<compile_context>
chip_gen: v5e
topology: v5e:2x2
jax: 0.10.0
libtpu: 0.0.40
codegen_flags: <defaults>
</compile_context>

<pallas_src>
import functools

import jax
import jax.numpy as jnp
from jax.experimental import pallas as pl
from jax.experimental.pallas import tpu as pltpu

# bf16 matmul operands (f32 accumulation). Set to jnp.float32 for bit-faithful f32.
MATMUL_DTYPE = jnp.bfloat16
# Explicit scoped-VMEM budget: fits v5e/v6e (128 MiB physical) and v7x (64 MiB).
VMEM_LIMIT_BYTES = 32 * 1024 * 1024
# Row-tile targets (sized so double-buffered tiles + resident weights stay far
# below the v7x 64 MiB budget at these feature dims).
MAX_ROW_TILE = 512      # scale-0 MLP: rows of the flattened (B*S, D) input
MAX_Q_TILE = 256        # attention scales: query rows per grid step (K/V whole)


def _pick_tile(n, max_tile):
    """Largest tile <= max_tile that divides n and is a multiple of 8 (TPU sublane),
    falling back to the full extent (always legal as a block shape)."""
    if n <= max_tile:
        return n
    t = (max_tile // 8) * 8
    while t >= 8:
        if n % t == 0:
            return t
        t -= 8
    return n


# ----------------------------------------------------------------------------
# Shared MLP block: Linear(D->dim) -> LayerNorm(dim) -> ReLU -> Linear(dim->D)
# ----------------------------------------------------------------------------
def _mlp_block(x, w1_ref, b1_ref, g_ref, beta_ref, w2_ref, b2_ref):
    h = jnp.dot(x.astype(MATMUL_DTYPE), w1_ref[...],
                preferred_element_type=jnp.float32) + b1_ref[...]
    mean = jnp.mean(h, axis=-1, keepdims=True)
    var = jnp.mean(jnp.square(h - mean), axis=-1, keepdims=True)   # biased, as nn.LayerNorm
    h = (h - mean) * jax.lax.rsqrt(var + 1e-5)
    h = h * g_ref[...] + beta_ref[...]
    h = jnp.maximum(h, 0.0)                                        # ReLU
    return jnp.dot(h.astype(MATMUL_DTYPE), w2_ref[...],
                   preferred_element_type=jnp.float32) + b2_ref[...]


# ----------------------------------------------------------------------------
# Kernel A: scale 0  (MLP + weighted-accumulator init), grid over row tiles of B*S
# ----------------------------------------------------------------------------
def scale0_kernel(x_ref, w1_ref, b1_ref, g_ref, beta_ref, w2_ref, b2_ref, w_ref,
                  out_ref, acc_ref):
    out = _mlp_block(x_ref[...], w1_ref, b1_ref, g_ref, beta_ref, w2_ref, b2_ref)
    out_ref[...] = out
    acc_ref[...] = w_ref[0] * out        # acc = softmax(scale_weights)[0] * out_0


def scale0_forward(x2d, sp, w_scalar, tm):
    M, D = x2d.shape
    dim = sp["w1"].shape[1]
    row_spec = pl.BlockSpec((tm, D), lambda i: (i, 0))

    def pin(shape):
        return pl.BlockSpec(shape, lambda i: (0,) * len(shape))

    return pl.pallas_call(
        scale0_kernel,
        out_shape=(jax.ShapeDtypeStruct((M, D), jnp.float32),
                   jax.ShapeDtypeStruct((M, D), jnp.float32)),
        grid=(M // tm,),
        in_specs=[row_spec,
                  pin((D, dim)), pin((1, dim)), pin((1, dim)), pin((1, dim)),
                  pin((dim, D)), pin((1, D)),
                  pl.BlockSpec(memory_space=pltpu.MemorySpace.SMEM)],
        out_specs=(row_spec, row_spec),
        compiler_params=pltpu.CompilerParams(
            dimension_semantics=("parallel",),
            vmem_limit_bytes=VMEM_LIMIT_BYTES),
    )(x2d, sp["w1"], sp["b1"], sp["g"], sp["beta"], sp["w2"], sp["b2"], w_scalar)


# ----------------------------------------------------------------------------
# Kernel B: scale i>0 (MLP + cross-scale MHA + residual + weighted accumulate)
# grid = (batch, query row tiles); K/V = full previous-scale output of the batch.
# ----------------------------------------------------------------------------
def scale_attn_kernel(x_ref, w1_ref, b1_ref, g_ref, beta_ref, w2_ref, b2_ref,
                      prev_ref,
                      wq_ref, bq_ref, wk_ref, bk_ref, wv_ref, bv_ref, wo_ref, bo_ref,
                      w_ref, acc_in_ref,
                      out_ref, acc_ref, *, num_heads):
    # --- scale processor on this query tile (row-wise, so tiling Q is exact) ---
    s_out = _mlp_block(x_ref[0], w1_ref, b1_ref, g_ref, beta_ref, w2_ref, b2_ref)  # (tq, D)
    prev = prev_ref[0]                                                             # (S, D)

    tq, D = s_out.shape
    s_out_m = s_out.astype(MATMUL_DTYPE)
    prev_m = prev.astype(MATMUL_DTYPE)

    # --- multihead attention: Q from s_out, K/V from previous scale output.
    # Per-head weight slabs (leading-dim ref slices) avoid lane slicing of
    # activations and the head concat; Wq/bq are already scaled by 1/sqrt(dh).
    attended = jnp.zeros((tq, D), dtype=jnp.float32)
    for h in range(num_heads):                                    # static unroll
        qh = jnp.dot(s_out_m, wq_ref[h], preferred_element_type=jnp.float32) + bq_ref[h]
        kh = jnp.dot(prev_m, wk_ref[h], preferred_element_type=jnp.float32) + bk_ref[h]
        vh = jnp.dot(prev_m, wv_ref[h], preferred_element_type=jnp.float32) + bv_ref[h]
        s = jnp.dot(qh.astype(MATMUL_DTYPE), kh.astype(MATMUL_DTYPE).T,
                    preferred_element_type=jnp.float32)           # (tq, S)
        s = s - jnp.max(s, axis=-1, keepdims=True)
        p = jnp.exp(s)
        p = p * pl.reciprocal(jnp.sum(p, axis=-1, keepdims=True), approx=True)
        ctx = jnp.dot(p.astype(MATMUL_DTYPE), vh.astype(MATMUL_DTYPE),
                      preferred_element_type=jnp.float32)         # (tq, dh)
        # distribute the output projection per head: concat @ Wo == sum_h ctx_h @ Wo_h
        attended = attended + jnp.dot(ctx.astype(MATMUL_DTYPE), wo_ref[h],
                                      preferred_element_type=jnp.float32)
    attended = attended + bo_ref[...]

    out = s_out + attended                                        # fused residual
    out_ref[0] = out
    acc_ref[0] = acc_in_ref[0] + w_ref[0] * out                   # fused weighted combine


def scale_with_attention(x3d, prev3d, acc3d, sp, attn, w_scalar, num_heads, tq):
    # TODO(synk): for very large S, tile the K/V axis flash-style (online softmax)
    # instead of holding the full (S, D) K/V and (tq, S) scores per head in VMEM.
    B, S, D = x3d.shape
    dim = sp["w1"].shape[1]
    dh = D // num_heads

    q_spec = pl.BlockSpec((1, tq, D), lambda b, qi: (b, qi, 0))   # this scale's rows
    kv_spec = pl.BlockSpec((1, S, D), lambda b, qi: (b, 0, 0))    # previous scale, full seq

    def pin(shape):
        return pl.BlockSpec(shape, lambda b, qi: (0,) * len(shape))

    return pl.pallas_call(
        functools.partial(scale_attn_kernel, num_heads=num_heads),
        out_shape=(jax.ShapeDtypeStruct((B, S, D), jnp.float32),
                   jax.ShapeDtypeStruct((B, S, D), jnp.float32)),
        grid=(B, S // tq),
        in_specs=[
            q_spec,                                               # x
            pin((D, dim)), pin((1, dim)), pin((1, dim)), pin((1, dim)),
            pin((dim, D)), pin((1, D)),                           # MLP params
            kv_spec,                                              # previous scale output
            pin((num_heads, D, dh)), pin((num_heads, 1, dh)),     # Wq, bq (pre-scaled)
            pin((num_heads, D, dh)), pin((num_heads, 1, dh)),     # Wk, bk
            pin((num_heads, D, dh)), pin((num_heads, 1, dh)),     # Wv, bv
            pin((num_heads, dh, D)), pin((1, D)),                 # Wo slabs, bo
            pl.BlockSpec(memory_space=pltpu.MemorySpace.SMEM),    # softmax(scale_weights)[i]
            q_spec,                                               # running accumulator (in)
        ],
        out_specs=(q_spec, q_spec),
        input_output_aliases={17: 1},                             # acc_in -> acc_out (in place)
        compiler_params=pltpu.CompilerParams(
            dimension_semantics=("parallel", "parallel"),
            vmem_limit_bytes=VMEM_LIMIT_BYTES),
    )(x3d,
      sp["w1"], sp["b1"], sp["g"], sp["beta"], sp["w2"], sp["b2"],
      prev3d,
      attn["wq_h"], attn["bq_h"], attn["wk_h"], attn["bk_h"],
      attn["wv_h"], attn["bv_h"], attn["wo_h"], attn["bo"],
      w_scalar, acc3d)


# ----------------------------------------------------------------------------
# Parameters (synthetic, deterministic) and wrapper-side preprocessing
# ----------------------------------------------------------------------------
def init_params(key, input_dim, num_scales, scale_factor):
    params = {"scales": []}
    for i in range(num_scales):
        dim = int(input_dim * (scale_factor ** i))
        key, k1, k2, k3, k4 = jax.random.split(key, 5)
        params["scales"].append({
            "w1": 0.05 * jax.random.normal(k1, (input_dim, dim), jnp.float32),
            "b1": 0.01 * jax.random.normal(k2, (1, dim), jnp.float32),
            "g": jnp.ones((1, dim), jnp.float32),
            "beta": jnp.zeros((1, dim), jnp.float32),
            "w2": 0.05 * jax.random.normal(k3, (dim, input_dim), jnp.float32),
            "b2": 0.01 * jax.random.normal(k4, (1, input_dim), jnp.float32),
        })
    key, kq, kk, kv, ko = jax.random.split(key, 5)
    D = input_dim
    params["attn"] = {
        "wq": 0.05 * jax.random.normal(kq, (D, D), jnp.float32),  # (in, out)
        "wk": 0.05 * jax.random.normal(kk, (D, D), jnp.float32),
        "wv": 0.05 * jax.random.normal(kv, (D, D), jnp.float32),
        "bq": jnp.zeros((1, D), jnp.float32),
        "bk": jnp.zeros((1, D), jnp.float32),
        "bv": jnp.zeros((1, D), jnp.float32),
        "wo": 0.05 * jax.random.normal(ko, (D, D), jnp.float32),  # (in=concat, out)
        "bo": jnp.zeros((1, D), jnp.float32),
    }
    params["scale_weights"] = jnp.ones((num_scales,), jnp.float32) / num_scales
    return params


def _split_heads_in(w, b, num_heads):
    """(D, D)/(1, D) with out-dim split by head -> (H, D, dh)/(H, 1, dh) slabs."""
    D = w.shape[0]
    dh = w.shape[1] // num_heads
    w_h = w.reshape(D, num_heads, dh).transpose(1, 0, 2)
    b_h = b.reshape(1, num_heads, dh).transpose(1, 0, 2)
    return w_h, b_h


def prepare_params(params, num_heads):
    """One-time, outside the hot path: bf16 weights, per-head attention slabs,
    and 1/sqrt(dh) folded into Wq/bq."""
    prep = {"scale_weights": params["scale_weights"], "scales": []}
    for sp in params["scales"]:
        prep["scales"].append({
            "w1": sp["w1"].astype(MATMUL_DTYPE), "b1": sp["b1"],
            "g": sp["g"], "beta": sp["beta"],
            "w2": sp["w2"].astype(MATMUL_DTYPE), "b2": sp["b2"],
        })
    a = params["attn"]
    D = a["wq"].shape[0]
    dh = D // num_heads
    scale = 1.0 / (dh ** 0.5)
    wq_h, bq_h = _split_heads_in(a["wq"] * scale, a["bq"] * scale, num_heads)
    wk_h, bk_h = _split_heads_in(a["wk"], a["bk"], num_heads)
    wv_h, bv_h = _split_heads_in(a["wv"], a["bv"], num_heads)
    wo_h = a["wo"].reshape(num_heads, dh, D)
    prep["attn"] = {
        "wq_h": wq_h.astype(MATMUL_DTYPE), "bq_h": bq_h,
        "wk_h": wk_h.astype(MATMUL_DTYPE), "bk_h": bk_h,
        "wv_h": wv_h.astype(MATMUL_DTYPE), "bv_h": bv_h,
        "wo_h": wo_h.astype(MATMUL_DTYPE), "bo": a["bo"],
    }
    return prep


# ----------------------------------------------------------------------------
# Full forward pass
# ----------------------------------------------------------------------------
def multi_scale_operator_forward(x, params, num_heads):
    B, S, D = x.shape
    M = B * S
    norm_w = jax.nn.softmax(params["scale_weights"])   # tiny glue (NS elements)

    tm = _pick_tile(M, MAX_ROW_TILE)
    tq = _pick_tile(S, MAX_Q_TILE)

    # Scale 0: MLP + accumulator init, over flattened rows.
    out0, acc = scale0_forward(x.reshape(M, D), params["scales"][0], norm_w[0:1], tm)
    prev = out0.reshape(B, S, D)
    acc = acc.reshape(B, S, D)

    # Scales 1..NS-1: fused MLP + cross-scale attention + residual + accumulate.
    attn = params["attn"]
    for i in range(1, len(params["scales"])):
        prev, acc = scale_with_attention(x, prev, acc, params["scales"][i], attn,
                                         norm_w[i:i + 1], num_heads, tq)
    return acc


if __name__ == "__main__":
    B, S, D = 2, 8, 32
    NUM_SCALES, SCALE_FACTOR, HEADS = 4, 2.0, 4

    key = jax.random.PRNGKey(0)
    key, kx = jax.random.split(key)
    x = jax.random.normal(kx, (B, S, D), jnp.float32)

    raw_params = init_params(key, D, NUM_SCALES, SCALE_FACTOR)
    params = prepare_params(raw_params, HEADS)

    fwd = jax.jit(multi_scale_operator_forward, static_argnums=(2,))
    out = fwd(x, params, HEADS)
    out = jax.block_until_ready(out)

    assert out.shape == (B, S, D)
    assert bool(jnp.all(jnp.isfinite(out)))
    print("KERNEL_OK")
</pallas_src>

<mosaic_0001>
module attributes {stable_mosaic.version = 11 : i64} {
  func.func @scale0_kernel(%arg0: i32, %arg1: memref<16x32xf32, #tpu.memory_space<vmem>>, %arg2: memref<32x32xbf16, #tpu.memory_space<vmem>>, %arg3: memref<1x32xf32, #tpu.memory_space<vmem>>, %arg4: memref<1x32xf32, #tpu.memory_space<vmem>>, %arg5: memref<1x32xf32, #tpu.memory_space<vmem>>, %arg6: memref<32x32xbf16, #tpu.memory_space<vmem>>, %arg7: memref<1x32xf32, #tpu.memory_space<vmem>>, %arg8: memref<1xf32, #tpu.memory_space<smem>>, %arg9: memref<16x32xf32, #tpu.memory_space<vmem>>, %arg10: memref<16x32xf32, #tpu.memory_space<vmem>>) attributes {dimension_semantics = [#tpu.dimension_semantics<parallel>], iteration_bounds = array<i64: 1>, scalar_prefetch = 0 : i64, scratch_operands = 0 : i64, tpu.core_type = #tpu.core_type<tc>, window_params = [{transform_indices = @transform_0, window_bounds = array<i64: 16, 32>}, {pipeline_mode = #tpu.pipeline_mode<synchronous>, transform_indices = @transform_1, window_bounds = array<i64: 32, 32>}, {pipeline_mode = #tpu.pipeline_mode<synchronous>, transform_indices = @transform_2, window_bounds = array<i64: 1, 32>}, {pipeline_mode = #tpu.pipeline_mode<synchronous>, transform_indices = @transform_3, window_bounds = array<i64: 1, 32>}, {pipeline_mode = #tpu.pipeline_mode<synchronous>, transform_indices = @transform_4, window_bounds = array<i64: 1, 32>}, {pipeline_mode = #tpu.pipeline_mode<synchronous>, transform_indices = @transform_5, window_bounds = array<i64: 32, 32>}, {pipeline_mode = #tpu.pipeline_mode<synchronous>, transform_indices = @transform_6, window_bounds = array<i64: 1, 32>}, {transform_indices = @transform_7, window_bounds = array<i64: 1>}, {transform_indices = @transform_8, window_bounds = array<i64: 16, 32>}, {transform_indices = @transform_9, window_bounds = array<i64: 16, 32>}]} {
    %c0 = arith.constant 0 : index
    %c0_0 = arith.constant 0 : index
    %0 = vector.load %arg1[%c0, %c0_0] : memref<16x32xf32, #tpu.memory_space<vmem>>, vector<16x32xf32>
    %1 = arith.truncf %0 : vector<16x32xf32> to vector<16x32xbf16>
    %c0_1 = arith.constant 0 : index
    %c0_2 = arith.constant 0 : index
    %2 = vector.load %arg2[%c0_1, %c0_2] : memref<32x32xbf16, #tpu.memory_space<vmem>>, vector<32x32xbf16>
    %cst = arith.constant dense<0.000000e+00> : vector<16x32xf32>
    %3 = tpu.matmul %1, %2, %cst {dimension_numbers = #tpu.dot_dimension_numbers<[1], [0], [0], [1], [0, 0, 1, 1], [], []>} : vector<16x32xbf16>, vector<32x32xbf16>, vector<16x32xf32> -> vector<16x32xf32>
    %c0_3 = arith.constant 0 : index
    %c0_4 = arith.constant 0 : index
    %4 = vector.load %arg3[%c0_3, %c0_4] : memref<1x32xf32, #tpu.memory_space<vmem>>, vector<1x32xf32>
    %5 = vector.broadcast %4 : vector<1x32xf32> to vector<16x32xf32>
    %6 = arith.addf %3, %5 : vector<16x32xf32>
    %cst_5 = arith.constant dense<0.000000e+00> : vector<16xf32>
    %7 = vector.multi_reduction <add>, %6, %cst_5 [1] : vector<16x32xf32> to vector<16xf32>
    %8 = vector.shape_cast %7 : vector<16xf32> to vector<16x1xf32>
    %cst_6 = arith.constant 3.200000e+01 : f32
    %9 = vector.broadcast %cst_6 : f32 to vector<16x1xf32>
    %10 = arith.divf %8, %9 : vector<16x1xf32>
    %11 = vector.broadcast %10 : vector<16x1xf32> to vector<16x32xf32>
    %12 = arith.subf %6, %11 : vector<16x32xf32>
    %13 = arith.mulf %12, %12 : vector<16x32xf32>
    %cst_7 = arith.constant dense<0.000000e+00> : vector<16xf32>
    %14 = vector.multi_reduction <add>, %13, %cst_7 [1] : vector<16x32xf32> to vector<16xf32>
    %15 = vector.shape_cast %14 : vector<16xf32> to vector<16x1xf32>
    %cst_8 = arith.constant 3.200000e+01 : f32
    %16 = vector.broadcast %cst_8 : f32 to vector<16x1xf32>
    %17 = arith.divf %15, %16 : vector<16x1xf32>
    %18 = vector.broadcast %10 : vector<16x1xf32> to vector<16x32xf32>
    %19 = arith.subf %6, %18 : vector<16x32xf32>
    %cst_9 = arith.constant 9.99999974E-6 : f32
    %20 = vector.broadcast %cst_9 : f32 to vector<16x1xf32>
    %21 = arith.addf %17, %20 : vector<16x1xf32>
    %22 = math.rsqrt %21 : vector<16x1xf32>
    %23 = vector.broadcast %22 : vector<16x1xf32> to vector<16x32xf32>
    %24 = arith.mulf %19, %23 : vector<16x32xf32>
    %c0_10 = arith.constant 0 : index
    %c0_11 = arith.constant 0 : index
    %25 = vector.load %arg4[%c0_10, %c0_11] : memref<1x32xf32, #tpu.memory_space<vmem>>, vector<1x32xf32>
    %26 = vector.broadcast %25 : vector<1x32xf32> to vector<16x32xf32>
    %27 = arith.mulf %24, %26 : vector<16x32xf32>
    %c0_12 = arith.constant 0 : index
    %c0_13 = arith.constant 0 : index
    %28 = vector.load %arg5[%c0_12, %c0_13] : memref<1x32xf32, #tpu.memory_space<vmem>>, vector<1x32xf32>
    %29 = vector.broadcast %28 : vector<1x32xf32> to vector<16x32xf32>
    %30 = arith.addf %27, %29 : vector<16x32xf32>
    %cst_14 = arith.constant 0.000000e+00 : f32
    %31 = vector.broadcast %cst_14 : f32 to vector<16x32xf32>
    %32 = arith.maximumf %30, %31 : vector<16x32xf32>
    %33 = arith.truncf %32 : vector<16x32xf32> to vector<16x32xbf16>
    %c0_15 = arith.constant 0 : index
    %c0_16 = arith.constant 0 : index
    %34 = vector.load %arg6[%c0_15, %c0_16] : memref<32x32xbf16, #tpu.memory_space<vmem>>, vector<32x32xbf16>
    %cst_17 = arith.constant dense<0.000000e+00> : vector<16x32xf32>
    %35 = tpu.matmul %33, %34, %cst_17 {dimension_numbers = #tpu.dot_dimension_numbers<[1], [0], [0], [1], [0, 0, 1, 1], [], []>} : vector<16x32xbf16>, vector<32x32xbf16>, vector<16x32xf32> -> vector<16x32xf32>
    %c0_18 = arith.constant 0 : index
    %c0_19 = arith.constant 0 : index
    %36 = vector.load %arg7[%c0_18, %c0_19] : memref<1x32xf32, #tpu.memory_space<vmem>>, vector<1x32xf32>
    %37 = vector.broadcast %36 : vector<1x32xf32> to vector<16x32xf32>
    %38 = arith.addf %35, %37 : vector<16x32xf32>
    %c0_20 = arith.constant 0 : index
    %c0_21 = arith.constant 0 : index
    %39 = vector.load %arg9[%c0_20, %c0_21] : memref<16x32xf32, #tpu.memory_space<vmem>>, vector<16x32xf32>
    tpu.vector_store %arg9[%c0_20, %c0_21], %38 {strides = array<i32>} : memref<16x32xf32, #tpu.memory_space<vmem>>, vector<16x32xf32>,
    %c0_22 = arith.constant 0 : index
    %40 = memref.load %arg8[%c0_22] : memref<1xf32, #tpu.memory_space<smem>>
    %41 = vector.broadcast %40 : f32 to vector<16x32xf32>
    %42 = arith.mulf %41, %38 : vector<16x32xf32>
    %c0_23 = arith.constant 0 : index
    %c0_24 = arith.constant 0 : index
    %43 = vector.load %arg10[%c0_23, %c0_24] : memref<16x32xf32, #tpu.memory_space<vmem>>, vector<16x32xf32>
    tpu.vector_store %arg10[%c0_23, %c0_24], %42 {strides = array<i32>} : memref<16x32xf32, #tpu.memory_space<vmem>>, vector<16x32xf32>,
    return
  }
  func.func @transform_0(%arg0: i32) -> (i32, i32) {
    %c0_i32 = arith.constant 0 : i32
    %c0_i32_0 = arith.constant 0 : i32
    return %arg0, %c0_i32 : i32, i32
  }
  func.func @transform_1(%arg0: i32) -> (i32, i32) {
    %c0_i32 = arith.constant 0 : i32
    %c0_i32_0 = arith.constant 0 : i32
    %c0_i32_1 = arith.constant 0 : i32
    return %c0_i32, %c0_i32_0 : i32, i32
  }
  func.func @transform_2(%arg0: i32) -> (i32, i32) {
    %c0_i32 = arith.constant 0 : i32
    %c0_i32_0 = arith.constant 0 : i32
    %c0_i32_1 = arith.constant 0 : i32
    return %c0_i32, %c0_i32_0 : i32, i32
  }
  func.func @transform_3(%arg0: i32) -> (i32, i32) {
    %c0_i32 = arith.constant 0 : i32
    %c0_i32_0 = arith.constant 0 : i32
    %c0_i32_1 = arith.constant 0 : i32
    return %c0_i32, %c0_i32_0 : i32, i32
  }
  func.func @transform_4(%arg0: i32) -> (i32, i32) {
    %c0_i32 = arith.constant 0 : i32
    %c0_i32_0 = arith.constant 0 : i32
    %c0_i32_1 = arith.constant 0 : i32
    return %c0_i32, %c0_i32_0 : i32, i32
  }
  func.func @transform_5(%arg0: i32) -> (i32, i32) {
    %c0_i32 = arith.constant 0 : i32
    %c0_i32_0 = arith.constant 0 : i32
    %c0_i32_1 = arith.constant 0 : i32
    return %c0_i32, %c0_i32_0 : i32, i32
  }
  func.func @transform_6(%arg0: i32) -> (i32, i32) {
    %c0_i32 = arith.constant 0 : i32
    %c0_i32_0 = arith.constant 0 : i32
    %c0_i32_1 = arith.constant 0 : i32
    return %c0_i32, %c0_i32_0 : i32, i32
  }
  func.func @transform_7(%arg0: i32) -> i32 {
    %c0_i32 = arith.constant 0 : i32
    %c0_i32_0 = arith.constant 0 : i32
    return %c0_i32 : i32
  }
  func.func @transform_8(%arg0: i32) -> (i32, i32) {
    %c0_i32 = arith.constant 0 : i32
    %c0_i32_0 = arith.constant 0 : i32
    return %arg0, %c0_i32 : i32, i32
  }
  func.func @transform_9(%arg0: i32) -> (i32, i32) {
    %c0_i32 = arith.constant 0 : i32
    %c0_i32_0 = arith.constant 0 : i32
    return %arg0, %c0_i32 : i32, i32
  }
}

module attributes {stable_mosaic.version = 11 : i64} {
  func.func @scale_attn_kernel(%arg0: i32, %arg1: i32, %arg2: memref<1x8x32xf32, #tpu.memory_space<vmem>>, %arg3: memref<32x128xbf16, #tpu.memory_space<vmem>>, %arg4: memref<1x128xf32, #tpu.memory_space<vmem>>, %arg5: memref<1x128xf32, #tpu.memory_space<vmem>>, %arg6: memref<1x128xf32, #tpu.memory_space<vmem>>, %arg7: memref<128x32xbf16, #tpu.memory_space<vmem>>, %arg8: memref<1x32xf32, #tpu.memory_space<vmem>>, %arg9: memref<1x8x32xf32, #tpu.memory_space<vmem>>, %arg10: memref<4x32x8xbf16, #tpu.memory_space<vmem>>, %arg11: memref<4x1x8xf32, #tpu.memory_space<vmem>>, %arg12: memref<4x32x8xbf16, #tpu.memory_space<vmem>>, %arg13: memref<4x1x8xf32, #tpu.memory_space<vmem>>, %arg14: memref<4x32x8xbf16, #tpu.memory_space<vmem>>, %arg15: memref<4x1x8xf32, #tpu.memory_space<vmem>>, %arg16: memref<4x8x32xbf16, #tpu.memory_space<vmem>>, %arg17: memref<1x32xf32, #tpu.memory_space<vmem>>, %arg18: memref<1xf32, #tpu.memory_space<smem>>, %arg19: memref<1x8x32xf32, #tpu.memory_space<vmem>>, %arg20: memref<1x8x32xf32, #tpu.memory_space<vmem>>, %arg21: memref<1x8x32xf32, #tpu.memory_space<vmem>>) attributes {dimension_semantics = [#tpu.dimension_semantics<parallel>, #tpu.dimension_semantics<parallel>], iteration_bounds = array<i64: 2, 1>, scalar_prefetch = 0 : i64, scratch_operands = 0 : i64, tpu.core_type = #tpu.core_type<tc>, window_params = [{transform_indices = @transform_0, window_bounds = array<i64: 1, 8, 32>}, {pipeline_mode = #tpu.pipeline_mode<synchronous>, transform_indices = @transform_1, window_bounds = array<i64: 32, 128>}, {pipeline_mode = #tpu.pipeline_mode<synchronous>, transform_indices = @transform_2, window_bounds = array<i64: 1, 128>}, {pipeline_mode = #tpu.pipeline_mode<synchronous>, transform_indices = @transform_3, window_bounds = array<i64: 1, 128>}, {pipeline_mode = #tpu.pipeline_mode<synchronous>, transform_indices = @transform_4, window_bounds = array<i64: 1, 128>}, {pipeline_mode = #tpu.pipeline_mode<synchronous>, transform_indices = @transform_5, window_bounds = array<i64: 128, 32>}, {pipeline_mode = #tpu.pipeline_mode<synchronous>, transform_indices = @transform_6, window_bounds = array<i64: 1, 32>}, {transform_indices = @transform_7, window_bounds = array<i64: 1, 8, 32>}, {pipeline_mode = #tpu.pipeline_mode<synchronous>, transform_indices = @transform_8, window_bounds = array<i64: 4, 32, 8>}, {pipeline_mode = #tpu.pipeline_mode<synchronous>, transform_indices = @transform_9, window_bounds = array<i64: 4, 1, 8>}, {pipeline_mode = #tpu.pipeline_mode<synchronous>, transform_indices = @transform_10, window_bounds = array<i64: 4, 32, 8>}, {pipeline_mode = #tpu.pipeline_mode<synchronous>, transform_indices = @transform_11, window_bounds = array<i64: 4, 1, 8>}, {pipeline_mode = #tpu.pipeline_mode<synchronous>, transform_indices = @transform_12, window_bounds = array<i64: 4, 32, 8>}, {pipeline_mode = #tpu.pipeline_mode<synchronous>, transform_indices = @transform_13, window_bounds = array<i64: 4, 1, 8>}, {pipeline_mode = #tpu.pipeline_mode<synchronous>, transform_indices = @transform_14, window_bounds = array<i64: 4, 8, 32>}, {pipeline_mode = #tpu.pipeline_mode<synchronous>, transform_indices = @transform_15, window_bounds = array<i64: 1, 32>}, {transform_indices = @transform_16, window_bounds = array<i64: 1>}, {transform_indices = @transform_17, window_bounds = array<i64: 1, 8, 32>}, {transform_indices = @transform_18, window_bounds = array<i64: 1, 8, 32>}, {transform_indices = @transform_19, window_bounds = array<i64: 1, 8, 32>}]} {
    %c0 = arith.constant 0 : index
    %c0_0 = arith.constant 0 : index
    %c0_1 = arith.constant 0 : index
    %0 = vector.load %arg2[%c0, %c0_0, %c0_1] : memref<1x8x32xf32, #tpu.memory_space<vmem>>, vector<1x8x32xf32>
    %1 = vector.shape_cast %0 : vector<1x8x32xf32> to vector<8x32xf32>
    %2 = arith.truncf %1 : vector<8x32xf32> to vector<8x32xbf16>
    %c0_2 = arith.constant 0 : index
    %c0_3 = arith.constant 0 : index
    %3 = vector.load %arg3[%c0_2, %c0_3] : memref<32x128xbf16, #tpu.memory_space<vmem>>, vector<32x128xbf16>
    %cst = arith.constant dense<0.000000e+00> : vector<8x128xf32>
    %4 = tpu.matmul %2, %3, %cst {dimension_numbers = #tpu.dot_dimension_numbers<[1], [0], [0], [1], [0, 0, 1, 1], [], []>} : vector<8x32xbf16>, vector<32x128xbf16>, vector<8x128xf32> -> vector<8x128xf32>
    %c0_4 = arith.constant 0 : index
    %c0_5 = arith.constant 0 : index
    %5 = vector.load %arg4[%c0_4, %c0_5] : memref<1x128xf32, #tpu.memory_space<vmem>>, vector<1x128xf32>
    %6 = vector.broadcast %5 : vector<1x128xf32> to vector<8x128xf32>
    %7 = arith.addf %4, %6 : vector<8x128xf32>
    %cst_6 = arith.constant dense<0.000000e+00> : vector<8xf32>
    %8 = vector.multi_reduction <add>, %7, %cst_6 [1] : vector<8x128xf32> to vector<8xf32>
    %9 = vector.shape_cast %8 : vector<8xf32> to vector<8x1xf32>
    %cst_7 = arith.constant 1.280000e+02 : f32
    %10 = vector.broadcast %cst_7 : f32 to vector<8x1xf32>
    %11 = arith.divf %9, %10 : vector<8x1xf32>
    %12 = vector.broadcast %11 : vector<8x1xf32> to vector<8x128xf32>
    %13 = arith.subf %7, %12 : vector<8x128xf32>
    %14 = arith.mulf %13, %13 : vector<8x128xf32>
    %cst_8 = arith.constant dense<0.000000e+00> : vector<8xf32>
    %15 = vector.multi_reduction <add>, %14, %cst_8 [1] : vector<8x128xf32> to vector<8xf32>
    %16 = vector.shape_cast %15 : vector<8xf32> to vector<8x1xf32>
    %cst_9 = arith.constant 1.280000e+02 : f32
    %17 = vector.broadcast %cst_9 : f32 to vector<8x1xf32>
    %18 = arith.divf %16, %17 : vector<8x1xf32>
    %19 = vector.broadcast %11 : vector<8x1xf32> to vector<8x128xf32>
    %20 = arith.subf %7, %19 : vector<8x128xf32>
    %cst_10 = arith.constant 9.99999974E-6 : f32
    %21 = vector.broadcast %cst_10 : f32 to vector<8x1xf32>
    %22 = arith.addf %18, %21 : vector<8x1xf32>
    %23 = math.rsqrt %22 : vector<8x1xf32>
    %24 = vector.broadcast %23 : vector<8x1xf32> to vector<8x128xf32>
    %25 = arith.mulf %20, %24 : vector<8x128xf32>
    %c0_11 = arith.constant 0 : index
    %c0_12 = arith.constant 0 : index
    %26 = vector.load %arg5[%c0_11, %c0_12] : memref<1x128xf32, #tpu.memory_space<vmem>>, vector<1x128xf32>
    %27 = vector.broadcast %26 : vector<1x128xf32> to vector<8x128xf32>
    %28 = arith.mulf %25, %27 : vector<8x128xf32>
    %c0_13 = arith.constant 0 : index
    %c0_14 = arith.constant 0 : index
    %29 = vector.load %arg6[%c0_13, %c0_14] : memref<1x128xf32, #tpu.memory_space<vmem>>, vector<1x128xf32>
    %30 = vector.broadcast %29 : vector<1x128xf32> to vector<8x128xf32>
    %31 = arith.addf %28, %30 : vector<8x128xf32>
    %cst_15 = arith.constant 0.000000e+00 : f32
    %32 = vector.broadcast %cst_15 : f32 to vector<8x128xf32>
    %33 = arith.maximumf %31, %32 : vector<8x128xf32>
    %34 = arith.truncf %33 : vector<8x128xf32> to vector<8x128xbf16>
    %c0_16 = arith.constant 0 : index
    %c0_17 = arith.constant 0 : index
    %35 = vector.load %arg7[%c0_16, %c0_17] : memref<128x32xbf16, #tpu.memory_space<vmem>>, vector<128x32xbf16>
    %cst_18 = arith.constant dense<0.000000e+00> : vector<8x32xf32>
    %36 = tpu.matmul %34, %35, %cst_18 {dimension_numbers = #tpu.dot_dimension_numbers<[1], [0], [0], [1], [0, 0, 1, 1], [], []>} : vector<8x128xbf16>, vector<128x32xbf16>, vector<8x32xf32> -> vector<8x32xf32>
    %c0_19 = arith.constant 0 : index
    %c0_20 = arith.constant 0 : index
    %37 = vector.load %arg8[%c0_19, %c0_20] : memref<1x32xf32, #tpu.memory_space<vmem>>, vector<1x32xf32>
    %38 = vector.broadcast %37 : vector<1x32xf32> to vector<8x32xf32>
    %39 = arith.addf %36, %38 : vector<8x32xf32>
    %c0_21 = arith.constant 0 : index
    %c0_22 = arith.constant 0 : index
    %c0_23 = arith.constant 0 : index
    %40 = vector.load %arg9[%c0_21, %c0_22, %c0_23] : memref<1x8x32xf32, #tpu.memory_space<vmem>>, vector<1x8x32xf32>
    %41 = vector.shape_cast %40 : vector<1x8x32xf32> to vector<8x32xf32>
    %42 = arith.truncf %39 : vector<8x32xf32> to vector<8x32xbf16>
    %43 = arith.truncf %41 : vector<8x32xf32> to vector<8x32xbf16>
    %cst_24 = arith.constant 0.000000e+00 : f32
    %44 = vector.broadcast %cst_24 : f32 to vector<8x32xf32>
    %c0_25 = arith.constant 0 : index
    %c0_26 = arith.constant 0 : index
    %c0_27 = arith.constant 0 : index
    %45 = vector.load %arg10[%c0_25, %c0_26, %c0_27] : memref<4x32x8xbf16, #tpu.memory_space<vmem>>, vector<1x32x8xbf16>
    %46 = vector.shape_cast %45 : vector<1x32x8xbf16> to vector<32x8xbf16>
    %cst_28 = arith.constant dense<0.000000e+00> : vector<8x8xf32>
    %47 = tpu.matmul %42, %46, %cst_28 {dimension_numbers = #tpu.dot_dimension_numbers<[1], [0], [0], [1], [0, 0, 1, 1], [], []>} : vector<8x32xbf16>, vector<32x8xbf16>, vector<8x8xf32> -> vector<8x8xf32>
    %c0_29 = arith.constant 0 : index
    %c0_30 = arith.constant 0 : index
    %c0_31 = arith.constant 0 : index
    %48 = vector.load %arg11[%c0_29, %c0_30, %c0_31] : memref<4x1x8xf32, #tpu.memory_space<vmem>>, vector<1x1x8xf32>
    %49 = vector.shape_cast %48 : vector<1x1x8xf32> to vector<1x8xf32>
    %50 = vector.broadcast %49 : vector<1x8xf32> to vector<8x8xf32>
    %51 = arith.addf %47, %50 : vector<8x8xf32>
    %c0_32 = arith.constant 0 : index
    %c0_33 = arith.constant 0 : index
    %c0_34 = arith.constant 0 : index
    %52 = vector.load %arg12[%c0_32, %c0_33, %c0_34] : memref<4x32x8xbf16, #tpu.memory_space<vmem>>, vector<1x32x8xbf16>
    %53 = vector.shape_cast %52 : vector<1x32x8xbf16> to vector<32x8xbf16>
    %cst_35 = arith.constant dense<0.000000e+00> : vector<8x8xf32>
    %54 = tpu.matmul %43, %53, %cst_35 {dimension_numbers = #tpu.dot_dimension_numbers<[1], [0], [0], [1], [0, 0, 1, 1], [], []>} : vector<8x32xbf16>, vector<32x8xbf16>, vector<8x8xf32> -> vector<8x8xf32>
    %c0_36 = arith.constant 0 : index
    %c0_37 = arith.constant 0 : index
    %c0_38 = arith.constant 0 : index
    %55 = vector.load %arg13[%c0_36, %c0_37, %c0_38] : memref<4x1x8xf32, #tpu.memory_space<vmem>>, vector<1x1x8xf32>
    %56 = vector.shape_cast %55 : vector<1x1x8xf32> to vector<1x8xf32>
    %57 = vector.broadcast %56 : vector<1x8xf32> to vector<8x8xf32>
    %58 = arith.addf %54, %57 : vector<8x8xf32>
    %c0_39 = arith.constant 0 : index
    %c0_40 = arith.constant 0 : index
    %c0_41 = arith.constant 0 : index
    %59 = vector.load %arg14[%c0_39, %c0_40, %c0_41] : memref<4x32x8xbf16, #tpu.memory_space<vmem>>, vector<1x32x8xbf16>
    %60 = vector.shape_cast %59 : vector<1x32x8xbf16> to vector<32x8xbf16>
    %cst_42 = arith.constant dense<0.000000e+00> : vector<8x8xf32>
    %61 = tpu.matmul %43, %60, %cst_42 {dimension_numbers = #tpu.dot_dimension_numbers<[1], [0], [0], [1], [0, 0, 1, 1], [], []>} : vector<8x32xbf16>, vector<32x8xbf16>, vector<8x8xf32> -> vector<8x8xf32>
    %c0_43 = arith.constant 0 : index
    %c0_44 = arith.constant 0 : index
    %c0_45 = arith.constant 0 : index
    %62 = vector.load %arg15[%c0_43, %c0_44, %c0_45] : memref<4x1x8xf32, #tpu.memory_space<vmem>>, vector<1x1x8xf32>
    %63 = vector.shape_cast %62 : vector<1x1x8xf32> to vector<1x8xf32>
    %64 = vector.broadcast %63 : vector<1x8xf32> to vector<8x8xf32>
    %65 = arith.addf %61, %64 : vector<8x8xf32>
    %66 = arith.truncf %51 : vector<8x8xf32> to vector<8x8xbf16>
    %67 = arith.truncf %58 : vector<8x8xf32> to vector<8x8xbf16>
    %68 = tpu.transpose %67, [1, 0] : vector<8x8xbf16> -> vector<8x8xbf16>
    %cst_46 = arith.constant dense<0.000000e+00> : vector<8x8xf32>
    %69 = tpu.matmul %66, %68, %cst_46 {dimension_numbers = #tpu.dot_dimension_numbers<[1], [0], [0], [1], [0, 0, 1, 1], [], []>} : vector<8x8xbf16>, vector<8x8xbf16>, vector<8x8xf32> -> vector<8x8xf32>
    %cst_47 = arith.constant dense<0xFF800000> : vector<8xf32>
    %70 = vector.multi_reduction <maximumf>, %69, %cst_47 [1] : vector<8x8xf32> to vector<8xf32>
    %71 = vector.shape_cast %70 : vector<8xf32> to vector<8x1xf32>
    %72 = vector.broadcast %71 : vector<8x1xf32> to vector<8x8xf32>
    %73 = arith.subf %69, %72 : vector<8x8xf32>
    %74 = math.exp %73 : vector<8x8xf32>
    %cst_48 = arith.constant dense<0.000000e+00> : vector<8xf32>
    %75 = vector.multi_reduction <add>, %74, %cst_48 [1] : vector<8x8xf32> to vector<8xf32>
    %76 = vector.shape_cast %75 : vector<8xf32> to vector<8x1xf32>
    %77 = tpu.reciprocal %76 {approx = true} : vector<8x1xf32> -> vector<8x1xf32>
    %78 = vector.broadcast %77 : vector<8x1xf32> to vector<8x8xf32>
    %79 = arith.mulf %74, %78 : vector<8x8xf32>
    %80 = arith.truncf %79 : vector<8x8xf32> to vector<8x8xbf16>
    %81 = arith.truncf %65 : vector<8x8xf32> to vector<8x8xbf16>
    %cst_49 = arith.constant dense<0.000000e+00> : vector<8x8xf32>
    %82 = tpu.matmul %80, %81, %cst_49 {dimension_numbers = #tpu.dot_dimension_numbers<[1], [0], [0], [1], [0, 0, 1, 1], [], []>} : vector<8x8xbf16>, vector<8x8xbf16>, vector<8x8xf32> -> vector<8x8xf32>
    %83 = arith.truncf %82 : vector<8x8xf32> to vector<8x8xbf16>
    %c0_50 = arith.constant 0 : index
    %c0_51 = arith.constant 0 : index
    %c0_52 = arith.constant 0 : index
    %84 = vector.load %arg16[%c0_50, %c0_51, %c0_52] : memref<4x8x32xbf16, #tpu.memory_space<vmem>>, vector<1x8x32xbf16>
    %85 = vector.shape_cast %84 : vector<1x8x32xbf16> to vector<8x32xbf16>
    %cst_53 = arith.constant dense<0.000000e+00> : vector<8x32xf32>
    %86 = tpu.matmul %83, %85, %cst_53 {dimension_numbers = #tpu.dot_dimension_numbers<[1], [0], [0], [1], [0, 0, 1, 1], [], []>} : vector<8x8xbf16>, vector<8x32xbf16>, vector<8x32xf32> -> vector<8x32xf32>
    %87 = arith.addf %44, %86 : vector<8x32xf32>
    %c1 = arith.constant 1 : index
    %c0_54 = arith.constant 0 : index
    %c0_55 = arith.constant 0 : index
    %88 = vector.load %arg10[%c1, %c0_54, %c0_55] : memref<4x32x8xbf16, #tpu.memory_space<vmem>>, vector<1x32x8xbf16>
    %89 = vector.shape_cast %88 : vector<1x32x8xbf16> to vector<32x8xbf16>
    %cst_56 = arith.constant dense<0.000000e+00> : vector<8x8xf32>
    %90 = tpu.matmul %42, %89, %cst_56 {dimension_numbers = #tpu.dot_dimension_numbers<[1], [0], [0], [1], [0, 0, 1, 1], [], []>} : vector<8x32xbf16>, vector<32x8xbf16>, vector<8x8xf32> -> vector<8x8xf32>
    %c1_57 = arith.constant 1 : index
    %c0_58 = arith.constant 0 : index
    %c0_59 = arith.constant 0 : index
    %91 = vector.load %arg11[%c1_57, %c0_58, %c0_59] : memref<4x1x8xf32, #tpu.memory_space<vmem>>, vector<1x1x8xf32>
    %92 = vector.shape_cast %91 : vector<1x1x8xf32> to vector<1x8xf32>
    %93 = vector.broadcast %92 : vector<1x8xf32> to vector<8x8xf32>
    %94 = arith.addf %90, %93 : vector<8x8xf32>
    %c1_60 = arith.constant 1 : index
    %c0_61 = arith.constant 0 : index
    %c0_62 = arith.constant 0 : index
    %95 = vector.load %arg12[%c1_60, %c0_61, %c0_62] : memref<4x32x8xbf16, #tpu.memory_space<vmem>>, vector<1x32x8xbf16>
    %96 = vector.shape_cast %95 : vector<1x32x8xbf16> to vector<32x8xbf16>
    %cst_63 = arith.constant dense<0.000000e+00> : vector<8x8xf32>
    %97 = tpu.matmul %43, %96, %cst_63 {dimension_numbers = #tpu.dot_dimension_numbers<[1], [0], [0], [1], [0, 0, 1, 1], [], []>} : vector<8x32xbf16>, vector<32x8xbf16>, vector<8x8xf32> -> vector<8x8xf32>
    %c1_64 = arith.constant 1 : index
    %c0_65 = arith.constant 0 : index
    %c0_66 = arith.constant 0 : index
    %98 = vector.load %arg13[%c1_64, %c0_65, %c0_66] : memref<4x1x8xf32, #tpu.memory_space<vmem>>, vector<1x1x8xf32>
    %99 = vector.shape_cast %98 : vector<1x1x8xf32> to vector<1x8xf32>
    %100 = vector.broadcast %99 : vector<1x8xf32> to vector<8x8xf32>
    %101 = arith.addf %97, %100 : vector<8x8xf32>
    %c1_67 = arith.constant 1 : index
    %c0_68 = arith.constant 0 : index
    %c0_69 = arith.constant 0 : index
    %102 = vector.load %arg14[%c1_67, %c0_68, %c0_69] : memref<4x32x8xbf16, #tpu.memory_space<vmem>>, vector<1x32x8xbf16>
    %103 = vector.shape_cast %102 : vector<1x32x8xbf16> to vector<32x8xbf16>
    %cst_70 = arith.constant dense<0.000000e+00> : vector<8x8xf32>
    %104 = tpu.matmul %43, %103, %cst_70 {dimension_numbers = #tpu.dot_dimension_numbers<[1], [0], [0], [1], [0, 0, 1, 1], [], []>} : vector<8x32xbf16>, vector<32x8xbf16>, vector<8x8xf32> -> vector<8x8xf32>
    %c1_71 = arith.constant 1 : index
    %c0_72 = arith.constant 0 : index
    %c0_73 = arith.constant 0 : index
    %105 = vector.load %arg15[%c1_71, %c0_72, %c0_73] : memref<4x1x8xf32, #tpu.memory_space<vmem>>, vector<1x1x8xf32>
    %106 = vector.shape_cast %105 : vector<1x1x8xf32> to vector<1x8xf32>
    %107 = vector.broadcast %106 : vector<1x8xf32> to vector<8x8xf32>
    %108 = arith.addf %104, %107 : vector<8x8xf32>
    %109 = arith.truncf %94 : vector<8x8xf32> to vector<8x8xbf16>
    %110 = arith.truncf %101 : vector<8x8xf32> to vector<8x8xbf16>
    %111 = tpu.transpose %110, [1, 0] : vector<8x8xbf16> -> vector<8x8xbf16>
    %cst_74 = arith.constant dense<0.000000e+00> : vector<8x8xf32>
    %112 = tpu.matmul %109, %111, %cst_74 {dimension_numbers = #tpu.dot_dimension_numbers<[1], [0], [0], [1], [0, 0, 1, 1], [], []>} : vector<8x8xbf16>, vector<8x8xbf16>, vector<8x8xf32> -> vector<8x8xf32>
    %cst_75 = arith.constant dense<0xFF800000> : vector<8xf32>
    %113 = vector.multi_reduction <maximumf>, %112, %cst_75 [1] : vector<8x8xf32> to vector<8xf32>
    %114 = vector.shape_cast %113 : vector<8xf32> to vector<8x1xf32>
    %115 = vector.broadcast %114 : vector<8x1xf32> to vector<8x8xf32>
    %116 = arith.subf %112, %115 : vector<8x8xf32>
    %117 = math.exp %116 : vector<8x8xf32>
    %cst_76 = arith.constant dense<0.000000e+00> : vector<8xf32>
    %118 = vector.multi_reduction <add>, %117, %cst_76 [1] : vector<8x8xf32> to vector<8xf32>
    %119 = vector.shape_cast %118 : vector<8xf32> to vector<8x1xf32>
    %120 = tpu.reciprocal %119 {approx = true} : vector<8x1xf32> -> vector<8x1xf32>
    %121 = vector.broadcast %120 : vector<8x1xf32> to vector<8x8xf32>
    %122 = arith.mulf %117, %121 : vector<8x8xf32>
    %123 = arith.truncf %122 : vector<8x8xf32> to vector<8x8xbf16>
    %124 = arith.truncf %108 : vector<8x8xf32> to vector<8x8xbf16>
    %cst_77 = arith.constant dense<0.000000e+00> : vector<8x8xf32>
    %125 = tpu.matmul %123, %124, %cst_77 {dimension_numbers = #tpu.dot_dimension_numbers<[1], [0], [0], [1], [0, 0, 1, 1], [], []>} : vector<8x8xbf16>, vector<8x8xbf16>, vector<8x8xf32> -> vector<8x8xf32>
    %126 = arith.truncf %125 : vector<8x8xf32> to vector<8x8xbf16>
    %c1_78 = arith.constant 1 : index
    %c0_79 = arith.constant 0 : index
    %c0_80 = arith.constant 0 : index
    %127 = vector.load %arg16[%c1_78, %c0_79, %c0_80] : memref<4x8x32xbf16, #tpu.memory_space<vmem>>, vector<1x8x32xbf16>
    %128 = vector.shape_cast %127 : vector<1x8x32xbf16> to vector<8x32xbf16>
    %cst_81 = arith.constant dense<0.000000e+00> : vector<8x32xf32>
    %129 = tpu.matmul %126, %128, %cst_81 {dimension_numbers = #tpu.dot_dimension_numbers<[1], [0], [0], [1], [0, 0, 1, 1], [], []>} : vector<8x8xbf16>, vector<8x32xbf16>, vector<8x32xf32> -> vector<8x32xf32>
    %130 = arith.addf %87, %129 : vector<8x32xf32>
    %c2 = arith.constant 2 : index
    %c0_82 = arith.constant 0 : index
    %c0_83 = arith.constant 0 : index
    %131 = vector.load %arg10[%c2, %c0_82, %c0_83] : memref<4x32x8xbf16, #tpu.memory_space<vmem>>, vector<1x32x8xbf16>
    %132 = vector.shape_cast %131 : vector<1x32x8xbf16> to vector<32x8xbf16>
    %cst_84 = arith.constant dense<0.000000e+00> : vector<8x8xf32>
    %133 = tpu.matmul %42, %132, %cst_84 {dimension_numbers = #tpu.dot_dimension_numbers<[1], [0], [0], [1], [0, 0, 1, 1], [], []>} : vector<8x32xbf16>, vector<32x8xbf16>, vector<8x8xf32> -> vector<8x8xf32>
    %c2_85 = arith.constant 2 : index
    %c0_86 = arith.constant 0 : index
    %c0_87 = arith.constant 0 : index
    %134 = vector.load %arg11[%c2_85, %c0_86, %c0_87] : memref<4x1x8xf32, #tpu.memory_space<vmem>>, vector<1x1x8xf32>
    %135 = vector.shape_cast %134 : vector<1x1x8xf32> to vector<1x8xf32>
    %136 = vector.broadcast %135 : vector<1x8xf32> to vector<8x8xf32>
    %137 = arith.addf %133, %136 : vector<8x8xf32>
    %c2_88 = arith.constant 2 : index
    %c0_89 = arith.constant 0 : index
    %c0_90 = arith.constant 0 : index
    %138 = vector.load %arg12[%c2_88, %c0_89, %c0_90] : memref<4x32x8xbf16, #tpu.memory_space<vmem>>, vector<1x32x8xbf16>
    %139 = vector.shape_cast %138 : vector<1x32x8xbf16> to vector<32x8xbf16>
    %cst_91 = arith.constant dense<0.000000e+00> : vector<8x8xf32>
    %140 = tpu.matmul %43, %139, %cst_91 {dimension_numbers = #tpu.dot_dimension_numbers<[1], [0], [0], [1], [0, 0, 1, 1], [], []>} : vector<8x32xbf16>, vector<32x8xbf16>, vector<8x8xf32> -> vector<8x8xf32>
    %c2_92 = arith.constant 2 : index
    %c0_93 = arith.constant 0 : index
    %c0_94 = arith.constant 0 : index
    %141 = vector.load %arg13[%c2_92, %c0_93, %c0_94] : memref<4x1x8xf32, #tpu.memory_space<vmem>>, vector<1x1x8xf32>
    %142 = vector.shape_cast %141 : vector<1x1x8xf32> to vector<1x8xf32>
    %143 = vector.broadcast %142 : vector<1x8xf32> to vector<8x8xf32>
    %144 = arith.addf %140, %143 : vector<8x8xf32>
    %c2_95 = arith.constant 2 : index
    %c0_96 = arith.constant 0 : index
    %c0_97 = arith.constant 0 : index
    %145 = vector.load %arg14[%c2_95, %c0_96, %c0_97] : memref<4x32x8xbf16, #tpu.memory_space<vmem>>, vector<1x32x8xbf16>
    %146 = vector.shape_cast %145 : vector<1x32x8xbf16> to vector<32x8xbf16>
    %cst_98 = arith.constant dense<0.000000e+00> : vector<8x8xf32>
    %147 = tpu.matmul %43, %146, %cst_98 {dimension_numbers = #tpu.dot_dimension_numbers<[1], [0], [0], [1], [0, 0, 1, 1], [], []>} : vector<8x32xbf16>, vector<32x8xbf16>, vector<8x8xf32> -> vector<8x8xf32>
    %c2_99 = arith.constant 2 : index
    %c0_100 = arith.constant 0 : index
    %c0_101 = arith.constant 0 : index
    %148 = vector.load %arg15[%c2_99, %c0_100, %c0_101] : memref<4x1x8xf32, #tpu.memory_space<vmem>>, vector<1x1x8xf32>
    %149 = vector.shape_cast %148 : vector<1x1x8xf32> to vector<1x8xf32>
    %150 = vector.broadcast %149 : vector<1x8xf32> to vector<8x8xf32>
    %151 = arith.addf %147, %150 : vector<8x8xf32>
    %152 = arith.truncf %137 : vector<8x8xf32> to vector<8x8xbf16>
    %153 = arith.truncf %144 : vector<8x8xf32> to vector<8x8xbf16>
    %154 = tpu.transpose %153, [1, 0] : vector<8x8xbf16> -> vector<8x8xbf16>
    %cst_102 = arith.constant dense<0.000000e+00> : vector<8x8xf32>
    %155 = tpu.matmul %152, %154, %cst_102 {dimension_numbers = #tpu.dot_dimension_numbers<[1], [0], [0], [1], [0, 0, 1, 1], [], []>} : vector<8x8xbf16>, vector<8x8xbf16>, vector<8x8xf32> -> vector<8x8xf32>
    %cst_103 = arith.constant dense<0xFF800000> : vector<8xf32>
    %156 = vector.multi_reduction <maximumf>, %155, %cst_103 [1] : vector<8x8xf32> to vector<8xf32>
    %157 = vector.shape_cast %156 : vector<8xf32> to vector<8x1xf32>
    %158 = vector.broadcast %157 : vector<8x1xf32> to vector<8x8xf32>
    %159 = arith.subf %155, %158 : vector<8x8xf32>
    %160 = math.exp %159 : vector<8x8xf32>
    %cst_104 = arith.constant dense<0.000000e+00> : vector<8xf32>
    %161 = vector.multi_reduction <add>, %160, %cst_104 [1] : vector<8x8xf32> to vector<8xf32>
    %162 = vector.shape_cast %161 : vector<8xf32> to vector<8x1xf32>
    %163 = tpu.reciprocal %162 {approx = true} : vector<8x1xf32> -> vector<8x1xf32>
    %164 = vector.broadcast %163 : vector<8x1xf32> to vector<8x8xf32>
    %165 = arith.mulf %160, %164 : vector<8x8xf32>
    %166 = arith.truncf %165 : vector<8x8xf32> to vector<8x8xbf16>
    %167 = arith.truncf %151 : vector<8x8xf32> to vector<8x8xbf16>
    %cst_105 = arith.constant dense<0.000000e+00> : vector<8x8xf32>
    %168 = tpu.matmul %166, %167, %cst_105 {dimension_numbers = #tpu.dot_dimension_numbers<[1], [0], [0], [1], [0, 0, 1, 1], [], []>} : vector<8x8xbf16>, vector<8x8xbf16>, vector<8x8xf32> -> vector<8x8xf32>
    %169 = arith.truncf %168 : vector<8x8xf32> to vector<8x8xbf16>
    %c2_106 = arith.constant 2 : index
    %c0_107 = arith.constant 0 : index
    %c0_108 = arith.constant 0 : index
    %170 = vector.load %arg16[%c2_106, %c0_107, %c0_108] : memref<4x8x32xbf16, #tpu.memory_space<vmem>>, vector<1x8x32xbf16>
    %171 = vector.shape_cast %170 : vector<1x8x32xbf16> to vector<8x32xbf16>
    %cst_109 = arith.constant dense<0.000000e+00> : vector<8x32xf32>
    %172 = tpu.matmul %169, %171, %cst_109 {dimension_numbers = #tpu.dot_dimension_numbers<[1], [0], [0], [1], [0, 0, 1, 1], [], []>} : vector<8x8xbf16>, vector<8x32xbf16>, vector<8x32xf32> -> vector<8x32xf32>
    %173 = arith.addf %130, %172 : vector<8x32xf32>
    %c3 = arith.constant 3 : index
    %c0_110 = arith.constant 0 : index
    %c0_111 = arith.constant 0 : index
    %174 = vector.load %arg10[%c3, %c0_110, %c0_111] : memref<4x32x8xbf16, #tpu.memory_space<vmem>>, vector<1x32x8xbf16>
    %175 = vector.shape_cast %174 : vector<1x32x8xbf16> to vector<32x8xbf16>
    %cst_112 = arith.constant dense<0.000000e+00> : vector<8x8xf32>
    %176 = tpu.matmul %42, %175, %cst_112 {dimension_numbers = #tpu.dot_dimension_numbers<[1], [0], [0], [1], [0, 0, 1, 1], [], []>} : vector<8x32xbf16>, vector<32x8xbf16>, vector<8x8xf32> -> vector<8x8xf32>
    %c3_113 = arith.constant 3 : index
    %c0_114 = arith.constant 0 : index
    %c0_115 = arith.constant 0 : index
    %177 = vector.load %arg11[%c3_113, %c0_114, %c0_115] : memref<4x1x8xf32, #tpu.memory_space<vmem>>, vector<1x1x8xf32>
    %178 = vector.shape_cast %177 : vector<1x1x8xf32> to vector<1x8xf32>
    %179 = vector.broadcast %178 : vector<1x8xf32> to vector<8x8xf32>
    %180 = arith.addf %176, %179 : vector<8x8xf32>
    %c3_116 = arith.constant 3 : index
    %c0_117 = arith.constant 0 : index
    %c0_118 = arith.constant 0 : index
    %181 = vector.load %arg12[%c3_116, %c0_117, %c0_118] : memref<4x32x8xbf16, #tpu.memory_space<vmem>>, vector<1x32x8xbf16>
    %182 = vector.shape_cast %181 : vector<1x32x8xbf16> to vector<32x8xbf16>
    %cst_119 = arith.constant dense<0.000000e+00> : vector<8x8xf32>
    %183 = tpu.matmul %43, %182, %cst_119 {dimension_numbers = #tpu.dot_dimension_numbers<[1], [0], [0], [1], [0, 0, 1, 1], [], []>} : vector<8x32xbf16>, vector<32x8xbf16>, vector<8x8xf32> -> vector<8x8xf32>
    %c3_120 = arith.constant 3 : index
    %c0_121 = arith.constant 0 : index
    %c0_122 = arith.constant 0 : index
    %184 = vector.load %arg13[%c3_120, %c0_121, %c0_122] : memref<4x1x8xf32, #tpu.memory_space<vmem>>, vector<1x1x8xf32>
    %185 = vector.shape_cast %184 : vector<1x1x8xf32> to vector<1x8xf32>
    %186 = vector.broadcast %185 : vector<1x8xf32> to vector<8x8xf32>
    %187 = arith.addf %183, %186 : vector<8x8xf32>
    %c3_123 = arith.constant 3 : index
    %c0_124 = arith.constant 0 : index
    %c0_125 = arith.constant 0 : index
    %188 = vector.load %arg14[%c3_123, %c0_124, %c0_125] : memref<4x32x8xbf16, #tpu.memory_space<vmem>>, vector<1x32x8xbf16>
    %189 = vector.shape_cast %188 : vector<1x32x8xbf16> to vector<32x8xbf16>
    %cst_126 = arith.constant dense<0.000000e+00> : vector<8x8xf32>
    %190 = tpu.matmul %43, %189, %cst_126 {dimension_numbers = #tpu.dot_dimension_numbers<[1], [0], [0], [1], [0, 0, 1, 1], [], []>} : vector<8x32xbf16>, vector<32x8xbf16>, vector<8x8xf32> -> vector<8x8xf32>
    %c3_127 = arith.constant 3 : index
    %c0_128 = arith.constant 0 : index
    %c0_129 = arith.constant 0 : index
    %191 = vector.load %arg15[%c3_127, %c0_128, %c0_129] : memref<4x1x8xf32, #tpu.memory_space<vmem>>, vector<1x1x8xf32>
    %192 = vector.shape_cast %191 : vector<1x1x8xf32> to vector<1x8xf32>
    %193 = vector.broadcast %192 : vector<1x8xf32> to vector<8x8xf32>
    %194 = arith.addf %190, %193 : vector<8x8xf32>
    %195 = arith.truncf %180 : vector<8x8xf32> to vector<8x8xbf16>
    %196 = arith.truncf %187 : vector<8x8xf32> to vector<8x8xbf16>
    %197 = tpu.transpose %196, [1, 0] : vector<8x8xbf16> -> vector<8x8xbf16>
    %cst_130 = arith.constant dense<0.000000e+00> : vector<8x8xf32>
    %198 = tpu.matmul %195, %197, %cst_130 {dimension_numbers = #tpu.dot_dimension_numbers<[1], [0], [0], [1], [0, 0, 1, 1], [], []>} : vector<8x8xbf16>, vector<8x8xbf16>, vector<8x8xf32> -> vector<8x8xf32>
    %cst_131 = arith.constant dense<0xFF800000> : vector<8xf32>
    %199 = vector.multi_reduction <maximumf>, %198, %cst_131 [1] : vector<8x8xf32> to vector<8xf32>
    %200 = vector.shape_cast %199 : vector<8xf32> to vector<8x1xf32>
    %201 = vector.broadcast %200 : vector<8x1xf32> to vector<8x8xf32>
    %202 = arith.subf %198, %201 : vector<8x8xf32>
    %203 = math.exp %202 : vector<8x8xf32>
    %cst_132 = arith.constant dense<0.000000e+00> : vector<8xf32>
    %204 = vector.multi_reduction <add>, %203, %cst_132 [1] : vector<8x8xf32> to vector<8xf32>
    %205 = vector.shape_cast %204 : vector<8xf32> to vector<8x1xf32>
    %206 = tpu.reciprocal %205 {approx = true} : vector<8x1xf32> -> vector<8x1xf32>
    %207 = vector.broadcast %206 : vector<8x1xf32> to vector<8x8xf32>
    %208 = arith.mulf %203, %207 : vector<8x8xf32>
    %209 = arith.truncf %208 : vector<8x8xf32> to vector<8x8xbf16>
    %210 = arith.truncf %194 : vector<8x8xf32> to vector<8x8xbf16>
    %cst_133 = arith.constant dense<0.000000e+00> : vector<8x8xf32>
    %211 = tpu.matmul %209, %210, %cst_133 {dimension_numbers = #tpu.dot_dimension_numbers<[1], [0], [0], [1], [0, 0, 1, 1], [], []>} : vector<8x8xbf16>, vector<8x8xbf16>, vector<8x8xf32> -> vector<8x8xf32>
    %212 = arith.truncf %211 : vector<8x8xf32> to vector<8x8xbf16>
    %c3_134 = arith.constant 3 : index
    %c0_135 = arith.constant 0 : index
    %c0_136 = arith.constant 0 : index
    %213 = vector.load %arg16[%c3_134, %c0_135, %c0_136] : memref<4x8x32xbf16, #tpu.memory_space<vmem>>, vector<1x8x32xbf16>
    %214 = vector.shape_cast %213 : vector<1x8x32xbf16> to vector<8x32xbf16>
    %cst_137 = arith.constant dense<0.000000e+00> : vector<8x32xf32>
    %215 = tpu.matmul %212, %214, %cst_137 {dimension_numbers = #tpu.dot_dimension_numbers<[1], [0], [0], [1], [0, 0, 1, 1], [], []>} : vector<8x8xbf16>, vector<8x32xbf16>, vector<8x32xf32> -> vector<8x32xf32>
    %216 = arith.addf %173, %215 : vector<8x32xf32>
    %c0_138 = arith.constant 0 : index
    %c0_139 = arith.constant 0 : index
    %217 = vector.load %arg17[%c0_138, %c0_139] : memref<1x32xf32, #tpu.memory_space<vmem>>, vector<1x32xf32>
    %218 = vector.broadcast %217 : vector<1x32xf32> to vector<8x32xf32>
    %219 = arith.addf %216, %218 : vector<8x32xf32>
    %220 = arith.addf %39, %219 : vector<8x32xf32>
    %c0_140 = arith.constant 0 : index
    %c0_141 = arith.constant 0 : index
    %c0_142 = arith.constant 0 : index
    %221 = vector.load %arg20[%c0_140, %c0_141, %c0_142] : memref<1x8x32xf32, #tpu.memory_space<vmem>>, vector<1x8x32xf32>
    %222 = vector.shape_cast %221 : vector<1x8x32xf32> to vector<8x32xf32>
    %223 = vector.shape_cast %220 : vector<8x32xf32> to vector<1x8x32xf32>
    tpu.vector_store %arg20[%c0_140, %c0_141, %c0_142], %223 {strides = array<i32>} : memref<1x8x32xf32, #tpu.memory_space<vmem>>, vector<1x8x32xf32>,
    %c0_143 = arith.constant 0 : index
    %c0_144 = arith.constant 0 : index
    %c0_145 = arith.constant 0 : index
    %224 = vector.load %arg19[%c0_143, %c0_144, %c0_145] : memref<1x8x32xf32, #tpu.memory_space<vmem>>, vector<1x8x32xf32>
    %225 = vector.shape_cast %224 : vector<1x8x32xf32> to vector<8x32xf32>
    %c0_146 = arith.constant 0 : index
    %226 = memref.load %arg18[%c0_146] : memref<1xf32, #tpu.memory_space<smem>>
    %227 = vector.broadcast %226 : f32 to vector<8x32xf32>
    %228 = arith.mulf %227, %220 : vector<8x32xf32>
    %229 = arith.addf %225, %228 : vector<8x32xf32>
    %c0_147 = arith.constant 0 : index
    %c0_148 = arith.constant 0 : index
    %c0_149 = arith.constant 0 : index
    %230 = vector.load %arg21[%c0_147, %c0_148, %c0_149] : memref<1x8x32xf32, #tpu.memory_space<vmem>>, vector<1x8x32xf32>
    %231 = vector.shape_cast %230 : vector<1x8x32xf32> to vector<8x32xf32>
    %232 = vector.shape_cast %229 : vector<8x32xf32> to vector<1x8x32xf32>
    tpu.vector_store %arg21[%c0_147, %c0_148, %c0_149], %232 {strides = array<i32>} : memref<1x8x32xf32, #tpu.memory_space<vmem>>, vector<1x8x32xf32>,
    return
  }
  func.func @transform_0(%arg0: i32, %arg1: i32) -> (i32, i32, i32) {
    %c0_i32 = arith.constant 0 : i32
    %c0_i32_0 = arith.constant 0 : i32
    return %arg0, %arg1, %c0_i32 : i32, i32, i32
  }
  func.func @transform_1(%arg0: i32, %arg1: i32) -> (i32, i32) {
    %c0_i32 = arith.constant 0 : i32
    %c0_i32_0 = arith.constant 0 : i32
    %c0_i32_1 = arith.constant 0 : i32
    return %c0_i32, %c0_i32_0 : i32, i32
  }
  func.func @transform_2(%arg0: i32, %arg1: i32) -> (i32, i32) {
    %c0_i32 = arith.constant 0 : i32
    %c0_i32_0 = arith.constant 0 : i32
    %c0_i32_1 = arith.constant 0 : i32
    return %c0_i32, %c0_i32_0 : i32, i32
  }
  func.func @transform_3(%arg0: i32, %arg1: i32) -> (i32, i32) {
    %c0_i32 = arith.constant 0 : i32
    %c0_i32_0 = arith.constant 0 : i32
    %c0_i32_1 = arith.constant 0 : i32
    return %c0_i32, %c0_i32_0 : i32, i32
  }
  func.func @transform_4(%arg0: i32, %arg1: i32) -> (i32, i32) {
    %c0_i32 = arith.constant 0 : i32
    %c0_i32_0 = arith.constant 0 : i32
    %c0_i32_1 = arith.constant 0 : i32
    return %c0_i32, %c0_i32_0 : i32, i32
  }
  func.func @transform_5(%arg0: i32, %arg1: i32) -> (i32, i32) {
    %c0_i32 = arith.constant 0 : i32
    %c0_i32_0 = arith.constant 0 : i32
    %c0_i32_1 = arith.constant 0 : i32
    return %c0_i32, %c0_i32_0 : i32, i32
  }
  func.func @transform_6(%arg0: i32, %arg1: i32) -> (i32, i32) {
    %c0_i32 = arith.constant 0 : i32
    %c0_i32_0 = arith.constant 0 : i32
    %c0_i32_1 = arith.constant 0 : i32
    return %c0_i32, %c0_i32_0 : i32, i32
  }
  func.func @transform_7(%arg0: i32, %arg1: i32) -> (i32, i32, i32) {
    %c0_i32 = arith.constant 0 : i32
    %c0_i32_0 = arith.constant 0 : i32
    %c0_i32_1 = arith.constant 0 : i32
    return %arg0, %c0_i32, %c0_i32_0 : i32, i32, i32
  }
  func.func @transform_8(%arg0: i32, %arg1: i32) -> (i32, i32, i32) {
    %c0_i32 = arith.constant 0 : i32
    %c0_i32_0 = arith.constant 0 : i32
    %c0_i32_1 = arith.constant 0 : i32
    %c0_i32_2 = arith.constant 0 : i32
    return %c0_i32, %c0_i32_0, %c0_i32_1 : i32, i32, i32
  }
  func.func @transform_9(%arg0: i32, %arg1: i32) -> (i32, i32, i32) {
    %c0_i32 = arith.constant 0 : i32
    %c0_i32_0 = arith.constant 0 : i32
    %c0_i32_1 = arith.constant 0 : i32
    %c0_i32_2 = arith.constant 0 : i32
    return %c0_i32, %c0_i32_0, %c0_i32_1 : i32, i32, i32
  }
  func.func @transform_10(%arg0: i32, %arg1: i32) -> (i32, i32, i32) {
    %c0_i32 = arith.constant 0 : i32
    %c0_i32_0 = arith.constant 0 : i32
    %c0_i32_1 = arith.constant 0 : i32
    %c0_i32_2 = arith.constant 0 : i32
    return %c0_i32, %c0_i32_0, %c0_i32_1 : i32, i32, i32
  }
  func.func @transform_11(%arg0: i32, %arg1: i32) -> (i32, i32, i32) {
    %c0_i32 = arith.constant 0 : i32
    %c0_i32_0 = arith.constant 0 : i32
    %c0_i32_1 = arith.constant 0 : i32
    %c0_i32_2 = arith.constant 0 : i32
    return %c0_i32, %c0_i32_0, %c0_i32_1 : i32, i32, i32
  }
  func.func @transform_12(%arg0: i32, %arg1: i32) -> (i32, i32, i32) {
    %c0_i32 = arith.constant 0 : i32
    %c0_i32_0 = arith.constant 0 : i32
    %c0_i32_1 = arith.constant 0 : i32
    %c0_i32_2 = arith.constant 0 : i32
    return %c0_i32, %c0_i32_0, %c0_i32_1 : i32, i32, i32
  }
  func.func @transform_13(%arg0: i32, %arg1: i32) -> (i32, i32, i32) {
    %c0_i32 = arith.constant 0 : i32
    %c0_i32_0 = arith.constant 0 : i32
    %c0_i32_1 = arith.constant 0 : i32
    %c0_i32_2 = arith.constant 0 : i32
    return %c0_i32, %c0_i32_0, %c0_i32_1 : i32, i32, i32
  }
  func.func @transform_14(%arg0: i32, %arg1: i32) -> (i32, i32, i32) {
    %c0_i32 = arith.constant 0 : i32
    %c0_i32_0 = arith.constant 0 : i32
    %c0_i32_1 = arith.constant 0 : i32
    %c0_i32_2 = arith.constant 0 : i32
    return %c0_i32, %c0_i32_0, %c0_i32_1 : i32, i32, i32
  }
  func.func @transform_15(%arg0: i32, %arg1: i32) -> (i32, i32) {
    %c0_i32 = arith.constant 0 : i32
    %c0_i32_0 = arith.constant 0 : i32
    %c0_i32_1 = arith.constant 0 : i32
    return %c0_i32, %c0_i32_0 : i32, i32
  }
  func.func @transform_16(%arg0: i32, %arg1: i32) -> i32 {
    %c0_i32 = arith.constant 0 : i32
    %c0_i32_0 = arith.constant 0 : i32
    return %c0_i32 : i32
  }
  func.func @transform_17(%arg0: i32, %arg1: i32) -> (i32, i32, i32) {
    %c0_i32 = arith.constant 0 : i32
    %c0_i32_0 = arith.constant 0 : i32
    return %arg0, %arg1, %c0_i32 : i32, i32, i32
  }
  func.func @transform_18(%arg0: i32, %arg1: i32) -> (i32, i32, i32) {
    %c0_i32 = arith.constant 0 : i32
    %c0_i32_0 = arith.constant 0 : i32
    return %arg0, %arg1, %c0_i32 : i32, i32, i32
  }
  func.func @transform_19(%arg0: i32, %arg1: i32) -> (i32, i32, i32) {
    %c0_i32 = arith.constant 0 : i32
    %c0_i32_0 = arith.constant 0 : i32
    return %arg0, %arg1, %c0_i32 : i32, i32, i32
  }
}

module attributes {stable_mosaic.version = 11 : i64} {
  func.func @scale_attn_kernel(%arg0: i32, %arg1: i32, %arg2: memref<1x8x32xf32, #tpu.memory_space<vmem>>, %arg3: memref<32x64xbf16, #tpu.memory_space<vmem>>, %arg4: memref<1x64xf32, #tpu.memory_space<vmem>>, %arg5: memref<1x64xf32, #tpu.memory_space<vmem>>, %arg6: memref<1x64xf32, #tpu.memory_space<vmem>>, %arg7: memref<64x32xbf16, #tpu.memory_space<vmem>>, %arg8: memref<1x32xf32, #tpu.memory_space<vmem>>, %arg9: memref<1x8x32xf32, #tpu.memory_space<vmem>>, %arg10: memref<4x32x8xbf16, #tpu.memory_space<vmem>>, %arg11: memref<4x1x8xf32, #tpu.memory_space<vmem>>, %arg12: memref<4x32x8xbf16, #tpu.memory_space<vmem>>, %arg13: memref<4x1x8xf32, #tpu.memory_space<vmem>>, %arg14: memref<4x32x8xbf16, #tpu.memory_space<vmem>>, %arg15: memref<4x1x8xf32, #tpu.memory_space<vmem>>, %arg16: memref<4x8x32xbf16, #tpu.memory_space<vmem>>, %arg17: memref<1x32xf32, #tpu.memory_space<vmem>>, %arg18: memref<1xf32, #tpu.memory_space<smem>>, %arg19: memref<1x8x32xf32, #tpu.memory_space<vmem>>, %arg20: memref<1x8x32xf32, #tpu.memory_space<vmem>>, %arg21: memref<1x8x32xf32, #tpu.memory_space<vmem>>) attributes {dimension_semantics = [#tpu.dimension_semantics<parallel>, #tpu.dimension_semantics<parallel>], iteration_bounds = array<i64: 2, 1>, scalar_prefetch = 0 : i64, scratch_operands = 0 : i64, tpu.core_type = #tpu.core_type<tc>, window_params = [{transform_indices = @transform_0, window_bounds = array<i64: 1, 8, 32>}, {pipeline_mode = #tpu.pipeline_mode<synchronous>, transform_indices = @transform_1, window_bounds = array<i64: 32, 64>}, {pipeline_mode = #tpu.pipeline_mode<synchronous>, transform_indices = @transform_2, window_bounds = array<i64: 1, 64>}, {pipeline_mode = #tpu.pipeline_mode<synchronous>, transform_indices = @transform_3, window_bounds = array<i64: 1, 64>}, {pipeline_mode = #tpu.pipeline_mode<synchronous>, transform_indices = @transform_4, window_bounds = array<i64: 1, 64>}, {pipeline_mode = #tpu.pipeline_mode<synchronous>, transform_indices = @transform_5, window_bounds = array<i64: 64, 32>}, {pipeline_mode = #tpu.pipeline_mode<synchronous>, transform_indices = @transform_6, window_bounds = array<i64: 1, 32>}, {transform_indices = @transform_7, window_bounds = array<i64: 1, 8, 32>}, {pipeline_mode = #tpu.pipeline_mode<synchronous>, transform_indices = @transform_8, window_bounds = array<i64: 4, 32, 8>}, {pipeline_mode = #tpu.pipeline_mode<synchronous>, transform_indices = @transform_9, window_bounds = array<i64: 4, 1, 8>}, {pipeline_mode = #tpu.pipeline_mode<synchronous>, transform_indices = @transform_10, window_bounds = array<i64: 4, 32, 8>}, {pipeline_mode = #tpu.pipeline_mode<synchronous>, transform_indices = @transform_11, window_bounds = array<i64: 4, 1, 8>}, {pipeline_mode = #tpu.pipeline_mode<synchronous>, transform_indices = @transform_12, window_bounds = array<i64: 4, 32, 8>}, {pipeline_mode = #tpu.pipeline_mode<synchronous>, transform_indices = @transform_13, window_bounds = array<i64: 4, 1, 8>}, {pipeline_mode = #tpu.pipeline_mode<synchronous>, transform_indices = @transform_14, window_bounds = array<i64: 4, 8, 32>}, {pipeline_mode = #tpu.pipeline_mode<synchronous>, transform_indices = @transform_15, window_bounds = array<i64: 1, 32>}, {transform_indices = @transform_16, window_bounds = array<i64: 1>}, {transform_indices = @transform_17, window_bounds = array<i64: 1, 8, 32>}, {transform_indices = @transform_18, window_bounds = array<i64: 1, 8, 32>}, {transform_indices = @transform_19, window_bounds = array<i64: 1, 8, 32>}]} {
    %c0 = arith.constant 0 : index
    %c0_0 = arith.constant 0 : index
    %c0_1 = arith.constant 0 : index
    %0 = vector.load %arg2[%c0, %c0_0, %c0_1] : memref<1x8x32xf32, #tpu.memory_space<vmem>>, vector<1x8x32xf32>
    %1 = vector.shape_cast %0 : vector<1x8x32xf32> to vector<8x32xf32>
    %2 = arith.truncf %1 : vector<8x32xf32> to vector<8x32xbf16>
    %c0_2 = arith.constant 0 : index
    %c0_3 = arith.constant 0 : index
    %3 = vector.load %arg3[%c0_2, %c0_3] : memref<32x64xbf16, #tpu.memory_space<vmem>>, vector<32x64xbf16>
    %cst = arith.constant dense<0.000000e+00> : vector<8x64xf32>
    %4 = tpu.matmul %2, %3, %cst {dimension_numbers = #tpu.dot_dimension_numbers<[1], [0], [0], [1], [0, 0, 1, 1], [], []>} : vector<8x32xbf16>, vector<32x64xbf16>, vector<8x64xf32> -> vector<8x64xf32>
    %c0_4 = arith.constant 0 : index
    %c0_5 = arith.constant 0 : index
    %5 = vector.load %arg4[%c0_4, %c0_5] : memref<1x64xf32, #tpu.memory_space<vmem>>, vector<1x64xf32>
    %6 = vector.broadcast %5 : vector<1x64xf32> to vector<8x64xf32>
    %7 = arith.addf %4, %6 : vector<8x64xf32>
    %cst_6 = arith.constant dense<0.000000e+00> : vector<8xf32>
    %8 = vector.multi_reduction <add>, %7, %cst_6 [1] : vector<8x64xf32> to vector<8xf32>
    %9 = vector.shape_cast %8 : vector<8xf32> to vector<8x1xf32>
    %cst_7 = arith.constant 6.400000e+01 : f32
    %10 = vector.broadcast %cst_7 : f32 to vector<8x1xf32>
    %11 = arith.divf %9, %10 : vector<8x1xf32>
    %12 = vector.broadcast %11 : vector<8x1xf32> to vector<8x64xf32>
    %13 = arith.subf %7, %12 : vector<8x64xf32>
    %14 = arith.mulf %13, %13 : vector<8x64xf32>
    %cst_8 = arith.constant dense<0.000000e+00> : vector<8xf32>
    %15 = vector.multi_reduction <add>, %14, %cst_8 [1] : vector<8x64xf32> to vector<8xf32>
    %16 = vector.shape_cast %15 : vector<8xf32> to vector<8x1xf32>
    %cst_9 = arith.constant 6.400000e+01 : f32
    %17 = vector.broadcast %cst_9 : f32 to vector<8x1xf32>
    %18 = arith.divf %16, %17 : vector<8x1xf32>
    %19 = vector.broadcast %11 : vector<8x1xf32> to vector<8x64xf32>
    %20 = arith.subf %7, %19 : vector<8x64xf32>
    %cst_10 = arith.constant 9.99999974E-6 : f32
    %21 = vector.broadcast %cst_10 : f32 to vector<8x1xf32>
    %22 = arith.addf %18, %21 : vector<8x1xf32>
    %23 = math.rsqrt %22 : vector<8x1xf32>
    %24 = vector.broadcast %23 : vector<8x1xf32> to vector<8x64xf32>
    %25 = arith.mulf %20, %24 : vector<8x64xf32>
    %c0_11 = arith.constant 0 : index
    %c0_12 = arith.constant 0 : index
    %26 = vector.load %arg5[%c0_11, %c0_12] : memref<1x64xf32, #tpu.memory_space<vmem>>, vector<1x64xf32>
    %27 = vector.broadcast %26 : vector<1x64xf32> to vector<8x64xf32>
    %28 = arith.mulf %25, %27 : vector<8x64xf32>
    %c0_13 = arith.constant 0 : index
    %c0_14 = arith.constant 0 : index
    %29 = vector.load %arg6[%c0_13, %c0_14] : memref<1x64xf32, #tpu.memory_space<vmem>>, vector<1x64xf32>
    %30 = vector.broadcast %29 : vector<1x64xf32> to vector<8x64xf32>
    %31 = arith.addf %28, %30 : vector<8x64xf32>
    %cst_15 = arith.constant 0.000000e+00 : f32
    %32 = vector.broadcast %cst_15 : f32 to vector<8x64xf32>
    %33 = arith.maximumf %31, %32 : vector<8x64xf32>
    %34 = arith.truncf %33 : vector<8x64xf32> to vector<8x64xbf16>
    %c0_16 = arith.constant 0 : index
    %c0_17 = arith.constant 0 : index
    %35 = vector.load %arg7[%c0_16, %c0_17] : memref<64x32xbf16, #tpu.memory_space<vmem>>, vector<64x32xbf16>
    %cst_18 = arith.constant dense<0.000000e+00> : vector<8x32xf32>
    %36 = tpu.matmul %34, %35, %cst_18 {dimension_numbers = #tpu.dot_dimension_numbers<[1], [0], [0], [1], [0, 0, 1, 1], [], []>} : vector<8x64xbf16>, vector<64x32xbf16>, vector<8x32xf32> -> vector<8x32xf32>
    %c0_19 = arith.constant 0 : index
    %c0_20 = arith.constant 0 : index
    %37 = vector.load %arg8[%c0_19, %c0_20] : memref<1x32xf32, #tpu.memory_space<vmem>>, vector<1x32xf32>
    %38 = vector.broadcast %37 : vector<1x32xf32> to vector<8x32xf32>
    %39 = arith.addf %36, %38 : vector<8x32xf32>
    %c0_21 = arith.constant 0 : index
    %c0_22 = arith.constant 0 : index
    %c0_23 = arith.constant 0 : index
    %40 = vector.load %arg9[%c0_21, %c0_22, %c0_23] : memref<1x8x32xf32, #tpu.memory_space<vmem>>, vector<1x8x32xf32>
    %41 = vector.shape_cast %40 : vector<1x8x32xf32> to vector<8x32xf32>
    %42 = arith.truncf %39 : vector<8x32xf32> to vector<8x32xbf16>
    %43 = arith.truncf %41 : vector<8x32xf32> to vector<8x32xbf16>
    %cst_24 = arith.constant 0.000000e+00 : f32
    %44 = vector.broadcast %cst_24 : f32 to vector<8x32xf32>
    %c0_25 = arith.constant 0 : index
    %c0_26 = arith.constant 0 : index
    %c0_27 = arith.constant 0 : index
    %45 = vector.load %arg10[%c0_25, %c0_26, %c0_27] : memref<4x32x8xbf16, #tpu.memory_space<vmem>>, vector<1x32x8xbf16>
    %46 = vector.shape_cast %45 : vector<1x32x8xbf16> to vector<32x8xbf16>
    %cst_28 = arith.constant dense<0.000000e+00> : vector<8x8xf32>
    %47 = tpu.matmul %42, %46, %cst_28 {dimension_numbers = #tpu.dot_dimension_numbers<[1], [0], [0], [1], [0, 0, 1, 1], [], []>} : vector<8x32xbf16>, vector<32x8xbf16>, vector<8x8xf32> -> vector<8x8xf32>
    %c0_29 = arith.constant 0 : index
    %c0_30 = arith.constant 0 : index
    %c0_31 = arith.constant 0 : index
    %48 = vector.load %arg11[%c0_29, %c0_30, %c0_31] : memref<4x1x8xf32, #tpu.memory_space<vmem>>, vector<1x1x8xf32>
    %49 = vector.shape_cast %48 : vector<1x1x8xf32> to vector<1x8xf32>
    %50 = vector.broadcast %49 : vector<1x8xf32> to vector<8x8xf32>
    %51 = arith.addf %47, %50 : vector<8x8xf32>
    %c0_32 = arith.constant 0 : index
    %c0_33 = arith.constant 0 : index
    %c0_34 = arith.constant 0 : index
    %52 = vector.load %arg12[%c0_32, %c0_33, %c0_34] : memref<4x32x8xbf16, #tpu.memory_space<vmem>>, vector<1x32x8xbf16>
    %53 = vector.shape_cast %52 : vector<1x32x8xbf16> to vector<32x8xbf16>
    %cst_35 = arith.constant dense<0.000000e+00> : vector<8x8xf32>
    %54 = tpu.matmul %43, %53, %cst_35 {dimension_numbers = #tpu.dot_dimension_numbers<[1], [0], [0], [1], [0, 0, 1, 1], [], []>} : vector<8x32xbf16>, vector<32x8xbf16>, vector<8x8xf32> -> vector<8x8xf32>
    %c0_36 = arith.constant 0 : index
    %c0_37 = arith.constant 0 : index
    %c0_38 = arith.constant 0 : index
    %55 = vector.load %arg13[%c0_36, %c0_37, %c0_38] : memref<4x1x8xf32, #tpu.memory_space<vmem>>, vector<1x1x8xf32>
    %56 = vector.shape_cast %55 : vector<1x1x8xf32> to vector<1x8xf32>
    %57 = vector.broadcast %56 : vector<1x8xf32> to vector<8x8xf32>
    %58 = arith.addf %54, %57 : vector<8x8xf32>
    %c0_39 = arith.constant 0 : index
    %c0_40 = arith.constant 0 : index
    %c0_41 = arith.constant 0 : index
    %59 = vector.load %arg14[%c0_39, %c0_40, %c0_41] : memref<4x32x8xbf16, #tpu.memory_space<vmem>>, vector<1x32x8xbf16>
    %60 = vector.shape_cast %59 : vector<1x32x8xbf16> to vector<32x8xbf16>
    %cst_42 = arith.constant dense<0.000000e+00> : vector<8x8xf32>
    %61 = tpu.matmul %43, %60, %cst_42 {dimension_numbers = #tpu.dot_dimension_numbers<[1], [0], [0], [1], [0, 0, 1, 1], [], []>} : vector<8x32xbf16>, vector<32x8xbf16>, vector<8x8xf32> -> vector<8x8xf32>
    %c0_43 = arith.constant 0 : index
    %c0_44 = arith.constant 0 : index
    %c0_45 = arith.constant 0 : index
    %62 = vector.load %arg15[%c0_43, %c0_44, %c0_45] : memref<4x1x8xf32, #tpu.memory_space<vmem>>, vector<1x1x8xf32>
    %63 = vector.shape_cast %62 : vector<1x1x8xf32> to vector<1x8xf32>
    %64 = vector.broadcast %63 : vector<1x8xf32> to vector<8x8xf32>
    %65 = arith.addf %61, %64 : vector<8x8xf32>
    %66 = arith.truncf %51 : vector<8x8xf32> to vector<8x8xbf16>
    %67 = arith.truncf %58 : vector<8x8xf32> to vector<8x8xbf16>
    %68 = tpu.transpose %67, [1, 0] : vector<8x8xbf16> -> vector<8x8xbf16>
    %cst_46 = arith.constant dense<0.000000e+00> : vector<8x8xf32>
    %69 = tpu.matmul %66, %68, %cst_46 {dimension_numbers = #tpu.dot_dimension_numbers<[1], [0], [0], [1], [0, 0, 1, 1], [], []>} : vector<8x8xbf16>, vector<8x8xbf16>, vector<8x8xf32> -> vector<8x8xf32>
    %cst_47 = arith.constant dense<0xFF800000> : vector<8xf32>
    %70 = vector.multi_reduction <maximumf>, %69, %cst_47 [1] : vector<8x8xf32> to vector<8xf32>
    %71 = vector.shape_cast %70 : vector<8xf32> to vector<8x1xf32>
    %72 = vector.broadcast %71 : vector<8x1xf32> to vector<8x8xf32>
    %73 = arith.subf %69, %72 : vector<8x8xf32>
    %74 = math.exp %73 : vector<8x8xf32>
    %cst_48 = arith.constant dense<0.000000e+00> : vector<8xf32>
    %75 = vector.multi_reduction <add>, %74, %cst_48 [1] : vector<8x8xf32> to vector<8xf32>
    %76 = vector.shape_cast %75 : vector<8xf32> to vector<8x1xf32>
    %77 = tpu.reciprocal %76 {approx = true} : vector<8x1xf32> -> vector<8x1xf32>
    %78 = vector.broadcast %77 : vector<8x1xf32> to vector<8x8xf32>
    %79 = arith.mulf %74, %78 : vector<8x8xf32>
    %80 = arith.truncf %79 : vector<8x8xf32> to vector<8x8xbf16>
    %81 = arith.truncf %65 : vector<8x8xf32> to vector<8x8xbf16>
    %cst_49 = arith.constant dense<0.000000e+00> : vector<8x8xf32>
    %82 = tpu.matmul %80, %81, %cst_49 {dimension_numbers = #tpu.dot_dimension_numbers<[1], [0], [0], [1], [0, 0, 1, 1], [], []>} : vector<8x8xbf16>, vector<8x8xbf16>, vector<8x8xf32> -> vector<8x8xf32>
    %83 = arith.truncf %82 : vector<8x8xf32> to vector<8x8xbf16>
    %c0_50 = arith.constant 0 : index
    %c0_51 = arith.constant 0 : index
    %c0_52 = arith.constant 0 : index
    %84 = vector.load %arg16[%c0_50, %c0_51, %c0_52] : memref<4x8x32xbf16, #tpu.memory_space<vmem>>, vector<1x8x32xbf16>
    %85 = vector.shape_cast %84 : vector<1x8x32xbf16> to vector<8x32xbf16>
    %cst_53 = arith.constant dense<0.000000e+00> : vector<8x32xf32>
    %86 = tpu.matmul %83, %85, %cst_53 {dimension_numbers = #tpu.dot_dimension_numbers<[1], [0], [0], [1], [0, 0, 1, 1], [], []>} : vector<8x8xbf16>, vector<8x32xbf16>, vector<8x32xf32> -> vector<8x32xf32>
    %87 = arith.addf %44, %86 : vector<8x32xf32>
    %c1 = arith.constant 1 : index
    %c0_54 = arith.constant 0 : index
    %c0_55 = arith.constant 0 : index
    %88 = vector.load %arg10[%c1, %c0_54, %c0_55] : memref<4x32x8xbf16, #tpu.memory_space<vmem>>, vector<1x32x8xbf16>
    %89 = vector.shape_cast %88 : vector<1x32x8xbf16> to vector<32x8xbf16>
    %cst_56 = arith.constant dense<0.000000e+00> : vector<8x8xf32>
    %90 = tpu.matmul %42, %89, %cst_56 {dimension_numbers = #tpu.dot_dimension_numbers<[1], [0], [0], [1], [0, 0, 1, 1], [], []>} : vector<8x32xbf16>, vector<32x8xbf16>, vector<8x8xf32> -> vector<8x8xf32>
    %c1_57 = arith.constant 1 : index
    %c0_58 = arith.constant 0 : index
    %c0_59 = arith.constant 0 : index
    %91 = vector.load %arg11[%c1_57, %c0_58, %c0_59] : memref<4x1x8xf32, #tpu.memory_space<vmem>>, vector<1x1x8xf32>
    %92 = vector.shape_cast %91 : vector<1x1x8xf32> to vector<1x8xf32>
    %93 = vector.broadcast %92 : vector<1x8xf32> to vector<8x8xf32>
    %94 = arith.addf %90, %93 : vector<8x8xf32>
    %c1_60 = arith.constant 1 : index
    %c0_61 = arith.constant 0 : index
    %c0_62 = arith.constant 0 : index
    %95 = vector.load %arg12[%c1_60, %c0_61, %c0_62] : memref<4x32x8xbf16, #tpu.memory_space<vmem>>, vector<1x32x8xbf16>
    %96 = vector.shape_cast %95 : vector<1x32x8xbf16> to vector<32x8xbf16>
    %cst_63 = arith.constant dense<0.000000e+00> : vector<8x8xf32>
    %97 = tpu.matmul %43, %96, %cst_63 {dimension_numbers = #tpu.dot_dimension_numbers<[1], [0], [0], [1], [0, 0, 1, 1], [], []>} : vector<8x32xbf16>, vector<32x8xbf16>, vector<8x8xf32> -> vector<8x8xf32>
    %c1_64 = arith.constant 1 : index
    %c0_65 = arith.constant 0 : index
    %c0_66 = arith.constant 0 : index
    %98 = vector.load %arg13[%c1_64, %c0_65, %c0_66] : memref<4x1x8xf32, #tpu.memory_space<vmem>>, vector<1x1x8xf32>
    %99 = vector.shape_cast %98 : vector<1x1x8xf32> to vector<1x8xf32>
    %100 = vector.broadcast %99 : vector<1x8xf32> to vector<8x8xf32>
    %101 = arith.addf %97, %100 : vector<8x8xf32>
    %c1_67 = arith.constant 1 : index
    %c0_68 = arith.constant 0 : index
    %c0_69 = arith.constant 0 : index
    %102 = vector.load %arg14[%c1_67, %c0_68, %c0_69] : memref<4x32x8xbf16, #tpu.memory_space<vmem>>, vector<1x32x8xbf16>
    %103 = vector.shape_cast %102 : vector<1x32x8xbf16> to vector<32x8xbf16>
    %cst_70 = arith.constant dense<0.000000e+00> : vector<8x8xf32>
    %104 = tpu.matmul %43, %103, %cst_70 {dimension_numbers = #tpu.dot_dimension_numbers<[1], [0], [0], [1], [0, 0, 1, 1], [], []>} : vector<8x32xbf16>, vector<32x8xbf16>, vector<8x8xf32> -> vector<8x8xf32>
    %c1_71 = arith.constant 1 : index
    %c0_72 = arith.constant 0 : index
    %c0_73 = arith.constant 0 : index
    %105 = vector.load %arg15[%c1_71, %c0_72, %c0_73] : memref<4x1x8xf32, #tpu.memory_space<vmem>>, vector<1x1x8xf32>
    %106 = vector.shape_cast %105 : vector<1x1x8xf32> to vector<1x8xf32>
    %107 = vector.broadcast %106 : vector<1x8xf32> to vector<8x8xf32>
    %108 = arith.addf %104, %107 : vector<8x8xf32>
    %109 = arith.truncf %94 : vector<8x8xf32> to vector<8x8xbf16>
    %110 = arith.truncf %101 : vector<8x8xf32> to vector<8x8xbf16>
    %111 = tpu.transpose %110, [1, 0] : vector<8x8xbf16> -> vector<8x8xbf16>
    %cst_74 = arith.constant dense<0.000000e+00> : vector<8x8xf32>
    %112 = tpu.matmul %109, %111, %cst_74 {dimension_numbers = #tpu.dot_dimension_numbers<[1], [0], [0], [1], [0, 0, 1, 1], [], []>} : vector<8x8xbf16>, vector<8x8xbf16>, vector<8x8xf32> -> vector<8x8xf32>
    %cst_75 = arith.constant dense<0xFF800000> : vector<8xf32>
    %113 = vector.multi_reduction <maximumf>, %112, %cst_75 [1] : vector<8x8xf32> to vector<8xf32>
    %114 = vector.shape_cast %113 : vector<8xf32> to vector<8x1xf32>
    %115 = vector.broadcast %114 : vector<8x1xf32> to vector<8x8xf32>
    %116 = arith.subf %112, %115 : vector<8x8xf32>
    %117 = math.exp %116 : vector<8x8xf32>
    %cst_76 = arith.constant dense<0.000000e+00> : vector<8xf32>
    %118 = vector.multi_reduction <add>, %117, %cst_76 [1] : vector<8x8xf32> to vector<8xf32>
    %119 = vector.shape_cast %118 : vector<8xf32> to vector<8x1xf32>
    %120 = tpu.reciprocal %119 {approx = true} : vector<8x1xf32> -> vector<8x1xf32>
    %121 = vector.broadcast %120 : vector<8x1xf32> to vector<8x8xf32>
    %122 = arith.mulf %117, %121 : vector<8x8xf32>
    %123 = arith.truncf %122 : vector<8x8xf32> to vector<8x8xbf16>
    %124 = arith.truncf %108 : vector<8x8xf32> to vector<8x8xbf16>
    %cst_77 = arith.constant dense<0.000000e+00> : vector<8x8xf32>
    %125 = tpu.matmul %123, %124, %cst_77 {dimension_numbers = #tpu.dot_dimension_numbers<[1], [0], [0], [1], [0, 0, 1, 1], [], []>} : vector<8x8xbf16>, vector<8x8xbf16>, vector<8x8xf32> -> vector<8x8xf32>
    %126 = arith.truncf %125 : vector<8x8xf32> to vector<8x8xbf16>
    %c1_78 = arith.constant 1 : index
    %c0_79 = arith.constant 0 : index
    %c0_80 = arith.constant 0 : index
    %127 = vector.load %arg16[%c1_78, %c0_79, %c0_80] : memref<4x8x32xbf16, #tpu.memory_space<vmem>>, vector<1x8x32xbf16>
    %128 = vector.shape_cast %127 : vector<1x8x32xbf16> to vector<8x32xbf16>
    %cst_81 = arith.constant dense<0.000000e+00> : vector<8x32xf32>
    %129 = tpu.matmul %126, %128, %cst_81 {dimension_numbers = #tpu.dot_dimension_numbers<[1], [0], [0], [1], [0, 0, 1, 1], [], []>} : vector<8x8xbf16>, vector<8x32xbf16>, vector<8x32xf32> -> vector<8x32xf32>
    %130 = arith.addf %87, %129 : vector<8x32xf32>
    %c2 = arith.constant 2 : index
    %c0_82 = arith.constant 0 : index
    %c0_83 = arith.constant 0 : index
    %131 = vector.load %arg10[%c2, %c0_82, %c0_83] : memref<4x32x8xbf16, #tpu.memory_space<vmem>>, vector<1x32x8xbf16>
    %132 = vector.shape_cast %131 : vector<1x32x8xbf16> to vector<32x8xbf16>
    %cst_84 = arith.constant dense<0.000000e+00> : vector<8x8xf32>
    %133 = tpu.matmul %42, %132, %cst_84 {dimension_numbers = #tpu.dot_dimension_numbers<[1], [0], [0], [1], [0, 0, 1, 1], [], []>} : vector<8x32xbf16>, vector<32x8xbf16>, vector<8x8xf32> -> vector<8x8xf32>
    %c2_85 = arith.constant 2 : index
    %c0_86 = arith.constant 0 : index
    %c0_87 = arith.constant 0 : index
    %134 = vector.load %arg11[%c2_85, %c0_86, %c0_87] : memref<4x1x8xf32, #tpu.memory_space<vmem>>, vector<1x1x8xf32>
    %135 = vector.shape_cast %134 : vector<1x1x8xf32> to vector<1x8xf32>
    %136 = vector.broadcast %135 : vector<1x8xf32> to vector<8x8xf32>
    %137 = arith.addf %133, %136 : vector<8x8xf32>
    %c2_88 = arith.constant 2 : index
    %c0_89 = arith.constant 0 : index
    %c0_90 = arith.constant 0 : index
    %138 = vector.load %arg12[%c2_88, %c0_89, %c0_90] : memref<4x32x8xbf16, #tpu.memory_space<vmem>>, vector<1x32x8xbf16>
    %139 = vector.shape_cast %138 : vector<1x32x8xbf16> to vector<32x8xbf16>
    %cst_91 = arith.constant dense<0.000000e+00> : vector<8x8xf32>
    %140 = tpu.matmul %43, %139, %cst_91 {dimension_numbers = #tpu.dot_dimension_numbers<[1], [0], [0], [1], [0, 0, 1, 1], [], []>} : vector<8x32xbf16>, vector<32x8xbf16>, vector<8x8xf32> -> vector<8x8xf32>
    %c2_92 = arith.constant 2 : index
    %c0_93 = arith.constant 0 : index
    %c0_94 = arith.constant 0 : index
    %141 = vector.load %arg13[%c2_92, %c0_93, %c0_94] : memref<4x1x8xf32, #tpu.memory_space<vmem>>, vector<1x1x8xf32>
    %142 = vector.shape_cast %141 : vector<1x1x8xf32> to vector<1x8xf32>
    %143 = vector.broadcast %142 : vector<1x8xf32> to vector<8x8xf32>
    %144 = arith.addf %140, %143 : vector<8x8xf32>
    %c2_95 = arith.constant 2 : index
    %c0_96 = arith.constant 0 : index
    %c0_97 = arith.constant 0 : index
    %145 = vector.load %arg14[%c2_95, %c0_96, %c0_97] : memref<4x32x8xbf16, #tpu.memory_space<vmem>>, vector<1x32x8xbf16>
    %146 = vector.shape_cast %145 : vector<1x32x8xbf16> to vector<32x8xbf16>
    %cst_98 = arith.constant dense<0.000000e+00> : vector<8x8xf32>
    %147 = tpu.matmul %43, %146, %cst_98 {dimension_numbers = #tpu.dot_dimension_numbers<[1], [0], [0], [1], [0, 0, 1, 1], [], []>} : vector<8x32xbf16>, vector<32x8xbf16>, vector<8x8xf32> -> vector<8x8xf32>
    %c2_99 = arith.constant 2 : index
    %c0_100 = arith.constant 0 : index
    %c0_101 = arith.constant 0 : index
    %148 = vector.load %arg15[%c2_99, %c0_100, %c0_101] : memref<4x1x8xf32, #tpu.memory_space<vmem>>, vector<1x1x8xf32>
    %149 = vector.shape_cast %148 : vector<1x1x8xf32> to vector<1x8xf32>
    %150 = vector.broadcast %149 : vector<1x8xf32> to vector<8x8xf32>
    %151 = arith.addf %147, %150 : vector<8x8xf32>
    %152 = arith.truncf %137 : vector<8x8xf32> to vector<8x8xbf16>
    %153 = arith.truncf %144 : vector<8x8xf32> to vector<8x8xbf16>
    %154 = tpu.transpose %153, [1, 0] : vector<8x8xbf16> -> vector<8x8xbf16>
    %cst_102 = arith.constant dense<0.000000e+00> : vector<8x8xf32>
    %155 = tpu.matmul %152, %154, %cst_102 {dimension_numbers = #tpu.dot_dimension_numbers<[1], [0], [0], [1], [0, 0, 1, 1], [], []>} : vector<8x8xbf16>, vector<8x8xbf16>, vector<8x8xf32> -> vector<8x8xf32>
    %cst_103 = arith.constant dense<0xFF800000> : vector<8xf32>
    %156 = vector.multi_reduction <maximumf>, %155, %cst_103 [1] : vector<8x8xf32> to vector<8xf32>
    %157 = vector.shape_cast %156 : vector<8xf32> to vector<8x1xf32>
    %158 = vector.broadcast %157 : vector<8x1xf32> to vector<8x8xf32>
    %159 = arith.subf %155, %158 : vector<8x8xf32>
    %160 = math.exp %159 : vector<8x8xf32>
    %cst_104 = arith.constant dense<0.000000e+00> : vector<8xf32>
    %161 = vector.multi_reduction <add>, %160, %cst_104 [1] : vector<8x8xf32> to vector<8xf32>
    %162 = vector.shape_cast %161 : vector<8xf32> to vector<8x1xf32>
    %163 = tpu.reciprocal %162 {approx = true} : vector<8x1xf32> -> vector<8x1xf32>
    %164 = vector.broadcast %163 : vector<8x1xf32> to vector<8x8xf32>
    %165 = arith.mulf %160, %164 : vector<8x8xf32>
    %166 = arith.truncf %165 : vector<8x8xf32> to vector<8x8xbf16>
    %167 = arith.truncf %151 : vector<8x8xf32> to vector<8x8xbf16>
    %cst_105 = arith.constant dense<0.000000e+00> : vector<8x8xf32>
    %168 = tpu.matmul %166, %167, %cst_105 {dimension_numbers = #tpu.dot_dimension_numbers<[1], [0], [0], [1], [0, 0, 1, 1], [], []>} : vector<8x8xbf16>, vector<8x8xbf16>, vector<8x8xf32> -> vector<8x8xf32>
    %169 = arith.truncf %168 : vector<8x8xf32> to vector<8x8xbf16>
    %c2_106 = arith.constant 2 : index
    %c0_107 = arith.constant 0 : index
    %c0_108 = arith.constant 0 : index
    %170 = vector.load %arg16[%c2_106, %c0_107, %c0_108] : memref<4x8x32xbf16, #tpu.memory_space<vmem>>, vector<1x8x32xbf16>
    %171 = vector.shape_cast %170 : vector<1x8x32xbf16> to vector<8x32xbf16>
    %cst_109 = arith.constant dense<0.000000e+00> : vector<8x32xf32>
    %172 = tpu.matmul %169, %171, %cst_109 {dimension_numbers = #tpu.dot_dimension_numbers<[1], [0], [0], [1], [0, 0, 1, 1], [], []>} : vector<8x8xbf16>, vector<8x32xbf16>, vector<8x32xf32> -> vector<8x32xf32>
    %173 = arith.addf %130, %172 : vector<8x32xf32>
    %c3 = arith.constant 3 : index
    %c0_110 = arith.constant 0 : index
    %c0_111 = arith.constant 0 : index
    %174 = vector.load %arg10[%c3, %c0_110, %c0_111] : memref<4x32x8xbf16, #tpu.memory_space<vmem>>, vector<1x32x8xbf16>
    %175 = vector.shape_cast %174 : vector<1x32x8xbf16> to vector<32x8xbf16>
    %cst_112 = arith.constant dense<0.000000e+00> : vector<8x8xf32>
    %176 = tpu.matmul %42, %175, %cst_112 {dimension_numbers = #tpu.dot_dimension_numbers<[1], [0], [0], [1], [0, 0, 1, 1], [], []>} : vector<8x32xbf16>, vector<32x8xbf16>, vector<8x8xf32> -> vector<8x8xf32>
    %c3_113 = arith.constant 3 : index
    %c0_114 = arith.constant 0 : index
    %c0_115 = arith.constant 0 : index
    %177 = vector.load %arg11[%c3_113, %c0_114, %c0_115] : memref<4x1x8xf32, #tpu.memory_space<vmem>>, vector<1x1x8xf32>
    %178 = vector.shape_cast %177 : vector<1x1x8xf32> to vector<1x8xf32>
    %179 = vector.broadcast %178 : vector<1x8xf32> to vector<8x8xf32>
    %180 = arith.addf %176, %179 : vector<8x8xf32>
    %c3_116 = arith.constant 3 : index
    %c0_117 = arith.constant 0 : index
    %c0_118 = arith.constant 0 : index
    %181 = vector.load %arg12[%c3_116, %c0_117, %c0_118] : memref<4x32x8xbf16, #tpu.memory_space<vmem>>, vector<1x32x8xbf16>
    %182 = vector.shape_cast %181 : vector<1x32x8xbf16> to vector<32x8xbf16>
    %cst_119 = arith.constant dense<0.000000e+00> : vector<8x8xf32>
    %183 = tpu.matmul %43, %182, %cst_119 {dimension_numbers = #tpu.dot_dimension_numbers<[1], [0], [0], [1], [0, 0, 1, 1], [], []>} : vector<8x32xbf16>, vector<32x8xbf16>, vector<8x8xf32> -> vector<8x8xf32>
    %c3_120 = arith.constant 3 : index
    %c0_121 = arith.constant 0 : index
    %c0_122 = arith.constant 0 : index
    %184 = vector.load %arg13[%c3_120, %c0_121, %c0_122] : memref<4x1x8xf32, #tpu.memory_space<vmem>>, vector<1x1x8xf32>
    %185 = vector.shape_cast %184 : vector<1x1x8xf32> to vector<1x8xf32>
    %186 = vector.broadcast %185 : vector<1x8xf32> to vector<8x8xf32>
    %187 = arith.addf %183, %186 : vector<8x8xf32>
    %c3_123 = arith.constant 3 : index
    %c0_124 = arith.constant 0 : index
    %c0_125 = arith.constant 0 : index
    %188 = vector.load %arg14[%c3_123, %c0_124, %c0_125] : memref<4x32x8xbf16, #tpu.memory_space<vmem>>, vector<1x32x8xbf16>
    %189 = vector.shape_cast %188 : vector<1x32x8xbf16> to vector<32x8xbf16>
    %cst_126 = arith.constant dense<0.000000e+00> : vector<8x8xf32>
    %190 = tpu.matmul %43, %189, %cst_126 {dimension_numbers = #tpu.dot_dimension_numbers<[1], [0], [0], [1], [0, 0, 1, 1], [], []>} : vector<8x32xbf16>, vector<32x8xbf16>, vector<8x8xf32> -> vector<8x8xf32>
    %c3_127 = arith.constant 3 : index
    %c0_128 = arith.constant 0 : index
    %c0_129 = arith.constant 0 : index
    %191 = vector.load %arg15[%c3_127, %c0_128, %c0_129] : memref<4x1x8xf32, #tpu.memory_space<vmem>>, vector<1x1x8xf32>
    %192 = vector.shape_cast %191 : vector<1x1x8xf32> to vector<1x8xf32>
    %193 = vector.broadcast %192 : vector<1x8xf32> to vector<8x8xf32>
    %194 = arith.addf %190, %193 : vector<8x8xf32>
    %195 = arith.truncf %180 : vector<8x8xf32> to vector<8x8xbf16>
    %196 = arith.truncf %187 : vector<8x8xf32> to vector<8x8xbf16>
    %197 = tpu.transpose %196, [1, 0] : vector<8x8xbf16> -> vector<8x8xbf16>
    %cst_130 = arith.constant dense<0.000000e+00> : vector<8x8xf32>
    %198 = tpu.matmul %195, %197, %cst_130 {dimension_numbers = #tpu.dot_dimension_numbers<[1], [0], [0], [1], [0, 0, 1, 1], [], []>} : vector<8x8xbf16>, vector<8x8xbf16>, vector<8x8xf32> -> vector<8x8xf32>
    %cst_131 = arith.constant dense<0xFF800000> : vector<8xf32>
    %199 = vector.multi_reduction <maximumf>, %198, %cst_131 [1] : vector<8x8xf32> to vector<8xf32>
    %200 = vector.shape_cast %199 : vector<8xf32> to vector<8x1xf32>
    %201 = vector.broadcast %200 : vector<8x1xf32> to vector<8x8xf32>
    %202 = arith.subf %198, %201 : vector<8x8xf32>
    %203 = math.exp %202 : vector<8x8xf32>
    %cst_132 = arith.constant dense<0.000000e+00> : vector<8xf32>
    %204 = vector.multi_reduction <add>, %203, %cst_132 [1] : vector<8x8xf32> to vector<8xf32>
    %205 = vector.shape_cast %204 : vector<8xf32> to vector<8x1xf32>
    %206 = tpu.reciprocal %205 {approx = true} : vector<8x1xf32> -> vector<8x1xf32>
    %207 = vector.broadcast %206 : vector<8x1xf32> to vector<8x8xf32>
    %208 = arith.mulf %203, %207 : vector<8x8xf32>
    %209 = arith.truncf %208 : vector<8x8xf32> to vector<8x8xbf16>
    %210 = arith.truncf %194 : vector<8x8xf32> to vector<8x8xbf16>
    %cst_133 = arith.constant dense<0.000000e+00> : vector<8x8xf32>
    %211 = tpu.matmul %209, %210, %cst_133 {dimension_numbers = #tpu.dot_dimension_numbers<[1], [0], [0], [1], [0, 0, 1, 1], [], []>} : vector<8x8xbf16>, vector<8x8xbf16>, vector<8x8xf32> -> vector<8x8xf32>
    %212 = arith.truncf %211 : vector<8x8xf32> to vector<8x8xbf16>
    %c3_134 = arith.constant 3 : index
    %c0_135 = arith.constant 0 : index
    %c0_136 = arith.constant 0 : index
    %213 = vector.load %arg16[%c3_134, %c0_135, %c0_136] : memref<4x8x32xbf16, #tpu.memory_space<vmem>>, vector<1x8x32xbf16>
    %214 = vector.shape_cast %213 : vector<1x8x32xbf16> to vector<8x32xbf16>
    %cst_137 = arith.constant dense<0.000000e+00> : vector<8x32xf32>
    %215 = tpu.matmul %212, %214, %cst_137 {dimension_numbers = #tpu.dot_dimension_numbers<[1], [0], [0], [1], [0, 0, 1, 1], [], []>} : vector<8x8xbf16>, vector<8x32xbf16>, vector<8x32xf32> -> vector<8x32xf32>
    %216 = arith.addf %173, %215 : vector<8x32xf32>
    %c0_138 = arith.constant 0 : index
    %c0_139 = arith.constant 0 : index
    %217 = vector.load %arg17[%c0_138, %c0_139] : memref<1x32xf32, #tpu.memory_space<vmem>>, vector<1x32xf32>
    %218 = vector.broadcast %217 : vector<1x32xf32> to vector<8x32xf32>
    %219 = arith.addf %216, %218 : vector<8x32xf32>
    %220 = arith.addf %39, %219 : vector<8x32xf32>
    %c0_140 = arith.constant 0 : index
    %c0_141 = arith.constant 0 : index
    %c0_142 = arith.constant 0 : index
    %221 = vector.load %arg20[%c0_140, %c0_141, %c0_142] : memref<1x8x32xf32, #tpu.memory_space<vmem>>, vector<1x8x32xf32>
    %222 = vector.shape_cast %221 : vector<1x8x32xf32> to vector<8x32xf32>
    %223 = vector.shape_cast %220 : vector<8x32xf32> to vector<1x8x32xf32>
    tpu.vector_store %arg20[%c0_140, %c0_141, %c0_142], %223 {strides = array<i32>} : memref<1x8x32xf32, #tpu.memory_space<vmem>>, vector<1x8x32xf32>,
    %c0_143 = arith.constant 0 : index
    %c0_144 = arith.constant 0 : index
    %c0_145 = arith.constant 0 : index
    %224 = vector.load %arg19[%c0_143, %c0_144, %c0_145] : memref<1x8x32xf32, #tpu.memory_space<vmem>>, vector<1x8x32xf32>
    %225 = vector.shape_cast %224 : vector<1x8x32xf32> to vector<8x32xf32>
    %c0_146 = arith.constant 0 : index
    %226 = memref.load %arg18[%c0_146] : memref<1xf32, #tpu.memory_space<smem>>
    %227 = vector.broadcast %226 : f32 to vector<8x32xf32>
    %228 = arith.mulf %227, %220 : vector<8x32xf32>
    %229 = arith.addf %225, %228 : vector<8x32xf32>
    %c0_147 = arith.constant 0 : index
    %c0_148 = arith.constant 0 : index
    %c0_149 = arith.constant 0 : index
    %230 = vector.load %arg21[%c0_147, %c0_148, %c0_149] : memref<1x8x32xf32, #tpu.memory_space<vmem>>, vector<1x8x32xf32>
    %231 = vector.shape_cast %230 : vector<1x8x32xf32> to vector<8x32xf32>
    %232 = vector.shape_cast %229 : vector<8x32xf32> to vector<1x8x32xf32>
    tpu.vector_store %arg21[%c0_147, %c0_148, %c0_149], %232 {strides = array<i32>} : memref<1x8x32xf32, #tpu.memory_space<vmem>>, vector<1x8x32xf32>,
    return
  }
  func.func @transform_0(%arg0: i32, %arg1: i32) -> (i32, i32, i32) {
    %c0_i32 = arith.constant 0 : i32
    %c0_i32_0 = arith.constant 0 : i32
    return %arg0, %arg1, %c0_i32 : i32, i32, i32
  }
  func.func @transform_1(%arg0: i32, %arg1: i32) -> (i32, i32) {
    %c0_i32 = arith.constant 0 : i32
    %c0_i32_0 = arith.constant 0 : i32
    %c0_i32_1 = arith.constant 0 : i32
    return %c0_i32, %c0_i32_0 : i32, i32
  }
  func.func @transform_2(%arg0: i32, %arg1: i32) -> (i32, i32) {
    %c0_i32 = arith.constant 0 : i32
    %c0_i32_0 = arith.constant 0 : i32
    %c0_i32_1 = arith.constant 0 : i32
    return %c0_i32, %c0_i32_0 : i32, i32
  }
  func.func @transform_3(%arg0: i32, %arg1: i32) -> (i32, i32) {
    %c0_i32 = arith.constant 0 : i32
    %c0_i32_0 = arith.constant 0 : i32
    %c0_i32_1 = arith.constant 0 : i32
    return %c0_i32, %c0_i32_0 : i32, i32
  }
  func.func @transform_4(%arg0: i32, %arg1: i32) -> (i32, i32) {
    %c0_i32 = arith.constant 0 : i32
    %c0_i32_0 = arith.constant 0 : i32
    %c0_i32_1 = arith.constant 0 : i32
    return %c0_i32, %c0_i32_0 : i32, i32
  }
  func.func @transform_5(%arg0: i32, %arg1: i32) -> (i32, i32) {
    %c0_i32 = arith.constant 0 : i32
    %c0_i32_0 = arith.constant 0 : i32
    %c0_i32_1 = arith.constant 0 : i32
    return %c0_i32, %c0_i32_0 : i32, i32
  }
  func.func @transform_6(%arg0: i32, %arg1: i32) -> (i32, i32) {
    %c0_i32 = arith.constant 0 : i32
    %c0_i32_0 = arith.constant 0 : i32
    %c0_i32_1 = arith.constant 0 : i32
    return %c0_i32, %c0_i32_0 : i32, i32
  }
  func.func @transform_7(%arg0: i32, %arg1: i32) -> (i32, i32, i32) {
    %c0_i32 = arith.constant 0 : i32
    %c0_i32_0 = arith.constant 0 : i32
    %c0_i32_1 = arith.constant 0 : i32
    return %arg0, %c0_i32, %c0_i32_0 : i32, i32, i32
  }
  func.func @transform_8(%arg0: i32, %arg1: i32) -> (i32, i32, i32) {
    %c0_i32 = arith.constant 0 : i32
    %c0_i32_0 = arith.constant 0 : i32
    %c0_i32_1 = arith.constant 0 : i32
    %c0_i32_2 = arith.constant 0 : i32
    return %c0_i32, %c0_i32_0, %c0_i32_1 : i32, i32, i32
  }
  func.func @transform_9(%arg0: i32, %arg1: i32) -> (i32, i32, i32) {
    %c0_i32 = arith.constant 0 : i32
    %c0_i32_0 = arith.constant 0 : i32
    %c0_i32_1 = arith.constant 0 : i32
    %c0_i32_2 = arith.constant 0 : i32
    return %c0_i32, %c0_i32_0, %c0_i32_1 : i32, i32, i32
  }
  func.func @transform_10(%arg0: i32, %arg1: i32) -> (i32, i32, i32) {
    %c0_i32 = arith.constant 0 : i32
    %c0_i32_0 = arith.constant 0 : i32
    %c0_i32_1 = arith.constant 0 : i32
    %c0_i32_2 = arith.constant 0 : i32
    return %c0_i32, %c0_i32_0, %c0_i32_1 : i32, i32, i32
  }
  func.func @transform_11(%arg0: i32, %arg1: i32) -> (i32, i32, i32) {
    %c0_i32 = arith.constant 0 : i32
    %c0_i32_0 = arith.constant 0 : i32
    %c0_i32_1 = arith.constant 0 : i32
    %c0_i32_2 = arith.constant 0 : i32
    return %c0_i32, %c0_i32_0, %c0_i32_1 : i32, i32, i32
  }
  func.func @transform_12(%arg0: i32, %arg1: i32) -> (i32, i32, i32) {
    %c0_i32 = arith.constant 0 : i32
    %c0_i32_0 = arith.constant 0 : i32
    %c0_i32_1 = arith.constant 0 : i32
    %c0_i32_2 = arith.constant 0 : i32
    return %c0_i32, %c0_i32_0, %c0_i32_1 : i32, i32, i32
  }
  func.func @transform_13(%arg0: i32, %arg1: i32) -> (i32, i32, i32) {
    %c0_i32 = arith.constant 0 : i32
    %c0_i32_0 = arith.constant 0 : i32
    %c0_i32_1 = arith.constant 0 : i32
    %c0_i32_2 = arith.constant 0 : i32
    return %c0_i32, %c0_i32_0, %c0_i32_1 : i32, i32, i32
  }
  func.func @transform_14(%arg0: i32, %arg1: i32) -> (i32, i32, i32) {
    %c0_i32 = arith.constant 0 : i32
    %c0_i32_0 = arith.constant 0 : i32
    %c0_i32_1 = arith.constant 0 : i32
    %c0_i32_2 = arith.constant 0 : i32
    return %c0_i32, %c0_i32_0, %c0_i32_1 : i32, i32, i32
  }
  func.func @transform_15(%arg0: i32, %arg1: i32) -> (i32, i32) {
    %c0_i32 = arith.constant 0 : i32
    %c0_i32_0 = arith.constant 0 : i32
    %c0_i32_1 = arith.constant 0 : i32
    return %c0_i32, %c0_i32_0 : i32, i32
  }
  func.func @transform_16(%arg0: i32, %arg1: i32) -> i32 {
    %c0_i32 = arith.constant 0 : i32
    %c0_i32_0 = arith.constant 0 : i32
    return %c0_i32 : i32
  }
  func.func @transform_17(%arg0: i32, %arg1: i32) -> (i32, i32, i32) {
    %c0_i32 = arith.constant 0 : i32
    %c0_i32_0 = arith.constant 0 : i32
    return %arg0, %arg1, %c0_i32 : i32, i32, i32
  }
  func.func @transform_18(%arg0: i32, %arg1: i32) -> (i32, i32, i32) {
    %c0_i32 = arith.constant 0 : i32
    %c0_i32_0 = arith.constant 0 : i32
    return %arg0, %arg1, %c0_i32 : i32, i32, i32
  }
  func.func @transform_19(%arg0: i32, %arg1: i32) -> (i32, i32, i32) {
    %c0_i32 = arith.constant 0 : i32
    %c0_i32_0 = arith.constant 0 : i32
    return %arg0, %arg1, %c0_i32 : i32, i32, i32
  }
}

module attributes {stable_mosaic.version = 11 : i64} {
  func.func @scale_attn_kernel(%arg0: i32, %arg1: i32, %arg2: memref<1x8x32xf32, #tpu.memory_space<vmem>>, %arg3: memref<32x256xbf16, #tpu.memory_space<vmem>>, %arg4: memref<1x256xf32, #tpu.memory_space<vmem>>, %arg5: memref<1x256xf32, #tpu.memory_space<vmem>>, %arg6: memref<1x256xf32, #tpu.memory_space<vmem>>, %arg7: memref<256x32xbf16, #tpu.memory_space<vmem>>, %arg8: memref<1x32xf32, #tpu.memory_space<vmem>>, %arg9: memref<1x8x32xf32, #tpu.memory_space<vmem>>, %arg10: memref<4x32x8xbf16, #tpu.memory_space<vmem>>, %arg11: memref<4x1x8xf32, #tpu.memory_space<vmem>>, %arg12: memref<4x32x8xbf16, #tpu.memory_space<vmem>>, %arg13: memref<4x1x8xf32, #tpu.memory_space<vmem>>, %arg14: memref<4x32x8xbf16, #tpu.memory_space<vmem>>, %arg15: memref<4x1x8xf32, #tpu.memory_space<vmem>>, %arg16: memref<4x8x32xbf16, #tpu.memory_space<vmem>>, %arg17: memref<1x32xf32, #tpu.memory_space<vmem>>, %arg18: memref<1xf32, #tpu.memory_space<smem>>, %arg19: memref<1x8x32xf32, #tpu.memory_space<vmem>>, %arg20: memref<1x8x32xf32, #tpu.memory_space<vmem>>, %arg21: memref<1x8x32xf32, #tpu.memory_space<vmem>>) attributes {dimension_semantics = [#tpu.dimension_semantics<parallel>, #tpu.dimension_semantics<parallel>], iteration_bounds = array<i64: 2, 1>, scalar_prefetch = 0 : i64, scratch_operands = 0 : i64, tpu.core_type = #tpu.core_type<tc>, window_params = [{transform_indices = @transform_0, window_bounds = array<i64: 1, 8, 32>}, {pipeline_mode = #tpu.pipeline_mode<synchronous>, transform_indices = @transform_1, window_bounds = array<i64: 32, 256>}, {pipeline_mode = #tpu.pipeline_mode<synchronous>, transform_indices = @transform_2, window_bounds = array<i64: 1, 256>}, {pipeline_mode = #tpu.pipeline_mode<synchronous>, transform_indices = @transform_3, window_bounds = array<i64: 1, 256>}, {pipeline_mode = #tpu.pipeline_mode<synchronous>, transform_indices = @transform_4, window_bounds = array<i64: 1, 256>}, {pipeline_mode = #tpu.pipeline_mode<synchronous>, transform_indices = @transform_5, window_bounds = array<i64: 256, 32>}, {pipeline_mode = #tpu.pipeline_mode<synchronous>, transform_indices = @transform_6, window_bounds = array<i64: 1, 32>}, {transform_indices = @transform_7, window_bounds = array<i64: 1, 8, 32>}, {pipeline_mode = #tpu.pipeline_mode<synchronous>, transform_indices = @transform_8, window_bounds = array<i64: 4, 32, 8>}, {pipeline_mode = #tpu.pipeline_mode<synchronous>, transform_indices = @transform_9, window_bounds = array<i64: 4, 1, 8>}, {pipeline_mode = #tpu.pipeline_mode<synchronous>, transform_indices = @transform_10, window_bounds = array<i64: 4, 32, 8>}, {pipeline_mode = #tpu.pipeline_mode<synchronous>, transform_indices = @transform_11, window_bounds = array<i64: 4, 1, 8>}, {pipeline_mode = #tpu.pipeline_mode<synchronous>, transform_indices = @transform_12, window_bounds = array<i64: 4, 32, 8>}, {pipeline_mode = #tpu.pipeline_mode<synchronous>, transform_indices = @transform_13, window_bounds = array<i64: 4, 1, 8>}, {pipeline_mode = #tpu.pipeline_mode<synchronous>, transform_indices = @transform_14, window_bounds = array<i64: 4, 8, 32>}, {pipeline_mode = #tpu.pipeline_mode<synchronous>, transform_indices = @transform_15, window_bounds = array<i64: 1, 32>}, {transform_indices = @transform_16, window_bounds = array<i64: 1>}, {transform_indices = @transform_17, window_bounds = array<i64: 1, 8, 32>}, {transform_indices = @transform_18, window_bounds = array<i64: 1, 8, 32>}, {transform_indices = @transform_19, window_bounds = array<i64: 1, 8, 32>}]} {
    %c0 = arith.constant 0 : index
    %c0_0 = arith.constant 0 : index
    %c0_1 = arith.constant 0 : index
    %0 = vector.load %arg2[%c0, %c0_0, %c0_1] : memref<1x8x32xf32, #tpu.memory_space<vmem>>, vector<1x8x32xf32>
    %1 = vector.shape_cast %0 : vector<1x8x32xf32> to vector<8x32xf32>
    %2 = arith.truncf %1 : vector<8x32xf32> to vector<8x32xbf16>
    %c0_2 = arith.constant 0 : index
    %c0_3 = arith.constant 0 : index
    %3 = vector.load %arg3[%c0_2, %c0_3] : memref<32x256xbf16, #tpu.memory_space<vmem>>, vector<32x256xbf16>
    %cst = arith.constant dense<0.000000e+00> : vector<8x256xf32>
    %4 = tpu.matmul %2, %3, %cst {dimension_numbers = #tpu.dot_dimension_numbers<[1], [0], [0], [1], [0, 0, 1, 1], [], []>} : vector<8x32xbf16>, vector<32x256xbf16>, vector<8x256xf32> -> vector<8x256xf32>
    %c0_4 = arith.constant 0 : index
    %c0_5 = arith.constant 0 : index
    %5 = vector.load %arg4[%c0_4, %c0_5] : memref<1x256xf32, #tpu.memory_space<vmem>>, vector<1x256xf32>
    %6 = vector.broadcast %5 : vector<1x256xf32> to vector<8x256xf32>
    %7 = arith.addf %4, %6 : vector<8x256xf32>
    %cst_6 = arith.constant dense<0.000000e+00> : vector<8xf32>
    %8 = vector.multi_reduction <add>, %7, %cst_6 [1] : vector<8x256xf32> to vector<8xf32>
    %9 = vector.shape_cast %8 : vector<8xf32> to vector<8x1xf32>
    %cst_7 = arith.constant 2.560000e+02 : f32
    %10 = vector.broadcast %cst_7 : f32 to vector<8x1xf32>
    %11 = arith.divf %9, %10 : vector<8x1xf32>
    %12 = vector.broadcast %11 : vector<8x1xf32> to vector<8x256xf32>
    %13 = arith.subf %7, %12 : vector<8x256xf32>
    %14 = arith.mulf %13, %13 : vector<8x256xf32>
    %cst_8 = arith.constant dense<0.000000e+00> : vector<8xf32>
    %15 = vector.multi_reduction <add>, %14, %cst_8 [1] : vector<8x256xf32> to vector<8xf32>
    %16 = vector.shape_cast %15 : vector<8xf32> to vector<8x1xf32>
    %cst_9 = arith.constant 2.560000e+02 : f32
    %17 = vector.broadcast %cst_9 : f32 to vector<8x1xf32>
    %18 = arith.divf %16, %17 : vector<8x1xf32>
    %19 = vector.broadcast %11 : vector<8x1xf32> to vector<8x256xf32>
    %20 = arith.subf %7, %19 : vector<8x256xf32>
    %cst_10 = arith.constant 9.99999974E-6 : f32
    %21 = vector.broadcast %cst_10 : f32 to vector<8x1xf32>
    %22 = arith.addf %18, %21 : vector<8x1xf32>
    %23 = math.rsqrt %22 : vector<8x1xf32>
    %24 = vector.broadcast %23 : vector<8x1xf32> to vector<8x256xf32>
    %25 = arith.mulf %20, %24 : vector<8x256xf32>
    %c0_11 = arith.constant 0 : index
    %c0_12 = arith.constant 0 : index
    %26 = vector.load %arg5[%c0_11, %c0_12] : memref<1x256xf32, #tpu.memory_space<vmem>>, vector<1x256xf32>
    %27 = vector.broadcast %26 : vector<1x256xf32> to vector<8x256xf32>
    %28 = arith.mulf %25, %27 : vector<8x256xf32>
    %c0_13 = arith.constant 0 : index
    %c0_14 = arith.constant 0 : index
    %29 = vector.load %arg6[%c0_13, %c0_14] : memref<1x256xf32, #tpu.memory_space<vmem>>, vector<1x256xf32>
    %30 = vector.broadcast %29 : vector<1x256xf32> to vector<8x256xf32>
    %31 = arith.addf %28, %30 : vector<8x256xf32>
    %cst_15 = arith.constant 0.000000e+00 : f32
    %32 = vector.broadcast %cst_15 : f32 to vector<8x256xf32>
    %33 = arith.maximumf %31, %32 : vector<8x256xf32>
    %34 = arith.truncf %33 : vector<8x256xf32> to vector<8x256xbf16>
    %c0_16 = arith.constant 0 : index
    %c0_17 = arith.constant 0 : index
    %35 = vector.load %arg7[%c0_16, %c0_17] : memref<256x32xbf16, #tpu.memory_space<vmem>>, vector<256x32xbf16>
    %cst_18 = arith.constant dense<0.000000e+00> : vector<8x32xf32>
    %36 = tpu.matmul %34, %35, %cst_18 {dimension_numbers = #tpu.dot_dimension_numbers<[1], [0], [0], [1], [0, 0, 1, 1], [], []>} : vector<8x256xbf16>, vector<256x32xbf16>, vector<8x32xf32> -> vector<8x32xf32>
    %c0_19 = arith.constant 0 : index
    %c0_20 = arith.constant 0 : index
    %37 = vector.load %arg8[%c0_19, %c0_20] : memref<1x32xf32, #tpu.memory_space<vmem>>, vector<1x32xf32>
    %38 = vector.broadcast %37 : vector<1x32xf32> to vector<8x32xf32>
    %39 = arith.addf %36, %38 : vector<8x32xf32>
    %c0_21 = arith.constant 0 : index
    %c0_22 = arith.constant 0 : index
    %c0_23 = arith.constant 0 : index
    %40 = vector.load %arg9[%c0_21, %c0_22, %c0_23] : memref<1x8x32xf32, #tpu.memory_space<vmem>>, vector<1x8x32xf32>
    %41 = vector.shape_cast %40 : vector<1x8x32xf32> to vector<8x32xf32>
    %42 = arith.truncf %39 : vector<8x32xf32> to vector<8x32xbf16>
    %43 = arith.truncf %41 : vector<8x32xf32> to vector<8x32xbf16>
    %cst_24 = arith.constant 0.000000e+00 : f32
    %44 = vector.broadcast %cst_24 : f32 to vector<8x32xf32>
    %c0_25 = arith.constant 0 : index
    %c0_26 = arith.constant 0 : index
    %c0_27 = arith.constant 0 : index
    %45 = vector.load %arg10[%c0_25, %c0_26, %c0_27] : memref<4x32x8xbf16, #tpu.memory_space<vmem>>, vector<1x32x8xbf16>
    %46 = vector.shape_cast %45 : vector<1x32x8xbf16> to vector<32x8xbf16>
    %cst_28 = arith.constant dense<0.000000e+00> : vector<8x8xf32>
    %47 = tpu.matmul %42, %46, %cst_28 {dimension_numbers = #tpu.dot_dimension_numbers<[1], [0], [0], [1], [0, 0, 1, 1], [], []>} : vector<8x32xbf16>, vector<32x8xbf16>, vector<8x8xf32> -> vector<8x8xf32>
    %c0_29 = arith.constant 0 : index
    %c0_30 = arith.constant 0 : index
    %c0_31 = arith.constant 0 : index
    %48 = vector.load %arg11[%c0_29, %c0_30, %c0_31] : memref<4x1x8xf32, #tpu.memory_space<vmem>>, vector<1x1x8xf32>
    %49 = vector.shape_cast %48 : vector<1x1x8xf32> to vector<1x8xf32>
    %50 = vector.broadcast %49 : vector<1x8xf32> to vector<8x8xf32>
    %51 = arith.addf %47, %50 : vector<8x8xf32>
    %c0_32 = arith.constant 0 : index
    %c0_33 = arith.constant 0 : index
    %c0_34 = arith.constant 0 : index
    %52 = vector.load %arg12[%c0_32, %c0_33, %c0_34] : memref<4x32x8xbf16, #tpu.memory_space<vmem>>, vector<1x32x8xbf16>
    %53 = vector.shape_cast %52 : vector<1x32x8xbf16> to vector<32x8xbf16>
    %cst_35 = arith.constant dense<0.000000e+00> : vector<8x8xf32>
    %54 = tpu.matmul %43, %53, %cst_35 {dimension_numbers = #tpu.dot_dimension_numbers<[1], [0], [0], [1], [0, 0, 1, 1], [], []>} : vector<8x32xbf16>, vector<32x8xbf16>, vector<8x8xf32> -> vector<8x8xf32>
    %c0_36 = arith.constant 0 : index
    %c0_37 = arith.constant 0 : index
    %c0_38 = arith.constant 0 : index
    %55 = vector.load %arg13[%c0_36, %c0_37, %c0_38] : memref<4x1x8xf32, #tpu.memory_space<vmem>>, vector<1x1x8xf32>
    %56 = vector.shape_cast %55 : vector<1x1x8xf32> to vector<1x8xf32>
    %57 = vector.broadcast %56 : vector<1x8xf32> to vector<8x8xf32>
    %58 = arith.addf %54, %57 : vector<8x8xf32>
    %c0_39 = arith.constant 0 : index
    %c0_40 = arith.constant 0 : index
    %c0_41 = arith.constant 0 : index
    %59 = vector.load %arg14[%c0_39, %c0_40, %c0_41] : memref<4x32x8xbf16, #tpu.memory_space<vmem>>, vector<1x32x8xbf16>
    %60 = vector.shape_cast %59 : vector<1x32x8xbf16> to vector<32x8xbf16>
    %cst_42 = arith.constant dense<0.000000e+00> : vector<8x8xf32>
    %61 = tpu.matmul %43, %60, %cst_42 {dimension_numbers = #tpu.dot_dimension_numbers<[1], [0], [0], [1], [0, 0, 1, 1], [], []>} : vector<8x32xbf16>, vector<32x8xbf16>, vector<8x8xf32> -> vector<8x8xf32>
    %c0_43 = arith.constant 0 : index
    %c0_44 = arith.constant 0 : index
    %c0_45 = arith.constant 0 : index
    %62 = vector.load %arg15[%c0_43, %c0_44, %c0_45] : memref<4x1x8xf32, #tpu.memory_space<vmem>>, vector<1x1x8xf32>
    %63 = vector.shape_cast %62 : vector<1x1x8xf32> to vector<1x8xf32>
    %64 = vector.broadcast %63 : vector<1x8xf32> to vector<8x8xf32>
    %65 = arith.addf %61, %64 : vector<8x8xf32>
    %66 = arith.truncf %51 : vector<8x8xf32> to vector<8x8xbf16>
    %67 = arith.truncf %58 : vector<8x8xf32> to vector<8x8xbf16>
    %68 = tpu.transpose %67, [1, 0] : vector<8x8xbf16> -> vector<8x8xbf16>
    %cst_46 = arith.constant dense<0.000000e+00> : vector<8x8xf32>
    %69 = tpu.matmul %66, %68, %cst_46 {dimension_numbers = #tpu.dot_dimension_numbers<[1], [0], [0], [1], [0, 0, 1, 1], [], []>} : vector<8x8xbf16>, vector<8x8xbf16>, vector<8x8xf32> -> vector<8x8xf32>
    %cst_47 = arith.constant dense<0xFF800000> : vector<8xf32>
    %70 = vector.multi_reduction <maximumf>, %69, %cst_47 [1] : vector<8x8xf32> to vector<8xf32>
    %71 = vector.shape_cast %70 : vector<8xf32> to vector<8x1xf32>
    %72 = vector.broadcast %71 : vector<8x1xf32> to vector<8x8xf32>
    %73 = arith.subf %69, %72 : vector<8x8xf32>
    %74 = math.exp %73 : vector<8x8xf32>
    %cst_48 = arith.constant dense<0.000000e+00> : vector<8xf32>
    %75 = vector.multi_reduction <add>, %74, %cst_48 [1] : vector<8x8xf32> to vector<8xf32>
    %76 = vector.shape_cast %75 : vector<8xf32> to vector<8x1xf32>
    %77 = tpu.reciprocal %76 {approx = true} : vector<8x1xf32> -> vector<8x1xf32>
    %78 = vector.broadcast %77 : vector<8x1xf32> to vector<8x8xf32>
    %79 = arith.mulf %74, %78 : vector<8x8xf32>
    %80 = arith.truncf %79 : vector<8x8xf32> to vector<8x8xbf16>
    %81 = arith.truncf %65 : vector<8x8xf32> to vector<8x8xbf16>
    %cst_49 = arith.constant dense<0.000000e+00> : vector<8x8xf32>
    %82 = tpu.matmul %80, %81, %cst_49 {dimension_numbers = #tpu.dot_dimension_numbers<[1], [0], [0], [1], [0, 0, 1, 1], [], []>} : vector<8x8xbf16>, vector<8x8xbf16>, vector<8x8xf32> -> vector<8x8xf32>
    %83 = arith.truncf %82 : vector<8x8xf32> to vector<8x8xbf16>
    %c0_50 = arith.constant 0 : index
    %c0_51 = arith.constant 0 : index
    %c0_52 = arith.constant 0 : index
    %84 = vector.load %arg16[%c0_50, %c0_51, %c0_52] : memref<4x8x32xbf16, #tpu.memory_space<vmem>>, vector<1x8x32xbf16>
    %85 = vector.shape_cast %84 : vector<1x8x32xbf16> to vector<8x32xbf16>
    %cst_53 = arith.constant dense<0.000000e+00> : vector<8x32xf32>
    %86 = tpu.matmul %83, %85, %cst_53 {dimension_numbers = #tpu.dot_dimension_numbers<[1], [0], [0], [1], [0, 0, 1, 1], [], []>} : vector<8x8xbf16>, vector<8x32xbf16>, vector<8x32xf32> -> vector<8x32xf32>
    %87 = arith.addf %44, %86 : vector<8x32xf32>
    %c1 = arith.constant 1 : index
    %c0_54 = arith.constant 0 : index
    %c0_55 = arith.constant 0 : index
    %88 = vector.load %arg10[%c1, %c0_54, %c0_55] : memref<4x32x8xbf16, #tpu.memory_space<vmem>>, vector<1x32x8xbf16>
    %89 = vector.shape_cast %88 : vector<1x32x8xbf16> to vector<32x8xbf16>
    %cst_56 = arith.constant dense<0.000000e+00> : vector<8x8xf32>
    %90 = tpu.matmul %42, %89, %cst_56 {dimension_numbers = #tpu.dot_dimension_numbers<[1], [0], [0], [1], [0, 0, 1, 1], [], []>} : vector<8x32xbf16>, vector<32x8xbf16>, vector<8x8xf32> -> vector<8x8xf32>
    %c1_57 = arith.constant 1 : index
    %c0_58 = arith.constant 0 : index
    %c0_59 = arith.constant 0 : index
    %91 = vector.load %arg11[%c1_57, %c0_58, %c0_59] : memref<4x1x8xf32, #tpu.memory_space<vmem>>, vector<1x1x8xf32>
    %92 = vector.shape_cast %91 : vector<1x1x8xf32> to vector<1x8xf32>
    %93 = vector.broadcast %92 : vector<1x8xf32> to vector<8x8xf32>
    %94 = arith.addf %90, %93 : vector<8x8xf32>
    %c1_60 = arith.constant 1 : index
    %c0_61 = arith.constant 0 : index
    %c0_62 = arith.constant 0 : index
    %95 = vector.load %arg12[%c1_60, %c0_61, %c0_62] : memref<4x32x8xbf16, #tpu.memory_space<vmem>>, vector<1x32x8xbf16>
    %96 = vector.shape_cast %95 : vector<1x32x8xbf16> to vector<32x8xbf16>
    %cst_63 = arith.constant dense<0.000000e+00> : vector<8x8xf32>
    %97 = tpu.matmul %43, %96, %cst_63 {dimension_numbers = #tpu.dot_dimension_numbers<[1], [0], [0], [1], [0, 0, 1, 1], [], []>} : vector<8x32xbf16>, vector<32x8xbf16>, vector<8x8xf32> -> vector<8x8xf32>
    %c1_64 = arith.constant 1 : index
    %c0_65 = arith.constant 0 : index
    %c0_66 = arith.constant 0 : index
    %98 = vector.load %arg13[%c1_64, %c0_65, %c0_66] : memref<4x1x8xf32, #tpu.memory_space<vmem>>, vector<1x1x8xf32>
    %99 = vector.shape_cast %98 : vector<1x1x8xf32> to vector<1x8xf32>
    %100 = vector.broadcast %99 : vector<1x8xf32> to vector<8x8xf32>
    %101 = arith.addf %97, %100 : vector<8x8xf32>
    %c1_67 = arith.constant 1 : index
    %c0_68 = arith.constant 0 : index
    %c0_69 = arith.constant 0 : index
    %102 = vector.load %arg14[%c1_67, %c0_68, %c0_69] : memref<4x32x8xbf16, #tpu.memory_space<vmem>>, vector<1x32x8xbf16>
    %103 = vector.shape_cast %102 : vector<1x32x8xbf16> to vector<32x8xbf16>
    %cst_70 = arith.constant dense<0.000000e+00> : vector<8x8xf32>
    %104 = tpu.matmul %43, %103, %cst_70 {dimension_numbers = #tpu.dot_dimension_numbers<[1], [0], [0], [1], [0, 0, 1, 1], [], []>} : vector<8x32xbf16>, vector<32x8xbf16>, vector<8x8xf32> -> vector<8x8xf32>
    %c1_71 = arith.constant 1 : index
    %c0_72 = arith.constant 0 : index
    %c0_73 = arith.constant 0 : index
    %105 = vector.load %arg15[%c1_71, %c0_72, %c0_73] : memref<4x1x8xf32, #tpu.memory_space<vmem>>, vector<1x1x8xf32>
    %106 = vector.shape_cast %105 : vector<1x1x8xf32> to vector<1x8xf32>
    %107 = vector.broadcast %106 : vector<1x8xf32> to vector<8x8xf32>
    %108 = arith.addf %104, %107 : vector<8x8xf32>
    %109 = arith.truncf %94 : vector<8x8xf32> to vector<8x8xbf16>
    %110 = arith.truncf %101 : vector<8x8xf32> to vector<8x8xbf16>
    %111 = tpu.transpose %110, [1, 0] : vector<8x8xbf16> -> vector<8x8xbf16>
    %cst_74 = arith.constant dense<0.000000e+00> : vector<8x8xf32>
    %112 = tpu.matmul %109, %111, %cst_74 {dimension_numbers = #tpu.dot_dimension_numbers<[1], [0], [0], [1], [0, 0, 1, 1], [], []>} : vector<8x8xbf16>, vector<8x8xbf16>, vector<8x8xf32> -> vector<8x8xf32>
    %cst_75 = arith.constant dense<0xFF800000> : vector<8xf32>
    %113 = vector.multi_reduction <maximumf>, %112, %cst_75 [1] : vector<8x8xf32> to vector<8xf32>
    %114 = vector.shape_cast %113 : vector<8xf32> to vector<8x1xf32>
    %115 = vector.broadcast %114 : vector<8x1xf32> to vector<8x8xf32>
    %116 = arith.subf %112, %115 : vector<8x8xf32>
    %117 = math.exp %116 : vector<8x8xf32>
    %cst_76 = arith.constant dense<0.000000e+00> : vector<8xf32>
    %118 = vector.multi_reduction <add>, %117, %cst_76 [1] : vector<8x8xf32> to vector<8xf32>
    %119 = vector.shape_cast %118 : vector<8xf32> to vector<8x1xf32>
    %120 = tpu.reciprocal %119 {approx = true} : vector<8x1xf32> -> vector<8x1xf32>
    %121 = vector.broadcast %120 : vector<8x1xf32> to vector<8x8xf32>
    %122 = arith.mulf %117, %121 : vector<8x8xf32>
    %123 = arith.truncf %122 : vector<8x8xf32> to vector<8x8xbf16>
    %124 = arith.truncf %108 : vector<8x8xf32> to vector<8x8xbf16>
    %cst_77 = arith.constant dense<0.000000e+00> : vector<8x8xf32>
    %125 = tpu.matmul %123, %124, %cst_77 {dimension_numbers = #tpu.dot_dimension_numbers<[1], [0], [0], [1], [0, 0, 1, 1], [], []>} : vector<8x8xbf16>, vector<8x8xbf16>, vector<8x8xf32> -> vector<8x8xf32>
    %126 = arith.truncf %125 : vector<8x8xf32> to vector<8x8xbf16>
    %c1_78 = arith.constant 1 : index
    %c0_79 = arith.constant 0 : index
    %c0_80 = arith.constant 0 : index
    %127 = vector.load %arg16[%c1_78, %c0_79, %c0_80] : memref<4x8x32xbf16, #tpu.memory_space<vmem>>, vector<1x8x32xbf16>
    %128 = vector.shape_cast %127 : vector<1x8x32xbf16> to vector<8x32xbf16>
    %cst_81 = arith.constant dense<0.000000e+00> : vector<8x32xf32>
    %129 = tpu.matmul %126, %128, %cst_81 {dimension_numbers = #tpu.dot_dimension_numbers<[1], [0], [0], [1], [0, 0, 1, 1], [], []>} : vector<8x8xbf16>, vector<8x32xbf16>, vector<8x32xf32> -> vector<8x32xf32>
    %130 = arith.addf %87, %129 : vector<8x32xf32>
    %c2 = arith.constant 2 : index
    %c0_82 = arith.constant 0 : index
    %c0_83 = arith.constant 0 : index
    %131 = vector.load %arg10[%c2, %c0_82, %c0_83] : memref<4x32x8xbf16, #tpu.memory_space<vmem>>, vector<1x32x8xbf16>
    %132 = vector.shape_cast %131 : vector<1x32x8xbf16> to vector<32x8xbf16>
    %cst_84 = arith.constant dense<0.000000e+00> : vector<8x8xf32>
    %133 = tpu.matmul %42, %132, %cst_84 {dimension_numbers = #tpu.dot_dimension_numbers<[1], [0], [0], [1], [0, 0, 1, 1], [], []>} : vector<8x32xbf16>, vector<32x8xbf16>, vector<8x8xf32> -> vector<8x8xf32>
    %c2_85 = arith.constant 2 : index
    %c0_86 = arith.constant 0 : index
    %c0_87 = arith.constant 0 : index
    %134 = vector.load %arg11[%c2_85, %c0_86, %c0_87] : memref<4x1x8xf32, #tpu.memory_space<vmem>>, vector<1x1x8xf32>
    %135 = vector.shape_cast %134 : vector<1x1x8xf32> to vector<1x8xf32>
    %136 = vector.broadcast %135 : vector<1x8xf32> to vector<8x8xf32>
    %137 = arith.addf %133, %136 : vector<8x8xf32>
    %c2_88 = arith.constant 2 : index
    %c0_89 = arith.constant 0 : index
    %c0_90 = arith.constant 0 : index
    %138 = vector.load %arg12[%c2_88, %c0_89, %c0_90] : memref<4x32x8xbf16, #tpu.memory_space<vmem>>, vector<1x32x8xbf16>
    %139 = vector.shape_cast %138 : vector<1x32x8xbf16> to vector<32x8xbf16>
    %cst_91 = arith.constant dense<0.000000e+00> : vector<8x8xf32>
    %140 = tpu.matmul %43, %139, %cst_91 {dimension_numbers = #tpu.dot_dimension_numbers<[1], [0], [0], [1], [0, 0, 1, 1], [], []>} : vector<8x32xbf16>, vector<32x8xbf16>, vector<8x8xf32> -> vector<8x8xf32>
    %c2_92 = arith.constant 2 : index
    %c0_93 = arith.constant 0 : index
    %c0_94 = arith.constant 0 : index
    %141 = vector.load %arg13[%c2_92, %c0_93, %c0_94] : memref<4x1x8xf32, #tpu.memory_space<vmem>>, vector<1x1x8xf32>
    %142 = vector.shape_cast %141 : vector<1x1x8xf32> to vector<1x8xf32>
    %143 = vector.broadcast %142 : vector<1x8xf32> to vector<8x8xf32>
    %144 = arith.addf %140, %143 : vector<8x8xf32>
    %c2_95 = arith.constant 2 : index
    %c0_96 = arith.constant 0 : index
    %c0_97 = arith.constant 0 : index
    %145 = vector.load %arg14[%c2_95, %c0_96, %c0_97] : memref<4x32x8xbf16, #tpu.memory_space<vmem>>, vector<1x32x8xbf16>
    %146 = vector.shape_cast %145 : vector<1x32x8xbf16> to vector<32x8xbf16>
    %cst_98 = arith.constant dense<0.000000e+00> : vector<8x8xf32>
    %147 = tpu.matmul %43, %146, %cst_98 {dimension_numbers = #tpu.dot_dimension_numbers<[1], [0], [0], [1], [0, 0, 1, 1], [], []>} : vector<8x32xbf16>, vector<32x8xbf16>, vector<8x8xf32> -> vector<8x8xf32>
    %c2_99 = arith.constant 2 : index
    %c0_100 = arith.constant 0 : index
    %c0_101 = arith.constant 0 : index
    %148 = vector.load %arg15[%c2_99, %c0_100, %c0_101] : memref<4x1x8xf32, #tpu.memory_space<vmem>>, vector<1x1x8xf32>
    %149 = vector.shape_cast %148 : vector<1x1x8xf32> to vector<1x8xf32>
    %150 = vector.broadcast %149 : vector<1x8xf32> to vector<8x8xf32>
    %151 = arith.addf %147, %150 : vector<8x8xf32>
    %152 = arith.truncf %137 : vector<8x8xf32> to vector<8x8xbf16>
    %153 = arith.truncf %144 : vector<8x8xf32> to vector<8x8xbf16>
    %154 = tpu.transpose %153, [1, 0] : vector<8x8xbf16> -> vector<8x8xbf16>
    %cst_102 = arith.constant dense<0.000000e+00> : vector<8x8xf32>
    %155 = tpu.matmul %152, %154, %cst_102 {dimension_numbers = #tpu.dot_dimension_numbers<[1], [0], [0], [1], [0, 0, 1, 1], [], []>} : vector<8x8xbf16>, vector<8x8xbf16>, vector<8x8xf32> -> vector<8x8xf32>
    %cst_103 = arith.constant dense<0xFF800000> : vector<8xf32>
    %156 = vector.multi_reduction <maximumf>, %155, %cst_103 [1] : vector<8x8xf32> to vector<8xf32>
    %157 = vector.shape_cast %156 : vector<8xf32> to vector<8x1xf32>
    %158 = vector.broadcast %157 : vector<8x1xf32> to vector<8x8xf32>
    %159 = arith.subf %155, %158 : vector<8x8xf32>
    %160 = math.exp %159 : vector<8x8xf32>
    %cst_104 = arith.constant dense<0.000000e+00> : vector<8xf32>
    %161 = vector.multi_reduction <add>, %160, %cst_104 [1] : vector<8x8xf32> to vector<8xf32>
    %162 = vector.shape_cast %161 : vector<8xf32> to vector<8x1xf32>
    %163 = tpu.reciprocal %162 {approx = true} : vector<8x1xf32> -> vector<8x1xf32>
    %164 = vector.broadcast %163 : vector<8x1xf32> to vector<8x8xf32>
    %165 = arith.mulf %160, %164 : vector<8x8xf32>
    %166 = arith.truncf %165 : vector<8x8xf32> to vector<8x8xbf16>
    %167 = arith.truncf %151 : vector<8x8xf32> to vector<8x8xbf16>
    %cst_105 = arith.constant dense<0.000000e+00> : vector<8x8xf32>
    %168 = tpu.matmul %166, %167, %cst_105 {dimension_numbers = #tpu.dot_dimension_numbers<[1], [0], [0], [1], [0, 0, 1, 1], [], []>} : vector<8x8xbf16>, vector<8x8xbf16>, vector<8x8xf32> -> vector<8x8xf32>
    %169 = arith.truncf %168 : vector<8x8xf32> to vector<8x8xbf16>
    %c2_106 = arith.constant 2 : index
    %c0_107 = arith.constant 0 : index
    %c0_108 = arith.constant 0 : index
    %170 = vector.load %arg16[%c2_106, %c0_107, %c0_108] : memref<4x8x32xbf16, #tpu.memory_space<vmem>>, vector<1x8x32xbf16>
    %171 = vector.shape_cast %170 : vector<1x8x32xbf16> to vector<8x32xbf16>
    %cst_109 = arith.constant dense<0.000000e+00> : vector<8x32xf32>
    %172 = tpu.matmul %169, %171, %cst_109 {dimension_numbers = #tpu.dot_dimension_numbers<[1], [0], [0], [1], [0, 0, 1, 1], [], []>} : vector<8x8xbf16>, vector<8x32xbf16>, vector<8x32xf32> -> vector<8x32xf32>
    %173 = arith.addf %130, %172 : vector<8x32xf32>
    %c3 = arith.constant 3 : index
    %c0_110 = arith.constant 0 : index
    %c0_111 = arith.constant 0 : index
    %174 = vector.load %arg10[%c3, %c0_110, %c0_111] : memref<4x32x8xbf16, #tpu.memory_space<vmem>>, vector<1x32x8xbf16>
    %175 = vector.shape_cast %174 : vector<1x32x8xbf16> to vector<32x8xbf16>
    %cst_112 = arith.constant dense<0.000000e+00> : vector<8x8xf32>
    %176 = tpu.matmul %42, %175, %cst_112 {dimension_numbers = #tpu.dot_dimension_numbers<[1], [0], [0], [1], [0, 0, 1, 1], [], []>} : vector<8x32xbf16>, vector<32x8xbf16>, vector<8x8xf32> -> vector<8x8xf32>
    %c3_113 = arith.constant 3 : index
    %c0_114 = arith.constant 0 : index
    %c0_115 = arith.constant 0 : index
    %177 = vector.load %arg11[%c3_113, %c0_114, %c0_115] : memref<4x1x8xf32, #tpu.memory_space<vmem>>, vector<1x1x8xf32>
    %178 = vector.shape_cast %177 : vector<1x1x8xf32> to vector<1x8xf32>
    %179 = vector.broadcast %178 : vector<1x8xf32> to vector<8x8xf32>
    %180 = arith.addf %176, %179 : vector<8x8xf32>
    %c3_116 = arith.constant 3 : index
    %c0_117 = arith.constant 0 : index
    %c0_118 = arith.constant 0 : index
    %181 = vector.load %arg12[%c3_116, %c0_117, %c0_118] : memref<4x32x8xbf16, #tpu.memory_space<vmem>>, vector<1x32x8xbf16>
    %182 = vector.shape_cast %181 : vector<1x32x8xbf16> to vector<32x8xbf16>
    %cst_119 = arith.constant dense<0.000000e+00> : vector<8x8xf32>
    %183 = tpu.matmul %43, %182, %cst_119 {dimension_numbers = #tpu.dot_dimension_numbers<[1], [0], [0], [1], [0, 0, 1, 1], [], []>} : vector<8x32xbf16>, vector<32x8xbf16>, vector<8x8xf32> -> vector<8x8xf32>
    %c3_120 = arith.constant 3 : index
    %c0_121 = arith.constant 0 : index
    %c0_122 = arith.constant 0 : index
    %184 = vector.load %arg13[%c3_120, %c0_121, %c0_122] : memref<4x1x8xf32, #tpu.memory_space<vmem>>, vector<1x1x8xf32>
    %185 = vector.shape_cast %184 : vector<1x1x8xf32> to vector<1x8xf32>
    %186 = vector.broadcast %185 : vector<1x8xf32> to vector<8x8xf32>
    %187 = arith.addf %183, %186 : vector<8x8xf32>
    %c3_123 = arith.constant 3 : index
    %c0_124 = arith.constant 0 : index
    %c0_125 = arith.constant 0 : index
    %188 = vector.load %arg14[%c3_123, %c0_124, %c0_125] : memref<4x32x8xbf16, #tpu.memory_space<vmem>>, vector<1x32x8xbf16>
    %189 = vector.shape_cast %188 : vector<1x32x8xbf16> to vector<32x8xbf16>
    %cst_126 = arith.constant dense<0.000000e+00> : vector<8x8xf32>
    %190 = tpu.matmul %43, %189, %cst_126 {dimension_numbers = #tpu.dot_dimension_numbers<[1], [0], [0], [1], [0, 0, 1, 1], [], []>} : vector<8x32xbf16>, vector<32x8xbf16>, vector<8x8xf32> -> vector<8x8xf32>
    %c3_127 = arith.constant 3 : index
    %c0_128 = arith.constant 0 : index
    %c0_129 = arith.constant 0 : index
    %191 = vector.load %arg15[%c3_127, %c0_128, %c0_129] : memref<4x1x8xf32, #tpu.memory_space<vmem>>, vector<1x1x8xf32>
    %192 = vector.shape_cast %191 : vector<1x1x8xf32> to vector<1x8xf32>
    %193 = vector.broadcast %192 : vector<1x8xf32> to vector<8x8xf32>
    %194 = arith.addf %190, %193 : vector<8x8xf32>
    %195 = arith.truncf %180 : vector<8x8xf32> to vector<8x8xbf16>
    %196 = arith.truncf %187 : vector<8x8xf32> to vector<8x8xbf16>
    %197 = tpu.transpose %196, [1, 0] : vector<8x8xbf16> -> vector<8x8xbf16>
    %cst_130 = arith.constant dense<0.000000e+00> : vector<8x8xf32>
    %198 = tpu.matmul %195, %197, %cst_130 {dimension_numbers = #tpu.dot_dimension_numbers<[1], [0], [0], [1], [0, 0, 1, 1], [], []>} : vector<8x8xbf16>, vector<8x8xbf16>, vector<8x8xf32> -> vector<8x8xf32>
    %cst_131 = arith.constant dense<0xFF800000> : vector<8xf32>
    %199 = vector.multi_reduction <maximumf>, %198, %cst_131 [1] : vector<8x8xf32> to vector<8xf32>
    %200 = vector.shape_cast %199 : vector<8xf32> to vector<8x1xf32>
    %201 = vector.broadcast %200 : vector<8x1xf32> to vector<8x8xf32>
    %202 = arith.subf %198, %201 : vector<8x8xf32>
    %203 = math.exp %202 : vector<8x8xf32>
    %cst_132 = arith.constant dense<0.000000e+00> : vector<8xf32>
    %204 = vector.multi_reduction <add>, %203, %cst_132 [1] : vector<8x8xf32> to vector<8xf32>
    %205 = vector.shape_cast %204 : vector<8xf32> to vector<8x1xf32>
    %206 = tpu.reciprocal %205 {approx = true} : vector<8x1xf32> -> vector<8x1xf32>
    %207 = vector.broadcast %206 : vector<8x1xf32> to vector<8x8xf32>
    %208 = arith.mulf %203, %207 : vector<8x8xf32>
    %209 = arith.truncf %208 : vector<8x8xf32> to vector<8x8xbf16>
    %210 = arith.truncf %194 : vector<8x8xf32> to vector<8x8xbf16>
    %cst_133 = arith.constant dense<0.000000e+00> : vector<8x8xf32>
    %211 = tpu.matmul %209, %210, %cst_133 {dimension_numbers = #tpu.dot_dimension_numbers<[1], [0], [0], [1], [0, 0, 1, 1], [], []>} : vector<8x8xbf16>, vector<8x8xbf16>, vector<8x8xf32> -> vector<8x8xf32>
    %212 = arith.truncf %211 : vector<8x8xf32> to vector<8x8xbf16>
    %c3_134 = arith.constant 3 : index
    %c0_135 = arith.constant 0 : index
    %c0_136 = arith.constant 0 : index
    %213 = vector.load %arg16[%c3_134, %c0_135, %c0_136] : memref<4x8x32xbf16, #tpu.memory_space<vmem>>, vector<1x8x32xbf16>
    %214 = vector.shape_cast %213 : vector<1x8x32xbf16> to vector<8x32xbf16>
    %cst_137 = arith.constant dense<0.000000e+00> : vector<8x32xf32>
    %215 = tpu.matmul %212, %214, %cst_137 {dimension_numbers = #tpu.dot_dimension_numbers<[1], [0], [0], [1], [0, 0, 1, 1], [], []>} : vector<8x8xbf16>, vector<8x32xbf16>, vector<8x32xf32> -> vector<8x32xf32>
    %216 = arith.addf %173, %215 : vector<8x32xf32>
    %c0_138 = arith.constant 0 : index
    %c0_139 = arith.constant 0 : index
    %217 = vector.load %arg17[%c0_138, %c0_139] : memref<1x32xf32, #tpu.memory_space<vmem>>, vector<1x32xf32>
    %218 = vector.broadcast %217 : vector<1x32xf32> to vector<8x32xf32>
    %219 = arith.addf %216, %218 : vector<8x32xf32>
    %220 = arith.addf %39, %219 : vector<8x32xf32>
    %c0_140 = arith.constant 0 : index
    %c0_141 = arith.constant 0 : index
    %c0_142 = arith.constant 0 : index
    %221 = vector.load %arg20[%c0_140, %c0_141, %c0_142] : memref<1x8x32xf32, #tpu.memory_space<vmem>>, vector<1x8x32xf32>
    %222 = vector.shape_cast %221 : vector<1x8x32xf32> to vector<8x32xf32>
    %223 = vector.shape_cast %220 : vector<8x32xf32> to vector<1x8x32xf32>
    tpu.vector_store %arg20[%c0_140, %c0_141, %c0_142], %223 {strides = array<i32>} : memref<1x8x32xf32, #tpu.memory_space<vmem>>, vector<1x8x32xf32>,
    %c0_143 = arith.constant 0 : index
    %c0_144 = arith.constant 0 : index
    %c0_145 = arith.constant 0 : index
    %224 = vector.load %arg19[%c0_143, %c0_144, %c0_145] : memref<1x8x32xf32, #tpu.memory_space<vmem>>, vector<1x8x32xf32>
    %225 = vector.shape_cast %224 : vector<1x8x32xf32> to vector<8x32xf32>
    %c0_146 = arith.constant 0 : index
    %226 = memref.load %arg18[%c0_146] : memref<1xf32, #tpu.memory_space<smem>>
    %227 = vector.broadcast %226 : f32 to vector<8x32xf32>
    %228 = arith.mulf %227, %220 : vector<8x32xf32>
    %229 = arith.addf %225, %228 : vector<8x32xf32>
    %c0_147 = arith.constant 0 : index
    %c0_148 = arith.constant 0 : index
    %c0_149 = arith.constant 0 : index
    %230 = vector.load %arg21[%c0_147, %c0_148, %c0_149] : memref<1x8x32xf32, #tpu.memory_space<vmem>>, vector<1x8x32xf32>
    %231 = vector.shape_cast %230 : vector<1x8x32xf32> to vector<8x32xf32>
    %232 = vector.shape_cast %229 : vector<8x32xf32> to vector<1x8x32xf32>
    tpu.vector_store %arg21[%c0_147, %c0_148, %c0_149], %232 {strides = array<i32>} : memref<1x8x32xf32, #tpu.memory_space<vmem>>, vector<1x8x32xf32>,
    return
  }
  func.func @transform_0(%arg0: i32, %arg1: i32) -> (i32, i32, i32) {
    %c0_i32 = arith.constant 0 : i32
    %c0_i32_0 = arith.constant 0 : i32
    return %arg0, %arg1, %c0_i32 : i32, i32, i32
  }
  func.func @transform_1(%arg0: i32, %arg1: i32) -> (i32, i32) {
    %c0_i32 = arith.constant 0 : i32
    %c0_i32_0 = arith.constant 0 : i32
    %c0_i32_1 = arith.constant 0 : i32
    return %c0_i32, %c0_i32_0 : i32, i32
  }
  func.func @transform_2(%arg0: i32, %arg1: i32) -> (i32, i32) {
    %c0_i32 = arith.constant 0 : i32
    %c0_i32_0 = arith.constant 0 : i32
    %c0_i32_1 = arith.constant 0 : i32
    return %c0_i32, %c0_i32_0 : i32, i32
  }
  func.func @transform_3(%arg0: i32, %arg1: i32) -> (i32, i32) {
    %c0_i32 = arith.constant 0 : i32
    %c0_i32_0 = arith.constant 0 : i32
    %c0_i32_1 = arith.constant 0 : i32
    return %c0_i32, %c0_i32_0 : i32, i32
  }
  func.func @transform_4(%arg0: i32, %arg1: i32) -> (i32, i32) {
    %c0_i32 = arith.constant 0 : i32
    %c0_i32_0 = arith.constant 0 : i32
    %c0_i32_1 = arith.constant 0 : i32
    return %c0_i32, %c0_i32_0 : i32, i32
  }
  func.func @transform_5(%arg0: i32, %arg1: i32) -> (i32, i32) {
    %c0_i32 = arith.constant 0 : i32
    %c0_i32_0 = arith.constant 0 : i32
    %c0_i32_1 = arith.constant 0 : i32
    return %c0_i32, %c0_i32_0 : i32, i32
  }
  func.func @transform_6(%arg0: i32, %arg1: i32) -> (i32, i32) {
    %c0_i32 = arith.constant 0 : i32
    %c0_i32_0 = arith.constant 0 : i32
    %c0_i32_1 = arith.constant 0 : i32
    return %c0_i32, %c0_i32_0 : i32, i32
  }
  func.func @transform_7(%arg0: i32, %arg1: i32) -> (i32, i32, i32) {
    %c0_i32 = arith.constant 0 : i32
    %c0_i32_0 = arith.constant 0 : i32
    %c0_i32_1 = arith.constant 0 : i32
    return %arg0, %c0_i32, %c0_i32_0 : i32, i32, i32
  }
  func.func @transform_8(%arg0: i32, %arg1: i32) -> (i32, i32, i32) {
    %c0_i32 = arith.constant 0 : i32
    %c0_i32_0 = arith.constant 0 : i32
    %c0_i32_1 = arith.constant 0 : i32
    %c0_i32_2 = arith.constant 0 : i32
    return %c0_i32, %c0_i32_0, %c0_i32_1 : i32, i32, i32
  }
  func.func @transform_9(%arg0: i32, %arg1: i32) -> (i32, i32, i32) {
    %c0_i32 = arith.constant 0 : i32
    %c0_i32_0 = arith.constant 0 : i32
    %c0_i32_1 = arith.constant 0 : i32
    %c0_i32_2 = arith.constant 0 : i32
    return %c0_i32, %c0_i32_0, %c0_i32_1 : i32, i32, i32
  }
  func.func @transform_10(%arg0: i32, %arg1: i32) -> (i32, i32, i32) {
    %c0_i32 = arith.constant 0 : i32
    %c0_i32_0 = arith.constant 0 : i32
    %c0_i32_1 = arith.constant 0 : i32
    %c0_i32_2 = arith.constant 0 : i32
    return %c0_i32, %c0_i32_0, %c0_i32_1 : i32, i32, i32
  }
  func.func @transform_11(%arg0: i32, %arg1: i32) -> (i32, i32, i32) {
    %c0_i32 = arith.constant 0 : i32
    %c0_i32_0 = arith.constant 0 : i32
    %c0_i32_1 = arith.constant 0 : i32
    %c0_i32_2 = arith.constant 0 : i32
    return %c0_i32, %c0_i32_0, %c0_i32_1 : i32, i32, i32
  }
  func.func @transform_12(%arg0: i32, %arg1: i32) -> (i32, i32, i32) {
    %c0_i32 = arith.constant 0 : i32
    %c0_i32_0 = arith.constant 0 : i32
    %c0_i32_1 = arith.constant 0 : i32
    %c0_i32_2 = arith.constant 0 : i32
    return %c0_i32, %c0_i32_0, %c0_i32_1 : i32, i32, i32
  }
  func.func @transform_13(%arg0: i32, %arg1: i32) -> (i32, i32, i32) {
    %c0_i32 = arith.constant 0 : i32
    %c0_i32_0 = arith.constant 0 : i32
    %c0_i32_1 = arith.constant 0 : i32
    %c0_i32_2 = arith.constant 0 : i32
    return %c0_i32, %c0_i32_0, %c0_i32_1 : i32, i32, i32
  }
  func.func @transform_14(%arg0: i32, %arg1: i32) -> (i32, i32, i32) {
    %c0_i32 = arith.constant 0 : i32
    %c0_i32_0 = arith.constant 0 : i32
    %c0_i32_1 = arith.constant 0 : i32
    %c0_i32_2 = arith.constant 0 : i32
    return %c0_i32, %c0_i32_0, %c0_i32_1 : i32, i32, i32
  }
  func.func @transform_15(%arg0: i32, %arg1: i32) -> (i32, i32) {
    %c0_i32 = arith.constant 0 : i32
    %c0_i32_0 = arith.constant 0 : i32
    %c0_i32_1 = arith.constant 0 : i32
    return %c0_i32, %c0_i32_0 : i32, i32
  }
  func.func @transform_16(%arg0: i32, %arg1: i32) -> i32 {
    %c0_i32 = arith.constant 0 : i32
    %c0_i32_0 = arith.constant 0 : i32
    return %c0_i32 : i32
  }
  func.func @transform_17(%arg0: i32, %arg1: i32) -> (i32, i32, i32) {
    %c0_i32 = arith.constant 0 : i32
    %c0_i32_0 = arith.constant 0 : i32
    return %arg0, %arg1, %c0_i32 : i32, i32, i32
  }
  func.func @transform_18(%arg0: i32, %arg1: i32) -> (i32, i32, i32) {
    %c0_i32 = arith.constant 0 : i32
    %c0_i32_0 = arith.constant 0 : i32
    return %arg0, %arg1, %c0_i32 : i32, i32, i32
  }
  func.func @transform_19(%arg0: i32, %arg1: i32) -> (i32, i32, i32) {
    %c0_i32 = arith.constant 0 : i32
    %c0_i32_0 = arith.constant 0 : i32
    return %arg0, %arg1, %c0_i32 : i32, i32, i32
  }
}

</mosaic_0001>

<llo_original>
// kernel: multi_scale_operator_forward.4
$region0: #{multi_scale_operator_forward.4}
  #allocation0 [shape = 'u32[]', space=smem, size = 0x4, offset = 0x4, fixed_abs, tag = 'smem constant byte address 0x4 - core index']
  #allocation1 [shape = 'u32[72,128]{1,0:T(1,128)}', space=vmem, size = 0x9000, scoped, tag = 'internal scratch']
  #allocation2 [shape = 'f32[1]{0:T(128)S(6)}', space=smem, size = 0x200, scoped, tag = 'scoped memory for multi_scale_operator_forward.4']
  %s0 = inlined_call_operand.vmem [shape: f32[16,32], index: 0, kind: input, shape index: {}]
  %s1 = inlined_call_operand.vmem [shape: bf16[32,32], index: 1, kind: input, shape index: {}]
  %s2 = inlined_call_operand.hbm [shape: f32[1,32], index: 2, kind: input, shape index: {}]
  %s3 = inlined_call_operand.hbm [shape: f32[1,32], index: 3, kind: input, shape index: {}]
  %s4 = inlined_call_operand.hbm [shape: f32[1,32], index: 4, kind: input, shape index: {}]
  %s5 = inlined_call_operand.vmem [shape: bf16[32,32], index: 5, kind: input, shape index: {}]
  %s6 = inlined_call_operand.hbm [shape: f32[1,32], index: 6, kind: input, shape index: {}]
  %s7 = inlined_call_operand.<no memory space> [shape: f32[1], index: 7, kind: input, shape index: {}]
  %s8 = inlined_call_operand.vmem [shape: f32[16,32], index: 8, kind: output, shape index: {0}]
  %s9 = inlined_call_operand.vmem [shape: f32[16,32], index: 9, kind: output, shape index: {1}]
  %10 = xla_tuple %s8, %s9
  %s11 = sld [smem:[#allocation0]]
  $region66: #{multi_scale_operator_forward.4} parent=0
    _
  %s13 = ssub.s32 1, %s11
  %s14 = scalar_select 0, %s13, %s11
  %15 = sst [smem:[#allocation2]] %s7
  $region1: #{multi_scale_operator_forward.4} parent=0
    #allocation3 [shape = 'u8[512]{0}', space=vmem, size = 0x400, scoped, tag = 'input window, operand 2, single buffered']
    #allocation4 [shape = 's32[1]{0}', space=sflag, size = 0x4, scoped, tag = 'scoped memory for multi_scale_operator_forward.4']
    #allocation5 [shape = 'u8[512]{0}', space=vmem, size = 0x400, scoped, tag = 'input window, operand 3, single buffered']
    #allocation6 [shape = 's32[1]{0}', space=sflag, size = 0x4, scoped, tag = 'scoped memory for multi_scale_operator_forward.4']
    #allocation7 [shape = 'u8[512]{0}', space=vmem, size = 0x400, scoped, tag = 'input window, operand 4, single buffered']
    #allocation8 [shape = 'u8[512]{0}', space=vmem, size = 0x400, scoped, tag = 'input window, operand 6, single buffered']
    #allocation9 [shape = 's32[1]{0}', space=sflag, size = 0x4, scoped, tag = 'scoped memory for multi_scale_operator_forward.4']
    %16 = vsyncpa [#allocation4], 0
    %17 = vsyncpa [#allocation6], 0
    %18 = vsyncpa [#allocation9], 0
    // Predicated region
    $region2: #{multi_scale_operator_forward.4} parent=1 // pred_check
      _
    $region3: #{multi_scale_operator_forward.4} parent=1 // pred_check_branch
      %20 = sbr.rel (0) target = $region5
    $region4: #{multi_scale_operator_forward.4} parent=1 // pred_region
      _
    $region5: #{multi_scale_operator_forward.4} parent=1 // pred_fallthru
      _
    // Predicated region
    $region6: #{multi_scale_operator_forward.4} parent=1 // pred_check
      _
    $region7: #{multi_scale_operator_forward.4} parent=1 // pred_check_branch
      %22 = sbr.rel (0) target = $region9
    $region8: #{multi_scale_operator_forward.4} parent=1 // pred_region
      _
    $region9: #{multi_scale_operator_forward.4} parent=1 // pred_fallthru
      _
    // Predicated region
    $region10: #{multi_scale_operator_forward.4} parent=1 // pred_check
      _
    $region11: #{multi_scale_operator_forward.4} parent=1 // pred_check_branch
      %24 = sbr.rel (0) target = $region13
    $region12: #{multi_scale_operator_forward.4} parent=1 // pred_region
      %26 = vsyncadd [#allocation4], 0
      %s28 = sshll.u32 %s2, 4
      %s29 = int_to_ptr.hbm [resolvable:$true] %s28
      %s30 = sshll.u32 [#allocation3], 4
      %s31 = int_to_ptr.vmem [resolvable:$true] %s30
      %33 = dma.hbm_to_vmem [thread:$0]  %s29, 16, %s31, [#allocation4]
    $region13: #{multi_scale_operator_forward.4} parent=1 // pred_fallthru
      _
    // Predicated region
    $region14: #{multi_scale_operator_forward.4} parent=1 // pred_check
      _
    $region15: #{multi_scale_operator_forward.4} parent=1 // pred_check_branch
      %35 = sbr.rel (0) target = $region17
    $region16: #{multi_scale_operator_forward.4} parent=1 // pred_region
      %37 = vsyncadd [#allocation6], 0
      %s39 = sshll.u32 %s3, 4
      %s40 = int_to_ptr.hbm [resolvable:$true] %s39
      %s41 = sshll.u32 [#allocation5], 4
      %s42 = int_to_ptr.vmem [resolvable:$true] %s41
      %44 = dma.hbm_to_vmem [thread:$0]  %s40, 16, %s42, [#allocation6]
    $region17: #{multi_scale_operator_forward.4} parent=1 // pred_fallthru
      _
    // Predicated region
    $region18: #{multi_scale_operator_forward.4} parent=1 // pred_check
      _
    $region19: #{multi_scale_operator_forward.4} parent=1 // pred_check_branch
      %46 = sbr.rel (0) target = $region21
    $region20: #{multi_scale_operator_forward.4} parent=1 // pred_region
      %48 = vsyncadd [#allocation6], 0
      %s50 = sshll.u32 %s4, 4
      %s51 = int_to_ptr.hbm [resolvable:$true] %s50
      %s52 = sshll.u32 [#allocation7], 4
      %s53 = int_to_ptr.vmem [resolvable:$true] %s52
      %55 = dma.hbm_to_vmem [thread:$0]  %s51, 16, %s53, [#allocation6]
    $region21: #{multi_scale_operator_forward.4} parent=1 // pred_fallthru
      _
    // Predicated region
    $region22: #{multi_scale_operator_forward.4} parent=1 // pred_check
      _
    $region23: #{multi_scale_operator_forward.4} parent=1 // pred_check_branch
      %57 = sbr.rel (0) target = $region25
    $region24: #{multi_scale_operator_forward.4} parent=1 // pred_region
      _
    $region25: #{multi_scale_operator_forward.4} parent=1 // pred_fallthru
      _
    // Predicated region
    $region26: #{multi_scale_operator_forward.4} parent=1 // pred_check
      _
    $region27: #{multi_scale_operator_forward.4} parent=1 // pred_check_branch
      %59 = sbr.rel (0) target = $region29
    $region28: #{multi_scale_operator_forward.4} parent=1 // pred_region
      %61 = vsyncadd [#allocation9], 0
      %s63 = sshll.u32 %s6, 4
      %s64 = int_to_ptr.hbm [resolvable:$true] %s63
      %s65 = sshll.u32 [#allocation8], 4
      %s66 = int_to_ptr.vmem [resolvable:$true] %s65
      %68 = dma.hbm_to_vmem [thread:$0]  %s64, 16, %s66, [#allocation9]
    $region29: #{multi_scale_operator_forward.4} parent=1 // pred_fallthru
      _
    // Predicated region
    $region30: #{multi_scale_operator_forward.4} parent=1 // pred_check
      _
    $region31: #{multi_scale_operator_forward.4} parent=1 // pred_check_branch
      %70 = sbr.rel (0) target = $region33
    $region32: #{multi_scale_operator_forward.4} parent=1 // pred_region
      _
    $region33: #{multi_scale_operator_forward.4} parent=1 // pred_fallthru
      _
    // Predicated region
    $region34: #{multi_scale_operator_forward.4} parent=1 // pred_check
      _
    $region35: #{multi_scale_operator_forward.4} parent=1 // pred_check_branch
      %72 = sbr.rel (0) target = $region37
    $region36: #{multi_scale_operator_forward.4} parent=1 // pred_region
      %74 = dma.done [#allocation4], 16
    $region37: #{multi_scale_operator_forward.4} parent=1 // pred_fallthru
      _
    // Predicated region
    $region38: #{multi_scale_operator_forward.4} parent=1 // pred_check
      _
    $region39: #{multi_scale_operator_forward.4} parent=1 // pred_check_branch
      %76 = sbr.rel (0) target = $region41
    $region40: #{multi_scale_operator_forward.4} parent=1 // pred_region
      %78 = dma.done [#allocation6], 16
    $region41: #{multi_scale_operator_forward.4} parent=1 // pred_fallthru
      _
    // Predicated region
    $region42: #{multi_scale_operator_forward.4} parent=1 // pred_check
      _
    $region43: #{multi_scale_operator_forward.4} parent=1 // pred_check_branch
      %80 = sbr.rel (0) target = $region45
    $region44: #{multi_scale_operator_forward.4} parent=1 // pred_region
      %82 = dma.done [#allocation6], 16
    $region45: #{multi_scale_operator_forward.4} parent=1 // pred_fallthru
      _
    // Predicated region
    $region46: #{multi_scale_operator_forward.4} parent=1 // pred_check
      _
    $region47: #{multi_scale_operator_forward.4} parent=1 // pred_check_branch
      %84 = sbr.rel (0) target = $region49
    $region48: #{multi_scale_operator_forward.4} parent=1 // pred_region
      %86 = dma.done [#allocation9], 16
    $region49: #{multi_scale_operator_forward.4} parent=1 // pred_fallthru
      _
    %v88 = vld [vmem:[%s0] sm:$0xff]
    %v89 = vld [vmem:[%s0 + $0x8] sm:$0xff]
    %v90 = vpack.c.bf16 %v89, %v88
    %v91 = vld [vmem:[%s1] sm:$0xf]
    %v92 = vld [vmem:[%s1 + $0x4] sm:$0xf]
    %v93 = vld [vmem:[%s1 + $0x8] sm:$0xf]
    %v94 = vld [vmem:[%s1 + $0xc] sm:$0xf]
    %v95 = vld [vmem:[#allocation3] sm:$0x1]
    %v97 = vperm.slane %v95, 0
    %v103 = vunpack.c.l.b16 %v91
    %v104 = vunpack.c.l.b16 %v92
    %v105 = vunpack.c.l.b16 %v93
    %v106 = vunpack.c.l.b16 %v94
    %v107 = vpack.c.b16 %v104, %v103
    %v108 = vpack.c.b16 %v106, %v105
    %vm111 = vcmask 261120
    %v113 = vsel %vm111, %v90, 0
    %115 = vmatpush.bf16.msra.mxu0 0
    %116 = vmatpush.bf16.msra.mxu0 0
    %117 = vmatpush.bf16.msra.mxu0 0
    %118 = vmatpush.bf16.msra.mxu0 0
    %119 = vmatpush.bf16.msra.mxu0 0
    %120 = vmatpush.bf16.msra.mxu0 0
    %121 = vmatpush.bf16.msra.mxu0 %v108
    %122 = vmatpush.bf16.msra.mxu0 %v107
    %123 = vmatmul.bf16.gmra.mxu0 %v113
    %v124 = vpop.f32.mrf.mxu0
    %v125 = vadd.f32 %v97, %v124
    %v126 = vpop.f32.mrf.mxu0
    %v127 = vadd.f32 %v97, %v126
    %128 = vdwg.mxu0
    %v129 = vsel %vm111, %v125, 0.0
    %130 = vadd.xlane.f32.xlu0 %v129
    %v131 = vpop.xlane.xlu0 %130
    %v132 = vsel %vm111, %v127, 0.0
    %133 = vadd.xlane.f32.xlu0 %v132
    %v134 = vpop.xlane.xlu0 %133
    %v135 = vrcp.pop 32.0
    %v136 = vmul.f32 32.0, %v135
    %v137 = vsub.f32 1.0, %v136
    %v138 = vmul.f32 %v135, %v137
    %v139 = vadd.f32 %v135, %v138
    %vm140 = vweird.f32 %v135
    %v141 = vsel %vm140, %v135, %v139
    %v142 = vmul.f32 %v131, %v141
    %v143 = vmul.f32 %v134, %v141
    %v144 = vsub.f32 %v125, %v142
    %v145 = vsub.f32 %v127, %v143
    %v146 = vmul.f32 %v144, %v144
    %v147 = vmul.f32 %v145, %v145
    %v148 = vsel %vm111, %v146, 0.0
    %149 = vadd.xlane.f32.xlu0 %v148
    %v150 = vpop.xlane.xlu0 %149
    %v151 = vsel %vm111, %v147, 0.0
    %152 = vadd.xlane.f32.xlu0 %v151
    %v153 = vpop.xlane.xlu0 %152
    %v154 = vmul.f32 %v150, %v141
    %v155 = vmul.f32 %v153, %v141
    %v156 = vadd.f32 %v154, 1e-05
    %v157 = vadd.f32 %v155, 1e-05
    %v158 = vrsqrt.pop %v156
    %v159 = vmul.f32 %v158, %v156
    %v160 = vmul.f32 %v159, %v158
    %v161 = vmul.f32 0.5, %v160
    %v162 = vsub.f32 1.5, %v161
    %v163 = vmul.f32 %v158, %v162
    %vm164 = vweird.f32 %v156
    %vm165 = vweird.f32 %v158
    %vm166 = vmor %vm164, %vm165
    %v167 = vsel %vm166, %v158, %v163
    %v168 = vrsqrt.pop %v157
    %v169 = vmul.f32 %v168, %v157
    %v170 = vmul.f32 %v169, %v168
    %v171 = vmul.f32 0.5, %v170
    %v172 = vsub.f32 1.5, %v171
    %v173 = vmul.f32 %v168, %v172
    %vm174 = vweird.f32 %v157
    %vm175 = vweird.f32 %v168
    %vm176 = vmor %vm174, %vm175
    %v177 = vsel %vm176, %v168, %v173
    %v178 = vmul.f32 %v144, %v167
    %v179 = vmul.f32 %v145, %v177
    %v180 = vld [vmem:[#allocation5] sm:$0x1]
    %v182 = vperm.slane %v180, 0
    %v184 = vmul.f32 %v178, %v182
    %v185 = vmul.f32 %v179, %v182
    %v186 = vld [vmem:[#allocation7] sm:$0x1]
    %v188 = vperm.slane %v186, 0
    %v190 = vadd.f32 %v184, %v188
    %v191 = vadd.f32 %v185, %v188
    %v192 = vmax.f32 %v190, 0.0
    %v193 = vmax.f32 %v191, 0.0
    %v194 = vpack.c.bf16 %v193, %v192
    %v195 = vld [vmem:[%s5] sm:$0xf]
    %v196 = vld [vmem:[%s5 + $0x4] sm:$0xf]
    %v197 = vld [vmem:[%s5 + $0x8] sm:$0xf]
    %v198 = vld [vmem:[%s5 + $0xc] sm:$0xf]
    %v199 = vld [vmem:[#allocation8] sm:$0x1]
    %v201 = vperm.slane %v199, 0
    %v207 = vunpack.c.l.b16 %v195
    %v208 = vunpack.c.l.b16 %v196
    %v209 = vunpack.c.l.b16 %v197
    %v210 = vunpack.c.l.b16 %v198
    %v211 = vpack.c.b16 %v208, %v207
    %v212 = vpack.c.b16 %v210, %v209
    %v216 = vsel %vm111, %v194, 0
    %218 = vmatpush.bf16.msra.mxu0 0
    %219 = vmatpush.bf16.msra.mxu0 0
    %220 = vmatpush.bf16.msra.mxu0 0
    %221 = vmatpush.bf16.msra.mxu0 0
    %222 = vmatpush.bf16.msra.mxu0 0
    %223 = vmatpush.bf16.msra.mxu0 0
    %224 = vmatpush.bf16.msra.mxu0 %v212
    %225 = vmatpush.bf16.msra.mxu0 %v211
    %226 = vmatmul.bf16.gmra.mxu0 %v216
    %v227 = vpop.f32.mrf.mxu0
    %v228 = vadd.f32 %v201, %v227
    %v229 = vpop.f32.mrf.mxu0
    %v230 = vadd.f32 %v201, %v229
    %231 = vdwg.mxu0
    %232 = vst.msk [vmem:[%s8] sm:$0xff] %vm111, %v228
    %233 = vst.msk [vmem:[%s8 + $0x8] sm:$0xff] %vm111, %v230
    %s234 = sld [smem:[#allocation2]]
    %v235 = vstv %s234
    %v236 = vmul.f32 %v235, %v228
    %v237 = vmul.f32 %v235, %v230
    %238 = vst.msk [vmem:[%s9] sm:$0xff] %vm111, %v236
    %239 = vst.msk [vmem:[%s9 + $0x8] sm:$0xff] %vm111, %v237
    // Predicated region
    $region50: #{multi_scale_operator_forward.4} parent=1 // pred_check
      _
    $region51: #{multi_scale_operator_forward.4} parent=1 // pred_check_branch
      %241 = sbr.rel (0) target = $region53
    $region52: #{multi_scale_operator_forward.4} parent=1 // pred_region
      _
    $region53: #{multi_scale_operator_forward.4} parent=1 // pred_fallthru
      _
    // Predicated region
    $region54: #{multi_scale_operator_forward.4} parent=1 // pred_check
      _
    $region55: #{multi_scale_operator_forward.4} parent=1 // pred_check_branch
      %243 = sbr.rel (0) target = $region57
    $region56: #{multi_scale_operator_forward.4} parent=1 // pred_region
      _
    $region57: #{multi_scale_operator_forward.4} parent=1 // pred_fallthru
      _
    // Predicated region
    $region58: #{multi_scale_operator_forward.4} parent=1 // pred_check
      _
    $region59: #{multi_scale_operator_forward.4} parent=1 // pred_check_branch
      %245 = sbr.rel (0) target = $region61
    $region60: #{multi_scale_operator_forward.4} parent=1 // pred_region
      _
    $region61: #{multi_scale_operator_forward.4} parent=1 // pred_fallthru
      _
    // Predicated region
    $region62: #{multi_scale_operator_forward.4} parent=1 // pred_check
      _
    $region63: #{multi_scale_operator_forward.4} parent=1 // pred_check_branch
      %247 = sbr.rel (0) target = $region65
    $region64: #{multi_scale_operator_forward.4} parent=1 // pred_region
      _
    $region65: #{multi_scale_operator_forward.4} parent=1 // pred_fallthru
      _
    %248 = vsyncpa [#allocation4], 1
    %249 = vsyncpa [#allocation6], 1
    %250 = vsyncpa [#allocation9], 1

// kernel: multi_scale_operator_forward.6
$region0: #{multi_scale_operator_forward.6}
  #allocation0 [shape = 'u32[]', space=smem, size = 0x4, offset = 0x4, fixed_abs, tag = 'smem constant byte address 0x4 - core index']
  #allocation1 [shape = 'u32[72,128]{1,0:T(1,128)}', space=vmem, size = 0x9000, scoped, tag = 'internal scratch']
  #allocation2 [shape = 'f32[1]{0:T(128)S(6)}', space=smem, size = 0x200, scoped, tag = 'scoped memory for multi_scale_operator_forward.6']
  %s0 = inlined_call_operand.vmem [shape: f32[2,8,32], index: 0, kind: input, shape index: {}]
  %s1 = inlined_call_operand.vmem [shape: bf16[32,128], index: 1, kind: input, shape index: {}]
  %s2 = inlined_call_operand.vmem [shape: f32[1,128], index: 2, kind: input, shape index: {}]
  %s3 = inlined_call_operand.vmem [shape: f32[1,128], index: 3, kind: input, shape index: {}]
  %s4 = inlined_call_operand.vmem [shape: f32[1,128], index: 4, kind: input, shape index: {}]
  %s5 = inlined_call_operand.vmem [shape: bf16[128,32], index: 5, kind: input, shape index: {}]
  %s6 = inlined_call_operand.vmem [shape: f32[1,32], index: 6, kind: input, shape index: {}]
  %s7 = inlined_call_operand.vmem [shape: f32[2,8,32], index: 7, kind: input, shape index: {}]
  %s8 = inlined_call_operand.vmem [shape: bf16[4,32,8], index: 8, kind: input, shape index: {}]
  %s9 = inlined_call_operand.vmem [shape: f32[4,1,8], index: 9, kind: input, shape index: {}]
  %s10 = inlined_call_operand.vmem [shape: bf16[4,32,8], index: 10, kind: input, shape index: {}]
  %s11 = inlined_call_operand.vmem [shape: f32[4,1,8], index: 11, kind: input, shape index: {}]
  %s12 = inlined_call_operand.vmem [shape: bf16[4,32,8], index: 12, kind: input, shape index: {}]
  %s13 = inlined_call_operand.vmem [shape: f32[4,1,8], index: 13, kind: input, shape index: {}]
  %s14 = inlined_call_operand.vmem [shape: bf16[4,8,32], index: 14, kind: input, shape index: {}]
  %s15 = inlined_call_operand.vmem [shape: f32[1,32], index: 15, kind: input, shape index: {}]
  %s16 = inlined_call_operand.<no memory space> [shape: f32[1], index: 16, kind: input, shape index: {}]
  %s17 = inlined_call_operand.vmem [shape: f32[2,8,32], index: 17, kind: input, shape index: {}, may-alias: {17,19}]
  %s18 = inlined_call_operand.vmem [shape: f32[2,8,32], index: 18, kind: output, shape index: {0}]
  %s19 = inlined_call_operand.vmem [shape: f32[2,8,32], index: 19, kind: output, shape index: {1}, may-alias: {17,19}]
  %20 = xla_tuple %s18, %s19
  %s21 = sld [smem:[#allocation0]]
  $region113: #{multi_scale_operator_forward.6} parent=0
    _
  %s23 = ssub.s32 1, %s21
  %s24 = scalar_select 0, %s23, %s21
  %25 = sst [smem:[#allocation2]] %s16
  loop: start=0, step=1, limit=4
  $region2: #{multi_scale_operator_forward.6} parent=0 // loop_pre_header
    _
  $region3: #{multi_scale_operator_forward.6} parent=0 // loop_header
    %s27 = sphi 0, %s31
    %p28 = scmp.ge.s32.totalorder %s27, 4
    %s34 = sphi 0, %s46
    %s35 = sphi 0, %s42
    %s36 = sphi 0, %s34
    %s37 = sphi 0, %s35
    %s38 = sphi 0, %s36
    %s39 = sphi 0, %s37
    %s51 = sphi 0, %s53
    %s54 = sphi 0, %s51
    %s55 = sphi 0, %s54
    %s71 = sphi 0, %s55
    %s75 = sphi 0, %s75
    %s77 = sphi 0, %s75
    %s78 = sphi 0, %s77
    %s92 = sphi 0, %s78
    %s96 = sphi 0, %s96
    %s98 = sphi 0, %s96
    %s99 = sphi 0, %s98
    %s113 = sphi 0, %s99
    %s117 = sphi 0, %s117
    %s119 = sphi 0, %s117
    %s120 = sphi 0, %s119
    %s134 = sphi 0, %s120
    %s138 = sphi 0, %s138
    %s140 = sphi 0, %s138
    %s141 = sphi 0, %s140
    %s155 = sphi 0, %s141
    %s159 = sphi 0, %s159
    %s161 = sphi 0, %s159
    %s162 = sphi 0, %s161
    %s176 = sphi 0, %s162
    %s180 = sphi 0, %s180
    %s182 = sphi 0, %s180
    %s183 = sphi 0, %s182
    %s197 = sphi 0, %s183
    %s203 = sphi 0, %s205
    %s206 = sphi 0, %s203
    %s207 = sphi 0, %s206
    %s223 = sphi 0, %s207
    %s227 = sphi 0, %s227
    %s229 = sphi 0, %s227
    %s230 = sphi 0, %s229
    %s244 = sphi 0, %s230
    %s248 = sphi 0, %s248
    %s250 = sphi 0, %s248
    %s251 = sphi 0, %s250
    %s265 = sphi 0, %s251
    %s269 = sphi 0, %s269
    %s271 = sphi 0, %s269
    %s272 = sphi 0, %s271
    %s286 = sphi 0, %s272
    %s290 = sphi 0, %s290
    %s292 = sphi 0, %s290
    %s293 = sphi 0, %s292
    %s307 = sphi 0, %s293
    %s311 = sphi 0, %s311
    %s313 = sphi 0, %s311
    %s314 = sphi 0, %s313
    %s328 = sphi 0, %s314
    %s332 = sphi 0, %s332
    %s334 = sphi 0, %s332
    %s335 = sphi 0, %s334
    %s349 = sphi 0, %s335
    %s353 = sphi 0, %s353
    %s355 = sphi 0, %s353
    %s356 = sphi 0, %s355
    %s370 = sphi 0, %s356
    %s374 = sphi 0, %s374
    %s376 = sphi 0, %s374
    %s377 = sphi 0, %s376
    %s391 = sphi 0, %s377
    %s395 = sphi 0, %s395
    %s397 = sphi 0, %s395
    %s398 = sphi 0, %s397
    %s412 = sphi 0, %s398
    %s420 = sphi 0, %s422
    %s423 = sphi 0, %s420
    %s424 = sphi 0, %s423
    %s440 = sphi 0, %s424
    %s448 = sphi 0, %s450
    %s451 = sphi 0, %s448
    %s452 = sphi 0, %s451
    %s468 = sphi 0, %s452
    %s476 = sphi 0, %s478
    %s479 = sphi 0, %s476
    %s480 = sphi 0, %s479
    %s496 = sphi 0, %s480
  $region4: #{multi_scale_operator_forward.6} parent=0 // loop_header_branch
    %30 = sbr.rel (%p28) target = $region8
  $region5: #{multi_scale_operator_forward.6} parent=0 // loop_body
    %s32 = ssub.s32 %s27, 1
    %s33 = ssub.s32 %s27, 2
    %s40 = sadd.s32 1, %s35
    %p41 = scmp.ge.s32.totalorder %s40, 1
    %s42 = scalar_select %p41, 0, %s40
    %s43 = sadd.s32 1, %s34
    %s44 = scalar_select %p41, %s43, %s34
    %p45 = scmp.ge.s32.totalorder %s44, 2
    %s46 = scalar_select %p45, 0, %s44
    %s47 = ssub.s32 %s34, %s46
    %s48 = ssub.s32 %s35, %s42
    %s49 = sor.u32 %s47, %s48
    %p50 = scmp.eq.s32.totalorder %s49, 0
    %s52 = sadd.s32 %s51, 1
    %s53 = scalar_select %p50, %s51, %s52
    %p56 = pneg %p50
    %p57 = scmp.eq.s32.totalorder %s27, 1
    %p58 = por %p56, %p57
    %p59 = scmp.ne.s32.totalorder %s51, %s54
    %p60 = scmp.eq.s32.totalorder %s27, 0
    %p61 = por %p59, %p60
    %p62 = scmp.ne.s32.totalorder %s51, %s54
    %p63 = scmp.eq.s32.totalorder %s32, 1
    %p64 = por %p62, %p63
    %p65 = scmp.ne.s32.totalorder %s54, %s55
    %p66 = scmp.eq.s32.totalorder %s32, 0
    %p67 = por %p65, %p66
    %p68 = scmp.ne.s32.totalorder %s54, %s55
    %p69 = scmp.eq.s32.totalorder %s33, 1
    %p70 = por %p68, %p69
    %p72 = scmp.ne.s32.totalorder %s55, %s71
    %p73 = scmp.eq.s32.totalorder %s33, 0
    %p74 = por %p72, %p73
    %s76 = sadd.s32 %s75, 1
    %p79 = scmp.eq.s32.totalorder %s27, 1
    %p80 = scmp.ne.s32.totalorder %s75, %s77
    %p81 = scmp.eq.s32.totalorder %s27, 0
    %p82 = por %p80, %p81
    %p83 = scmp.ne.s32.totalorder %s75, %s77
    %p84 = scmp.eq.s32.totalorder %s32, 1
    %p85 = por %p83, %p84
    %p86 = scmp.ne.s32.totalorder %s77, %s78
    %p87 = scmp.eq.s32.totalorder %s32, 0
    %p88 = por %p86, %p87
    %p89 = scmp.ne.s32.totalorder %s77, %s78
    %p90 = scmp.eq.s32.totalorder %s33, 1
    %p91 = por %p89, %p90
    %p93 = scmp.ne.s32.totalorder %s78, %s92
    %p94 = scmp.eq.s32.totalorder %s33, 0
    %p95 = por %p93, %p94
    %s97 = sadd.s32 %s96, 1
    %p100 = scmp.eq.s32.totalorder %s27, 1
    %p101 = scmp.ne.s32.totalorder %s96, %s98
    %p102 = scmp.eq.s32.totalorder %s27, 0
    %p103 = por %p101, %p102
    %p104 = scmp.ne.s32.totalorder %s96, %s98
    %p105 = scmp.eq.s32.totalorder %s32, 1
    %p106 = por %p104, %p105
    %p107 = scmp.ne.s32.totalorder %s98, %s99
    %p108 = scmp.eq.s32.totalorder %s32, 0
    %p109 = por %p107, %p108
    %p110 = scmp.ne.s32.totalorder %s98, %s99
    %p111 = scmp.eq.s32.totalorder %s33, 1
    %p112 = por %p110, %p111
    %p114 = scmp.ne.s32.totalorder %s99, %s113
    %p115 = scmp.eq.s32.totalorder %s33, 0
    %p116 = por %p114, %p115
    %s118 = sadd.s32 %s117, 1
    %p121 = scmp.eq.s32.totalorder %s27, 1
    %p122 = scmp.ne.s32.totalorder %s117, %s119
    %p123 = scmp.eq.s32.totalorder %s27, 0
    %p124 = por %p122, %p123
    %p125 = scmp.ne.s32.totalorder %s117, %s119
    %p126 = scmp.eq.s32.totalorder %s32, 1
    %p127 = por %p125, %p126
    %p128 = scmp.ne.s32.totalorder %s119, %s120
    %p129 = scmp.eq.s32.totalorder %s32, 0
    %p130 = por %p128, %p129
    %p131 = scmp.ne.s32.totalorder %s119, %s120
    %p132 = scmp.eq.s32.totalorder %s33, 1
    %p133 = por %p131, %p132
    %p135 = scmp.ne.s32.totalorder %s120, %s134
    %p136 = scmp.eq.s32.totalorder %s33, 0
    %p137 = por %p135, %p136
    %s139 = sadd.s32 %s138, 1
    %p142 = scmp.eq.s32.totalorder %s27, 1
    %p143 = scmp.ne.s32.totalorder %s138, %s140
    %p144 = scmp.eq.s32.totalorder %s27, 0
    %p145 = por %p143, %p144
    %p146 = scmp.ne.s32.totalorder %s138, %s140
    %p147 = scmp.eq.s32.totalorder %s32, 1
    %p148 = por %p146, %p147
    %p149 = scmp.ne.s32.totalorder %s140, %s141
    %p150 = scmp.eq.s32.totalorder %s32, 0
    %p151 = por %p149, %p150
    %p152 = scmp.ne.s32.totalorder %s140, %s141
    %p153 = scmp.eq.s32.totalorder %s33, 1
    %p154 = por %p152, %p153
    %p156 = scmp.ne.s32.totalorder %s141, %s155
    %p157 = scmp.eq.s32.totalorder %s33, 0
    %p158 = por %p156, %p157
    %s160 = sadd.s32 %s159, 1
    %p163 = scmp.eq.s32.totalorder %s27, 1
    %p164 = scmp.ne.s32.totalorder %s159, %s161
    %p165 = scmp.eq.s32.totalorder %s27, 0
    %p166 = por %p164, %p165
    %p167 = scmp.ne.s32.totalorder %s159, %s161
    %p168 = scmp.eq.s32.totalorder %s32, 1
    %p169 = por %p167, %p168
    %p170 = scmp.ne.s32.totalorder %s161, %s162
    %p171 = scmp.eq.s32.totalorder %s32, 0
    %p172 = por %p170, %p171
    %p173 = scmp.ne.s32.totalorder %s161, %s162
    %p174 = scmp.eq.s32.totalorder %s33, 1
    %p175 = por %p173, %p174
    %p177 = scmp.ne.s32.totalorder %s162, %s176
    %p178 = scmp.eq.s32.totalorder %s33, 0
    %p179 = por %p177, %p178
    %s181 = sadd.s32 %s180, 1
    %p184 = scmp.eq.s32.totalorder %s27, 1
    %p185 = scmp.ne.s32.totalorder %s180, %s182
    %p186 = scmp.eq.s32.totalorder %s27, 0
    %p187 = por %p185, %p186
    %p188 = scmp.ne.s32.totalorder %s180, %s182
    %p189 = scmp.eq.s32.totalorder %s32, 1
    %p190 = por %p188, %p189
    %p191 = scmp.ne.s32.totalorder %s182, %s183
    %p192 = scmp.eq.s32.totalorder %s32, 0
    %p193 = por %p191, %p192
    %p194 = scmp.ne.s32.totalorder %s182, %s183
    %p195 = scmp.eq.s32.totalorder %s33, 1
    %p196 = por %p194, %p195
    %p198 = scmp.ne.s32.totalorder %s183, %s197
    %p199 = scmp.eq.s32.totalorder %s33, 0
    %p200 = por %p198, %p199
    %s201 = ssub.s32 %s34, %s46
    %p202 = scmp.eq.s32.totalorder %s201, 0
    %s204 = sadd.s32 %s203, 1
    %s205 = scalar_select %p202, %s203, %s204
    %p208 = pneg %p202
    %p209 = scmp.eq.s32.totalorder %s27, 1
    %p210 = por %p208, %p209
    %p211 = scmp.ne.s32.totalorder %s203, %s206
    %p212 = scmp.eq.s32.totalorder %s27, 0
    %p213 = por %p211, %p212
    %p214 = scmp.ne.s32.totalorder %s203, %s206
    %p215 = scmp.eq.s32.totalorder %s32, 1
    %p216 = por %p214, %p215
    %p217 = scmp.ne.s32.totalorder %s206, %s207
    %p218 = scmp.eq.s32.totalorder %s32, 0
    %p219 = por %p217, %p218
    %p220 = scmp.ne.s32.totalorder %s206, %s207
    %p221 = scmp.eq.s32.totalorder %s33, 1
    %p222 = por %p220, %p221
    %p224 = scmp.ne.s32.totalorder %s207, %s223
    %p225 = scmp.eq.s32.totalorder %s33, 0
    %p226 = por %p224, %p225
    %s228 = sadd.s32 %s227, 1
    %p231 = scmp.eq.s32.totalorder %s27, 1
    %p232 = scmp.ne.s32.totalorder %s227, %s229
    %p233 = scmp.eq.s32.totalorder %s27, 0
    %p234 = por %p232, %p233
    %p235 = scmp.ne.s32.totalorder %s227, %s229
    %p236 = scmp.eq.s32.totalorder %s32, 1
    %p237 = por %p235, %p236
    %p238 = scmp.ne.s32.totalorder %s229, %s230
    %p239 = scmp.eq.s32.totalorder %s32, 0
    %p240 = por %p238, %p239
    %p241 = scmp.ne.s32.totalorder %s229, %s230
    %p242 = scmp.eq.s32.totalorder %s33, 1
    %p243 = por %p241, %p242
    %p245 = scmp.ne.s32.totalorder %s230, %s244
    %p246 = scmp.eq.s32.totalorder %s33, 0
    %p247 = por %p245, %p246
    %s249 = sadd.s32 %s248, 1
    %p252 = scmp.eq.s32.totalorder %s27, 1
    %p253 = scmp.ne.s32.totalorder %s248, %s250
    %p254 = scmp.eq.s32.totalorder %s27, 0
    %p255 = por %p253, %p254
    %p256 = scmp.ne.s32.totalorder %s248, %s250
    %p257 = scmp.eq.s32.totalorder %s32, 1
    %p258 = por %p256, %p257
    %p259 = scmp.ne.s32.totalorder %s250, %s251
    %p260 = scmp.eq.s32.totalorder %s32, 0
    %p261 = por %p259, %p260
    %p262 = scmp.ne.s32.totalorder %s250, %s251
    %p263 = scmp.eq.s32.totalorder %s33, 1
    %p264 = por %p262, %p263
    %p266 = scmp.ne.s32.totalorder %s251, %s265
    %p267 = scmp.eq.s32.totalorder %s33, 0
    %p268 = por %p266, %p267
    %s270 = sadd.s32 %s269, 1
    %p273 = scmp.eq.s32.totalorder %s27, 1
    %p274 = scmp.ne.s32.totalorder %s269, %s271
    %p275 = scmp.eq.s32.totalorder %s27, 0
    %p276 = por %p274, %p275
    %p277 = scmp.ne.s32.totalorder %s269, %s271
    %p278 = scmp.eq.s32.totalorder %s32, 1
    %p279 = por %p277, %p278
    %p280 = scmp.ne.s32.totalorder %s271, %s272
    %p281 = scmp.eq.s32.totalorder %s32, 0
    %p282 = por %p280, %p281
    %p283 = scmp.ne.s32.totalorder %s271, %s272
    %p284 = scmp.eq.s32.totalorder %s33, 1
    %p285 = por %p283, %p284
    %p287 = scmp.ne.s32.totalorder %s272, %s286
    %p288 = scmp.eq.s32.totalorder %s33, 0
    %p289 = por %p287, %p288
    %s291 = sadd.s32 %s290, 1
    %p294 = scmp.eq.s32.totalorder %s27, 1
    %p295 = scmp.ne.s32.totalorder %s290, %s292
    %p296 = scmp.eq.s32.totalorder %s27, 0
    %p297 = por %p295, %p296
    %p298 = scmp.ne.s32.totalorder %s290, %s292
    %p299 = scmp.eq.s32.totalorder %s32, 1
    %p300 = por %p298, %p299
    %p301 = scmp.ne.s32.totalorder %s292, %s293
    %p302 = scmp.eq.s32.totalorder %s32, 0
    %p303 = por %p301, %p302
    %p304 = scmp.ne.s32.totalorder %s292, %s293
    %p305 = scmp.eq.s32.totalorder %s33, 1
    %p306 = por %p304, %p305
    %p308 = scmp.ne.s32.totalorder %s293, %s307
    %p309 = scmp.eq.s32.totalorder %s33, 0
    %p310 = por %p308, %p309
    %s312 = sadd.s32 %s311, 1
    %p315 = scmp.eq.s32.totalorder %s27, 1
    %p316 = scmp.ne.s32.totalorder %s311, %s313
    %p317 = scmp.eq.s32.totalorder %s27, 0
    %p318 = por %p316, %p317
    %p319 = scmp.ne.s32.totalorder %s311, %s313
    %p320 = scmp.eq.s32.totalorder %s32, 1
    %p321 = por %p319, %p320
    %p322 = scmp.ne.s32.totalorder %s313, %s314
    %p323 = scmp.eq.s32.totalorder %s32, 0
    %p324 = por %p322, %p323
    %p325 = scmp.ne.s32.totalorder %s313, %s314
    %p326 = scmp.eq.s32.totalorder %s33, 1
    %p327 = por %p325, %p326
    %p329 = scmp.ne.s32.totalorder %s314, %s328
    %p330 = scmp.eq.s32.totalorder %s33, 0
    %p331 = por %p329, %p330
    %s333 = sadd.s32 %s332, 1
    %p336 = scmp.eq.s32.totalorder %s27, 1
    %p337 = scmp.ne.s32.totalorder %s332, %s334
    %p338 = scmp.eq.s32.totalorder %s27, 0
    %p339 = por %p337, %p338
    %p340 = scmp.ne.s32.totalorder %s332, %s334
    %p341 = scmp.eq.s32.totalorder %s32, 1
    %p342 = por %p340, %p341
    %p343 = scmp.ne.s32.totalorder %s334, %s335
    %p344 = scmp.eq.s32.totalorder %s32, 0
    %p345 = por %p343, %p344
    %p346 = scmp.ne.s32.totalorder %s334, %s335
    %p347 = scmp.eq.s32.totalorder %s33, 1
    %p348 = por %p346, %p347
    %p350 = scmp.ne.s32.totalorder %s335, %s349
    %p351 = scmp.eq.s32.totalorder %s33, 0
    %p352 = por %p350, %p351
    %s354 = sadd.s32 %s353, 1
    %p357 = scmp.eq.s32.totalorder %s27, 1
    %p358 = scmp.ne.s32.totalorder %s353, %s355
    %p359 = scmp.eq.s32.totalorder %s27, 0
    %p360 = por %p358, %p359
    %p361 = scmp.ne.s32.totalorder %s353, %s355
    %p362 = scmp.eq.s32.totalorder %s32, 1
    %p363 = por %p361, %p362
    %p364 = scmp.ne.s32.totalorder %s355, %s356
    %p365 = scmp.eq.s32.totalorder %s32, 0
    %p366 = por %p364, %p365
    %p367 = scmp.ne.s32.totalorder %s355, %s356
    %p368 = scmp.eq.s32.totalorder %s33, 1
    %p369 = por %p367, %p368
    %p371 = scmp.ne.s32.totalorder %s356, %s370
    %p372 = scmp.eq.s32.totalorder %s33, 0
    %p373 = por %p371, %p372
    %s375 = sadd.s32 %s374, 1
    %p378 = scmp.eq.s32.totalorder %s27, 1
    %p379 = scmp.ne.s32.totalorder %s374, %s376
    %p380 = scmp.eq.s32.totalorder %s27, 0
    %p381 = por %p379, %p380
    %p382 = scmp.ne.s32.totalorder %s374, %s376
    %p383 = scmp.eq.s32.totalorder %s32, 1
    %p384 = por %p382, %p383
    %p385 = scmp.ne.s32.totalorder %s376, %s377
    %p386 = scmp.eq.s32.totalorder %s32, 0
    %p387 = por %p385, %p386
    %p388 = scmp.ne.s32.totalorder %s376, %s377
    %p389 = scmp.eq.s32.totalorder %s33, 1
    %p390 = por %p388, %p389
    %p392 = scmp.ne.s32.totalorder %s377, %s391
    %p393 = scmp.eq.s32.totalorder %s33, 0
    %p394 = por %p392, %p393
    %s396 = sadd.s32 %s395, 1
    %p399 = scmp.eq.s32.totalorder %s27, 1
    %p400 = scmp.ne.s32.totalorder %s395, %s397
    %p401 = scmp.eq.s32.totalorder %s27, 0
    %p402 = por %p400, %p401
    %p403 = scmp.ne.s32.totalorder %s395, %s397
    %p404 = scmp.eq.s32.totalorder %s32, 1
    %p405 = por %p403, %p404
    %p406 = scmp.ne.s32.totalorder %s397, %s398
    %p407 = scmp.eq.s32.totalorder %s32, 0
    %p408 = por %p406, %p407
    %p409 = scmp.ne.s32.totalorder %s397, %s398
    %p410 = scmp.eq.s32.totalorder %s33, 1
    %p411 = por %p409, %p410
    %p413 = scmp.ne.s32.totalorder %s398, %s412
    %p414 = scmp.eq.s32.totalorder %s33, 0
    %p415 = por %p413, %p414
    %s416 = ssub.s32 %s34, %s46
    %s417 = ssub.s32 %s35, %s42
    %s418 = sor.u32 %s416, %s417
    %p419 = scmp.eq.s32.totalorder %s418, 0
    %s421 = sadd.s32 %s420, 1
    %s422 = scalar_select %p419, %s420, %s421
    %p425 = pneg %p419
    %p426 = scmp.eq.s32.totalorder %s27, 1
    %p427 = por %p425, %p426
    %p428 = scmp.ne.s32.totalorder %s420, %s423
    %p429 = scmp.eq.s32.totalorder %s27, 0
    %p430 = por %p428, %p429
    %p431 = scmp.ne.s32.totalorder %s420, %s423
    %p432 = scmp.eq.s32.totalorder %s32, 1
    %p433 = por %p431, %p432
    %p434 = scmp.ne.s32.totalorder %s423, %s424
    %p435 = scmp.eq.s32.totalorder %s32, 0
    %p436 = por %p434, %p435
    %p437 = scmp.ne.s32.totalorder %s423, %s424
    %p438 = scmp.eq.s32.totalorder %s33, 1
    %p439 = por %p437, %p438
    %p441 = scmp.ne.s32.totalorder %s424, %s440
    %p442 = scmp.eq.s32.totalorder %s33, 0
    %p443 = por %p441, %p442
    %s444 = ssub.s32 %s34, %s46
    %s445 = ssub.s32 %s35, %s42
    %s446 = sor.u32 %s444, %s445
    %p447 = scmp.eq.s32.totalorder %s446, 0
    %s449 = sadd.s32 %s448, 1
    %s450 = scalar_select %p447, %s448, %s449
    %p453 = pneg %p447
    %p454 = scmp.eq.s32.totalorder %s27, 1
    %p455 = por %p453, %p454
    %p456 = scmp.ne.s32.totalorder %s448, %s451
    %p457 = scmp.eq.s32.totalorder %s27, 0
    %p458 = por %p456, %p457
    %p459 = scmp.ne.s32.totalorder %s448, %s451
    %p460 = scmp.eq.s32.totalorder %s32, 1
    %p461 = por %p459, %p460
    %p462 = scmp.ne.s32.totalorder %s451, %s452
    %p463 = scmp.eq.s32.totalorder %s32, 0
    %p464 = por %p462, %p463
    %p465 = scmp.ne.s32.totalorder %s451, %s452
    %p466 = scmp.eq.s32.totalorder %s33, 1
    %p467 = por %p465, %p466
    %p469 = scmp.ne.s32.totalorder %s452, %s468
    %p470 = scmp.eq.s32.totalorder %s33, 0
    %p471 = por %p469, %p470
    %s472 = ssub.s32 %s34, %s46
    %s473 = ssub.s32 %s35, %s42
    %s474 = sor.u32 %s472, %s473
    %p475 = scmp.eq.s32.totalorder %s474, 0
    %s477 = sadd.s32 %s476, 1
    %s478 = scalar_select %p475, %s476, %s477
    %p481 = pneg %p475
    %p482 = scmp.eq.s32.totalorder %s27, 1
    %p483 = por %p481, %p482
    %p484 = scmp.ne.s32.totalorder %s476, %s479
    %p485 = scmp.eq.s32.totalorder %s27, 0
    %p486 = por %p484, %p485
    %p487 = scmp.ne.s32.totalorder %s476, %s479
    %p488 = scmp.eq.s32.totalorder %s32, 1
    %p489 = por %p487, %p488
    %p490 = scmp.ne.s32.totalorder %s479, %s480
    %p491 = scmp.eq.s32.totalorder %s32, 0
    %p492 = por %p490, %p491
    %p493 = scmp.ne.s32.totalorder %s479, %s480
    %p494 = scmp.eq.s32.totalorder %s33, 1
    %p495 = por %p493, %p494
    %p497 = scmp.ne.s32.totalorder %s480, %s496
    %p498 = scmp.eq.s32.totalorder %s33, 0
    %p499 = por %p497, %p498
    %p500 = scmp.le.s32.totalorder 1, %s27
    %p501 = scmp.lt.s32.totalorder %s27, 3
    %p502 = pnand %p500, %p501
    %p503 = pneg %p502
    // Predicated region
    $region9: #{multi_scale_operator_forward.6} parent=5 // pred_check
      _
    $region10: #{multi_scale_operator_forward.6} parent=5 // pred_check_branch
      %505 = sbr.rel (%p502) target = $region12
    $region11: #{multi_scale_operator_forward.6} parent=5 // pred_region
      %s506 = ssub.s32 %s27, 1
      // Predicated region
      $region13: #{multi_scale_operator_forward.6} parent=11 // pred_check
        %p507 = pneg %p88
      $region14: #{multi_scale_operator_forward.6} parent=11 // pred_check_branch
        %509 = sbr.rel (%p507) target = $region16
      $region15: #{multi_scale_operator_forward.6} parent=11 // pred_region
        _
      $region16: #{multi_scale_operator_forward.6} parent=11 // pred_fallthru
        _
      // Predicated region
      $region17: #{multi_scale_operator_forward.6} parent=11 // pred_check
        %p510 = pneg %p109
      $region18: #{multi_scale_operator_forward.6} parent=11 // pred_check_branch
        %512 = sbr.rel (%p510) target = $region20
      $region19: #{multi_scale_operator_forward.6} parent=11 // pred_region
        _
      $region20: #{multi_scale_operator_forward.6} parent=11 // pred_fallthru
        _
      // Predicated region
      $region21: #{multi_scale_operator_forward.6} parent=11 // pred_check
        %p513 = pneg %p130
      $region22: #{multi_scale_operator_forward.6} parent=11 // pred_check_branch
        %515 = sbr.rel (%p513) target = $region24
      $region23: #{multi_scale_operator_forward.6} parent=11 // pred_region
        _
      $region24: #{multi_scale_operator_forward.6} parent=11 // pred_fallthru
        _
      // Predicated region
      $region25: #{multi_scale_operator_forward.6} parent=11 // pred_check
        %p516 = pneg %p151
      $region26: #{multi_scale_operator_forward.6} parent=11 // pred_check_branch
        %518 = sbr.rel (%p516) target = $region28
      $region27: #{multi_scale_operator_forward.6} parent=11 // pred_region
        _
      $region28: #{multi_scale_operator_forward.6} parent=11 // pred_fallthru
        _
      // Predicated region
      $region29: #{multi_scale_operator_forward.6} parent=11 // pred_check
        %p519 = pneg %p172
      $region30: #{multi_scale_operator_forward.6} parent=11 // pred_check_branch
        %521 = sbr.rel (%p519) target = $region32
      $region31: #{multi_scale_operator_forward.6} parent=11 // pred_region
        _
      $region32: #{multi_scale_operator_forward.6} parent=11 // pred_fallthru
        _
      // Predicated region
      $region33: #{multi_scale_operator_forward.6} parent=11 // pred_check
        %p522 = pneg %p193
      $region34: #{multi_scale_operator_forward.6} parent=11 // pred_check_branch
        %524 = sbr.rel (%p522) target = $region36
      $region35: #{multi_scale_operator_forward.6} parent=11 // pred_region
        _
      $region36: #{multi_scale_operator_forward.6} parent=11 // pred_fallthru
        _
      // Predicated region
      $region37: #{multi_scale_operator_forward.6} parent=11 // pred_check
        %p525 = pneg %p240
      $region38: #{multi_scale_operator_forward.6} parent=11 // pred_check_branch
        %527 = sbr.rel (%p525) target = $region40
      $region39: #{multi_scale_operator_forward.6} parent=11 // pred_region
        _
      $region40: #{multi_scale_operator_forward.6} parent=11 // pred_fallthru
        _
      // Predicated region
      $region41: #{multi_scale_operator_forward.6} parent=11 // pred_check
        %p528 = pneg %p261
      $region42: #{multi_scale_operator_forward.6} parent=11 // pred_check_branch
        %530 = sbr.rel (%p528) target = $region44
      $region43: #{multi_scale_operator_forward.6} parent=11 // pred_region
        _
      $region44: #{multi_scale_operator_forward.6} parent=11 // pred_fallthru
        _
      // Predicated region
      $region45: #{multi_scale_operator_forward.6} parent=11 // pred_check
        %p531 = pneg %p282
      $region46: #{multi_scale_operator_forward.6} parent=11 // pred_check_branch
        %533 = sbr.rel (%p531) target = $region48
      $region47: #{multi_scale_operator_forward.6} parent=11 // pred_region
        _
      $region48: #{multi_scale_operator_forward.6} parent=11 // pred_fallthru
        _
      // Predicated region
      $region49: #{multi_scale_operator_forward.6} parent=11 // pred_check
        %p534 = pneg %p303
      $region50: #{multi_scale_operator_forward.6} parent=11 // pred_check_branch
        %536 = sbr.rel (%p534) target = $region52
      $region51: #{multi_scale_operator_forward.6} parent=11 // pred_region
        _
      $region52: #{multi_scale_operator_forward.6} parent=11 // pred_fallthru
        _
      // Predicated region
      $region53: #{multi_scale_operator_forward.6} parent=11 // pred_check
        %p537 = pneg %p324
      $region54: #{multi_scale_operator_forward.6} parent=11 // pred_check_branch
        %539 = sbr.rel (%p537) target = $region56
      $region55: #{multi_scale_operator_forward.6} parent=11 // pred_region
        _
      $region56: #{multi_scale_operator_forward.6} parent=11 // pred_fallthru
        _
      // Predicated region
      $region57: #{multi_scale_operator_forward.6} parent=11 // pred_check
        %p540 = pneg %p345
      $region58: #{multi_scale_operator_forward.6} parent=11 // pred_check_branch
        %542 = sbr.rel (%p540) target = $region60
      $region59: #{multi_scale_operator_forward.6} parent=11 // pred_region
        _
      $region60: #{multi_scale_operator_forward.6} parent=11 // pred_fallthru
        _
      // Predicated region
      $region61: #{multi_scale_operator_forward.6} parent=11 // pred_check
        %p543 = pneg %p366
      $region62: #{multi_scale_operator_forward.6} parent=11 // pred_check_branch
        %545 = sbr.rel (%p543) target = $region64
      $region63: #{multi_scale_operator_forward.6} parent=11 // pred_region
        _
      $region64: #{multi_scale_operator_forward.6} parent=11 // pred_fallthru
        _
      // Predicated region
      $region65: #{multi_scale_operator_forward.6} parent=11 // pred_check
        %p546 = pneg %p387
      $region66: #{multi_scale_operator_forward.6} parent=11 // pred_check_branch
        %548 = sbr.rel (%p546) target = $region68
      $region67: #{multi_scale_operator_forward.6} parent=11 // pred_region
        _
      $region68: #{multi_scale_operator_forward.6} parent=11 // pred_fallthru
        _
      // Predicated region
      $region69: #{multi_scale_operator_forward.6} parent=11 // pred_check
        %p549 = pneg %p408
      $region70: #{multi_scale_operator_forward.6} parent=11 // pred_check_branch
        %551 = sbr.rel (%p549) target = $region72
      $region71: #{multi_scale_operator_forward.6} parent=11 // pred_region
        _
      $region72: #{multi_scale_operator_forward.6} parent=11 // pred_fallthru
        _
    $region12: #{multi_scale_operator_forward.6} parent=5 // pred_fallthru
      _
    %p552 = scmp.lt.s32.totalorder %s27, 2
    // Predicated region
    $region73: #{multi_scale_operator_forward.6} parent=5 // pred_check
      %p553 = pneg %p552
    $region74: #{multi_scale_operator_forward.6} parent=5 // pred_check_branch
      %555 = sbr.rel (%p553) target = $region76
    $region75: #{multi_scale_operator_forward.6} parent=5 // pred_region
      // Predicated region
      $region77: #{multi_scale_operator_forward.6} parent=75 // pred_check
        %p556 = pneg %p61
      $region78: #{multi_scale_operator_forward.6} parent=75 // pred_check_branch
        %558 = sbr.rel (%p556) target = $region80
      $region79: #{multi_scale_operator_forward.6} parent=75 // pred_region
        %p559 = scmp.lt.s32.totalorder %s34, 1
        %s560 = scalar_select %p559, %s34, 1
        %p561 = scmp.lt.s32.totalorder %s35, 0
        %s562 = scalar_select %p561, %s35, 0
        %s563 = sadd.s32 %s562, %s560
        %s564 = smul.addr %s563, 8
        %s565 = scalar_lea.vmem %s0, %s564
      $region80: #{multi_scale_operator_forward.6} parent=75 // pred_fallthru
        _
      // Predicated region
      $region81: #{multi_scale_operator_forward.6} parent=75 // pred_check
        %p566 = pneg %p213
      $region82: #{multi_scale_operator_forward.6} parent=75 // pred_check_branch
        %568 = sbr.rel (%p566) target = $region84
      $region83: #{multi_scale_operator_forward.6} parent=75 // pred_region
        %p569 = scmp.lt.s32.totalorder %s34, 1
        %s570 = scalar_select %p569, %s34, 1
        %s571 = smul.addr %s570, 8
        %s572 = scalar_lea.vmem %s7, %s571
      $region84: #{multi_scale_operator_forward.6} parent=75 // pred_fallthru
        _
      // Predicated region
      $region85: #{multi_scale_operator_forward.6} parent=75 // pred_check
        %p573 = pneg %p430
      $region86: #{multi_scale_operator_forward.6} parent=75 // pred_check_branch
        %575 = sbr.rel (%p573) target = $region88
      $region87: #{multi_scale_operator_forward.6} parent=75 // pred_region
        %p576 = scmp.lt.s32.totalorder %s34, 1
        %s577 = scalar_select %p576, %s34, 1
        %p578 = scmp.lt.s32.totalorder %s35, 0
        %s579 = scalar_select %p578, %s35, 0
        %s580 = sadd.s32 %s579, %s577
        %s581 = smul.addr %s580, 8
        %s582 = scalar_lea.vmem %s17, %s581
      $region88: #{multi_scale_operator_forward.6} parent=75 // pred_fallthru
        _
    $region76: #{multi_scale_operator_forward.6} parent=5 // pred_fallthru
      _
    %p583 = scmp.le.s32.totalorder 1, %s27
    %p584 = scmp.lt.s32.totalorder %s27, 3
    %p585 = pnand %p583, %p584
    %p586 = pneg %p585
    // Predicated region
    $region89: #{multi_scale_operator_forward.6} parent=5 // pred_check
      _
    $region90: #{multi_scale_operator_forward.6} parent=5 // pred_check_branch
      %588 = sbr.rel (%p585) target = $region92
    $region91: #{multi_scale_operator_forward.6} parent=5 // pred_region
      %s589 = ssub.s32 %s27, 1
      %p590 = scmp.lt.s32.totalorder %s36, 1
      %s591 = scalar_select %p590, %s36, 1
      %p592 = scmp.lt.s32.totalorder %s37, 0
      %s593 = scalar_select %p592, %s37, 0
      %s594 = sadd.s32 %s593, %s591
      %s595 = smul.addr %s594, 8
      %s596 = scalar_lea.vmem %s0, %s595
      %p597 = pneg %p67
      %p598 = pneg %p64
      %p599 = pneg %p88
      %p600 = pneg %p85
      %p601 = pneg %p109
      %p602 = pneg %p106
      %p603 = pneg %p130
      %p604 = pneg %p127
      %p605 = pneg %p151
      %p606 = pneg %p148
      %p607 = pneg %p172
      %p608 = pneg %p169
      %p609 = pneg %p193
      %p610 = pneg %p190
      %p611 = scmp.lt.s32.totalorder %s36, 1
      %s612 = scalar_select %p611, %s36, 1
      %s613 = smul.addr %s612, 8
      %s614 = scalar_lea.vmem %s7, %s613
      %p615 = pneg %p219
      %p616 = pneg %p216
      %p617 = pneg %p240
      %p618 = pneg %p237
      %p619 = pneg %p261
      %p620 = pneg %p258
      %p621 = pneg %p282
      %p622 = pneg %p279
      %p623 = pneg %p303
      %p624 = pneg %p300
      %p625 = pneg %p324
      %p626 = pneg %p321
      %p627 = pneg %p345
      %p628 = pneg %p342
      %p629 = pneg %p366
      %p630 = pneg %p363
      %p631 = pneg %p387
      %p632 = pneg %p384
      %p633 = pneg %p408
      %p634 = pneg %p405
      %p635 = scmp.lt.s32.totalorder %s36, 1
      %s636 = scalar_select %p635, %s36, 1
      %p637 = scmp.lt.s32.totalorder %s37, 0
      %s638 = scalar_select %p637, %s37, 0
      %s639 = sadd.s32 %s638, %s636
      %s640 = smul.addr %s639, 8
      %s641 = scalar_lea.vmem %s17, %s640
      %p642 = pneg %p436
      %p643 = pneg %p433
      %p644 = pneg %p464
      %p645 = pneg %p461
      %p646 = scmp.lt.s32.totalorder %s36, 1
      %s647 = scalar_select %p646, %s36, 1
      %p648 = scmp.lt.s32.totalorder %s37, 0
      %s649 = scalar_select %p648, %s37, 0
      %s650 = sadd.s32 %s649, %s647
      %s651 = smul.addr %s650, 8
      %s652 = scalar_lea.vmem %s18, %s651
      %p653 = pneg %p492
      %p654 = pneg %p489
      %p655 = scmp.lt.s32.totalorder %s36, 1
      %s656 = scalar_select %p655, %s36, 1
      %p657 = scmp.lt.s32.totalorder %s37, 0
      %s658 = scalar_select %p657, %s37, 0
      %s659 = sadd.s32 %s658, %s656
      %s660 = smul.addr %s659, 8
      %s661 = scalar_lea.vmem %s19, %s660
      %p662 = scmp.lt.s32.totalorder %s36, 1
      %s663 = scalar_select %p662, %s36, 1
      %p664 = scmp.lt.s32.totalorder %s37, 0
      %s665 = scalar_select %p664, %s37, 0
      %s666 = sadd.s32 %s665, %s663
      %s667 = smul.addr %s666, 8
      %s668 = scalar_lea.vmem %s0, %s667
      %p669 = scmp.lt.s32.totalorder %s36, 1
      %s670 = scalar_select %p669, %s36, 1
      %s671 = smul.addr %s670, 8
      %s672 = scalar_lea.vmem %s7, %s671
      %p673 = scmp.lt.s32.totalorder %s36, 1
      %s674 = scalar_select %p673, %s36, 1
      %p675 = scmp.lt.s32.totalorder %s37, 0
      %s676 = scalar_select %p675, %s37, 0
      %s677 = sadd.s32 %s676, %s674
      %s678 = smul.addr %s677, 8
      %s679 = scalar_lea.vmem %s17, %s678
      %p680 = scmp.lt.s32.totalorder %s36, 1
      %s681 = scalar_select %p680, %s36, 1
      %p682 = scmp.lt.s32.totalorder %s37, 0
      %s683 = scalar_select %p682, %s37, 0
      %s684 = sadd.s32 %s683, %s681
      %s685 = smul.addr %s684, 8
      %s686 = scalar_lea.vmem %s18, %s685
      %p687 = scmp.lt.s32.totalorder %s36, 1
      %s688 = scalar_select %p687, %s36, 1
      %p689 = scmp.lt.s32.totalorder %s37, 0
      %s690 = scalar_select %p689, %s37, 0
      %s691 = sadd.s32 %s690, %s688
      %s692 = smul.addr %s691, 8
      %s693 = scalar_lea.vmem %s19, %s692
      %v695 = vld [vmem:[%s668] sm:$0xff]
      %v696 = vpack.c.bf16 %v695, %v695
      %v697 = vld [vmem:[%s1] sm:$0xf]
      %v698 = vld [vmem:[%s1 + $0x4] sm:$0xf]
      %v699 = vld [vmem:[%s1 + $0x8] sm:$0xf]
      %v700 = vld [vmem:[%s1 + $0xc] sm:$0xf]
      %v701 = vld [vmem:[%s2] sm:$0x1]
      %v703 = vperm.slane %v701, 0
      %v709 = vunpack.c.l.b16 %v697
      %v710 = vunpack.c.l.b16 %v698
      %v711 = vunpack.c.l.b16 %v699
      %v712 = vunpack.c.l.b16 %v700
      %v713 = vpack.c.b16 %v710, %v709
      %v714 = vpack.c.b16 %v712, %v711
      %vm717 = vcmask 261120
      %v719 = vsel %vm717, %v696, 0
      %721 = vmatpush.bf16.msra.mxu0 0
      %722 = vmatpush.bf16.msra.mxu0 0
      %723 = vmatpush.bf16.msra.mxu0 0
      %724 = vmatpush.bf16.msra.mxu0 0
      %725 = vmatpush.bf16.msra.mxu0 0
      %726 = vmatpush.bf16.msra.mxu0 0
      %727 = vmatpush.bf16.msra.mxu0 %v714
      %728 = vmatpush.bf16.msra.mxu0 %v713
      %729 = vmatmul.bf16.gmra.mxu0 %v719
      %v730 = vpop.f32.mrf.mxu0
      %v731 = vadd.f32 %v703, %v730
      %v732 = vpop.f32.mrf.mxu0
      %733 = vdwg.mxu0
      %734 = vadd.xlane.f32.xlu0 %v731
      %v735 = vpop.xlane.xlu0 %734
      %v736 = vrcp.pop 128.0
      %v737 = vmul.f32 128.0, %v736
      %v738 = vsub.f32 1.0, %v737
      %v739 = vmul.f32 %v736, %v738
      %v740 = vadd.f32 %v736, %v739
      %vm741 = vweird.f32 %v736
      %v742 = vsel %vm741, %v736, %v740
      %v743 = vmul.f32 %v735, %v742
      %v744 = vsub.f32 %v731, %v743
      %v745 = vmul.f32 %v744, %v744
      %746 = vadd.xlane.f32.xlu0 %v745
      %v747 = vpop.xlane.xlu0 %746
      %v748 = vmul.f32 %v747, %v742
      %v749 = vadd.f32 %v748, 1e-05
      %v750 = vrsqrt.pop %v749
      %v751 = vmul.f32 %v750, %v749
      %v752 = vmul.f32 %v751, %v750
      %v753 = vmul.f32 0.5, %v752
      %v754 = vsub.f32 1.5, %v753
      %v755 = vmul.f32 %v750, %v754
      %vm756 = vweird.f32 %v749
      %vm757 = vweird.f32 %v750
      %vm758 = vmor %vm756, %vm757
      %v759 = vsel %vm758, %v750, %v755
      %v760 = vmul.f32 %v744, %v759
      %v761 = vld [vmem:[%s3] sm:$0x1]
      %v763 = vperm.slane %v761, 0
      %v765 = vmul.f32 %v760, %v763
      %v766 = vld [vmem:[%s4] sm:$0x1]
      %v768 = vperm.slane %v766, 0
      %v770 = vadd.f32 %v765, %v768
      %v771 = vmax.f32 %v770, 0.0
      %v772 = vpack.c.bf16 %v771, %v771
      %v773 = vld [vmem:[%s5] sm:$0xf]
      %v774 = vld [vmem:[%s5 + $0x4] sm:$0xf]
      %v775 = vld [vmem:[%s5 + $0x8] sm:$0xf]
      %v776 = vld [vmem:[%s5 + $0xc] sm:$0xf]
      %v777 = vld [vmem:[%s5 + $0x10] sm:$0xf]
      %v778 = vld [vmem:[%s5 + $0x14] sm:$0xf]
      %v779 = vld [vmem:[%s5 + $0x18] sm:$0xf]
      %v780 = vld [vmem:[%s5 + $0x1c] sm:$0xf]
      %v781 = vld [vmem:[%s5 + $0x20] sm:$0xf]
      %v782 = vld [vmem:[%s5 + $0x24] sm:$0xf]
      %v783 = vld [vmem:[%s5 + $0x28] sm:$0xf]
      %v784 = vld [vmem:[%s5 + $0x2c] sm:$0xf]
      %v785 = vld [vmem:[%s5 + $0x30] sm:$0xf]
      %v786 = vld [vmem:[%s5 + $0x34] sm:$0xf]
      %v787 = vld [vmem:[%s5 + $0x38] sm:$0xf]
      %v788 = vld [vmem:[%s5 + $0x3c] sm:$0xf]
      %v789 = vld [vmem:[%s6] sm:$0x1]
      %v791 = vperm.slane %v789, 0
      %v809 = vunpack.c.l.b16 %v773
      %v810 = vunpack.c.l.b16 %v774
      %v811 = vunpack.c.l.b16 %v775
      %v812 = vunpack.c.l.b16 %v776
      %v813 = vunpack.c.l.b16 %v777
      %v814 = vunpack.c.l.b16 %v778
      %v815 = vunpack.c.l.b16 %v779
      %v816 = vunpack.c.l.b16 %v780
      %v817 = vunpack.c.l.b16 %v781
      %v818 = vunpack.c.l.b16 %v782
      %v819 = vunpack.c.l.b16 %v783
      %v820 = vunpack.c.l.b16 %v784
      %v821 = vunpack.c.l.b16 %v785
      %v822 = vunpack.c.l.b16 %v786
      %v823 = vunpack.c.l.b16 %v787
      %v824 = vunpack.c.l.b16 %v788
      %v825 = vpack.c.b16 %v810, %v809
      %v826 = vpack.c.b16 %v812, %v811
      %v827 = vpack.c.b16 %v814, %v813
      %v828 = vpack.c.b16 %v816, %v815
      %v829 = vpack.c.b16 %v818, %v817
      %v830 = vpack.c.b16 %v820, %v819
      %v831 = vpack.c.b16 %v822, %v821
      %v832 = vpack.c.b16 %v824, %v823
      %841 = vmatpush.bf16.msra.mxu0 %v832
      %842 = vmatpush.bf16.msra.mxu0 %v831
      %843 = vmatpush.bf16.msra.mxu0 %v830
      %844 = vmatpush.bf16.msra.mxu0 %v829
      %845 = vmatpush.bf16.msra.mxu0 %v828
      %846 = vmatpush.bf16.msra.mxu0 %v827
      %847 = vmatpush.bf16.msra.mxu0 %v826
      %848 = vmatpush.bf16.msra.mxu0 %v825
      %849 = vmatmul.bf16.gmra.mxu0 %v772
      %v850 = vpop.f32.mrf.mxu0
      %v851 = vadd.f32 %v791, %v850
      %v852 = vpop.f32.mrf.mxu0
      %853 = vdwg.mxu0
      %v854 = vld [vmem:[%s672] sm:$0xff]
      %v855 = vpack.c.bf16 %v851, %v851
      %v856 = vpack.c.bf16 %v854, %v854
      %v857 = vld [vmem:[%s8] sm:$0xf]
      %v858 = vld [vmem:[%s8 + $0x4] sm:$0xf]
      %v859 = vld [vmem:[%s8 + $0x8] sm:$0xf]
      %v860 = vld [vmem:[%s8 + $0xc] sm:$0xf]
      %v861 = vld [vmem:[%s9] sm:$0x1]
      %v863 = vperm.slane %v861, 0
      %v869 = vunpack.c.l.b16 %v857
      %v870 = vunpack.c.l.b16 %v858
      %v871 = vunpack.c.l.b16 %v859
      %v872 = vunpack.c.l.b16 %v860
      %v873 = vpack.c.b16 %v870, %v869
      %v874 = vpack.c.b16 %v872, %v871
      %v878 = vsel %vm717, %v855, 0
      %880 = vmatpush.bf16.msra.mxu0 0
      %881 = vmatpush.bf16.msra.mxu0 0
      %882 = vmatpush.bf16.msra.mxu0 0
      %883 = vmatpush.bf16.msra.mxu0 0
      %884 = vmatpush.bf16.msra.mxu0 0
      %885 = vmatpush.bf16.msra.mxu0 0
      %886 = vmatpush.bf16.msra.mxu0 %v874
      %887 = vmatpush.bf16.msra.mxu0 %v873
      %888 = vmatmul.bf16.gmra.mxu0 %v878
      %v889 = vpop.f32.mrf.mxu0
      %v890 = vadd.f32 %v863, %v889
      %v891 = vpop.f32.mrf.mxu0
      %892 = vdwg.mxu0
      %v893 = vld [vmem:[%s10] sm:$0xf]
      %v894 = vld [vmem:[%s10 + $0x4] sm:$0xf]
      %v895 = vld [vmem:[%s10 + $0x8] sm:$0xf]
      %v896 = vld [vmem:[%s10 + $0xc] sm:$0xf]
      %v897 = vld [vmem:[%s11] sm:$0x1]
      %v899 = vperm.slane %v897, 0
      %v905 = vunpack.c.l.b16 %v893
      %v906 = vunpack.c.l.b16 %v894
      %v907 = vunpack.c.l.b16 %v895
      %v908 = vunpack.c.l.b16 %v896
      %v909 = vpack.c.b16 %v906, %v905
      %v910 = vpack.c.b16 %v908, %v907
      %v914 = vsel %vm717, %v856, 0
      %916 = vmatpush.bf16.msra.mxu0 0
      %917 = vmatpush.bf16.msra.mxu0 0
      %918 = vmatpush.bf16.msra.mxu0 0
      %919 = vmatpush.bf16.msra.mxu0 0
      %920 = vmatpush.bf16.msra.mxu0 0
      %921 = vmatpush.bf16.msra.mxu0 0
      %922 = vmatpush.bf16.msra.mxu0 %v910
      %923 = vmatpush.bf16.msra.mxu0 %v909
      %924 = vmatmul.bf16.gmra.mxu0 %v914
      %v925 = vpop.f32.mrf.mxu0
      %v926 = vadd.f32 %v899, %v925
      %v927 = vpop.f32.mrf.mxu0
      %928 = vdwg.mxu0
      %v929 = vld [vmem:[%s12] sm:$0xf]
      %v930 = vld [vmem:[%s12 + $0x4] sm:$0xf]
      %v931 = vld [vmem:[%s12 + $0x8] sm:$0xf]
      %v932 = vld [vmem:[%s12 + $0xc] sm:$0xf]
      %v933 = vld [vmem:[%s13] sm:$0x1]
      %v935 = vperm.slane %v933, 0
      %v941 = vunpack.c.l.b16 %v929
      %v942 = vunpack.c.l.b16 %v930
      %v943 = vunpack.c.l.b16 %v931
      %v944 = vunpack.c.l.b16 %v932
      %v945 = vpack.c.b16 %v942, %v941
      %v946 = vpack.c.b16 %v944, %v943
      %949 = vmatpush.bf16.msra.mxu0 0
      %950 = vmatpush.bf16.msra.mxu0 0
      %951 = vmatpush.bf16.msra.mxu0 0
      %952 = vmatpush.bf16.msra.mxu0 0
      %953 = vmatpush.bf16.msra.mxu0 0
      %954 = vmatpush.bf16.msra.mxu0 0
      %955 = vmatpush.bf16.msra.mxu0 %v946
      %956 = vmatpush.bf16.msra.mxu0 %v945
      %957 = vmatmul.bf16.gmra.mxu0 %v914
      %v958 = vpop.f32.mrf.mxu0
      %v959 = vadd.f32 %v935, %v958
      %v960 = vpop.f32.mrf.mxu0
      %961 = vdwg.mxu0
      %v962 = vpack.c.bf16 %v890, %v890
      %v963 = vpack.c.bf16 %v926, %v926
      %vm964 = vcmask 64512
      %v966 = vsel %vm964, %v962, 0
      %v969 = vsel %vm964, %v963, 0
      %971 = vmatpush.bf16.xpose.msra.mxu0 0
      %972 = vmatpush.bf16.xpose.msra.mxu0 0
      %973 = vmatpush.bf16.xpose.msra.mxu0 0
      %974 = vmatpush.bf16.xpose.msra.mxu0 0
      %975 = vmatpush.bf16.xpose.msra.mxu0 0
      %976 = vmatpush.bf16.xpose.msra.mxu0 0
      %977 = vmatpush.bf16.xpose.msra.mxu0 0
      %978 = vmatpush.bf16.xpose.msra.mxu0 %v969
      %979 = vmatmul.bf16.gmra.mxu0 %v966
      %v980 = vpop.f32.mrf.mxu0
      %v981 = vadd.f32 0.0, %v980
      %v982 = vpop.f32.mrf.mxu0
      %983 = vdwg.mxu0
      %v984 = vsel %vm964, %v981, -inf
      %985 = vmax.xlane.f32.xlu0 %v984
      %v986 = vpop.xlane.xlu0 %985
      %v987 = vsub.f32 %v981, %v986
      %v988 = vmul.f32 %v987, 1.442695
      %v989 = vpow.pop %v988
      %v990 = vsel %vm964, %v989, 0.0
      %991 = vadd.xlane.f32.xlu0 %v990
      %v992 = vpop.xlane.xlu0 %991
      %v993 = vrcp.pop %v992
      %v994 = vmul.f32 %v989, %v993
      %v995 = vpack.c.bf16 %v994, %v994
      %v996 = vpack.c.bf16 %v959, %v959
      %v998 = vsel %vm964, %v995, 0
      %vm1000 = vcmask 1043456
      %v1002 = vsel %vm1000, %v996, 0
      %1004 = vmatpush.bf16.msra.mxu0 0
      %1005 = vmatpush.bf16.msra.mxu0 0
      %1006 = vmatpush.bf16.msra.mxu0 0
      %1007 = vmatpush.bf16.msra.mxu0 0
      %1008 = vmatpush.bf16.msra.mxu0 0
      %1009 = vmatpush.bf16.msra.mxu0 0
      %1010 = vmatpush.bf16.msra.mxu0 0
      %1011 = vmatpush.bf16.msra.mxu0 %v1002
      %1012 = vmatmul.bf16.gmra.mxu0 %v998
      %v1013 = vpop.f32.mrf.mxu0
      %v1014 = vadd.f32 0.0, %v1013
      %v1015 = vpop.f32.mrf.mxu0
      %1016 = vdwg.mxu0
      %v1017 = vpack.c.bf16 %v1014, %v1014
      %v1018 = vld [vmem:[%s14] sm:$0xf]
      %s1019 = scalar_lea.vmem %s8, 16
      %v1020 = vld [vmem:[%s1019] sm:$0xf]
      %v1021 = vld [vmem:[%s1019 + $0x4] sm:$0xf]
      %v1022 = vld [vmem:[%s1019 + $0x8] sm:$0xf]
      %v1023 = vld [vmem:[%s1019 + $0xc] sm:$0xf]
      %s1024 = scalar_lea.vmem %s9, 1
      %v1025 = vld [vmem:[%s1024] sm:$0x1]
      %v1027 = vperm.slane %v1025, 0
      %v1033 = vunpack.c.l.b16 %v1020
      %v1034 = vunpack.c.l.b16 %v1021
      %v1035 = vunpack.c.l.b16 %v1022
      %v1036 = vunpack.c.l.b16 %v1023
      %v1037 = vpack.c.b16 %v1034, %v1033
      %v1038 = vpack.c.b16 %v1036, %v1035
      %1041 = vmatpush.bf16.msra.mxu0 0
      %1042 = vmatpush.bf16.msra.mxu0 0
      %1043 = vmatpush.bf16.msra.mxu0 0
      %1044 = vmatpush.bf16.msra.mxu0 0
      %1045 = vmatpush.bf16.msra.mxu0 0
      %1046 = vmatpush.bf16.msra.mxu0 0
      %1047 = vmatpush.bf16.msra.mxu0 %v1038
      %1048 = vmatpush.bf16.msra.mxu0 %v1037
      %1049 = vmatmul.bf16.gmra.mxu0 %v878
      %v1050 = vpop.f32.mrf.mxu0
      %v1051 = vadd.f32 %v1027, %v1050
      %v1052 = vpop.f32.mrf.mxu0
      %1053 = vdwg.mxu0
      %s1054 = scalar_lea.vmem %s10, 16
      %v1055 = vld [vmem:[%s1054] sm:$0xf]
      %v1056 = vld [vmem:[%s1054 + $0x4] sm:$0xf]
      %v1057 = vld [vmem:[%s1054 + $0x8] sm:$0xf]
      %v1058 = vld [vmem:[%s1054 + $0xc] sm:$0xf]
      %s1059 = scalar_lea.vmem %s11, 1
      %v1060 = vld [vmem:[%s1059] sm:$0x1]
      %v1062 = vperm.slane %v1060, 0
      %v1068 = vunpack.c.l.b16 %v1055
      %v1069 = vunpack.c.l.b16 %v1056
      %v1070 = vunpack.c.l.b16 %v1057
      %v1071 = vunpack.c.l.b16 %v1058
      %v1072 = vpack.c.b16 %v1069, %v1068
      %v1073 = vpack.c.b16 %v1071, %v1070
      %1076 = vmatpush.bf16.msra.mxu0 0
      %1077 = vmatpush.bf16.msra.mxu0 0
      %1078 = vmatpush.bf16.msra.mxu0 0
      %1079 = vmatpush.bf16.msra.mxu0 0
      %1080 = vmatpush.bf16.msra.mxu0 0
      %1081 = vmatpush.bf16.msra.mxu0 0
      %1082 = vmatpush.bf16.msra.mxu0 %v1073
      %1083 = vmatpush.bf16.msra.mxu0 %v1072
      %1084 = vmatmul.bf16.gmra.mxu0 %v914
      %v1085 = vpop.f32.mrf.mxu0
      %v1086 = vadd.f32 %v1062, %v1085
      %v1087 = vpop.f32.mrf.mxu0
      %1088 = vdwg.mxu0
      %s1089 = scalar_lea.vmem %s12, 16
      %v1090 = vld [vmem:[%s1089] sm:$0xf]
      %v1091 = vld [vmem:[%s1089 + $0x4] sm:$0xf]
      %v1092 = vld [vmem:[%s1089 + $0x8] sm:$0xf]
      %v1093 = vld [vmem:[%s1089 + $0xc] sm:$0xf]
      %s1094 = scalar_lea.vmem %s13, 1
      %v1095 = vld [vmem:[%s1094] sm:$0x1]
      %v1097 = vperm.slane %v1095, 0
      %v1103 = vunpack.c.l.b16 %v1090
      %v1104 = vunpack.c.l.b16 %v1091
      %v1105 = vunpack.c.l.b16 %v1092
      %v1106 = vunpack.c.l.b16 %v1093
      %v1107 = vpack.c.b16 %v1104, %v1103
      %v1108 = vpack.c.b16 %v1106, %v1105
      %1111 = vmatpush.bf16.msra.mxu0 0
      %1112 = vmatpush.bf16.msra.mxu0 0
      %1113 = vmatpush.bf16.msra.mxu0 0
      %1114 = vmatpush.bf16.msra.mxu0 0
      %1115 = vmatpush.bf16.msra.mxu0 0
      %1116 = vmatpush.bf16.msra.mxu0 0
      %1117 = vmatpush.bf16.msra.mxu0 %v1108
      %1118 = vmatpush.bf16.msra.mxu0 %v1107
      %1119 = vmatmul.bf16.gmra.mxu0 %v914
      %v1120 = vpop.f32.mrf.mxu0
      %v1121 = vadd.f32 %v1097, %v1120
      %v1122 = vpop.f32.mrf.mxu0
      %1123 = vdwg.mxu0
      %v1124 = vpack.c.bf16 %v1051, %v1051
      %v1125 = vpack.c.bf16 %v1086, %v1086
      %v1127 = vsel %vm964, %v1124, 0
      %v1130 = vsel %vm964, %v1125, 0
      %1132 = vmatpush.bf16.xpose.msra.mxu0 0
      %1133 = vmatpush.bf16.xpose.msra.mxu0 0
      %1134 = vmatpush.bf16.xpose.msra.mxu0 0
      %1135 = vmatpush.bf16.xpose.msra.mxu0 0
      %1136 = vmatpush.bf16.xpose.msra.mxu0 0
      %1137 = vmatpush.bf16.xpose.msra.mxu0 0
      %1138 = vmatpush.bf16.xpose.msra.mxu0 0
      %1139 = vmatpush.bf16.xpose.msra.mxu0 %v1130
      %1140 = vmatmul.bf16.gmra.mxu0 %v1127
      %v1141 = vpop.f32.mrf.mxu0
      %v1142 = vadd.f32 0.0, %v1141
      %v1143 = vpop.f32.mrf.mxu0
      %1144 = vdwg.mxu0
      %v1145 = vsel %vm964, %v1142, -inf
      %1146 = vmax.xlane.f32.xlu0 %v1145
      %v1147 = vpop.xlane.xlu0 %1146
      %v1148 = vsub.f32 %v1142, %v1147
      %v1149 = vmul.f32 %v1148, 1.442695
      %v1150 = vpow.pop %v1149
      %v1151 = vsel %vm964, %v1150, 0.0
      %1152 = vadd.xlane.f32.xlu0 %v1151
      %v1153 = vpop.xlane.xlu0 %1152
      %v1154 = vrcp.pop %v1153
      %v1155 = vmul.f32 %v1150, %v1154
      %v1156 = vpack.c.bf16 %v1155, %v1155
      %v1157 = vpack.c.bf16 %v1121, %v1121
      %v1159 = vsel %vm964, %v1156, 0
      %v1162 = vsel %vm1000, %v1157, 0
      %1164 = vmatpush.bf16.msra.mxu0 0
      %1165 = vmatpush.bf16.msra.mxu0 0
      %1166 = vmatpush.bf16.msra.mxu0 0
      %1167 = vmatpush.bf16.msra.mxu0 0
      %1168 = vmatpush.bf16.msra.mxu0 0
      %1169 = vmatpush.bf16.msra.mxu0 0
      %1170 = vmatpush.bf16.msra.mxu0 0
      %1171 = vmatpush.bf16.msra.mxu0 %v1162
      %1172 = vmatmul.bf16.gmra.mxu0 %v1159
      %v1173 = vpop.f32.mrf.mxu0
      %v1174 = vadd.f32 0.0, %v1173
      %v1175 = vpop.f32.mrf.mxu0
      %1176 = vdwg.mxu0
      %v1177 = vpack.c.bf16 %v1174, %v1174
      %s1178 = scalar_lea.vmem %s14, 4
      %v1179 = vld [vmem:[%s1178] sm:$0xf]
      %v1181 = vsel %vm964, %v1177, 0
      %v1184 = vsel %vm1000, %v1179, 0
      %1186 = vmatpush.bf16.msra.mxu0 0
      %1187 = vmatpush.bf16.msra.mxu0 0
      %1188 = vmatpush.bf16.msra.mxu0 0
      %1189 = vmatpush.bf16.msra.mxu0 0
      %1190 = vmatpush.bf16.msra.mxu0 0
      %1191 = vmatpush.bf16.msra.mxu0 0
      %1192 = vmatpush.bf16.msra.mxu0 0
      %1193 = vmatpush.bf16.msra.mxu0 %v1184
      %1194 = vmatmul.bf16.gmra.mxu0 %v1181
      %v1195 = vpop.f32.mrf.mxu0
      %v1196 = vadd.f32 0.0, %v1195
      %v1197 = vpop.f32.mrf.mxu0
      %1198 = vdwg.mxu0
      %v1200 = vsel %vm964, %v1017, 0
      %v1203 = vsel %vm1000, %v1018, 0
      %1205 = vmatpush.bf16.msra.mxu0 0
      %1206 = vmatpush.bf16.msra.mxu0 0
      %1207 = vmatpush.bf16.msra.mxu0 0
      %1208 = vmatpush.bf16.msra.mxu0 0
      %1209 = vmatpush.bf16.msra.mxu0 0
      %1210 = vmatpush.bf16.msra.mxu0 0
      %1211 = vmatpush.bf16.msra.mxu0 0
      %1212 = vmatpush.bf16.msra.mxu0 %v1203
      %1213 = vmatmul.bf16.gmra.mxu0 %v1200
      %v1214 = vpop.f32.mrf.mxu0
      %v1215 = vadd.f32 %v1196, %v1214
      %v1216 = vpop.f32.mrf.mxu0
      %1217 = vdwg.mxu0
      %s1218 = scalar_lea.vmem %s8, 32
      %v1219 = vld [vmem:[%s1218] sm:$0xf]
      %v1220 = vld [vmem:[%s1218 + $0x4] sm:$0xf]
      %v1221 = vld [vmem:[%s1218 + $0x8] sm:$0xf]
      %v1222 = vld [vmem:[%s1218 + $0xc] sm:$0xf]
      %s1223 = scalar_lea.vmem %s9, 2
      %v1224 = vld [vmem:[%s1223] sm:$0x1]
      %v1226 = vperm.slane %v1224, 0
      %v1232 = vunpack.c.l.b16 %v1219
      %v1233 = vunpack.c.l.b16 %v1220
      %v1234 = vunpack.c.l.b16 %v1221
      %v1235 = vunpack.c.l.b16 %v1222
      %v1236 = vpack.c.b16 %v1233, %v1232
      %v1237 = vpack.c.b16 %v1235, %v1234
      %1240 = vmatpush.bf16.msra.mxu0 0
      %1241 = vmatpush.bf16.msra.mxu0 0
      %1242 = vmatpush.bf16.msra.mxu0 0
      %1243 = vmatpush.bf16.msra.mxu0 0
      %1244 = vmatpush.bf16.msra.mxu0 0
      %1245 = vmatpush.bf16.msra.mxu0 0
      %1246 = vmatpush.bf16.msra.mxu0 %v1237
      %1247 = vmatpush.bf16.msra.mxu0 %v1236
      %1248 = vmatmul.bf16.gmra.mxu0 %v878
      %v1249 = vpop.f32.mrf.mxu0
      %v1250 = vadd.f32 %v1226, %v1249
      %v1251 = vpop.f32.mrf.mxu0
      %1252 = vdwg.mxu0
      %s1253 = scalar_lea.vmem %s10, 32
      %v1254 = vld [vmem:[%s1253] sm:$0xf]
      %v1255 = vld [vmem:[%s1253 + $0x4] sm:$0xf]
      %v1256 = vld [vmem:[%s1253 + $0x8] sm:$0xf]
      %v1257 = vld [vmem:[%s1253 + $0xc] sm:$0xf]
      %s1258 = scalar_lea.vmem %s11, 2
      %v1259 = vld [vmem:[%s1258] sm:$0x1]
      %v1261 = vperm.slane %v1259, 0
      %v1267 = vunpack.c.l.b16 %v1254
      %v1268 = vunpack.c.l.b16 %v1255
      %v1269 = vunpack.c.l.b16 %v1256
      %v1270 = vunpack.c.l.b16 %v1257
      %v1271 = vpack.c.b16 %v1268, %v1267
      %v1272 = vpack.c.b16 %v1270, %v1269
      %1275 = vmatpush.bf16.msra.mxu0 0
      %1276 = vmatpush.bf16.msra.mxu0 0
      %1277 = vmatpush.bf16.msra.mxu0 0
      %1278 = vmatpush.bf16.msra.mxu0 0
      %1279 = vmatpush.bf16.msra.mxu0 0
      %1280 = vmatpush.bf16.msra.mxu0 0
      %1281 = vmatpush.bf16.msra.mxu0 %v1272
      %1282 = vmatpush.bf16.msra.mxu0 %v1271
      %1283 = vmatmul.bf16.gmra.mxu0 %v914
      %v1284 = vpop.f32.mrf.mxu0
      %v1285 = vadd.f32 %v1261, %v1284
      %v1286 = vpop.f32.mrf.mxu0
      %1287 = vdwg.mxu0
      %s1288 = scalar_lea.vmem %s12, 32
      %v1289 = vld [vmem:[%s1288] sm:$0xf]
      %v1290 = vld [vmem:[%s1288 + $0x4] sm:$0xf]
      %v1291 = vld [vmem:[%s1288 + $0x8] sm:$0xf]
      %v1292 = vld [vmem:[%s1288 + $0xc] sm:$0xf]
      %s1293 = scalar_lea.vmem %s13, 2
      %v1294 = vld [vmem:[%s1293] sm:$0x1]
      %v1296 = vperm.slane %v1294, 0
      %v1302 = vunpack.c.l.b16 %v1289
      %v1303 = vunpack.c.l.b16 %v1290
      %v1304 = vunpack.c.l.b16 %v1291
      %v1305 = vunpack.c.l.b16 %v1292
      %v1306 = vpack.c.b16 %v1303, %v1302
      %v1307 = vpack.c.b16 %v1305, %v1304
      %1310 = vmatpush.bf16.msra.mxu0 0
      %1311 = vmatpush.bf16.msra.mxu0 0
      %1312 = vmatpush.bf16.msra.mxu0 0
      %1313 = vmatpush.bf16.msra.mxu0 0
      %1314 = vmatpush.bf16.msra.mxu0 0
      %1315 = vmatpush.bf16.msra.mxu0 0
      %1316 = vmatpush.bf16.msra.mxu0 %v1307
      %1317 = vmatpush.bf16.msra.mxu0 %v1306
      %1318 = vmatmul.bf16.gmra.mxu0 %v914
      %v1319 = vpop.f32.mrf.mxu0
      %v1320 = vadd.f32 %v1296, %v1319
      %v1321 = vpop.f32.mrf.mxu0
      %1322 = vdwg.mxu0
      %v1323 = vpack.c.bf16 %v1250, %v1250
      %v1324 = vpack.c.bf16 %v1285, %v1285
      %v1326 = vsel %vm964, %v1323, 0
      %v1329 = vsel %vm964, %v1324, 0
      %1331 = vmatpush.bf16.xpose.msra.mxu0 0
      %1332 = vmatpush.bf16.xpose.msra.mxu0 0
      %1333 = vmatpush.bf16.xpose.msra.mxu0 0
      %1334 = vmatpush.bf16.xpose.msra.mxu0 0
      %1335 = vmatpush.bf16.xpose.msra.mxu0 0
      %1336 = vmatpush.bf16.xpose.msra.mxu0 0
      %1337 = vmatpush.bf16.xpose.msra.mxu0 0
      %1338 = vmatpush.bf16.xpose.msra.mxu0 %v1329
      %1339 = vmatmul.bf16.gmra.mxu0 %v1326
      %v1340 = vpop.f32.mrf.mxu0
      %v1341 = vadd.f32 0.0, %v1340
      %v1342 = vpop.f32.mrf.mxu0
      %1343 = vdwg.mxu0
      %v1344 = vsel %vm964, %v1341, -inf
      %1345 = vmax.xlane.f32.xlu0 %v1344
      %v1346 = vpop.xlane.xlu0 %1345
      %v1347 = vsub.f32 %v1341, %v1346
      %v1348 = vmul.f32 %v1347, 1.442695
      %v1349 = vpow.pop %v1348
      %v1350 = vsel %vm964, %v1349, 0.0
      %1351 = vadd.xlane.f32.xlu0 %v1350
      %v1352 = vpop.xlane.xlu0 %1351
      %v1353 = vrcp.pop %v1352
      %v1354 = vmul.f32 %v1349, %v1353
      %v1355 = vpack.c.bf16 %v1354, %v1354
      %v1356 = vpack.c.bf16 %v1320, %v1320
      %v1358 = vsel %vm964, %v1355, 0
      %v1361 = vsel %vm1000, %v1356, 0
      %1363 = vmatpush.bf16.msra.mxu0 0
      %1364 = vmatpush.bf16.msra.mxu0 0
      %1365 = vmatpush.bf16.msra.mxu0 0
      %1366 = vmatpush.bf16.msra.mxu0 0
      %1367 = vmatpush.bf16.msra.mxu0 0
      %1368 = vmatpush.bf16.msra.mxu0 0
      %1369 = vmatpush.bf16.msra.mxu0 0
      %1370 = vmatpush.bf16.msra.mxu0 %v1361
      %1371 = vmatmul.bf16.gmra.mxu0 %v1358
      %v1372 = vpop.f32.mrf.mxu0
      %v1373 = vadd.f32 0.0, %v1372
      %v1374 = vpop.f32.mrf.mxu0
      %1375 = vdwg.mxu0
      %v1376 = vpack.c.bf16 %v1373, %v1373
      %s1377 = scalar_lea.vmem %s14, 8
      %v1378 = vld [vmem:[%s1377] sm:$0xf]
      %v1380 = vsel %vm964, %v1376, 0
      %v1383 = vsel %vm1000, %v1378, 0
      %1385 = vmatpush.bf16.msra.mxu0 0
      %1386 = vmatpush.bf16.msra.mxu0 0
      %1387 = vmatpush.bf16.msra.mxu0 0
      %1388 = vmatpush.bf16.msra.mxu0 0
      %1389 = vmatpush.bf16.msra.mxu0 0
      %1390 = vmatpush.bf16.msra.mxu0 0
      %1391 = vmatpush.bf16.msra.mxu0 0
      %1392 = vmatpush.bf16.msra.mxu0 %v1383
      %1393 = vmatmul.bf16.gmra.mxu0 %v1380
      %v1394 = vpop.f32.mrf.mxu0
      %v1395 = vadd.f32 0.0, %v1394
      %v1396 = vpop.f32.mrf.mxu0
      %1397 = vdwg.mxu0
      %v1398 = vadd.f32 %v1215, %v1395
      %s1399 = scalar_lea.vmem %s8, 48
      %v1400 = vld [vmem:[%s1399] sm:$0xf]
      %v1401 = vld [vmem:[%s1399 + $0x4] sm:$0xf]
      %v1402 = vld [vmem:[%s1399 + $0x8] sm:$0xf]
      %v1403 = vld [vmem:[%s1399 + $0xc] sm:$0xf]
      %s1404 = scalar_lea.vmem %s9, 3
      %v1405 = vld [vmem:[%s1404] sm:$0x1]
      %v1407 = vperm.slane %v1405, 0
      %v1413 = vunpack.c.l.b16 %v1400
      %v1414 = vunpack.c.l.b16 %v1401
      %v1415 = vunpack.c.l.b16 %v1402
      %v1416 = vunpack.c.l.b16 %v1403
      %v1417 = vpack.c.b16 %v1414, %v1413
      %v1418 = vpack.c.b16 %v1416, %v1415
      %1421 = vmatpush.bf16.msra.mxu0 0
      %1422 = vmatpush.bf16.msra.mxu0 0
      %1423 = vmatpush.bf16.msra.mxu0 0
      %1424 = vmatpush.bf16.msra.mxu0 0
      %1425 = vmatpush.bf16.msra.mxu0 0
      %1426 = vmatpush.bf16.msra.mxu0 0
      %1427 = vmatpush.bf16.msra.mxu0 %v1418
      %1428 = vmatpush.bf16.msra.mxu0 %v1417
      %1429 = vmatmul.bf16.gmra.mxu0 %v878
      %v1430 = vpop.f32.mrf.mxu0
      %v1431 = vadd.f32 %v1407, %v1430
      %v1432 = vpop.f32.mrf.mxu0
      %1433 = vdwg.mxu0
      %s1434 = scalar_lea.vmem %s10, 48
      %v1435 = vld [vmem:[%s1434] sm:$0xf]
      %v1436 = vld [vmem:[%s1434 + $0x4] sm:$0xf]
      %v1437 = vld [vmem:[%s1434 + $0x8] sm:$0xf]
      %v1438 = vld [vmem:[%s1434 + $0xc] sm:$0xf]
      %s1439 = scalar_lea.vmem %s11, 3
      %v1440 = vld [vmem:[%s1439] sm:$0x1]
      %v1442 = vperm.slane %v1440, 0
      %v1448 = vunpack.c.l.b16 %v1435
      %v1449 = vunpack.c.l.b16 %v1436
      %v1450 = vunpack.c.l.b16 %v1437
      %v1451 = vunpack.c.l.b16 %v1438
      %v1452 = vpack.c.b16 %v1449, %v1448
      %v1453 = vpack.c.b16 %v1451, %v1450
      %1456 = vmatpush.bf16.msra.mxu0 0
      %1457 = vmatpush.bf16.msra.mxu0 0
      %1458 = vmatpush.bf16.msra.mxu0 0
      %1459 = vmatpush.bf16.msra.mxu0 0
      %1460 = vmatpush.bf16.msra.mxu0 0
      %1461 = vmatpush.bf16.msra.mxu0 0
      %1462 = vmatpush.bf16.msra.mxu0 %v1453
      %1463 = vmatpush.bf16.msra.mxu0 %v1452
      %1464 = vmatmul.bf16.gmra.mxu0 %v914
      %v1465 = vpop.f32.mrf.mxu0
      %v1466 = vadd.f32 %v1442, %v1465
      %v1467 = vpop.f32.mrf.mxu0
      %1468 = vdwg.mxu0
      %s1469 = scalar_lea.vmem %s12, 48
      %v1470 = vld [vmem:[%s1469] sm:$0xf]
      %v1471 = vld [vmem:[%s1469 + $0x4] sm:$0xf]
      %v1472 = vld [vmem:[%s1469 + $0x8] sm:$0xf]
      %v1473 = vld [vmem:[%s1469 + $0xc] sm:$0xf]
      %s1474 = scalar_lea.vmem %s13, 3
      %v1475 = vld [vmem:[%s1474] sm:$0x1]
      %v1477 = vperm.slane %v1475, 0
      %v1483 = vunpack.c.l.b16 %v1470
      %v1484 = vunpack.c.l.b16 %v1471
      %v1485 = vunpack.c.l.b16 %v1472
      %v1486 = vunpack.c.l.b16 %v1473
      %v1487 = vpack.c.b16 %v1484, %v1483
      %v1488 = vpack.c.b16 %v1486, %v1485
      %1491 = vmatpush.bf16.msra.mxu0 0
      %1492 = vmatpush.bf16.msra.mxu0 0
      %1493 = vmatpush.bf16.msra.mxu0 0
      %1494 = vmatpush.bf16.msra.mxu0 0
      %1495 = vmatpush.bf16.msra.mxu0 0
      %1496 = vmatpush.bf16.msra.mxu0 0
      %1497 = vmatpush.bf16.msra.mxu0 %v1488
      %1498 = vmatpush.bf16.msra.mxu0 %v1487
      %1499 = vmatmul.bf16.gmra.mxu0 %v914
      %v1500 = vpop.f32.mrf.mxu0
      %v1501 = vadd.f32 %v1477, %v1500
      %v1502 = vpop.f32.mrf.mxu0
      %1503 = vdwg.mxu0
      %v1504 = vpack.c.bf16 %v1431, %v1431
      %v1505 = vpack.c.bf16 %v1466, %v1466
      %v1507 = vsel %vm964, %v1504, 0
      %v1510 = vsel %vm964, %v1505, 0
      %1512 = vmatpush.bf16.xpose.msra.mxu0 0
      %1513 = vmatpush.bf16.xpose.msra.mxu0 0
      %1514 = vmatpush.bf16.xpose.msra.mxu0 0
      %1515 = vmatpush.bf16.xpose.msra.mxu0 0
      %1516 = vmatpush.bf16.xpose.msra.mxu0 0
      %1517 = vmatpush.bf16.xpose.msra.mxu0 0
      %1518 = vmatpush.bf16.xpose.msra.mxu0 0
      %1519 = vmatpush.bf16.xpose.msra.mxu0 %v1510
      %1520 = vmatmul.bf16.gmra.mxu0 %v1507
      %v1521 = vpop.f32.mrf.mxu0
      %v1522 = vadd.f32 0.0, %v1521
      %v1523 = vpop.f32.mrf.mxu0
      %1524 = vdwg.mxu0
      %v1525 = vsel %vm964, %v1522, -inf
      %1526 = vmax.xlane.f32.xlu0 %v1525
      %v1527 = vpop.xlane.xlu0 %1526
      %v1528 = vsub.f32 %v1522, %v1527
      %v1529 = vmul.f32 %v1528, 1.442695
      %v1530 = vpow.pop %v1529
      %v1531 = vsel %vm964, %v1530, 0.0
      %1532 = vadd.xlane.f32.xlu0 %v1531
      %v1533 = vpop.xlane.xlu0 %1532
      %v1534 = vrcp.pop %v1533
      %v1535 = vmul.f32 %v1530, %v1534
      %v1536 = vpack.c.bf16 %v1535, %v1535
      %v1537 = vpack.c.bf16 %v1501, %v1501
      %v1539 = vsel %vm964, %v1536, 0
      %v1542 = vsel %vm1000, %v1537, 0
      %1544 = vmatpush.bf16.msra.mxu0 0
      %1545 = vmatpush.bf16.msra.mxu0 0
      %1546 = vmatpush.bf16.msra.mxu0 0
      %1547 = vmatpush.bf16.msra.mxu0 0
      %1548 = vmatpush.bf16.msra.mxu0 0
      %1549 = vmatpush.bf16.msra.mxu0 0
      %1550 = vmatpush.bf16.msra.mxu0 0
      %1551 = vmatpush.bf16.msra.mxu0 %v1542
      %1552 = vmatmul.bf16.gmra.mxu0 %v1539
      %v1553 = vpop.f32.mrf.mxu0
      %v1554 = vadd.f32 0.0, %v1553
      %v1555 = vpop.f32.mrf.mxu0
      %1556 = vdwg.mxu0
      %v1557 = vpack.c.bf16 %v1554, %v1554
      %s1558 = scalar_lea.vmem %s14, 12
      %v1559 = vld [vmem:[%s1558] sm:$0xf]
      %v1561 = vsel %vm964, %v1557, 0
      %v1564 = vsel %vm1000, %v1559, 0
      %1566 = vmatpush.bf16.msra.mxu0 0
      %1567 = vmatpush.bf16.msra.mxu0 0
      %1568 = vmatpush.bf16.msra.mxu0 0
      %1569 = vmatpush.bf16.msra.mxu0 0
      %1570 = vmatpush.bf16.msra.mxu0 0
      %1571 = vmatpush.bf16.msra.mxu0 0
      %1572 = vmatpush.bf16.msra.mxu0 0
      %1573 = vmatpush.bf16.msra.mxu0 %v1564
      %1574 = vmatmul.bf16.gmra.mxu0 %v1561
      %v1575 = vpop.f32.mrf.mxu0
      %v1576 = vadd.f32 0.0, %v1575
      %v1577 = vpop.f32.mrf.mxu0
      %1578 = vdwg.mxu0
      %v1579 = vadd.f32 %v1398, %v1576
      %v1580 = vld [vmem:[%s15] sm:$0x1]
      %v1582 = vperm.slane %v1580, 0
      %v1584 = vadd.f32 %v1579, %v1582
      %v1585 = vadd.f32 %v851, %v1584
      %1586 = vst.msk [vmem:[%s686] sm:$0xff] %vm717, %v1585
      %v1587 = vld [vmem:[%s679] sm:$0xff]
      %s1588 = sld [smem:[#allocation2]]
      %v1589 = vstv %s1588
      %v1590 = vmul.f32 %v1589, %v1585
      %v1591 = vadd.f32 %v1587, %v1590
      %1592 = vst.msk [vmem:[%s693] sm:$0xff] %vm717, %v1591
      %p1593 = scmp.lt.s32.totalorder %s36, 1
      %s1594 = scalar_select %p1593, %s36, 1
      %p1595 = scmp.lt.s32.totalorder %s37, 0
      %s1596 = scalar_select %p1595, %s37, 0
      %s1597 = sadd.s32 %s1596, %s1594
      %s1598 = smul.addr %s1597, 8
      %s1599 = scalar_lea.vmem %s18, %s1598
      %p1600 = scmp.lt.s32.totalorder %s36, 1
      %s1601 = scalar_select %p1600, %s36, 1
      %p1602 = scmp.lt.s32.totalorder %s37, 0
      %s1603 = scalar_select %p1602, %s37, 0
      %s1604 = sadd.s32 %s1603, %s1601
      %s1605 = smul.addr %s1604, 8
      %s1606 = scalar_lea.vmem %s19, %s1605
      // Predicated region
      $region93: #{multi_scale_operator_forward.6} parent=91 // pred_check
        %p1607 = pneg %p461
      $region94: #{multi_scale_operator_forward.6} parent=91 // pred_check_branch
        %1609 = sbr.rel (%p1607) target = $region96
      $region95: #{multi_scale_operator_forward.6} parent=91 // pred_region
        _
      $region96: #{multi_scale_operator_forward.6} parent=91 // pred_fallthru
        _
      // Predicated region
      $region97: #{multi_scale_operator_forward.6} parent=91 // pred_check
        %p1610 = pneg %p489
      $region98: #{multi_scale_operator_forward.6} parent=91 // pred_check_branch
        %1612 = sbr.rel (%p1610) target = $region100
      $region99: #{multi_scale_operator_forward.6} parent=91 // pred_region
        _
      $region100: #{multi_scale_operator_forward.6} parent=91 // pred_fallthru
        _
    $region92: #{multi_scale_operator_forward.6} parent=5 // pred_fallthru
      _
    %p1613 = scmp.le.s32.totalorder 2, %s27
    // Predicated region
    $region101: #{multi_scale_operator_forward.6} parent=5 // pred_check
      %p1614 = pneg %p1613
    $region102: #{multi_scale_operator_forward.6} parent=5 // pred_check_branch
      %1616 = sbr.rel (%p1614) target = $region104
    $region103: #{multi_scale_operator_forward.6} parent=5 // pred_region
      %s1617 = ssub.s32 %s27, 2
      // Predicated region
      $region105: #{multi_scale_operator_forward.6} parent=103 // pred_check
        %p1618 = pneg %p467
      $region106: #{multi_scale_operator_forward.6} parent=103 // pred_check_branch
        %1620 = sbr.rel (%p1618) target = $region108
      $region107: #{multi_scale_operator_forward.6} parent=103 // pred_region
        %p1621 = scmp.lt.s32.totalorder %s38, 1
        %s1622 = scalar_select %p1621, %s38, 1
        %p1623 = scmp.lt.s32.totalorder %s39, 0
        %s1624 = scalar_select %p1623, %s39, 0
        %s1625 = sadd.s32 %s1624, %s1622
        %s1626 = smul.addr %s1625, 8
        %s1627 = scalar_lea.vmem %s18, %s1626
      $region108: #{multi_scale_operator_forward.6} parent=103 // pred_fallthru
        _
      // Predicated region
      $region109: #{multi_scale_operator_forward.6} parent=103 // pred_check
        %p1628 = pneg %p495
      $region110: #{multi_scale_operator_forward.6} parent=103 // pred_check_branch
        %1630 = sbr.rel (%p1628) target = $region112
      $region111: #{multi_scale_operator_forward.6} parent=103 // pred_region
        %p1631 = scmp.lt.s32.totalorder %s38, 1
        %s1632 = scalar_select %p1631, %s38, 1
        %p1633 = scmp.lt.s32.totalorder %s39, 0
        %s1634 = scalar_select %p1633, %s39, 0
        %s1635 = sadd.s32 %s1634, %s1632
        %s1636 = smul.addr %s1635, 8
        %s1637 = scalar_lea.vmem %s19, %s1636
      $region112: #{multi_scale_operator_forward.6} parent=103 // pred_fallthru
        _
    $region104: #{multi_scale_operator_forward.6} parent=5 // pred_fallthru
      _
  $region6: #{multi_scale_operator_forward.6} parent=0 // loop_footer
    %s31 = sadd.s32 1, %s27
  $region7: #{multi_scale_operator_forward.6} parent=0 // loop_footer_branch
    %26 = sbr.rel target = $region3
  $region8: #{multi_scale_operator_forward.6} parent=0 // loop_exit
    _

// kernel: multi_scale_operator_forward.7
$region0: #{multi_scale_operator_forward.7}
  #allocation0 [shape = 'u32[]', space=smem, size = 0x4, offset = 0x4, fixed_abs, tag = 'smem constant byte address 0x4 - core index']
  #allocation1 [shape = 'u32[72,128]{1,0:T(1,128)}', space=vmem, size = 0x9000, scoped, tag = 'internal scratch']
  #allocation2 [shape = 'f32[1]{0:T(128)S(6)}', space=smem, size = 0x200, scoped, tag = 'scoped memory for multi_scale_operator_forward.7']
  %s0 = inlined_call_operand.vmem [shape: f32[2,8,32], index: 0, kind: input, shape index: {}]
  %s1 = inlined_call_operand.vmem [shape: bf16[32,256], index: 1, kind: input, shape index: {}]
  %s2 = inlined_call_operand.vmem [shape: f32[1,256], index: 2, kind: input, shape index: {}]
  %s3 = inlined_call_operand.vmem [shape: f32[1,256], index: 3, kind: input, shape index: {}]
  %s4 = inlined_call_operand.vmem [shape: f32[1,256], index: 4, kind: input, shape index: {}]
  %s5 = inlined_call_operand.vmem [shape: bf16[256,32], index: 5, kind: input, shape index: {}]
  %s6 = inlined_call_operand.vmem [shape: f32[1,32], index: 6, kind: input, shape index: {}]
  %s7 = inlined_call_operand.vmem [shape: f32[2,8,32], index: 7, kind: input, shape index: {}]
  %s8 = inlined_call_operand.vmem [shape: bf16[4,32,8], index: 8, kind: input, shape index: {}]
  %s9 = inlined_call_operand.vmem [shape: f32[4,1,8], index: 9, kind: input, shape index: {}]
  %s10 = inlined_call_operand.vmem [shape: bf16[4,32,8], index: 10, kind: input, shape index: {}]
  %s11 = inlined_call_operand.vmem [shape: f32[4,1,8], index: 11, kind: input, shape index: {}]
  %s12 = inlined_call_operand.vmem [shape: bf16[4,32,8], index: 12, kind: input, shape index: {}]
  %s13 = inlined_call_operand.vmem [shape: f32[4,1,8], index: 13, kind: input, shape index: {}]
  %s14 = inlined_call_operand.vmem [shape: bf16[4,8,32], index: 14, kind: input, shape index: {}]
  %s15 = inlined_call_operand.vmem [shape: f32[1,32], index: 15, kind: input, shape index: {}]
  %s16 = inlined_call_operand.<no memory space> [shape: f32[1], index: 16, kind: input, shape index: {}]
  %s17 = inlined_call_operand.vmem [shape: f32[2,8,32], index: 17, kind: input, shape index: {}, may-alias: {17,19}]
  %s18 = inlined_call_operand.hbm [shape: f32[2,8,32], index: 18, kind: output, shape index: {0}]
  %s19 = inlined_call_operand.vmem [shape: f32[2,8,32], index: 19, kind: output, shape index: {1}, may-alias: {17,19}]
  %20 = xla_tuple %s18, %s19
  %s21 = sld [smem:[#allocation0]]
  $region113: #{multi_scale_operator_forward.7} parent=0
    _
  %s23 = ssub.s32 1, %s21
  %s24 = scalar_select 0, %s23, %s21
  %25 = sst [smem:[#allocation2]] %s16
  $region1: #{multi_scale_operator_forward.7} parent=0
    #allocation3 [shape = 'u8[8192]{0}', space=vmem, size = 0x2000, scoped, tag = 'output window, operand 0']
    #allocation4 [shape = 's32[2]{0}', space=sflag, size = 0x8, scoped, tag = 'scoped memory for multi_scale_operator_forward.7']
    %26 = vsyncpa [#allocation4], 0
    %s27 = scalar_lea.sflag [#allocation4], 1
    %28 = vsyncpa %s27, 0
    loop: start=0, step=1, limit=4
    $region2: #{multi_scale_operator_forward.7} parent=1 // loop_pre_header
      _
    $region3: #{multi_scale_operator_forward.7} parent=1 // loop_header
      %s30 = sphi 0, %s34
      %p31 = scmp.ge.s32.totalorder %s30, 4
      %s37 = sphi 0, %s49
      %s38 = sphi 0, %s45
      %s39 = sphi 0, %s37
      %s40 = sphi 0, %s38
      %s41 = sphi 0, %s39
      %s42 = sphi 0, %s40
      %s54 = sphi 0, %s56
      %s57 = sphi 0, %s54
      %s58 = sphi 0, %s57
      %s74 = sphi 0, %s58
      %s78 = sphi 0, %s78
      %s80 = sphi 0, %s78
      %s81 = sphi 0, %s80
      %s95 = sphi 0, %s81
      %s99 = sphi 0, %s99
      %s101 = sphi 0, %s99
      %s102 = sphi 0, %s101
      %s116 = sphi 0, %s102
      %s120 = sphi 0, %s120
      %s122 = sphi 0, %s120
      %s123 = sphi 0, %s122
      %s137 = sphi 0, %s123
      %s141 = sphi 0, %s141
      %s143 = sphi 0, %s141
      %s144 = sphi 0, %s143
      %s158 = sphi 0, %s144
      %s162 = sphi 0, %s162
      %s164 = sphi 0, %s162
      %s165 = sphi 0, %s164
      %s179 = sphi 0, %s165
      %s183 = sphi 0, %s183
      %s185 = sphi 0, %s183
      %s186 = sphi 0, %s185
      %s200 = sphi 0, %s186
      %s206 = sphi 0, %s208
      %s209 = sphi 0, %s206
      %s210 = sphi 0, %s209
      %s226 = sphi 0, %s210
      %s230 = sphi 0, %s230
      %s232 = sphi 0, %s230
      %s233 = sphi 0, %s232
      %s247 = sphi 0, %s233
      %s251 = sphi 0, %s251
      %s253 = sphi 0, %s251
      %s254 = sphi 0, %s253
      %s268 = sphi 0, %s254
      %s272 = sphi 0, %s272
      %s274 = sphi 0, %s272
      %s275 = sphi 0, %s274
      %s289 = sphi 0, %s275
      %s293 = sphi 0, %s293
      %s295 = sphi 0, %s293
      %s296 = sphi 0, %s295
      %s310 = sphi 0, %s296
      %s314 = sphi 0, %s314
      %s316 = sphi 0, %s314
      %s317 = sphi 0, %s316
      %s331 = sphi 0, %s317
      %s335 = sphi 0, %s335
      %s337 = sphi 0, %s335
      %s338 = sphi 0, %s337
      %s352 = sphi 0, %s338
      %s356 = sphi 0, %s356
      %s358 = sphi 0, %s356
      %s359 = sphi 0, %s358
      %s373 = sphi 0, %s359
      %s377 = sphi 0, %s377
      %s379 = sphi 0, %s377
      %s380 = sphi 0, %s379
      %s394 = sphi 0, %s380
      %s398 = sphi 0, %s398
      %s400 = sphi 0, %s398
      %s401 = sphi 0, %s400
      %s415 = sphi 0, %s401
      %s423 = sphi 0, %s425
      %s426 = sphi 0, %s423
      %s427 = sphi 0, %s426
      %s443 = sphi 0, %s427
      %s451 = sphi 0, %s453
      %s454 = sphi 0, %s451
      %s455 = sphi 0, %s454
      %s471 = sphi 0, %s455
      %s479 = sphi 0, %s481
      %s482 = sphi 0, %s479
      %s483 = sphi 0, %s482
      %s499 = sphi 0, %s483
    $region4: #{multi_scale_operator_forward.7} parent=1 // loop_header_branch
      %33 = sbr.rel (%p31) target = $region8
    $region5: #{multi_scale_operator_forward.7} parent=1 // loop_body
      %s35 = ssub.s32 %s30, 1
      %s36 = ssub.s32 %s30, 2
      %s43 = sadd.s32 1, %s38
      %p44 = scmp.ge.s32.totalorder %s43, 1
      %s45 = scalar_select %p44, 0, %s43
      %s46 = sadd.s32 1, %s37
      %s47 = scalar_select %p44, %s46, %s37
      %p48 = scmp.ge.s32.totalorder %s47, 2
      %s49 = scalar_select %p48, 0, %s47
      %s50 = ssub.s32 %s37, %s49
      %s51 = ssub.s32 %s38, %s45
      %s52 = sor.u32 %s50, %s51
      %p53 = scmp.eq.s32.totalorder %s52, 0
      %s55 = sadd.s32 %s54, 1
      %s56 = scalar_select %p53, %s54, %s55
      %p59 = pneg %p53
      %p60 = scmp.eq.s32.totalorder %s30, 1
      %p61 = por %p59, %p60
      %p62 = scmp.ne.s32.totalorder %s54, %s57
      %p63 = scmp.eq.s32.totalorder %s30, 0
      %p64 = por %p62, %p63
      %p65 = scmp.ne.s32.totalorder %s54, %s57
      %p66 = scmp.eq.s32.totalorder %s35, 1
      %p67 = por %p65, %p66
      %p68 = scmp.ne.s32.totalorder %s57, %s58
      %p69 = scmp.eq.s32.totalorder %s35, 0
      %p70 = por %p68, %p69
      %p71 = scmp.ne.s32.totalorder %s57, %s58
      %p72 = scmp.eq.s32.totalorder %s36, 1
      %p73 = por %p71, %p72
      %p75 = scmp.ne.s32.totalorder %s58, %s74
      %p76 = scmp.eq.s32.totalorder %s36, 0
      %p77 = por %p75, %p76
      %s79 = sadd.s32 %s78, 1
      %p82 = scmp.eq.s32.totalorder %s30, 1
      %p83 = scmp.ne.s32.totalorder %s78, %s80
      %p84 = scmp.eq.s32.totalorder %s30, 0
      %p85 = por %p83, %p84
      %p86 = scmp.ne.s32.totalorder %s78, %s80
      %p87 = scmp.eq.s32.totalorder %s35, 1
      %p88 = por %p86, %p87
      %p89 = scmp.ne.s32.totalorder %s80, %s81
      %p90 = scmp.eq.s32.totalorder %s35, 0
      %p91 = por %p89, %p90
      %p92 = scmp.ne.s32.totalorder %s80, %s81
      %p93 = scmp.eq.s32.totalorder %s36, 1
      %p94 = por %p92, %p93
      %p96 = scmp.ne.s32.totalorder %s81, %s95
      %p97 = scmp.eq.s32.totalorder %s36, 0
      %p98 = por %p96, %p97
      %s100 = sadd.s32 %s99, 1
      %p103 = scmp.eq.s32.totalorder %s30, 1
      %p104 = scmp.ne.s32.totalorder %s99, %s101
      %p105 = scmp.eq.s32.totalorder %s30, 0
      %p106 = por %p104, %p105
      %p107 = scmp.ne.s32.totalorder %s99, %s101
      %p108 = scmp.eq.s32.totalorder %s35, 1
      %p109 = por %p107, %p108
      %p110 = scmp.ne.s32.totalorder %s101, %s102
      %p111 = scmp.eq.s32.totalorder %s35, 0
      %p112 = por %p110, %p111
      %p113 = scmp.ne.s32.totalorder %s101, %s102
      %p114 = scmp.eq.s32.totalorder %s36, 1
      %p115 = por %p113, %p114
      %p117 = scmp.ne.s32.totalorder %s102, %s116
      %p118 = scmp.eq.s32.totalorder %s36, 0
      %p119 = por %p117, %p118
      %s121 = sadd.s32 %s120, 1
      %p124 = scmp.eq.s32.totalorder %s30, 1
      %p125 = scmp.ne.s32.totalorder %s120, %s122
      %p126 = scmp.eq.s32.totalorder %s30, 0
      %p127 = por %p125, %p126
      %p128 = scmp.ne.s32.totalorder %s120, %s122
      %p129 = scmp.eq.s32.totalorder %s35, 1
      %p130 = por %p128, %p129
      %p131 = scmp.ne.s32.totalorder %s122, %s123
      %p132 = scmp.eq.s32.totalorder %s35, 0
      %p133 = por %p131, %p132
      %p134 = scmp.ne.s32.totalorder %s122, %s123
      %p135 = scmp.eq.s32.totalorder %s36, 1
      %p136 = por %p134, %p135
      %p138 = scmp.ne.s32.totalorder %s123, %s137
      %p139 = scmp.eq.s32.totalorder %s36, 0
      %p140 = por %p138, %p139
      %s142 = sadd.s32 %s141, 1
      %p145 = scmp.eq.s32.totalorder %s30, 1
      %p146 = scmp.ne.s32.totalorder %s141, %s143
      %p147 = scmp.eq.s32.totalorder %s30, 0
      %p148 = por %p146, %p147
      %p149 = scmp.ne.s32.totalorder %s141, %s143
      %p150 = scmp.eq.s32.totalorder %s35, 1
      %p151 = por %p149, %p150
      %p152 = scmp.ne.s32.totalorder %s143, %s144
      %p153 = scmp.eq.s32.totalorder %s35, 0
      %p154 = por %p152, %p153
      %p155 = scmp.ne.s32.totalorder %s143, %s144
      %p156 = scmp.eq.s32.totalorder %s36, 1
      %p157 = por %p155, %p156
      %p159 = scmp.ne.s32.totalorder %s144, %s158
      %p160 = scmp.eq.s32.totalorder %s36, 0
      %p161 = por %p159, %p160
      %s163 = sadd.s32 %s162, 1
      %p166 = scmp.eq.s32.totalorder %s30, 1
      %p167 = scmp.ne.s32.totalorder %s162, %s164
      %p168 = scmp.eq.s32.totalorder %s30, 0
      %p169 = por %p167, %p168
      %p170 = scmp.ne.s32.totalorder %s162, %s164
      %p171 = scmp.eq.s32.totalorder %s35, 1
      %p172 = por %p170, %p171
      %p173 = scmp.ne.s32.totalorder %s164, %s165
      %p174 = scmp.eq.s32.totalorder %s35, 0
      %p175 = por %p173, %p174
      %p176 = scmp.ne.s32.totalorder %s164, %s165
      %p177 = scmp.eq.s32.totalorder %s36, 1
      %p178 = por %p176, %p177
      %p180 = scmp.ne.s32.totalorder %s165, %s179
      %p181 = scmp.eq.s32.totalorder %s36, 0
      %p182 = por %p180, %p181
      %s184 = sadd.s32 %s183, 1
      %p187 = scmp.eq.s32.totalorder %s30, 1
      %p188 = scmp.ne.s32.totalorder %s183, %s185
      %p189 = scmp.eq.s32.totalorder %s30, 0
      %p190 = por %p188, %p189
      %p191 = scmp.ne.s32.totalorder %s183, %s185
      %p192 = scmp.eq.s32.totalorder %s35, 1
      %p193 = por %p191, %p192
      %p194 = scmp.ne.s32.totalorder %s185, %s186
      %p195 = scmp.eq.s32.totalorder %s35, 0
      %p196 = por %p194, %p195
      %p197 = scmp.ne.s32.totalorder %s185, %s186
      %p198 = scmp.eq.s32.totalorder %s36, 1
      %p199 = por %p197, %p198
      %p201 = scmp.ne.s32.totalorder %s186, %s200
      %p202 = scmp.eq.s32.totalorder %s36, 0
      %p203 = por %p201, %p202
      %s204 = ssub.s32 %s37, %s49
      %p205 = scmp.eq.s32.totalorder %s204, 0
      %s207 = sadd.s32 %s206, 1
      %s208 = scalar_select %p205, %s206, %s207
      %p211 = pneg %p205
      %p212 = scmp.eq.s32.totalorder %s30, 1
      %p213 = por %p211, %p212
      %p214 = scmp.ne.s32.totalorder %s206, %s209
      %p215 = scmp.eq.s32.totalorder %s30, 0
      %p216 = por %p214, %p215
      %p217 = scmp.ne.s32.totalorder %s206, %s209
      %p218 = scmp.eq.s32.totalorder %s35, 1
      %p219 = por %p217, %p218
      %p220 = scmp.ne.s32.totalorder %s209, %s210
      %p221 = scmp.eq.s32.totalorder %s35, 0
      %p222 = por %p220, %p221
      %p223 = scmp.ne.s32.totalorder %s209, %s210
      %p224 = scmp.eq.s32.totalorder %s36, 1
      %p225 = por %p223, %p224
      %p227 = scmp.ne.s32.totalorder %s210, %s226
      %p228 = scmp.eq.s32.totalorder %s36, 0
      %p229 = por %p227, %p228
      %s231 = sadd.s32 %s230, 1
      %p234 = scmp.eq.s32.totalorder %s30, 1
      %p235 = scmp.ne.s32.totalorder %s230, %s232
      %p236 = scmp.eq.s32.totalorder %s30, 0
      %p237 = por %p235, %p236
      %p238 = scmp.ne.s32.totalorder %s230, %s232
      %p239 = scmp.eq.s32.totalorder %s35, 1
      %p240 = por %p238, %p239
      %p241 = scmp.ne.s32.totalorder %s232, %s233
      %p242 = scmp.eq.s32.totalorder %s35, 0
      %p243 = por %p241, %p242
      %p244 = scmp.ne.s32.totalorder %s232, %s233
      %p245 = scmp.eq.s32.totalorder %s36, 1
      %p246 = por %p244, %p245
      %p248 = scmp.ne.s32.totalorder %s233, %s247
      %p249 = scmp.eq.s32.totalorder %s36, 0
      %p250 = por %p248, %p249
      %s252 = sadd.s32 %s251, 1
      %p255 = scmp.eq.s32.totalorder %s30, 1
      %p256 = scmp.ne.s32.totalorder %s251, %s253
      %p257 = scmp.eq.s32.totalorder %s30, 0
      %p258 = por %p256, %p257
      %p259 = scmp.ne.s32.totalorder %s251, %s253
      %p260 = scmp.eq.s32.totalorder %s35, 1
      %p261 = por %p259, %p260
      %p262 = scmp.ne.s32.totalorder %s253, %s254
      %p263 = scmp.eq.s32.totalorder %s35, 0
      %p264 = por %p262, %p263
      %p265 = scmp.ne.s32.totalorder %s253, %s254
      %p266 = scmp.eq.s32.totalorder %s36, 1
      %p267 = por %p265, %p266
      %p269 = scmp.ne.s32.totalorder %s254, %s268
      %p270 = scmp.eq.s32.totalorder %s36, 0
      %p271 = por %p269, %p270
      %s273 = sadd.s32 %s272, 1
      %p276 = scmp.eq.s32.totalorder %s30, 1
      %p277 = scmp.ne.s32.totalorder %s272, %s274
      %p278 = scmp.eq.s32.totalorder %s30, 0
      %p279 = por %p277, %p278
      %p280 = scmp.ne.s32.totalorder %s272, %s274
      %p281 = scmp.eq.s32.totalorder %s35, 1
      %p282 = por %p280, %p281
      %p283 = scmp.ne.s32.totalorder %s274, %s275
      %p284 = scmp.eq.s32.totalorder %s35, 0
      %p285 = por %p283, %p284
      %p286 = scmp.ne.s32.totalorder %s274, %s275
      %p287 = scmp.eq.s32.totalorder %s36, 1
      %p288 = por %p286, %p287
      %p290 = scmp.ne.s32.totalorder %s275, %s289
      %p291 = scmp.eq.s32.totalorder %s36, 0
      %p292 = por %p290, %p291
      %s294 = sadd.s32 %s293, 1
      %p297 = scmp.eq.s32.totalorder %s30, 1
      %p298 = scmp.ne.s32.totalorder %s293, %s295
      %p299 = scmp.eq.s32.totalorder %s30, 0
      %p300 = por %p298, %p299
      %p301 = scmp.ne.s32.totalorder %s293, %s295
      %p302 = scmp.eq.s32.totalorder %s35, 1
      %p303 = por %p301, %p302
      %p304 = scmp.ne.s32.totalorder %s295, %s296
      %p305 = scmp.eq.s32.totalorder %s35, 0
      %p306 = por %p304, %p305
      %p307 = scmp.ne.s32.totalorder %s295, %s296
      %p308 = scmp.eq.s32.totalorder %s36, 1
      %p309 = por %p307, %p308
      %p311 = scmp.ne.s32.totalorder %s296, %s310
      %p312 = scmp.eq.s32.totalorder %s36, 0
      %p313 = por %p311, %p312
      %s315 = sadd.s32 %s314, 1
      %p318 = scmp.eq.s32.totalorder %s30, 1
      %p319 = scmp.ne.s32.totalorder %s314, %s316
      %p320 = scmp.eq.s32.totalorder %s30, 0
      %p321 = por %p319, %p320
      %p322 = scmp.ne.s32.totalorder %s314, %s316
      %p323 = scmp.eq.s32.totalorder %s35, 1
      %p324 = por %p322, %p323
      %p325 = scmp.ne.s32.totalorder %s316, %s317
      %p326 = scmp.eq.s32.totalorder %s35, 0
      %p327 = por %p325, %p326
      %p328 = scmp.ne.s32.totalorder %s316, %s317
      %p329 = scmp.eq.s32.totalorder %s36, 1
      %p330 = por %p328, %p329
      %p332 = scmp.ne.s32.totalorder %s317, %s331
      %p333 = scmp.eq.s32.totalorder %s36, 0
      %p334 = por %p332, %p333
      %s336 = sadd.s32 %s335, 1
      %p339 = scmp.eq.s32.totalorder %s30, 1
      %p340 = scmp.ne.s32.totalorder %s335, %s337
      %p341 = scmp.eq.s32.totalorder %s30, 0
      %p342 = por %p340, %p341
      %p343 = scmp.ne.s32.totalorder %s335, %s337
      %p344 = scmp.eq.s32.totalorder %s35, 1
      %p345 = por %p343, %p344
      %p346 = scmp.ne.s32.totalorder %s337, %s338
      %p347 = scmp.eq.s32.totalorder %s35, 0
      %p348 = por %p346, %p347
      %p349 = scmp.ne.s32.totalorder %s337, %s338
      %p350 = scmp.eq.s32.totalorder %s36, 1
      %p351 = por %p349, %p350
      %p353 = scmp.ne.s32.totalorder %s338, %s352
      %p354 = scmp.eq.s32.totalorder %s36, 0
      %p355 = por %p353, %p354
      %s357 = sadd.s32 %s356, 1
      %p360 = scmp.eq.s32.totalorder %s30, 1
      %p361 = scmp.ne.s32.totalorder %s356, %s358
      %p362 = scmp.eq.s32.totalorder %s30, 0
      %p363 = por %p361, %p362
      %p364 = scmp.ne.s32.totalorder %s356, %s358
      %p365 = scmp.eq.s32.totalorder %s35, 1
      %p366 = por %p364, %p365
      %p367 = scmp.ne.s32.totalorder %s358, %s359
      %p368 = scmp.eq.s32.totalorder %s35, 0
      %p369 = por %p367, %p368
      %p370 = scmp.ne.s32.totalorder %s358, %s359
      %p371 = scmp.eq.s32.totalorder %s36, 1
      %p372 = por %p370, %p371
      %p374 = scmp.ne.s32.totalorder %s359, %s373
      %p375 = scmp.eq.s32.totalorder %s36, 0
      %p376 = por %p374, %p375
      %s378 = sadd.s32 %s377, 1
      %p381 = scmp.eq.s32.totalorder %s30, 1
      %p382 = scmp.ne.s32.totalorder %s377, %s379
      %p383 = scmp.eq.s32.totalorder %s30, 0
      %p384 = por %p382, %p383
      %p385 = scmp.ne.s32.totalorder %s377, %s379
      %p386 = scmp.eq.s32.totalorder %s35, 1
      %p387 = por %p385, %p386
      %p388 = scmp.ne.s32.totalorder %s379, %s380
      %p389 = scmp.eq.s32.totalorder %s35, 0
      %p390 = por %p388, %p389
      %p391 = scmp.ne.s32.totalorder %s379, %s380
      %p392 = scmp.eq.s32.totalorder %s36, 1
      %p393 = por %p391, %p392
      %p395 = scmp.ne.s32.totalorder %s380, %s394
      %p396 = scmp.eq.s32.totalorder %s36, 0
      %p397 = por %p395, %p396
      %s399 = sadd.s32 %s398, 1
      %p402 = scmp.eq.s32.totalorder %s30, 1
      %p403 = scmp.ne.s32.totalorder %s398, %s400
      %p404 = scmp.eq.s32.totalorder %s30, 0
      %p405 = por %p403, %p404
      %p406 = scmp.ne.s32.totalorder %s398, %s400
      %p407 = scmp.eq.s32.totalorder %s35, 1
      %p408 = por %p406, %p407
      %p409 = scmp.ne.s32.totalorder %s400, %s401
      %p410 = scmp.eq.s32.totalorder %s35, 0
      %p411 = por %p409, %p410
      %p412 = scmp.ne.s32.totalorder %s400, %s401
      %p413 = scmp.eq.s32.totalorder %s36, 1
      %p414 = por %p412, %p413
      %p416 = scmp.ne.s32.totalorder %s401, %s415
      %p417 = scmp.eq.s32.totalorder %s36, 0
      %p418 = por %p416, %p417
      %s419 = ssub.s32 %s37, %s49
      %s420 = ssub.s32 %s38, %s45
      %s421 = sor.u32 %s419, %s420
      %p422 = scmp.eq.s32.totalorder %s421, 0
      %s424 = sadd.s32 %s423, 1
      %s425 = scalar_select %p422, %s423, %s424
      %p428 = pneg %p422
      %p429 = scmp.eq.s32.totalorder %s30, 1
      %p430 = por %p428, %p429
      %p431 = scmp.ne.s32.totalorder %s423, %s426
      %p432 = scmp.eq.s32.totalorder %s30, 0
      %p433 = por %p431, %p432
      %p434 = scmp.ne.s32.totalorder %s423, %s426
      %p435 = scmp.eq.s32.totalorder %s35, 1
      %p436 = por %p434, %p435
      %p437 = scmp.ne.s32.totalorder %s426, %s427
      %p438 = scmp.eq.s32.totalorder %s35, 0
      %p439 = por %p437, %p438
      %p440 = scmp.ne.s32.totalorder %s426, %s427
      %p441 = scmp.eq.s32.totalorder %s36, 1
      %p442 = por %p440, %p441
      %p444 = scmp.ne.s32.totalorder %s427, %s443
      %p445 = scmp.eq.s32.totalorder %s36, 0
      %p446 = por %p444, %p445
      %s447 = ssub.s32 %s37, %s49
      %s448 = ssub.s32 %s38, %s45
      %s449 = sor.u32 %s447, %s448
      %p450 = scmp.eq.s32.totalorder %s449, 0
      %s452 = sadd.s32 %s451, 1
      %s453 = scalar_select %p450, %s451, %s452
      %p456 = pneg %p450
      %p457 = scmp.eq.s32.totalorder %s30, 1
      %p458 = por %p456, %p457
      %p459 = scmp.ne.s32.totalorder %s451, %s454
      %p460 = scmp.eq.s32.totalorder %s30, 0
      %p461 = por %p459, %p460
      %p462 = scmp.ne.s32.totalorder %s451, %s454
      %p463 = scmp.eq.s32.totalorder %s35, 1
      %p464 = por %p462, %p463
      %p465 = scmp.ne.s32.totalorder %s454, %s455
      %p466 = scmp.eq.s32.totalorder %s35, 0
      %p467 = por %p465, %p466
      %p468 = scmp.ne.s32.totalorder %s454, %s455
      %p469 = scmp.eq.s32.totalorder %s36, 1
      %p470 = por %p468, %p469
      %p472 = scmp.ne.s32.totalorder %s455, %s471
      %p473 = scmp.eq.s32.totalorder %s36, 0
      %p474 = por %p472, %p473
      %s475 = ssub.s32 %s37, %s49
      %s476 = ssub.s32 %s38, %s45
      %s477 = sor.u32 %s475, %s476
      %p478 = scmp.eq.s32.totalorder %s477, 0
      %s480 = sadd.s32 %s479, 1
      %s481 = scalar_select %p478, %s479, %s480
      %p484 = pneg %p478
      %p485 = scmp.eq.s32.totalorder %s30, 1
      %p486 = por %p484, %p485
      %p487 = scmp.ne.s32.totalorder %s479, %s482
      %p488 = scmp.eq.s32.totalorder %s30, 0
      %p489 = por %p487, %p488
      %p490 = scmp.ne.s32.totalorder %s479, %s482
      %p491 = scmp.eq.s32.totalorder %s35, 1
      %p492 = por %p490, %p491
      %p493 = scmp.ne.s32.totalorder %s482, %s483
      %p494 = scmp.eq.s32.totalorder %s35, 0
      %p495 = por %p493, %p494
      %p496 = scmp.ne.s32.totalorder %s482, %s483
      %p497 = scmp.eq.s32.totalorder %s36, 1
      %p498 = por %p496, %p497
      %p500 = scmp.ne.s32.totalorder %s483, %s499
      %p501 = scmp.eq.s32.totalorder %s36, 0
      %p502 = por %p500, %p501
      %p503 = scmp.le.s32.totalorder 1, %s30
      %p504 = scmp.lt.s32.totalorder %s30, 3
      %p505 = pnand %p503, %p504
      %p506 = pneg %p505
      // Predicated region
      $region9: #{multi_scale_operator_forward.7} parent=5 // pred_check
        _
      $region10: #{multi_scale_operator_forward.7} parent=5 // pred_check_branch
        %508 = sbr.rel (%p505) target = $region12
      $region11: #{multi_scale_operator_forward.7} parent=5 // pred_region
        %s509 = ssub.s32 %s30, 1
        // Predicated region
        $region13: #{multi_scale_operator_forward.7} parent=11 // pred_check
          %p510 = pneg %p91
        $region14: #{multi_scale_operator_forward.7} parent=11 // pred_check_branch
          %512 = sbr.rel (%p510) target = $region16
        $region15: #{multi_scale_operator_forward.7} parent=11 // pred_region
          _
        $region16: #{multi_scale_operator_forward.7} parent=11 // pred_fallthru
          _
        // Predicated region
        $region17: #{multi_scale_operator_forward.7} parent=11 // pred_check
          %p513 = pneg %p112
        $region18: #{multi_scale_operator_forward.7} parent=11 // pred_check_branch
          %515 = sbr.rel (%p513) target = $region20
        $region19: #{multi_scale_operator_forward.7} parent=11 // pred_region
          _
        $region20: #{multi_scale_operator_forward.7} parent=11 // pred_fallthru
          _
        // Predicated region
        $region21: #{multi_scale_operator_forward.7} parent=11 // pred_check
          %p516 = pneg %p133
        $region22: #{multi_scale_operator_forward.7} parent=11 // pred_check_branch
          %518 = sbr.rel (%p516) target = $region24
        $region23: #{multi_scale_operator_forward.7} parent=11 // pred_region
          _
        $region24: #{multi_scale_operator_forward.7} parent=11 // pred_fallthru
          _
        // Predicated region
        $region25: #{multi_scale_operator_forward.7} parent=11 // pred_check
          %p519 = pneg %p154
        $region26: #{multi_scale_operator_forward.7} parent=11 // pred_check_branch
          %521 = sbr.rel (%p519) target = $region28
        $region27: #{multi_scale_operator_forward.7} parent=11 // pred_region
          _
        $region28: #{multi_scale_operator_forward.7} parent=11 // pred_fallthru
          _
        // Predicated region
        $region29: #{multi_scale_operator_forward.7} parent=11 // pred_check
          %p522 = pneg %p175
        $region30: #{multi_scale_operator_forward.7} parent=11 // pred_check_branch
          %524 = sbr.rel (%p522) target = $region32
        $region31: #{multi_scale_operator_forward.7} parent=11 // pred_region
          _
        $region32: #{multi_scale_operator_forward.7} parent=11 // pred_fallthru
          _
        // Predicated region
        $region33: #{multi_scale_operator_forward.7} parent=11 // pred_check
          %p525 = pneg %p196
        $region34: #{multi_scale_operator_forward.7} parent=11 // pred_check_branch
          %527 = sbr.rel (%p525) target = $region36
        $region35: #{multi_scale_operator_forward.7} parent=11 // pred_region
          _
        $region36: #{multi_scale_operator_forward.7} parent=11 // pred_fallthru
          _
        // Predicated region
        $region37: #{multi_scale_operator_forward.7} parent=11 // pred_check
          %p528 = pneg %p243
        $region38: #{multi_scale_operator_forward.7} parent=11 // pred_check_branch
          %530 = sbr.rel (%p528) target = $region40
        $region39: #{multi_scale_operator_forward.7} parent=11 // pred_region
          _
        $region40: #{multi_scale_operator_forward.7} parent=11 // pred_fallthru
          _
        // Predicated region
        $region41: #{multi_scale_operator_forward.7} parent=11 // pred_check
          %p531 = pneg %p264
        $region42: #{multi_scale_operator_forward.7} parent=11 // pred_check_branch
          %533 = sbr.rel (%p531) target = $region44
        $region43: #{multi_scale_operator_forward.7} parent=11 // pred_region
          _
        $region44: #{multi_scale_operator_forward.7} parent=11 // pred_fallthru
          _
        // Predicated region
        $region45: #{multi_scale_operator_forward.7} parent=11 // pred_check
          %p534 = pneg %p285
        $region46: #{multi_scale_operator_forward.7} parent=11 // pred_check_branch
          %536 = sbr.rel (%p534) target = $region48
        $region47: #{multi_scale_operator_forward.7} parent=11 // pred_region
          _
        $region48: #{multi_scale_operator_forward.7} parent=11 // pred_fallthru
          _
        // Predicated region
        $region49: #{multi_scale_operator_forward.7} parent=11 // pred_check
          %p537 = pneg %p306
        $region50: #{multi_scale_operator_forward.7} parent=11 // pred_check_branch
          %539 = sbr.rel (%p537) target = $region52
        $region51: #{multi_scale_operator_forward.7} parent=11 // pred_region
          _
        $region52: #{multi_scale_operator_forward.7} parent=11 // pred_fallthru
          _
        // Predicated region
        $region53: #{multi_scale_operator_forward.7} parent=11 // pred_check
          %p540 = pneg %p327
        $region54: #{multi_scale_operator_forward.7} parent=11 // pred_check_branch
          %542 = sbr.rel (%p540) target = $region56
        $region55: #{multi_scale_operator_forward.7} parent=11 // pred_region
          _
        $region56: #{multi_scale_operator_forward.7} parent=11 // pred_fallthru
          _
        // Predicated region
        $region57: #{multi_scale_operator_forward.7} parent=11 // pred_check
          %p543 = pneg %p348
        $region58: #{multi_scale_operator_forward.7} parent=11 // pred_check_branch
          %545 = sbr.rel (%p543) target = $region60
        $region59: #{multi_scale_operator_forward.7} parent=11 // pred_region
          _
        $region60: #{multi_scale_operator_forward.7} parent=11 // pred_fallthru
          _
        // Predicated region
        $region61: #{multi_scale_operator_forward.7} parent=11 // pred_check
          %p546 = pneg %p369
        $region62: #{multi_scale_operator_forward.7} parent=11 // pred_check_branch
          %548 = sbr.rel (%p546) target = $region64
        $region63: #{multi_scale_operator_forward.7} parent=11 // pred_region
          _
        $region64: #{multi_scale_operator_forward.7} parent=11 // pred_fallthru
          _
        // Predicated region
        $region65: #{multi_scale_operator_forward.7} parent=11 // pred_check
          %p549 = pneg %p390
        $region66: #{multi_scale_operator_forward.7} parent=11 // pred_check_branch
          %551 = sbr.rel (%p549) target = $region68
        $region67: #{multi_scale_operator_forward.7} parent=11 // pred_region
          _
        $region68: #{multi_scale_operator_forward.7} parent=11 // pred_fallthru
          _
        // Predicated region
        $region69: #{multi_scale_operator_forward.7} parent=11 // pred_check
          %p552 = pneg %p411
        $region70: #{multi_scale_operator_forward.7} parent=11 // pred_check_branch
          %554 = sbr.rel (%p552) target = $region72
        $region71: #{multi_scale_operator_forward.7} parent=11 // pred_region
          _
        $region72: #{multi_scale_operator_forward.7} parent=11 // pred_fallthru
          _
      $region12: #{multi_scale_operator_forward.7} parent=5 // pred_fallthru
        _
      %p555 = scmp.lt.s32.totalorder %s30, 2
      // Predicated region
      $region73: #{multi_scale_operator_forward.7} parent=5 // pred_check
        %p556 = pneg %p555
      $region74: #{multi_scale_operator_forward.7} parent=5 // pred_check_branch
        %558 = sbr.rel (%p556) target = $region76
      $region75: #{multi_scale_operator_forward.7} parent=5 // pred_region
        // Predicated region
        $region77: #{multi_scale_operator_forward.7} parent=75 // pred_check
          %p559 = pneg %p64
        $region78: #{multi_scale_operator_forward.7} parent=75 // pred_check_branch
          %561 = sbr.rel (%p559) target = $region80
        $region79: #{multi_scale_operator_forward.7} parent=75 // pred_region
          %p562 = scmp.lt.s32.totalorder %s37, 1
          %s563 = scalar_select %p562, %s37, 1
          %p564 = scmp.lt.s32.totalorder %s38, 0
          %s565 = scalar_select %p564, %s38, 0
          %s566 = sadd.s32 %s565, %s563
          %s567 = smul.addr %s566, 8
          %s568 = scalar_lea.vmem %s0, %s567
        $region80: #{multi_scale_operator_forward.7} parent=75 // pred_fallthru
          _
        // Predicated region
        $region81: #{multi_scale_operator_forward.7} parent=75 // pred_check
          %p569 = pneg %p216
        $region82: #{multi_scale_operator_forward.7} parent=75 // pred_check_branch
          %571 = sbr.rel (%p569) target = $region84
        $region83: #{multi_scale_operator_forward.7} parent=75 // pred_region
          %p572 = scmp.lt.s32.totalorder %s37, 1
          %s573 = scalar_select %p572, %s37, 1
          %s574 = smul.addr %s573, 8
          %s575 = scalar_lea.vmem %s7, %s574
        $region84: #{multi_scale_operator_forward.7} parent=75 // pred_fallthru
          _
        // Predicated region
        $region85: #{multi_scale_operator_forward.7} parent=75 // pred_check
          %p576 = pneg %p433
        $region86: #{multi_scale_operator_forward.7} parent=75 // pred_check_branch
          %578 = sbr.rel (%p576) target = $region88
        $region87: #{multi_scale_operator_forward.7} parent=75 // pred_region
          %p579 = scmp.lt.s32.totalorder %s37, 1
          %s580 = scalar_select %p579, %s37, 1
          %p581 = scmp.lt.s32.totalorder %s38, 0
          %s582 = scalar_select %p581, %s38, 0
          %s583 = sadd.s32 %s582, %s580
          %s584 = smul.addr %s583, 8
          %s585 = scalar_lea.vmem %s17, %s584
        $region88: #{multi_scale_operator_forward.7} parent=75 // pred_fallthru
          _
      $region76: #{multi_scale_operator_forward.7} parent=5 // pred_fallthru
        _
      %p586 = scmp.le.s32.totalorder 1, %s30
      %p587 = scmp.lt.s32.totalorder %s30, 3
      %p588 = pnand %p586, %p587
      %p589 = pneg %p588
      // Predicated region
      $region89: #{multi_scale_operator_forward.7} parent=5 // pred_check
        _
      $region90: #{multi_scale_operator_forward.7} parent=5 // pred_check_branch
        %591 = sbr.rel (%p588) target = $region92
      $region91: #{multi_scale_operator_forward.7} parent=5 // pred_region
        %s592 = ssub.s32 %s30, 1
        %p593 = scmp.lt.s32.totalorder %s39, 1
        %s594 = scalar_select %p593, %s39, 1
        %p595 = scmp.lt.s32.totalorder %s40, 0
        %s596 = scalar_select %p595, %s40, 0
        %s597 = sadd.s32 %s596, %s594
        %s598 = smul.addr %s597, 8
        %s599 = scalar_lea.vmem %s0, %s598
        %p600 = pneg %p70
        %p601 = pneg %p67
        %p602 = pneg %p91
        %p603 = pneg %p88
        %p604 = pneg %p112
        %p605 = pneg %p109
        %p606 = pneg %p133
        %p607 = pneg %p130
        %p608 = pneg %p154
        %p609 = pneg %p151
        %p610 = pneg %p175
        %p611 = pneg %p172
        %p612 = pneg %p196
        %p613 = pneg %p193
        %p614 = scmp.lt.s32.totalorder %s39, 1
        %s615 = scalar_select %p614, %s39, 1
        %s616 = smul.addr %s615, 8
        %s617 = scalar_lea.vmem %s7, %s616
        %p618 = pneg %p222
        %p619 = pneg %p219
        %p620 = pneg %p243
        %p621 = pneg %p240
        %p622 = pneg %p264
        %p623 = pneg %p261
        %p624 = pneg %p285
        %p625 = pneg %p282
        %p626 = pneg %p306
        %p627 = pneg %p303
        %p628 = pneg %p327
        %p629 = pneg %p324
        %p630 = pneg %p348
        %p631 = pneg %p345
        %p632 = pneg %p369
        %p633 = pneg %p366
        %p634 = pneg %p390
        %p635 = pneg %p387
        %p636 = pneg %p411
        %p637 = pneg %p408
        %p638 = scmp.lt.s32.totalorder %s39, 1
        %s639 = scalar_select %p638, %s39, 1
        %p640 = scmp.lt.s32.totalorder %s40, 0
        %s641 = scalar_select %p640, %s40, 0
        %s642 = sadd.s32 %s641, %s639
        %s643 = smul.addr %s642, 8
        %s644 = scalar_lea.vmem %s17, %s643
        %p645 = pneg %p439
        %p646 = pneg %p436
        %p647 = pneg %p467
        %p648 = pneg %p464
        %s649 = sand.u32 %s454, 1
        %s650 = scalar_lea.sflag [#allocation4], %s649
        %s651 = sand.u32 %s454, 1
        %s652 = smul.addr %s651, 8
        %s653 = scalar_lea.vmem [#allocation3], %s652
        %p654 = pneg %p495
        %p655 = pneg %p492
        %p656 = scmp.lt.s32.totalorder %s39, 1
        %s657 = scalar_select %p656, %s39, 1
        %p658 = scmp.lt.s32.totalorder %s40, 0
        %s659 = scalar_select %p658, %s40, 0
        %s660 = sadd.s32 %s659, %s657
        %s661 = smul.addr %s660, 8
        %s662 = scalar_lea.vmem %s19, %s661
        %p663 = scmp.lt.s32.totalorder %s39, 1
        %s664 = scalar_select %p663, %s39, 1
        %p665 = scmp.lt.s32.totalorder %s40, 0
        %s666 = scalar_select %p665, %s40, 0
        %s667 = sadd.s32 %s666, %s664
        %s668 = smul.addr %s667, 8
        %s669 = scalar_lea.vmem %s0, %s668
        %p670 = scmp.lt.s32.totalorder %s39, 1
        %s671 = scalar_select %p670, %s39, 1
        %s672 = smul.addr %s671, 8
        %s673 = scalar_lea.vmem %s7, %s672
        %p674 = scmp.lt.s32.totalorder %s39, 1
        %s675 = scalar_select %p674, %s39, 1
        %p676 = scmp.lt.s32.totalorder %s40, 0
        %s677 = scalar_select %p676, %s40, 0
        %s678 = sadd.s32 %s677, %s675
        %s679 = smul.addr %s678, 8
        %s680 = scalar_lea.vmem %s17, %s679
        %p681 = scmp.lt.s32.totalorder %s39, 1
        %s682 = scalar_select %p681, %s39, 1
        %p683 = scmp.lt.s32.totalorder %s40, 0
        %s684 = scalar_select %p683, %s40, 0
        %s685 = sadd.s32 %s684, %s682
        %s686 = smul.addr %s685, 8
        %s687 = scalar_lea.vmem %s19, %s686
        %v689 = vld [vmem:[%s669] sm:$0xff]
        %v690 = vpack.c.bf16 %v689, %v689
        %v691 = vld [vmem:[%s1] sm:$0xff]
        %v692 = vld [vmem:[%s1 + $0x8] sm:$0xff]
        %v693 = vld [vmem:[%s1 + $0x10] sm:$0xff]
        %v694 = vld [vmem:[%s1 + $0x18] sm:$0xff]
        %v695 = vld [vmem:[%s2] sm:$0x3]
        %v697 = vperm.slane %v695, 0
        %v698 = vperm.slane %v695, 1
        %v705 = vunpack.c.l.b16 %v691
        %v706 = vunpack.c.h.b16 %v691
        %v707 = vunpack.c.l.b16 %v692
        %v708 = vunpack.c.h.b16 %v692
        %v709 = vunpack.c.l.b16 %v693
        %v710 = vunpack.c.h.b16 %v693
        %v711 = vunpack.c.l.b16 %v694
        %v712 = vunpack.c.h.b16 %v694
        %v713 = vpack.c.b16 %v707, %v705
        %v714 = vpack.c.b16 %v708, %v706
        %v715 = vpack.c.b16 %v711, %v709
        %v716 = vpack.c.b16 %v712, %v710
        %vm721 = vcmask 261120
        %v723 = vsel %vm721, %v690, 0
        %725 = vmatpush.bf16.msra.mxu0 0
        %726 = vmatpush.bf16.msra.mxu0 0
        %727 = vmatpush.bf16.msra.mxu0 0
        %728 = vmatpush.bf16.msra.mxu0 0
        %729 = vmatpush.bf16.msra.mxu0 0
        %730 = vmatpush.bf16.msra.mxu0 0
        %731 = vmatpush.bf16.msra.mxu0 %v715
        %732 = vmatpush.bf16.msra.mxu0 %v713
        %733 = vmatmul.bf16.gmra.mxu0 %v723
        %v734 = vpop.f32.mrf.mxu0
        %v735 = vadd.f32 %v697, %v734
        %v736 = vpop.f32.mrf.mxu0
        %737 = vdwg.mxu0
        %738 = vmatpush.bf16.msra.mxu0 0
        %739 = vmatpush.bf16.msra.mxu0 0
        %740 = vmatpush.bf16.msra.mxu0 0
        %741 = vmatpush.bf16.msra.mxu0 0
        %742 = vmatpush.bf16.msra.mxu0 0
        %743 = vmatpush.bf16.msra.mxu0 0
        %744 = vmatpush.bf16.msra.mxu0 %v716
        %745 = vmatpush.bf16.msra.mxu0 %v714
        %746 = vmatmul.bf16.gmra.mxu0 %v723
        %v747 = vpop.f32.mrf.mxu0
        %v748 = vadd.f32 %v698, %v747
        %v749 = vpop.f32.mrf.mxu0
        %750 = vdwg.mxu0
        %v751 = vadd.f32 %v735, %v748
        %752 = vadd.xlane.f32.xlu0 %v751
        %v753 = vpop.xlane.xlu0 %752
        %v754 = vrcp.pop 256.0
        %v755 = vmul.f32 256.0, %v754
        %v756 = vsub.f32 1.0, %v755
        %v757 = vmul.f32 %v754, %v756
        %v758 = vadd.f32 %v754, %v757
        %vm759 = vweird.f32 %v754
        %v760 = vsel %vm759, %v754, %v758
        %v761 = vmul.f32 %v753, %v760
        %v762 = vsub.f32 %v735, %v761
        %v763 = vsub.f32 %v748, %v761
        %v764 = vmul.f32 %v762, %v762
        %v765 = vmul.f32 %v763, %v763
        %v766 = vadd.f32 %v764, %v765
        %767 = vadd.xlane.f32.xlu0 %v766
        %v768 = vpop.xlane.xlu0 %767
        %v769 = vmul.f32 %v768, %v760
        %v770 = vadd.f32 %v769, 1e-05
        %v771 = vrsqrt.pop %v770
        %v772 = vmul.f32 %v771, %v770
        %v773 = vmul.f32 %v772, %v771
        %v774 = vmul.f32 0.5, %v773
        %v775 = vsub.f32 1.5, %v774
        %v776 = vmul.f32 %v771, %v775
        %vm777 = vweird.f32 %v770
        %vm778 = vweird.f32 %v771
        %vm779 = vmor %vm777, %vm778
        %v780 = vsel %vm779, %v771, %v776
        %v781 = vmul.f32 %v762, %v780
        %v782 = vmul.f32 %v763, %v780
        %v783 = vld [vmem:[%s3] sm:$0x3]
        %v785 = vperm.slane %v783, 0
        %v786 = vperm.slane %v783, 1
        %v789 = vmul.f32 %v781, %v785
        %v790 = vmul.f32 %v782, %v786
        %v791 = vld [vmem:[%s4] sm:$0x3]
        %v793 = vperm.slane %v791, 0
        %v794 = vperm.slane %v791, 1
        %v797 = vadd.f32 %v789, %v793
        %v798 = vadd.f32 %v790, %v794
        %v799 = vmax.f32 %v797, 0.0
        %v800 = vmax.f32 %v798, 0.0
        %v801 = vpack.c.bf16 %v799, %v799
        %v802 = vpack.c.bf16 %v800, %v800
        %v803 = vld [vmem:[%s5] sm:$0xf]
        %v804 = vld [vmem:[%s5 + $0x4] sm:$0xf]
        %v805 = vld [vmem:[%s5 + $0x8] sm:$0xf]
        %v806 = vld [vmem:[%s5 + $0xc] sm:$0xf]
        %v807 = vld [vmem:[%s5 + $0x10] sm:$0xf]
        %v808 = vld [vmem:[%s5 + $0x14] sm:$0xf]
        %v809 = vld [vmem:[%s5 + $0x18] sm:$0xf]
        %v810 = vld [vmem:[%s5 + $0x1c] sm:$0xf]
        %v811 = vld [vmem:[%s5 + $0x20] sm:$0xf]
        %v812 = vld [vmem:[%s5 + $0x24] sm:$0xf]
        %v813 = vld [vmem:[%s5 + $0x28] sm:$0xf]
        %v814 = vld [vmem:[%s5 + $0x2c] sm:$0xf]
        %v815 = vld [vmem:[%s5 + $0x30] sm:$0xf]
        %v816 = vld [vmem:[%s5 + $0x34] sm:$0xf]
        %v817 = vld [vmem:[%s5 + $0x38] sm:$0xf]
        %v818 = vld [vmem:[%s5 + $0x3c] sm:$0xf]
        %v819 = vld [vmem:[%s5 + $0x40] sm:$0xf]
        %v820 = vld [vmem:[%s5 + $0x44] sm:$0xf]
        %v821 = vld [vmem:[%s5 + $0x48] sm:$0xf]
        %v822 = vld [vmem:[%s5 + $0x4c] sm:$0xf]
        %v823 = vld [vmem:[%s5 + $0x50] sm:$0xf]
        %v824 = vld [vmem:[%s5 + $0x54] sm:$0xf]
        %v825 = vld [vmem:[%s5 + $0x58] sm:$0xf]
        %v826 = vld [vmem:[%s5 + $0x5c] sm:$0xf]
        %v827 = vld [vmem:[%s5 + $0x60] sm:$0xf]
        %v828 = vld [vmem:[%s5 + $0x64] sm:$0xf]
        %v829 = vld [vmem:[%s5 + $0x68] sm:$0xf]
        %v830 = vld [vmem:[%s5 + $0x6c] sm:$0xf]
        %v831 = vld [vmem:[%s5 + $0x70] sm:$0xf]
        %v832 = vld [vmem:[%s5 + $0x74] sm:$0xf]
        %v833 = vld [vmem:[%s5 + $0x78] sm:$0xf]
        %v834 = vld [vmem:[%s5 + $0x7c] sm:$0xf]
        %v835 = vld [vmem:[%s6] sm:$0x1]
        %v837 = vperm.slane %v835, 0
        %v871 = vunpack.c.l.b16 %v803
        %v872 = vunpack.c.l.b16 %v804
        %v873 = vunpack.c.l.b16 %v805
        %v874 = vunpack.c.l.b16 %v806
        %v875 = vunpack.c.l.b16 %v807
        %v876 = vunpack.c.l.b16 %v808
        %v877 = vunpack.c.l.b16 %v809
        %v878 = vunpack.c.l.b16 %v810
        %v879 = vunpack.c.l.b16 %v811
        %v880 = vunpack.c.l.b16 %v812
        %v881 = vunpack.c.l.b16 %v813
        %v882 = vunpack.c.l.b16 %v814
        %v883 = vunpack.c.l.b16 %v815
        %v884 = vunpack.c.l.b16 %v816
        %v885 = vunpack.c.l.b16 %v817
        %v886 = vunpack.c.l.b16 %v818
        %v887 = vunpack.c.l.b16 %v819
        %v888 = vunpack.c.l.b16 %v820
        %v889 = vunpack.c.l.b16 %v821
        %v890 = vunpack.c.l.b16 %v822
        %v891 = vunpack.c.l.b16 %v823
        %v892 = vunpack.c.l.b16 %v824
        %v893 = vunpack.c.l.b16 %v825
        %v894 = vunpack.c.l.b16 %v826
        %v895 = vunpack.c.l.b16 %v827
        %v896 = vunpack.c.l.b16 %v828
        %v897 = vunpack.c.l.b16 %v829
        %v898 = vunpack.c.l.b16 %v830
        %v899 = vunpack.c.l.b16 %v831
        %v900 = vunpack.c.l.b16 %v832
        %v901 = vunpack.c.l.b16 %v833
        %v902 = vunpack.c.l.b16 %v834
        %v903 = vpack.c.b16 %v872, %v871
        %v904 = vpack.c.b16 %v874, %v873
        %v905 = vpack.c.b16 %v876, %v875
        %v906 = vpack.c.b16 %v878, %v877
        %v907 = vpack.c.b16 %v880, %v879
        %v908 = vpack.c.b16 %v882, %v881
        %v909 = vpack.c.b16 %v884, %v883
        %v910 = vpack.c.b16 %v886, %v885
        %v911 = vpack.c.b16 %v888, %v887
        %v912 = vpack.c.b16 %v890, %v889
        %v913 = vpack.c.b16 %v892, %v891
        %v914 = vpack.c.b16 %v894, %v893
        %v915 = vpack.c.b16 %v896, %v895
        %v916 = vpack.c.b16 %v898, %v897
        %v917 = vpack.c.b16 %v900, %v899
        %v918 = vpack.c.b16 %v902, %v901
        %935 = vmatpush.bf16.msra.mxu0 %v910
        %936 = vmatpush.bf16.msra.mxu0 %v909
        %937 = vmatpush.bf16.msra.mxu0 %v908
        %938 = vmatpush.bf16.msra.mxu0 %v907
        %939 = vmatpush.bf16.msra.mxu0 %v906
        %940 = vmatpush.bf16.msra.mxu0 %v905
        %941 = vmatpush.bf16.msra.mxu0 %v904
        %942 = vmatpush.bf16.msra.mxu0 %v903
        %943 = vmatmul.bf16.gmra.mxu0 %v801
        %v944 = vpop.f32.mrf.mxu0
        %v945 = vadd.f32 %v837, %v944
        %v946 = vpop.f32.mrf.mxu0
        %947 = vdwg.mxu0
        %948 = vmatpush.bf16.msra.mxu0 %v918
        %949 = vmatpush.bf16.msra.mxu0 %v917
        %950 = vmatpush.bf16.msra.mxu0 %v916
        %951 = vmatpush.bf16.msra.mxu0 %v915
        %952 = vmatpush.bf16.msra.mxu0 %v914
        %953 = vmatpush.bf16.msra.mxu0 %v913
        %954 = vmatpush.bf16.msra.mxu0 %v912
        %955 = vmatpush.bf16.msra.mxu0 %v911
        %956 = vmatmul.bf16.gmra.mxu0 %v802
        %v957 = vpop.f32.mrf.mxu0
        %v958 = vadd.f32 %v945, %v957
        %v959 = vpop.f32.mrf.mxu0
        %960 = vdwg.mxu0
        %v961 = vld [vmem:[%s673] sm:$0xff]
        %v962 = vpack.c.bf16 %v958, %v958
        %v963 = vpack.c.bf16 %v961, %v961
        %v964 = vld [vmem:[%s8] sm:$0xf]
        %v965 = vld [vmem:[%s8 + $0x4] sm:$0xf]
        %v966 = vld [vmem:[%s8 + $0x8] sm:$0xf]
        %v967 = vld [vmem:[%s8 + $0xc] sm:$0xf]
        %v968 = vld [vmem:[%s9] sm:$0x1]
        %v970 = vperm.slane %v968, 0
        %v976 = vunpack.c.l.b16 %v964
        %v977 = vunpack.c.l.b16 %v965
        %v978 = vunpack.c.l.b16 %v966
        %v979 = vunpack.c.l.b16 %v967
        %v980 = vpack.c.b16 %v977, %v976
        %v981 = vpack.c.b16 %v979, %v978
        %v985 = vsel %vm721, %v962, 0
        %987 = vmatpush.bf16.msra.mxu0 0
        %988 = vmatpush.bf16.msra.mxu0 0
        %989 = vmatpush.bf16.msra.mxu0 0
        %990 = vmatpush.bf16.msra.mxu0 0
        %991 = vmatpush.bf16.msra.mxu0 0
        %992 = vmatpush.bf16.msra.mxu0 0
        %993 = vmatpush.bf16.msra.mxu0 %v981
        %994 = vmatpush.bf16.msra.mxu0 %v980
        %995 = vmatmul.bf16.gmra.mxu0 %v985
        %v996 = vpop.f32.mrf.mxu0
        %v997 = vadd.f32 %v970, %v996
        %v998 = vpop.f32.mrf.mxu0
        %999 = vdwg.mxu0
        %v1000 = vld [vmem:[%s10] sm:$0xf]
        %v1001 = vld [vmem:[%s10 + $0x4] sm:$0xf]
        %v1002 = vld [vmem:[%s10 + $0x8] sm:$0xf]
        %v1003 = vld [vmem:[%s10 + $0xc] sm:$0xf]
        %v1004 = vld [vmem:[%s11] sm:$0x1]
        %v1006 = vperm.slane %v1004, 0
        %v1012 = vunpack.c.l.b16 %v1000
        %v1013 = vunpack.c.l.b16 %v1001
        %v1014 = vunpack.c.l.b16 %v1002
        %v1015 = vunpack.c.l.b16 %v1003
        %v1016 = vpack.c.b16 %v1013, %v1012
        %v1017 = vpack.c.b16 %v1015, %v1014
        %v1021 = vsel %vm721, %v963, 0
        %1023 = vmatpush.bf16.msra.mxu0 0
        %1024 = vmatpush.bf16.msra.mxu0 0
        %1025 = vmatpush.bf16.msra.mxu0 0
        %1026 = vmatpush.bf16.msra.mxu0 0
        %1027 = vmatpush.bf16.msra.mxu0 0
        %1028 = vmatpush.bf16.msra.mxu0 0
        %1029 = vmatpush.bf16.msra.mxu0 %v1017
        %1030 = vmatpush.bf16.msra.mxu0 %v1016
        %1031 = vmatmul.bf16.gmra.mxu0 %v1021
        %v1032 = vpop.f32.mrf.mxu0
        %v1033 = vadd.f32 %v1006, %v1032
        %v1034 = vpop.f32.mrf.mxu0
        %1035 = vdwg.mxu0
        %v1036 = vld [vmem:[%s12] sm:$0xf]
        %v1037 = vld [vmem:[%s12 + $0x4] sm:$0xf]
        %v1038 = vld [vmem:[%s12 + $0x8] sm:$0xf]
        %v1039 = vld [vmem:[%s12 + $0xc] sm:$0xf]
        %v1040 = vld [vmem:[%s13] sm:$0x1]
        %v1042 = vperm.slane %v1040, 0
        %v1048 = vunpack.c.l.b16 %v1036
        %v1049 = vunpack.c.l.b16 %v1037
        %v1050 = vunpack.c.l.b16 %v1038
        %v1051 = vunpack.c.l.b16 %v1039
        %v1052 = vpack.c.b16 %v1049, %v1048
        %v1053 = vpack.c.b16 %v1051, %v1050
        %1056 = vmatpush.bf16.msra.mxu0 0
        %1057 = vmatpush.bf16.msra.mxu0 0
        %1058 = vmatpush.bf16.msra.mxu0 0
        %1059 = vmatpush.bf16.msra.mxu0 0
        %1060 = vmatpush.bf16.msra.mxu0 0
        %1061 = vmatpush.bf16.msra.mxu0 0
        %1062 = vmatpush.bf16.msra.mxu0 %v1053
        %1063 = vmatpush.bf16.msra.mxu0 %v1052
        %1064 = vmatmul.bf16.gmra.mxu0 %v1021
        %v1065 = vpop.f32.mrf.mxu0
        %v1066 = vadd.f32 %v1042, %v1065
        %v1067 = vpop.f32.mrf.mxu0
        %1068 = vdwg.mxu0
        %v1069 = vpack.c.bf16 %v997, %v997
        %v1070 = vpack.c.bf16 %v1033, %v1033
        %vm1071 = vcmask 64512
        %v1073 = vsel %vm1071, %v1069, 0
        %v1076 = vsel %vm1071, %v1070, 0
        %1078 = vmatpush.bf16.xpose.msra.mxu0 0
        %1079 = vmatpush.bf16.xpose.msra.mxu0 0
        %1080 = vmatpush.bf16.xpose.msra.mxu0 0
        %1081 = vmatpush.bf16.xpose.msra.mxu0 0
        %1082 = vmatpush.bf16.xpose.msra.mxu0 0
        %1083 = vmatpush.bf16.xpose.msra.mxu0 0
        %1084 = vmatpush.bf16.xpose.msra.mxu0 0
        %1085 = vmatpush.bf16.xpose.msra.mxu0 %v1076
        %1086 = vmatmul.bf16.gmra.mxu0 %v1073
        %v1087 = vpop.f32.mrf.mxu0
        %v1088 = vadd.f32 0.0, %v1087
        %v1089 = vpop.f32.mrf.mxu0
        %1090 = vdwg.mxu0
        %v1091 = vsel %vm1071, %v1088, -inf
        %1092 = vmax.xlane.f32.xlu0 %v1091
        %v1093 = vpop.xlane.xlu0 %1092
        %v1094 = vsub.f32 %v1088, %v1093
        %v1095 = vmul.f32 %v1094, 1.442695
        %v1096 = vpow.pop %v1095
        %v1097 = vsel %vm1071, %v1096, 0.0
        %1098 = vadd.xlane.f32.xlu0 %v1097
        %v1099 = vpop.xlane.xlu0 %1098
        %v1100 = vrcp.pop %v1099
        %v1101 = vmul.f32 %v1096, %v1100
        %v1102 = vpack.c.bf16 %v1101, %v1101
        %v1103 = vpack.c.bf16 %v1066, %v1066
        %v1105 = vsel %vm1071, %v1102, 0
        %vm1107 = vcmask 1043456
        %v1109 = vsel %vm1107, %v1103, 0
        %1111 = vmatpush.bf16.msra.mxu0 0
        %1112 = vmatpush.bf16.msra.mxu0 0
        %1113 = vmatpush.bf16.msra.mxu0 0
        %1114 = vmatpush.bf16.msra.mxu0 0
        %1115 = vmatpush.bf16.msra.mxu0 0
        %1116 = vmatpush.bf16.msra.mxu0 0
        %1117 = vmatpush.bf16.msra.mxu0 0
        %1118 = vmatpush.bf16.msra.mxu0 %v1109
        %1119 = vmatmul.bf16.gmra.mxu0 %v1105
        %v1120 = vpop.f32.mrf.mxu0
        %v1121 = vadd.f32 0.0, %v1120
        %v1122 = vpop.f32.mrf.mxu0
        %1123 = vdwg.mxu0
        %v1124 = vpack.c.bf16 %v1121, %v1121
        %v1125 = vld [vmem:[%s14] sm:$0xf]
        %s1126 = scalar_lea.vmem %s8, 16
        %v1127 = vld [vmem:[%s1126] sm:$0xf]
        %v1128 = vld [vmem:[%s1126 + $0x4] sm:$0xf]
        %v1129 = vld [vmem:[%s1126 + $0x8] sm:$0xf]
        %v1130 = vld [vmem:[%s1126 + $0xc] sm:$0xf]
        %s1131 = scalar_lea.vmem %s9, 1
        %v1132 = vld [vmem:[%s1131] sm:$0x1]
        %v1134 = vperm.slane %v1132, 0
        %v1140 = vunpack.c.l.b16 %v1127
        %v1141 = vunpack.c.l.b16 %v1128
        %v1142 = vunpack.c.l.b16 %v1129
        %v1143 = vunpack.c.l.b16 %v1130
        %v1144 = vpack.c.b16 %v1141, %v1140
        %v1145 = vpack.c.b16 %v1143, %v1142
        %1148 = vmatpush.bf16.msra.mxu0 0
        %1149 = vmatpush.bf16.msra.mxu0 0
        %1150 = vmatpush.bf16.msra.mxu0 0
        %1151 = vmatpush.bf16.msra.mxu0 0
        %1152 = vmatpush.bf16.msra.mxu0 0
        %1153 = vmatpush.bf16.msra.mxu0 0
        %1154 = vmatpush.bf16.msra.mxu0 %v1145
        %1155 = vmatpush.bf16.msra.mxu0 %v1144
        %1156 = vmatmul.bf16.gmra.mxu0 %v985
        %v1157 = vpop.f32.mrf.mxu0
        %v1158 = vadd.f32 %v1134, %v1157
        %v1159 = vpop.f32.mrf.mxu0
        %1160 = vdwg.mxu0
        %s1161 = scalar_lea.vmem %s10, 16
        %v1162 = vld [vmem:[%s1161] sm:$0xf]
        %v1163 = vld [vmem:[%s1161 + $0x4] sm:$0xf]
        %v1164 = vld [vmem:[%s1161 + $0x8] sm:$0xf]
        %v1165 = vld [vmem:[%s1161 + $0xc] sm:$0xf]
        %s1166 = scalar_lea.vmem %s11, 1
        %v1167 = vld [vmem:[%s1166] sm:$0x1]
        %v1169 = vperm.slane %v1167, 0
        %v1175 = vunpack.c.l.b16 %v1162
        %v1176 = vunpack.c.l.b16 %v1163
        %v1177 = vunpack.c.l.b16 %v1164
        %v1178 = vunpack.c.l.b16 %v1165
        %v1179 = vpack.c.b16 %v1176, %v1175
        %v1180 = vpack.c.b16 %v1178, %v1177
        %1183 = vmatpush.bf16.msra.mxu0 0
        %1184 = vmatpush.bf16.msra.mxu0 0
        %1185 = vmatpush.bf16.msra.mxu0 0
        %1186 = vmatpush.bf16.msra.mxu0 0
        %1187 = vmatpush.bf16.msra.mxu0 0
        %1188 = vmatpush.bf16.msra.mxu0 0
        %1189 = vmatpush.bf16.msra.mxu0 %v1180
        %1190 = vmatpush.bf16.msra.mxu0 %v1179
        %1191 = vmatmul.bf16.gmra.mxu0 %v1021
        %v1192 = vpop.f32.mrf.mxu0
        %v1193 = vadd.f32 %v1169, %v1192
        %v1194 = vpop.f32.mrf.mxu0
        %1195 = vdwg.mxu0
        %s1196 = scalar_lea.vmem %s12, 16
        %v1197 = vld [vmem:[%s1196] sm:$0xf]
        %v1198 = vld [vmem:[%s1196 + $0x4] sm:$0xf]
        %v1199 = vld [vmem:[%s1196 + $0x8] sm:$0xf]
        %v1200 = vld [vmem:[%s1196 + $0xc] sm:$0xf]
        %s1201 = scalar_lea.vmem %s13, 1
        %v1202 = vld [vmem:[%s1201] sm:$0x1]
        %v1204 = vperm.slane %v1202, 0
        %v1210 = vunpack.c.l.b16 %v1197
        %v1211 = vunpack.c.l.b16 %v1198
        %v1212 = vunpack.c.l.b16 %v1199
        %v1213 = vunpack.c.l.b16 %v1200
        %v1214 = vpack.c.b16 %v1211, %v1210
        %v1215 = vpack.c.b16 %v1213, %v1212
        %1218 = vmatpush.bf16.msra.mxu0 0
        %1219 = vmatpush.bf16.msra.mxu0 0
        %1220 = vmatpush.bf16.msra.mxu0 0
        %1221 = vmatpush.bf16.msra.mxu0 0
        %1222 = vmatpush.bf16.msra.mxu0 0
        %1223 = vmatpush.bf16.msra.mxu0 0
        %1224 = vmatpush.bf16.msra.mxu0 %v1215
        %1225 = vmatpush.bf16.msra.mxu0 %v1214
        %1226 = vmatmul.bf16.gmra.mxu0 %v1021
        %v1227 = vpop.f32.mrf.mxu0
        %v1228 = vadd.f32 %v1204, %v1227
        %v1229 = vpop.f32.mrf.mxu0
        %1230 = vdwg.mxu0
        %v1231 = vpack.c.bf16 %v1158, %v1158
        %v1232 = vpack.c.bf16 %v1193, %v1193
        %v1234 = vsel %vm1071, %v1231, 0
        %v1237 = vsel %vm1071, %v1232, 0
        %1239 = vmatpush.bf16.xpose.msra.mxu0 0
        %1240 = vmatpush.bf16.xpose.msra.mxu0 0
        %1241 = vmatpush.bf16.xpose.msra.mxu0 0
        %1242 = vmatpush.bf16.xpose.msra.mxu0 0
        %1243 = vmatpush.bf16.xpose.msra.mxu0 0
        %1244 = vmatpush.bf16.xpose.msra.mxu0 0
        %1245 = vmatpush.bf16.xpose.msra.mxu0 0
        %1246 = vmatpush.bf16.xpose.msra.mxu0 %v1237
        %1247 = vmatmul.bf16.gmra.mxu0 %v1234
        %v1248 = vpop.f32.mrf.mxu0
        %v1249 = vadd.f32 0.0, %v1248
        %v1250 = vpop.f32.mrf.mxu0
        %1251 = vdwg.mxu0
        %v1252 = vsel %vm1071, %v1249, -inf
        %1253 = vmax.xlane.f32.xlu0 %v1252
        %v1254 = vpop.xlane.xlu0 %1253
        %v1255 = vsub.f32 %v1249, %v1254
        %v1256 = vmul.f32 %v1255, 1.442695
        %v1257 = vpow.pop %v1256
        %v1258 = vsel %vm1071, %v1257, 0.0
        %1259 = vadd.xlane.f32.xlu0 %v1258
        %v1260 = vpop.xlane.xlu0 %1259
        %v1261 = vrcp.pop %v1260
        %v1262 = vmul.f32 %v1257, %v1261
        %v1263 = vpack.c.bf16 %v1262, %v1262
        %v1264 = vpack.c.bf16 %v1228, %v1228
        %v1266 = vsel %vm1071, %v1263, 0
        %v1269 = vsel %vm1107, %v1264, 0
        %1271 = vmatpush.bf16.msra.mxu0 0
        %1272 = vmatpush.bf16.msra.mxu0 0
        %1273 = vmatpush.bf16.msra.mxu0 0
        %1274 = vmatpush.bf16.msra.mxu0 0
        %1275 = vmatpush.bf16.msra.mxu0 0
        %1276 = vmatpush.bf16.msra.mxu0 0
        %1277 = vmatpush.bf16.msra.mxu0 0
        %1278 = vmatpush.bf16.msra.mxu0 %v1269
        %1279 = vmatmul.bf16.gmra.mxu0 %v1266
        %v1280 = vpop.f32.mrf.mxu0
        %v1281 = vadd.f32 0.0, %v1280
        %v1282 = vpop.f32.mrf.mxu0
        %1283 = vdwg.mxu0
        %v1284 = vpack.c.bf16 %v1281, %v1281
        %s1285 = scalar_lea.vmem %s14, 4
        %v1286 = vld [vmem:[%s1285] sm:$0xf]
        %v1288 = vsel %vm1071, %v1284, 0
        %v1291 = vsel %vm1107, %v1286, 0
        %1293 = vmatpush.bf16.msra.mxu0 0
        %1294 = vmatpush.bf16.msra.mxu0 0
        %1295 = vmatpush.bf16.msra.mxu0 0
        %1296 = vmatpush.bf16.msra.mxu0 0
        %1297 = vmatpush.bf16.msra.mxu0 0
        %1298 = vmatpush.bf16.msra.mxu0 0
        %1299 = vmatpush.bf16.msra.mxu0 0
        %1300 = vmatpush.bf16.msra.mxu0 %v1291
        %1301 = vmatmul.bf16.gmra.mxu0 %v1288
        %v1302 = vpop.f32.mrf.mxu0
        %v1303 = vadd.f32 0.0, %v1302
        %v1304 = vpop.f32.mrf.mxu0
        %1305 = vdwg.mxu0
        %v1307 = vsel %vm1071, %v1124, 0
        %v1310 = vsel %vm1107, %v1125, 0
        %1312 = vmatpush.bf16.msra.mxu0 0
        %1313 = vmatpush.bf16.msra.mxu0 0
        %1314 = vmatpush.bf16.msra.mxu0 0
        %1315 = vmatpush.bf16.msra.mxu0 0
        %1316 = vmatpush.bf16.msra.mxu0 0
        %1317 = vmatpush.bf16.msra.mxu0 0
        %1318 = vmatpush.bf16.msra.mxu0 0
        %1319 = vmatpush.bf16.msra.mxu0 %v1310
        %1320 = vmatmul.bf16.gmra.mxu0 %v1307
        %v1321 = vpop.f32.mrf.mxu0
        %v1322 = vadd.f32 %v1303, %v1321
        %v1323 = vpop.f32.mrf.mxu0
        %1324 = vdwg.mxu0
        %s1325 = scalar_lea.vmem %s8, 32
        %v1326 = vld [vmem:[%s1325] sm:$0xf]
        %v1327 = vld [vmem:[%s1325 + $0x4] sm:$0xf]
        %v1328 = vld [vmem:[%s1325 + $0x8] sm:$0xf]
        %v1329 = vld [vmem:[%s1325 + $0xc] sm:$0xf]
        %s1330 = scalar_lea.vmem %s9, 2
        %v1331 = vld [vmem:[%s1330] sm:$0x1]
        %v1333 = vperm.slane %v1331, 0
        %v1339 = vunpack.c.l.b16 %v1326
        %v1340 = vunpack.c.l.b16 %v1327
        %v1341 = vunpack.c.l.b16 %v1328
        %v1342 = vunpack.c.l.b16 %v1329
        %v1343 = vpack.c.b16 %v1340, %v1339
        %v1344 = vpack.c.b16 %v1342, %v1341
        %1347 = vmatpush.bf16.msra.mxu0 0
        %1348 = vmatpush.bf16.msra.mxu0 0
        %1349 = vmatpush.bf16.msra.mxu0 0
        %1350 = vmatpush.bf16.msra.mxu0 0
        %1351 = vmatpush.bf16.msra.mxu0 0
        %1352 = vmatpush.bf16.msra.mxu0 0
        %1353 = vmatpush.bf16.msra.mxu0 %v1344
        %1354 = vmatpush.bf16.msra.mxu0 %v1343
        %1355 = vmatmul.bf16.gmra.mxu0 %v985
        %v1356 = vpop.f32.mrf.mxu0
        %v1357 = vadd.f32 %v1333, %v1356
        %v1358 = vpop.f32.mrf.mxu0
        %1359 = vdwg.mxu0
        %s1360 = scalar_lea.vmem %s10, 32
        %v1361 = vld [vmem:[%s1360] sm:$0xf]
        %v1362 = vld [vmem:[%s1360 + $0x4] sm:$0xf]
        %v1363 = vld [vmem:[%s1360 + $0x8] sm:$0xf]
        %v1364 = vld [vmem:[%s1360 + $0xc] sm:$0xf]
        %s1365 = scalar_lea.vmem %s11, 2
        %v1366 = vld [vmem:[%s1365] sm:$0x1]
        %v1368 = vperm.slane %v1366, 0
        %v1374 = vunpack.c.l.b16 %v1361
        %v1375 = vunpack.c.l.b16 %v1362
        %v1376 = vunpack.c.l.b16 %v1363
        %v1377 = vunpack.c.l.b16 %v1364
        %v1378 = vpack.c.b16 %v1375, %v1374
        %v1379 = vpack.c.b16 %v1377, %v1376
        %1382 = vmatpush.bf16.msra.mxu0 0
        %1383 = vmatpush.bf16.msra.mxu0 0
        %1384 = vmatpush.bf16.msra.mxu0 0
        %1385 = vmatpush.bf16.msra.mxu0 0
        %1386 = vmatpush.bf16.msra.mxu0 0
        %1387 = vmatpush.bf16.msra.mxu0 0
        %1388 = vmatpush.bf16.msra.mxu0 %v1379
        %1389 = vmatpush.bf16.msra.mxu0 %v1378
        %1390 = vmatmul.bf16.gmra.mxu0 %v1021
        %v1391 = vpop.f32.mrf.mxu0
        %v1392 = vadd.f32 %v1368, %v1391
        %v1393 = vpop.f32.mrf.mxu0
        %1394 = vdwg.mxu0
        %s1395 = scalar_lea.vmem %s12, 32
        %v1396 = vld [vmem:[%s1395] sm:$0xf]
        %v1397 = vld [vmem:[%s1395 + $0x4] sm:$0xf]
        %v1398 = vld [vmem:[%s1395 + $0x8] sm:$0xf]
        %v1399 = vld [vmem:[%s1395 + $0xc] sm:$0xf]
        %s1400 = scalar_lea.vmem %s13, 2
        %v1401 = vld [vmem:[%s1400] sm:$0x1]
        %v1403 = vperm.slane %v1401, 0
        %v1409 = vunpack.c.l.b16 %v1396
        %v1410 = vunpack.c.l.b16 %v1397
        %v1411 = vunpack.c.l.b16 %v1398
        %v1412 = vunpack.c.l.b16 %v1399
        %v1413 = vpack.c.b16 %v1410, %v1409
        %v1414 = vpack.c.b16 %v1412, %v1411
        %1417 = vmatpush.bf16.msra.mxu0 0
        %1418 = vmatpush.bf16.msra.mxu0 0
        %1419 = vmatpush.bf16.msra.mxu0 0
        %1420 = vmatpush.bf16.msra.mxu0 0
        %1421 = vmatpush.bf16.msra.mxu0 0
        %1422 = vmatpush.bf16.msra.mxu0 0
        %1423 = vmatpush.bf16.msra.mxu0 %v1414
        %1424 = vmatpush.bf16.msra.mxu0 %v1413
        %1425 = vmatmul.bf16.gmra.mxu0 %v1021
        %v1426 = vpop.f32.mrf.mxu0
        %v1427 = vadd.f32 %v1403, %v1426
        %v1428 = vpop.f32.mrf.mxu0
        %1429 = vdwg.mxu0
        %v1430 = vpack.c.bf16 %v1357, %v1357
        %v1431 = vpack.c.bf16 %v1392, %v1392
        %v1433 = vsel %vm1071, %v1430, 0
        %v1436 = vsel %vm1071, %v1431, 0
        %1438 = vmatpush.bf16.xpose.msra.mxu0 0
        %1439 = vmatpush.bf16.xpose.msra.mxu0 0
        %1440 = vmatpush.bf16.xpose.msra.mxu0 0
        %1441 = vmatpush.bf16.xpose.msra.mxu0 0
        %1442 = vmatpush.bf16.xpose.msra.mxu0 0
        %1443 = vmatpush.bf16.xpose.msra.mxu0 0
        %1444 = vmatpush.bf16.xpose.msra.mxu0 0
        %1445 = vmatpush.bf16.xpose.msra.mxu0 %v1436
        %1446 = vmatmul.bf16.gmra.mxu0 %v1433
        %v1447 = vpop.f32.mrf.mxu0
        %v1448 = vadd.f32 0.0, %v1447
        %v1449 = vpop.f32.mrf.mxu0
        %1450 = vdwg.mxu0
        %v1451 = vsel %vm1071, %v1448, -inf
        %1452 = vmax.xlane.f32.xlu0 %v1451
        %v1453 = vpop.xlane.xlu0 %1452
        %v1454 = vsub.f32 %v1448, %v1453
        %v1455 = vmul.f32 %v1454, 1.442695
        %v1456 = vpow.pop %v1455
        %v1457 = vsel %vm1071, %v1456, 0.0
        %1458 = vadd.xlane.f32.xlu0 %v1457
        %v1459 = vpop.xlane.xlu0 %1458
        %v1460 = vrcp.pop %v1459
        %v1461 = vmul.f32 %v1456, %v1460
        %v1462 = vpack.c.bf16 %v1461, %v1461
        %v1463 = vpack.c.bf16 %v1427, %v1427
        %v1465 = vsel %vm1071, %v1462, 0
        %v1468 = vsel %vm1107, %v1463, 0
        %1470 = vmatpush.bf16.msra.mxu0 0
        %1471 = vmatpush.bf16.msra.mxu0 0
        %1472 = vmatpush.bf16.msra.mxu0 0
        %1473 = vmatpush.bf16.msra.mxu0 0
        %1474 = vmatpush.bf16.msra.mxu0 0
        %1475 = vmatpush.bf16.msra.mxu0 0
        %1476 = vmatpush.bf16.msra.mxu0 0
        %1477 = vmatpush.bf16.msra.mxu0 %v1468
        %1478 = vmatmul.bf16.gmra.mxu0 %v1465
        %v1479 = vpop.f32.mrf.mxu0
        %v1480 = vadd.f32 0.0, %v1479
        %v1481 = vpop.f32.mrf.mxu0
        %1482 = vdwg.mxu0
        %v1483 = vpack.c.bf16 %v1480, %v1480
        %s1484 = scalar_lea.vmem %s14, 8
        %v1485 = vld [vmem:[%s1484] sm:$0xf]
        %v1487 = vsel %vm1071, %v1483, 0
        %v1490 = vsel %vm1107, %v1485, 0
        %1492 = vmatpush.bf16.msra.mxu0 0
        %1493 = vmatpush.bf16.msra.mxu0 0
        %1494 = vmatpush.bf16.msra.mxu0 0
        %1495 = vmatpush.bf16.msra.mxu0 0
        %1496 = vmatpush.bf16.msra.mxu0 0
        %1497 = vmatpush.bf16.msra.mxu0 0
        %1498 = vmatpush.bf16.msra.mxu0 0
        %1499 = vmatpush.bf16.msra.mxu0 %v1490
        %1500 = vmatmul.bf16.gmra.mxu0 %v1487
        %v1501 = vpop.f32.mrf.mxu0
        %v1502 = vadd.f32 0.0, %v1501
        %v1503 = vpop.f32.mrf.mxu0
        %1504 = vdwg.mxu0
        %v1505 = vadd.f32 %v1322, %v1502
        %s1506 = scalar_lea.vmem %s8, 48
        %v1507 = vld [vmem:[%s1506] sm:$0xf]
        %v1508 = vld [vmem:[%s1506 + $0x4] sm:$0xf]
        %v1509 = vld [vmem:[%s1506 + $0x8] sm:$0xf]
        %v1510 = vld [vmem:[%s1506 + $0xc] sm:$0xf]
        %s1511 = scalar_lea.vmem %s9, 3
        %v1512 = vld [vmem:[%s1511] sm:$0x1]
        %v1514 = vperm.slane %v1512, 0
        %v1520 = vunpack.c.l.b16 %v1507
        %v1521 = vunpack.c.l.b16 %v1508
        %v1522 = vunpack.c.l.b16 %v1509
        %v1523 = vunpack.c.l.b16 %v1510
        %v1524 = vpack.c.b16 %v1521, %v1520
        %v1525 = vpack.c.b16 %v1523, %v1522
        %1528 = vmatpush.bf16.msra.mxu0 0
        %1529 = vmatpush.bf16.msra.mxu0 0
        %1530 = vmatpush.bf16.msra.mxu0 0
        %1531 = vmatpush.bf16.msra.mxu0 0
        %1532 = vmatpush.bf16.msra.mxu0 0
        %1533 = vmatpush.bf16.msra.mxu0 0
        %1534 = vmatpush.bf16.msra.mxu0 %v1525
        %1535 = vmatpush.bf16.msra.mxu0 %v1524
        %1536 = vmatmul.bf16.gmra.mxu0 %v985
        %v1537 = vpop.f32.mrf.mxu0
        %v1538 = vadd.f32 %v1514, %v1537
        %v1539 = vpop.f32.mrf.mxu0
        %1540 = vdwg.mxu0
        %s1541 = scalar_lea.vmem %s10, 48
        %v1542 = vld [vmem:[%s1541] sm:$0xf]
        %v1543 = vld [vmem:[%s1541 + $0x4] sm:$0xf]
        %v1544 = vld [vmem:[%s1541 + $0x8] sm:$0xf]
        %v1545 = vld [vmem:[%s1541 + $0xc] sm:$0xf]
        %s1546 = scalar_lea.vmem %s11, 3
        %v1547 = vld [vmem:[%s1546] sm:$0x1]
        %v1549 = vperm.slane %v1547, 0
        %v1555 = vunpack.c.l.b16 %v1542
        %v1556 = vunpack.c.l.b16 %v1543
        %v1557 = vunpack.c.l.b16 %v1544
        %v1558 = vunpack.c.l.b16 %v1545
        %v1559 = vpack.c.b16 %v1556, %v1555
        %v1560 = vpack.c.b16 %v1558, %v1557
        %1563 = vmatpush.bf16.msra.mxu0 0
        %1564 = vmatpush.bf16.msra.mxu0 0
        %1565 = vmatpush.bf16.msra.mxu0 0
        %1566 = vmatpush.bf16.msra.mxu0 0
        %1567 = vmatpush.bf16.msra.mxu0 0
        %1568 = vmatpush.bf16.msra.mxu0 0
        %1569 = vmatpush.bf16.msra.mxu0 %v1560
        %1570 = vmatpush.bf16.msra.mxu0 %v1559
        %1571 = vmatmul.bf16.gmra.mxu0 %v1021
        %v1572 = vpop.f32.mrf.mxu0
        %v1573 = vadd.f32 %v1549, %v1572
        %v1574 = vpop.f32.mrf.mxu0
        %1575 = vdwg.mxu0
        %s1576 = scalar_lea.vmem %s12, 48
        %v1577 = vld [vmem:[%s1576] sm:$0xf]
        %v1578 = vld [vmem:[%s1576 + $0x4] sm:$0xf]
        %v1579 = vld [vmem:[%s1576 + $0x8] sm:$0xf]
        %v1580 = vld [vmem:[%s1576 + $0xc] sm:$0xf]
        %s1581 = scalar_lea.vmem %s13, 3
        %v1582 = vld [vmem:[%s1581] sm:$0x1]
        %v1584 = vperm.slane %v1582, 0
        %v1590 = vunpack.c.l.b16 %v1577
        %v1591 = vunpack.c.l.b16 %v1578
        %v1592 = vunpack.c.l.b16 %v1579
        %v1593 = vunpack.c.l.b16 %v1580
        %v1594 = vpack.c.b16 %v1591, %v1590
        %v1595 = vpack.c.b16 %v1593, %v1592
        %1598 = vmatpush.bf16.msra.mxu0 0
        %1599 = vmatpush.bf16.msra.mxu0 0
        %1600 = vmatpush.bf16.msra.mxu0 0
        %1601 = vmatpush.bf16.msra.mxu0 0
        %1602 = vmatpush.bf16.msra.mxu0 0
        %1603 = vmatpush.bf16.msra.mxu0 0
        %1604 = vmatpush.bf16.msra.mxu0 %v1595
        %1605 = vmatpush.bf16.msra.mxu0 %v1594
        %1606 = vmatmul.bf16.gmra.mxu0 %v1021
        %v1607 = vpop.f32.mrf.mxu0
        %v1608 = vadd.f32 %v1584, %v1607
        %v1609 = vpop.f32.mrf.mxu0
        %1610 = vdwg.mxu0
        %v1611 = vpack.c.bf16 %v1538, %v1538
        %v1612 = vpack.c.bf16 %v1573, %v1573
        %v1614 = vsel %vm1071, %v1611, 0
        %v1617 = vsel %vm1071, %v1612, 0
        %1619 = vmatpush.bf16.xpose.msra.mxu0 0
        %1620 = vmatpush.bf16.xpose.msra.mxu0 0
        %1621 = vmatpush.bf16.xpose.msra.mxu0 0
        %1622 = vmatpush.bf16.xpose.msra.mxu0 0
        %1623 = vmatpush.bf16.xpose.msra.mxu0 0
        %1624 = vmatpush.bf16.xpose.msra.mxu0 0
        %1625 = vmatpush.bf16.xpose.msra.mxu0 0
        %1626 = vmatpush.bf16.xpose.msra.mxu0 %v1617
        %1627 = vmatmul.bf16.gmra.mxu0 %v1614
        %v1628 = vpop.f32.mrf.mxu0
        %v1629 = vadd.f32 0.0, %v1628
        %v1630 = vpop.f32.mrf.mxu0
        %1631 = vdwg.mxu0
        %v1632 = vsel %vm1071, %v1629, -inf
        %1633 = vmax.xlane.f32.xlu0 %v1632
        %v1634 = vpop.xlane.xlu0 %1633
        %v1635 = vsub.f32 %v1629, %v1634
        %v1636 = vmul.f32 %v1635, 1.442695
        %v1637 = vpow.pop %v1636
        %v1638 = vsel %vm1071, %v1637, 0.0
        %1639 = vadd.xlane.f32.xlu0 %v1638
        %v1640 = vpop.xlane.xlu0 %1639
        %v1641 = vrcp.pop %v1640
        %v1642 = vmul.f32 %v1637, %v1641
        %v1643 = vpack.c.bf16 %v1642, %v1642
        %v1644 = vpack.c.bf16 %v1608, %v1608
        %v1646 = vsel %vm1071, %v1643, 0
        %v1649 = vsel %vm1107, %v1644, 0
        %1651 = vmatpush.bf16.msra.mxu0 0
        %1652 = vmatpush.bf16.msra.mxu0 0
        %1653 = vmatpush.bf16.msra.mxu0 0
        %1654 = vmatpush.bf16.msra.mxu0 0
        %1655 = vmatpush.bf16.msra.mxu0 0
        %1656 = vmatpush.bf16.msra.mxu0 0
        %1657 = vmatpush.bf16.msra.mxu0 0
        %1658 = vmatpush.bf16.msra.mxu0 %v1649
        %1659 = vmatmul.bf16.gmra.mxu0 %v1646
        %v1660 = vpop.f32.mrf.mxu0
        %v1661 = vadd.f32 0.0, %v1660
        %v1662 = vpop.f32.mrf.mxu0
        %1663 = vdwg.mxu0
        %v1664 = vpack.c.bf16 %v1661, %v1661
        %s1665 = scalar_lea.vmem %s14, 12
        %v1666 = vld [vmem:[%s1665] sm:$0xf]
        %v1668 = vsel %vm1071, %v1664, 0
        %v1671 = vsel %vm1107, %v1666, 0
        %1673 = vmatpush.bf16.msra.mxu0 0
        %1674 = vmatpush.bf16.msra.mxu0 0
        %1675 = vmatpush.bf16.msra.mxu0 0
        %1676 = vmatpush.bf16.msra.mxu0 0
        %1677 = vmatpush.bf16.msra.mxu0 0
        %1678 = vmatpush.bf16.msra.mxu0 0
        %1679 = vmatpush.bf16.msra.mxu0 0
        %1680 = vmatpush.bf16.msra.mxu0 %v1671
        %1681 = vmatmul.bf16.gmra.mxu0 %v1668
        %v1682 = vpop.f32.mrf.mxu0
        %v1683 = vadd.f32 0.0, %v1682
        %v1684 = vpop.f32.mrf.mxu0
        %1685 = vdwg.mxu0
        %v1686 = vadd.f32 %v1505, %v1683
        %v1687 = vld [vmem:[%s15] sm:$0x1]
        %v1689 = vperm.slane %v1687, 0
        %v1691 = vadd.f32 %v1686, %v1689
        %v1692 = vadd.f32 %v958, %v1691
        %1693 = vst.msk [vmem:[%s653] sm:$0xff] %vm721, %v1692
        %v1694 = vld [vmem:[%s680] sm:$0xff]
        %s1695 = sld [smem:[#allocation2]]
        %v1696 = vstv %s1695
        %v1697 = vmul.f32 %v1696, %v1692
        %v1698 = vadd.f32 %v1694, %v1697
        %1699 = vst.msk [vmem:[%s687] sm:$0xff] %vm721, %v1698
        %s1700 = sand.u32 %s454, 1
        %s1701 = scalar_lea.sflag [#allocation4], %s1700
        %s1702 = sand.u32 %s454, 1
        %s1703 = smul.addr %s1702, 8
        %s1704 = scalar_lea.vmem [#allocation3], %s1703
        %p1705 = scmp.lt.s32.totalorder %s39, 1
        %s1706 = scalar_select %p1705, %s39, 1
        %p1707 = scmp.lt.s32.totalorder %s40, 0
        %s1708 = scalar_select %p1707, %s40, 0
        %s1709 = sadd.s32 %s1708, %s1706
        %s1710 = smul.addr %s1709, 8
        %s1711 = scalar_lea.vmem %s19, %s1710
        // Predicated region
        $region93: #{multi_scale_operator_forward.7} parent=91 // pred_check
          %p1712 = pneg %p464
        $region94: #{multi_scale_operator_forward.7} parent=91 // pred_check_branch
          %1714 = sbr.rel (%p1712) target = $region96
        $region95: #{multi_scale_operator_forward.7} parent=91 // pred_region
          %1716 = vsyncadd %s1701, 0
          %s1717 = sadd.s32 %s40, %s39
          %s1718 = smul.addr %s1717, 8
          %s1719 = scalar_lea.hbm %s18, %s1718
          %s1721 = sshll.u32 %s1704, 4
          %s1722 = int_to_ptr.vmem [resolvable:$true] %s1721
          %s1723 = sshll.u32 %s1719, 4
          %s1724 = int_to_ptr.hbm [resolvable:$true] %s1723
          %1726 = dma.vmem_to_hbm [thread:$0]  %s1722, 128, %s1724, %s1701
        $region96: #{multi_scale_operator_forward.7} parent=91 // pred_fallthru
          _
        // Predicated region
        $region97: #{multi_scale_operator_forward.7} parent=91 // pred_check
          %p1727 = pneg %p492
        $region98: #{multi_scale_operator_forward.7} parent=91 // pred_check_branch
          %1729 = sbr.rel (%p1727) target = $region100
        $region99: #{multi_scale_operator_forward.7} parent=91 // pred_region
          _
        $region100: #{multi_scale_operator_forward.7} parent=91 // pred_fallthru
          _
      $region92: #{multi_scale_operator_forward.7} parent=5 // pred_fallthru
        _
      %p1730 = scmp.le.s32.totalorder 2, %s30
      // Predicated region
      $region101: #{multi_scale_operator_forward.7} parent=5 // pred_check
        %p1731 = pneg %p1730
      $region102: #{multi_scale_operator_forward.7} parent=5 // pred_check_branch
        %1733 = sbr.rel (%p1731) target = $region104
      $region103: #{multi_scale_operator_forward.7} parent=5 // pred_region
        %s1734 = ssub.s32 %s30, 2
        // Predicated region
        $region105: #{multi_scale_operator_forward.7} parent=103 // pred_check
          %p1735 = pneg %p470
        $region106: #{multi_scale_operator_forward.7} parent=103 // pred_check_branch
          %1737 = sbr.rel (%p1735) target = $region108
        $region107: #{multi_scale_operator_forward.7} parent=103 // pred_region
          %s1738 = sand.u32 %s455, 1
          %s1739 = scalar_lea.sflag [#allocation4], %s1738
          %s1740 = sand.u32 %s455, 1
          %s1741 = smul.addr %s1740, 8
          %s1742 = scalar_lea.vmem [#allocation3], %s1741
          %1744 = dma.done %s1739, 128
        $region108: #{multi_scale_operator_forward.7} parent=103 // pred_fallthru
          _
        // Predicated region
        $region109: #{multi_scale_operator_forward.7} parent=103 // pred_check
          %p1745 = pneg %p498
        $region110: #{multi_scale_operator_forward.7} parent=103 // pred_check_branch
          %1747 = sbr.rel (%p1745) target = $region112
        $region111: #{multi_scale_operator_forward.7} parent=103 // pred_region
          %p1748 = scmp.lt.s32.totalorder %s41, 1
          %s1749 = scalar_select %p1748, %s41, 1
          %p1750 = scmp.lt.s32.totalorder %s42, 0
          %s1751 = scalar_select %p1750, %s42, 0
          %s1752 = sadd.s32 %s1751, %s1749
          %s1753 = smul.addr %s1752, 8
          %s1754 = scalar_lea.vmem %s19, %s1753
        $region112: #{multi_scale_operator_forward.7} parent=103 // pred_fallthru
          _
      $region104: #{multi_scale_operator_forward.7} parent=5 // pred_fallthru
        _
    $region6: #{multi_scale_operator_forward.7} parent=1 // loop_footer
      %s34 = sadd.s32 1, %s30
    $region7: #{multi_scale_operator_forward.7} parent=1 // loop_footer_branch
      %29 = sbr.rel target = $region3
    $region8: #{multi_scale_operator_forward.7} parent=1 // loop_exit
      _
    %1755 = vsyncpa [#allocation4], 1
    %s1756 = scalar_lea.sflag [#allocation4], 1
    %1757 = vsyncpa %s1756, 1

// kernel: multi_scale_operator_forward.5
$region0: #{multi_scale_operator_forward.5}
  #allocation0 [shape = 'u32[]', space=smem, size = 0x4, offset = 0x4, fixed_abs, tag = 'smem constant byte address 0x4 - core index']
  #allocation1 [shape = 'u32[72,128]{1,0:T(1,128)}', space=vmem, size = 0x9000, scoped, tag = 'internal scratch']
  #allocation2 [shape = 'f32[1]{0:T(128)S(6)}', space=smem, size = 0x200, scoped, tag = 'scoped memory for multi_scale_operator_forward.5']
  %s0 = inlined_call_operand.vmem [shape: f32[2,8,32], index: 0, kind: input, shape index: {}]
  %s1 = inlined_call_operand.vmem [shape: bf16[32,64], index: 1, kind: input, shape index: {}]
  %s2 = inlined_call_operand.vmem [shape: f32[1,64], index: 2, kind: input, shape index: {}]
  %s3 = inlined_call_operand.vmem [shape: f32[1,64], index: 3, kind: input, shape index: {}]
  %s4 = inlined_call_operand.vmem [shape: f32[1,64], index: 4, kind: input, shape index: {}]
  %s5 = inlined_call_operand.vmem [shape: bf16[64,32], index: 5, kind: input, shape index: {}]
  %s6 = inlined_call_operand.vmem [shape: f32[1,32], index: 6, kind: input, shape index: {}]
  %s7 = inlined_call_operand.vmem [shape: f32[2,8,32], index: 7, kind: input, shape index: {}]
  %s8 = inlined_call_operand.vmem [shape: bf16[4,32,8], index: 8, kind: input, shape index: {}]
  %s9 = inlined_call_operand.vmem [shape: f32[4,1,8], index: 9, kind: input, shape index: {}]
  %s10 = inlined_call_operand.vmem [shape: bf16[4,32,8], index: 10, kind: input, shape index: {}]
  %s11 = inlined_call_operand.vmem [shape: f32[4,1,8], index: 11, kind: input, shape index: {}]
  %s12 = inlined_call_operand.vmem [shape: bf16[4,32,8], index: 12, kind: input, shape index: {}]
  %s13 = inlined_call_operand.vmem [shape: f32[4,1,8], index: 13, kind: input, shape index: {}]
  %s14 = inlined_call_operand.vmem [shape: bf16[4,8,32], index: 14, kind: input, shape index: {}]
  %s15 = inlined_call_operand.vmem [shape: f32[1,32], index: 15, kind: input, shape index: {}]
  %s16 = inlined_call_operand.<no memory space> [shape: f32[1], index: 16, kind: input, shape index: {}]
  %s17 = inlined_call_operand.vmem [shape: f32[2,8,32], index: 17, kind: input, shape index: {}, may-alias: {17,19}]
  %s18 = inlined_call_operand.vmem [shape: f32[2,8,32], index: 18, kind: output, shape index: {0}]
  %s19 = inlined_call_operand.vmem [shape: f32[2,8,32], index: 19, kind: output, shape index: {1}, may-alias: {17,19}]
  %20 = xla_tuple %s18, %s19
  %s21 = sld [smem:[#allocation0]]
  $region113: #{multi_scale_operator_forward.5} parent=0
    _
  %s23 = ssub.s32 1, %s21
  %s24 = scalar_select 0, %s23, %s21
  %25 = sst [smem:[#allocation2]] %s16
  loop: start=0, step=1, limit=4
  $region2: #{multi_scale_operator_forward.5} parent=0 // loop_pre_header
    _
  $region3: #{multi_scale_operator_forward.5} parent=0 // loop_header
    %s27 = sphi 0, %s31
    %p28 = scmp.ge.s32.totalorder %s27, 4
    %s34 = sphi 0, %s46
    %s35 = sphi 0, %s42
    %s36 = sphi 0, %s34
    %s37 = sphi 0, %s35
    %s38 = sphi 0, %s36
    %s39 = sphi 0, %s37
    %s51 = sphi 0, %s53
    %s54 = sphi 0, %s51
    %s55 = sphi 0, %s54
    %s71 = sphi 0, %s55
    %s75 = sphi 0, %s75
    %s77 = sphi 0, %s75
    %s78 = sphi 0, %s77
    %s92 = sphi 0, %s78
    %s96 = sphi 0, %s96
    %s98 = sphi 0, %s96
    %s99 = sphi 0, %s98
    %s113 = sphi 0, %s99
    %s117 = sphi 0, %s117
    %s119 = sphi 0, %s117
    %s120 = sphi 0, %s119
    %s134 = sphi 0, %s120
    %s138 = sphi 0, %s138
    %s140 = sphi 0, %s138
    %s141 = sphi 0, %s140
    %s155 = sphi 0, %s141
    %s159 = sphi 0, %s159
    %s161 = sphi 0, %s159
    %s162 = sphi 0, %s161
    %s176 = sphi 0, %s162
    %s180 = sphi 0, %s180
    %s182 = sphi 0, %s180
    %s183 = sphi 0, %s182
    %s197 = sphi 0, %s183
    %s203 = sphi 0, %s205
    %s206 = sphi 0, %s203
    %s207 = sphi 0, %s206
    %s223 = sphi 0, %s207
    %s227 = sphi 0, %s227
    %s229 = sphi 0, %s227
    %s230 = sphi 0, %s229
    %s244 = sphi 0, %s230
    %s248 = sphi 0, %s248
    %s250 = sphi 0, %s248
    %s251 = sphi 0, %s250
    %s265 = sphi 0, %s251
    %s269 = sphi 0, %s269
    %s271 = sphi 0, %s269
    %s272 = sphi 0, %s271
    %s286 = sphi 0, %s272
    %s290 = sphi 0, %s290
    %s292 = sphi 0, %s290
    %s293 = sphi 0, %s292
    %s307 = sphi 0, %s293
    %s311 = sphi 0, %s311
    %s313 = sphi 0, %s311
    %s314 = sphi 0, %s313
    %s328 = sphi 0, %s314
    %s332 = sphi 0, %s332
    %s334 = sphi 0, %s332
    %s335 = sphi 0, %s334
    %s349 = sphi 0, %s335
    %s353 = sphi 0, %s353
    %s355 = sphi 0, %s353
    %s356 = sphi 0, %s355
    %s370 = sphi 0, %s356
    %s374 = sphi 0, %s374
    %s376 = sphi 0, %s374
    %s377 = sphi 0, %s376
    %s391 = sphi 0, %s377
    %s395 = sphi 0, %s395
    %s397 = sphi 0, %s395
    %s398 = sphi 0, %s397
    %s412 = sphi 0, %s398
    %s420 = sphi 0, %s422
    %s423 = sphi 0, %s420
    %s424 = sphi 0, %s423
    %s440 = sphi 0, %s424
    %s448 = sphi 0, %s450
    %s451 = sphi 0, %s448
    %s452 = sphi 0, %s451
    %s468 = sphi 0, %s452
    %s476 = sphi 0, %s478
    %s479 = sphi 0, %s476
    %s480 = sphi 0, %s479
    %s496 = sphi 0, %s480
  $region4: #{multi_scale_operator_forward.5} parent=0 // loop_header_branch
    %30 = sbr.rel (%p28) target = $region8
  $region5: #{multi_scale_operator_forward.5} parent=0 // loop_body
    %s32 = ssub.s32 %s27, 1
    %s33 = ssub.s32 %s27, 2
    %s40 = sadd.s32 1, %s35
    %p41 = scmp.ge.s32.totalorder %s40, 1
    %s42 = scalar_select %p41, 0, %s40
    %s43 = sadd.s32 1, %s34
    %s44 = scalar_select %p41, %s43, %s34
    %p45 = scmp.ge.s32.totalorder %s44, 2
    %s46 = scalar_select %p45, 0, %s44
    %s47 = ssub.s32 %s34, %s46
    %s48 = ssub.s32 %s35, %s42
    %s49 = sor.u32 %s47, %s48
    %p50 = scmp.eq.s32.totalorder %s49, 0
    %s52 = sadd.s32 %s51, 1
    %s53 = scalar_select %p50, %s51, %s52
    %p56 = pneg %p50
    %p57 = scmp.eq.s32.totalorder %s27, 1
    %p58 = por %p56, %p57
    %p59 = scmp.ne.s32.totalorder %s51, %s54
    %p60 = scmp.eq.s32.totalorder %s27, 0
    %p61 = por %p59, %p60
    %p62 = scmp.ne.s32.totalorder %s51, %s54
    %p63 = scmp.eq.s32.totalorder %s32, 1
    %p64 = por %p62, %p63
    %p65 = scmp.ne.s32.totalorder %s54, %s55
    %p66 = scmp.eq.s32.totalorder %s32, 0
    %p67 = por %p65, %p66
    %p68 = scmp.ne.s32.totalorder %s54, %s55
    %p69 = scmp.eq.s32.totalorder %s33, 1
    %p70 = por %p68, %p69
    %p72 = scmp.ne.s32.totalorder %s55, %s71
    %p73 = scmp.eq.s32.totalorder %s33, 0
    %p74 = por %p72, %p73
    %s76 = sadd.s32 %s75, 1
    %p79 = scmp.eq.s32.totalorder %s27, 1
    %p80 = scmp.ne.s32.totalorder %s75, %s77
    %p81 = scmp.eq.s32.totalorder %s27, 0
    %p82 = por %p80, %p81
    %p83 = scmp.ne.s32.totalorder %s75, %s77
    %p84 = scmp.eq.s32.totalorder %s32, 1
    %p85 = por %p83, %p84
    %p86 = scmp.ne.s32.totalorder %s77, %s78
    %p87 = scmp.eq.s32.totalorder %s32, 0
    %p88 = por %p86, %p87
    %p89 = scmp.ne.s32.totalorder %s77, %s78
    %p90 = scmp.eq.s32.totalorder %s33, 1
    %p91 = por %p89, %p90
    %p93 = scmp.ne.s32.totalorder %s78, %s92
    %p94 = scmp.eq.s32.totalorder %s33, 0
    %p95 = por %p93, %p94
    %s97 = sadd.s32 %s96, 1
    %p100 = scmp.eq.s32.totalorder %s27, 1
    %p101 = scmp.ne.s32.totalorder %s96, %s98
    %p102 = scmp.eq.s32.totalorder %s27, 0
    %p103 = por %p101, %p102
    %p104 = scmp.ne.s32.totalorder %s96, %s98
    %p105 = scmp.eq.s32.totalorder %s32, 1
    %p106 = por %p104, %p105
    %p107 = scmp.ne.s32.totalorder %s98, %s99
    %p108 = scmp.eq.s32.totalorder %s32, 0
    %p109 = por %p107, %p108
    %p110 = scmp.ne.s32.totalorder %s98, %s99
    %p111 = scmp.eq.s32.totalorder %s33, 1
    %p112 = por %p110, %p111
    %p114 = scmp.ne.s32.totalorder %s99, %s113
    %p115 = scmp.eq.s32.totalorder %s33, 0
    %p116 = por %p114, %p115
    %s118 = sadd.s32 %s117, 1
    %p121 = scmp.eq.s32.totalorder %s27, 1
    %p122 = scmp.ne.s32.totalorder %s117, %s119
    %p123 = scmp.eq.s32.totalorder %s27, 0
    %p124 = por %p122, %p123
    %p125 = scmp.ne.s32.totalorder %s117, %s119
    %p126 = scmp.eq.s32.totalorder %s32, 1
    %p127 = por %p125, %p126
    %p128 = scmp.ne.s32.totalorder %s119, %s120
    %p129 = scmp.eq.s32.totalorder %s32, 0
    %p130 = por %p128, %p129
    %p131 = scmp.ne.s32.totalorder %s119, %s120
    %p132 = scmp.eq.s32.totalorder %s33, 1
    %p133 = por %p131, %p132
    %p135 = scmp.ne.s32.totalorder %s120, %s134
    %p136 = scmp.eq.s32.totalorder %s33, 0
    %p137 = por %p135, %p136
    %s139 = sadd.s32 %s138, 1
    %p142 = scmp.eq.s32.totalorder %s27, 1
    %p143 = scmp.ne.s32.totalorder %s138, %s140
    %p144 = scmp.eq.s32.totalorder %s27, 0
    %p145 = por %p143, %p144
    %p146 = scmp.ne.s32.totalorder %s138, %s140
    %p147 = scmp.eq.s32.totalorder %s32, 1
    %p148 = por %p146, %p147
    %p149 = scmp.ne.s32.totalorder %s140, %s141
    %p150 = scmp.eq.s32.totalorder %s32, 0
    %p151 = por %p149, %p150
    %p152 = scmp.ne.s32.totalorder %s140, %s141
    %p153 = scmp.eq.s32.totalorder %s33, 1
    %p154 = por %p152, %p153
    %p156 = scmp.ne.s32.totalorder %s141, %s155
    %p157 = scmp.eq.s32.totalorder %s33, 0
    %p158 = por %p156, %p157
    %s160 = sadd.s32 %s159, 1
    %p163 = scmp.eq.s32.totalorder %s27, 1
    %p164 = scmp.ne.s32.totalorder %s159, %s161
    %p165 = scmp.eq.s32.totalorder %s27, 0
    %p166 = por %p164, %p165
    %p167 = scmp.ne.s32.totalorder %s159, %s161
    %p168 = scmp.eq.s32.totalorder %s32, 1
    %p169 = por %p167, %p168
    %p170 = scmp.ne.s32.totalorder %s161, %s162
    %p171 = scmp.eq.s32.totalorder %s32, 0
    %p172 = por %p170, %p171
    %p173 = scmp.ne.s32.totalorder %s161, %s162
    %p174 = scmp.eq.s32.totalorder %s33, 1
    %p175 = por %p173, %p174
    %p177 = scmp.ne.s32.totalorder %s162, %s176
    %p178 = scmp.eq.s32.totalorder %s33, 0
    %p179 = por %p177, %p178
    %s181 = sadd.s32 %s180, 1
    %p184 = scmp.eq.s32.totalorder %s27, 1
    %p185 = scmp.ne.s32.totalorder %s180, %s182
    %p186 = scmp.eq.s32.totalorder %s27, 0
    %p187 = por %p185, %p186
    %p188 = scmp.ne.s32.totalorder %s180, %s182
    %p189 = scmp.eq.s32.totalorder %s32, 1
    %p190 = por %p188, %p189
    %p191 = scmp.ne.s32.totalorder %s182, %s183
    %p192 = scmp.eq.s32.totalorder %s32, 0
    %p193 = por %p191, %p192
    %p194 = scmp.ne.s32.totalorder %s182, %s183
    %p195 = scmp.eq.s32.totalorder %s33, 1
    %p196 = por %p194, %p195
    %p198 = scmp.ne.s32.totalorder %s183, %s197
    %p199 = scmp.eq.s32.totalorder %s33, 0
    %p200 = por %p198, %p199
    %s201 = ssub.s32 %s34, %s46
    %p202 = scmp.eq.s32.totalorder %s201, 0
    %s204 = sadd.s32 %s203, 1
    %s205 = scalar_select %p202, %s203, %s204
    %p208 = pneg %p202
    %p209 = scmp.eq.s32.totalorder %s27, 1
    %p210 = por %p208, %p209
    %p211 = scmp.ne.s32.totalorder %s203, %s206
    %p212 = scmp.eq.s32.totalorder %s27, 0
    %p213 = por %p211, %p212
    %p214 = scmp.ne.s32.totalorder %s203, %s206
    %p215 = scmp.eq.s32.totalorder %s32, 1
    %p216 = por %p214, %p215
    %p217 = scmp.ne.s32.totalorder %s206, %s207
    %p218 = scmp.eq.s32.totalorder %s32, 0
    %p219 = por %p217, %p218
    %p220 = scmp.ne.s32.totalorder %s206, %s207
    %p221 = scmp.eq.s32.totalorder %s33, 1
    %p222 = por %p220, %p221
    %p224 = scmp.ne.s32.totalorder %s207, %s223
    %p225 = scmp.eq.s32.totalorder %s33, 0
    %p226 = por %p224, %p225
    %s228 = sadd.s32 %s227, 1
    %p231 = scmp.eq.s32.totalorder %s27, 1
    %p232 = scmp.ne.s32.totalorder %s227, %s229
    %p233 = scmp.eq.s32.totalorder %s27, 0
    %p234 = por %p232, %p233
    %p235 = scmp.ne.s32.totalorder %s227, %s229
    %p236 = scmp.eq.s32.totalorder %s32, 1
    %p237 = por %p235, %p236
    %p238 = scmp.ne.s32.totalorder %s229, %s230
    %p239 = scmp.eq.s32.totalorder %s32, 0
    %p240 = por %p238, %p239
    %p241 = scmp.ne.s32.totalorder %s229, %s230
    %p242 = scmp.eq.s32.totalorder %s33, 1
    %p243 = por %p241, %p242
    %p245 = scmp.ne.s32.totalorder %s230, %s244
    %p246 = scmp.eq.s32.totalorder %s33, 0
    %p247 = por %p245, %p246
    %s249 = sadd.s32 %s248, 1
    %p252 = scmp.eq.s32.totalorder %s27, 1
    %p253 = scmp.ne.s32.totalorder %s248, %s250
    %p254 = scmp.eq.s32.totalorder %s27, 0
    %p255 = por %p253, %p254
    %p256 = scmp.ne.s32.totalorder %s248, %s250
    %p257 = scmp.eq.s32.totalorder %s32, 1
    %p258 = por %p256, %p257
    %p259 = scmp.ne.s32.totalorder %s250, %s251
    %p260 = scmp.eq.s32.totalorder %s32, 0
    %p261 = por %p259, %p260
    %p262 = scmp.ne.s32.totalorder %s250, %s251
    %p263 = scmp.eq.s32.totalorder %s33, 1
    %p264 = por %p262, %p263
    %p266 = scmp.ne.s32.totalorder %s251, %s265
    %p267 = scmp.eq.s32.totalorder %s33, 0
    %p268 = por %p266, %p267
    %s270 = sadd.s32 %s269, 1
    %p273 = scmp.eq.s32.totalorder %s27, 1
    %p274 = scmp.ne.s32.totalorder %s269, %s271
    %p275 = scmp.eq.s32.totalorder %s27, 0
    %p276 = por %p274, %p275
    %p277 = scmp.ne.s32.totalorder %s269, %s271
    %p278 = scmp.eq.s32.totalorder %s32, 1
    %p279 = por %p277, %p278
    %p280 = scmp.ne.s32.totalorder %s271, %s272
    %p281 = scmp.eq.s32.totalorder %s32, 0
    %p282 = por %p280, %p281
    %p283 = scmp.ne.s32.totalorder %s271, %s272
    %p284 = scmp.eq.s32.totalorder %s33, 1
    %p285 = por %p283, %p284
    %p287 = scmp.ne.s32.totalorder %s272, %s286
    %p288 = scmp.eq.s32.totalorder %s33, 0
    %p289 = por %p287, %p288
    %s291 = sadd.s32 %s290, 1
    %p294 = scmp.eq.s32.totalorder %s27, 1
    %p295 = scmp.ne.s32.totalorder %s290, %s292
    %p296 = scmp.eq.s32.totalorder %s27, 0
    %p297 = por %p295, %p296
    %p298 = scmp.ne.s32.totalorder %s290, %s292
    %p299 = scmp.eq.s32.totalorder %s32, 1
    %p300 = por %p298, %p299
    %p301 = scmp.ne.s32.totalorder %s292, %s293
    %p302 = scmp.eq.s32.totalorder %s32, 0
    %p303 = por %p301, %p302
    %p304 = scmp.ne.s32.totalorder %s292, %s293
    %p305 = scmp.eq.s32.totalorder %s33, 1
    %p306 = por %p304, %p305
    %p308 = scmp.ne.s32.totalorder %s293, %s307
    %p309 = scmp.eq.s32.totalorder %s33, 0
    %p310 = por %p308, %p309
    %s312 = sadd.s32 %s311, 1
    %p315 = scmp.eq.s32.totalorder %s27, 1
    %p316 = scmp.ne.s32.totalorder %s311, %s313
    %p317 = scmp.eq.s32.totalorder %s27, 0
    %p318 = por %p316, %p317
    %p319 = scmp.ne.s32.totalorder %s311, %s313
    %p320 = scmp.eq.s32.totalorder %s32, 1
    %p321 = por %p319, %p320
    %p322 = scmp.ne.s32.totalorder %s313, %s314
    %p323 = scmp.eq.s32.totalorder %s32, 0
    %p324 = por %p322, %p323
    %p325 = scmp.ne.s32.totalorder %s313, %s314
    %p326 = scmp.eq.s32.totalorder %s33, 1
    %p327 = por %p325, %p326
    %p329 = scmp.ne.s32.totalorder %s314, %s328
    %p330 = scmp.eq.s32.totalorder %s33, 0
    %p331 = por %p329, %p330
    %s333 = sadd.s32 %s332, 1
    %p336 = scmp.eq.s32.totalorder %s27, 1
    %p337 = scmp.ne.s32.totalorder %s332, %s334
    %p338 = scmp.eq.s32.totalorder %s27, 0
    %p339 = por %p337, %p338
    %p340 = scmp.ne.s32.totalorder %s332, %s334
    %p341 = scmp.eq.s32.totalorder %s32, 1
    %p342 = por %p340, %p341
    %p343 = scmp.ne.s32.totalorder %s334, %s335
    %p344 = scmp.eq.s32.totalorder %s32, 0
    %p345 = por %p343, %p344
    %p346 = scmp.ne.s32.totalorder %s334, %s335
    %p347 = scmp.eq.s32.totalorder %s33, 1
    %p348 = por %p346, %p347
    %p350 = scmp.ne.s32.totalorder %s335, %s349
    %p351 = scmp.eq.s32.totalorder %s33, 0
    %p352 = por %p350, %p351
    %s354 = sadd.s32 %s353, 1
    %p357 = scmp.eq.s32.totalorder %s27, 1
    %p358 = scmp.ne.s32.totalorder %s353, %s355
    %p359 = scmp.eq.s32.totalorder %s27, 0
    %p360 = por %p358, %p359
    %p361 = scmp.ne.s32.totalorder %s353, %s355
    %p362 = scmp.eq.s32.totalorder %s32, 1
    %p363 = por %p361, %p362
    %p364 = scmp.ne.s32.totalorder %s355, %s356
    %p365 = scmp.eq.s32.totalorder %s32, 0
    %p366 = por %p364, %p365
    %p367 = scmp.ne.s32.totalorder %s355, %s356
    %p368 = scmp.eq.s32.totalorder %s33, 1
    %p369 = por %p367, %p368
    %p371 = scmp.ne.s32.totalorder %s356, %s370
    %p372 = scmp.eq.s32.totalorder %s33, 0
    %p373 = por %p371, %p372
    %s375 = sadd.s32 %s374, 1
    %p378 = scmp.eq.s32.totalorder %s27, 1
    %p379 = scmp.ne.s32.totalorder %s374, %s376
    %p380 = scmp.eq.s32.totalorder %s27, 0
    %p381 = por %p379, %p380
    %p382 = scmp.ne.s32.totalorder %s374, %s376
    %p383 = scmp.eq.s32.totalorder %s32, 1
    %p384 = por %p382, %p383
    %p385 = scmp.ne.s32.totalorder %s376, %s377
    %p386 = scmp.eq.s32.totalorder %s32, 0
    %p387 = por %p385, %p386
    %p388 = scmp.ne.s32.totalorder %s376, %s377
    %p389 = scmp.eq.s32.totalorder %s33, 1
    %p390 = por %p388, %p389
    %p392 = scmp.ne.s32.totalorder %s377, %s391
    %p393 = scmp.eq.s32.totalorder %s33, 0
    %p394 = por %p392, %p393
    %s396 = sadd.s32 %s395, 1
    %p399 = scmp.eq.s32.totalorder %s27, 1
    %p400 = scmp.ne.s32.totalorder %s395, %s397
    %p401 = scmp.eq.s32.totalorder %s27, 0
    %p402 = por %p400, %p401
    %p403 = scmp.ne.s32.totalorder %s395, %s397
    %p404 = scmp.eq.s32.totalorder %s32, 1
    %p405 = por %p403, %p404
    %p406 = scmp.ne.s32.totalorder %s397, %s398
    %p407 = scmp.eq.s32.totalorder %s32, 0
    %p408 = por %p406, %p407
    %p409 = scmp.ne.s32.totalorder %s397, %s398
    %p410 = scmp.eq.s32.totalorder %s33, 1
    %p411 = por %p409, %p410
    %p413 = scmp.ne.s32.totalorder %s398, %s412
    %p414 = scmp.eq.s32.totalorder %s33, 0
    %p415 = por %p413, %p414
    %s416 = ssub.s32 %s34, %s46
    %s417 = ssub.s32 %s35, %s42
    %s418 = sor.u32 %s416, %s417
    %p419 = scmp.eq.s32.totalorder %s418, 0
    %s421 = sadd.s32 %s420, 1
    %s422 = scalar_select %p419, %s420, %s421
    %p425 = pneg %p419
    %p426 = scmp.eq.s32.totalorder %s27, 1
    %p427 = por %p425, %p426
    %p428 = scmp.ne.s32.totalorder %s420, %s423
    %p429 = scmp.eq.s32.totalorder %s27, 0
    %p430 = por %p428, %p429
    %p431 = scmp.ne.s32.totalorder %s420, %s423
    %p432 = scmp.eq.s32.totalorder %s32, 1
    %p433 = por %p431, %p432
    %p434 = scmp.ne.s32.totalorder %s423, %s424
    %p435 = scmp.eq.s32.totalorder %s32, 0
    %p436 = por %p434, %p435
    %p437 = scmp.ne.s32.totalorder %s423, %s424
    %p438 = scmp.eq.s32.totalorder %s33, 1
    %p439 = por %p437, %p438
    %p441 = scmp.ne.s32.totalorder %s424, %s440
    %p442 = scmp.eq.s32.totalorder %s33, 0
    %p443 = por %p441, %p442
    %s444 = ssub.s32 %s34, %s46
    %s445 = ssub.s32 %s35, %s42
    %s446 = sor.u32 %s444, %s445
    %p447 = scmp.eq.s32.totalorder %s446, 0
    %s449 = sadd.s32 %s448, 1
    %s450 = scalar_select %p447, %s448, %s449
    %p453 = pneg %p447
    %p454 = scmp.eq.s32.totalorder %s27, 1
    %p455 = por %p453, %p454
    %p456 = scmp.ne.s32.totalorder %s448, %s451
    %p457 = scmp.eq.s32.totalorder %s27, 0
    %p458 = por %p456, %p457
    %p459 = scmp.ne.s32.totalorder %s448, %s451
    %p460 = scmp.eq.s32.totalorder %s32, 1
    %p461 = por %p459, %p460
    %p462 = scmp.ne.s32.totalorder %s451, %s452
    %p463 = scmp.eq.s32.totalorder %s32, 0
    %p464 = por %p462, %p463
    %p465 = scmp.ne.s32.totalorder %s451, %s452
    %p466 = scmp.eq.s32.totalorder %s33, 1
    %p467 = por %p465, %p466
    %p469 = scmp.ne.s32.totalorder %s452, %s468
    %p470 = scmp.eq.s32.totalorder %s33, 0
    %p471 = por %p469, %p470
    %s472 = ssub.s32 %s34, %s46
    %s473 = ssub.s32 %s35, %s42
    %s474 = sor.u32 %s472, %s473
    %p475 = scmp.eq.s32.totalorder %s474, 0
    %s477 = sadd.s32 %s476, 1
    %s478 = scalar_select %p475, %s476, %s477
    %p481 = pneg %p475
    %p482 = scmp.eq.s32.totalorder %s27, 1
    %p483 = por %p481, %p482
    %p484 = scmp.ne.s32.totalorder %s476, %s479
    %p485 = scmp.eq.s32.totalorder %s27, 0
    %p486 = por %p484, %p485
    %p487 = scmp.ne.s32.totalorder %s476, %s479
    %p488 = scmp.eq.s32.totalorder %s32, 1
    %p489 = por %p487, %p488
    %p490 = scmp.ne.s32.totalorder %s479, %s480
    %p491 = scmp.eq.s32.totalorder %s32, 0
    %p492 = por %p490, %p491
    %p493 = scmp.ne.s32.totalorder %s479, %s480
    %p494 = scmp.eq.s32.totalorder %s33, 1
    %p495 = por %p493, %p494
    %p497 = scmp.ne.s32.totalorder %s480, %s496
    %p498 = scmp.eq.s32.totalorder %s33, 0
    %p499 = por %p497, %p498
    %p500 = scmp.le.s32.totalorder 1, %s27
    %p501 = scmp.lt.s32.totalorder %s27, 3
    %p502 = pnand %p500, %p501
    %p503 = pneg %p502
    // Predicated region
    $region9: #{multi_scale_operator_forward.5} parent=5 // pred_check
      _
    $region10: #{multi_scale_operator_forward.5} parent=5 // pred_check_branch
      %505 = sbr.rel (%p502) target = $region12
    $region11: #{multi_scale_operator_forward.5} parent=5 // pred_region
      %s506 = ssub.s32 %s27, 1
      // Predicated region
      $region13: #{multi_scale_operator_forward.5} parent=11 // pred_check
        %p507 = pneg %p88
      $region14: #{multi_scale_operator_forward.5} parent=11 // pred_check_branch
        %509 = sbr.rel (%p507) target = $region16
      $region15: #{multi_scale_operator_forward.5} parent=11 // pred_region
        _
      $region16: #{multi_scale_operator_forward.5} parent=11 // pred_fallthru
        _
      // Predicated region
      $region17: #{multi_scale_operator_forward.5} parent=11 // pred_check
        %p510 = pneg %p109
      $region18: #{multi_scale_operator_forward.5} parent=11 // pred_check_branch
        %512 = sbr.rel (%p510) target = $region20
      $region19: #{multi_scale_operator_forward.5} parent=11 // pred_region
        _
      $region20: #{multi_scale_operator_forward.5} parent=11 // pred_fallthru
        _
      // Predicated region
      $region21: #{multi_scale_operator_forward.5} parent=11 // pred_check
        %p513 = pneg %p130
      $region22: #{multi_scale_operator_forward.5} parent=11 // pred_check_branch
        %515 = sbr.rel (%p513) target = $region24
      $region23: #{multi_scale_operator_forward.5} parent=11 // pred_region
        _
      $region24: #{multi_scale_operator_forward.5} parent=11 // pred_fallthru
        _
      // Predicated region
      $region25: #{multi_scale_operator_forward.5} parent=11 // pred_check
        %p516 = pneg %p151
      $region26: #{multi_scale_operator_forward.5} parent=11 // pred_check_branch
        %518 = sbr.rel (%p516) target = $region28
      $region27: #{multi_scale_operator_forward.5} parent=11 // pred_region
        _
      $region28: #{multi_scale_operator_forward.5} parent=11 // pred_fallthru
        _
      // Predicated region
      $region29: #{multi_scale_operator_forward.5} parent=11 // pred_check
        %p519 = pneg %p172
      $region30: #{multi_scale_operator_forward.5} parent=11 // pred_check_branch
        %521 = sbr.rel (%p519) target = $region32
      $region31: #{multi_scale_operator_forward.5} parent=11 // pred_region
        _
      $region32: #{multi_scale_operator_forward.5} parent=11 // pred_fallthru
        _
      // Predicated region
      $region33: #{multi_scale_operator_forward.5} parent=11 // pred_check
        %p522 = pneg %p193
      $region34: #{multi_scale_operator_forward.5} parent=11 // pred_check_branch
        %524 = sbr.rel (%p522) target = $region36
      $region35: #{multi_scale_operator_forward.5} parent=11 // pred_region
        _
      $region36: #{multi_scale_operator_forward.5} parent=11 // pred_fallthru
        _
      // Predicated region
      $region37: #{multi_scale_operator_forward.5} parent=11 // pred_check
        %p525 = pneg %p240
      $region38: #{multi_scale_operator_forward.5} parent=11 // pred_check_branch
        %527 = sbr.rel (%p525) target = $region40
      $region39: #{multi_scale_operator_forward.5} parent=11 // pred_region
        _
      $region40: #{multi_scale_operator_forward.5} parent=11 // pred_fallthru
        _
      // Predicated region
      $region41: #{multi_scale_operator_forward.5} parent=11 // pred_check
        %p528 = pneg %p261
      $region42: #{multi_scale_operator_forward.5} parent=11 // pred_check_branch
        %530 = sbr.rel (%p528) target = $region44
      $region43: #{multi_scale_operator_forward.5} parent=11 // pred_region
        _
      $region44: #{multi_scale_operator_forward.5} parent=11 // pred_fallthru
        _
      // Predicated region
      $region45: #{multi_scale_operator_forward.5} parent=11 // pred_check
        %p531 = pneg %p282
      $region46: #{multi_scale_operator_forward.5} parent=11 // pred_check_branch
        %533 = sbr.rel (%p531) target = $region48
      $region47: #{multi_scale_operator_forward.5} parent=11 // pred_region
        _
      $region48: #{multi_scale_operator_forward.5} parent=11 // pred_fallthru
        _
      // Predicated region
      $region49: #{multi_scale_operator_forward.5} parent=11 // pred_check
        %p534 = pneg %p303
      $region50: #{multi_scale_operator_forward.5} parent=11 // pred_check_branch
        %536 = sbr.rel (%p534) target = $region52
      $region51: #{multi_scale_operator_forward.5} parent=11 // pred_region
        _
      $region52: #{multi_scale_operator_forward.5} parent=11 // pred_fallthru
        _
      // Predicated region
      $region53: #{multi_scale_operator_forward.5} parent=11 // pred_check
        %p537 = pneg %p324
      $region54: #{multi_scale_operator_forward.5} parent=11 // pred_check_branch
        %539 = sbr.rel (%p537) target = $region56
      $region55: #{multi_scale_operator_forward.5} parent=11 // pred_region
        _
      $region56: #{multi_scale_operator_forward.5} parent=11 // pred_fallthru
        _
      // Predicated region
      $region57: #{multi_scale_operator_forward.5} parent=11 // pred_check
        %p540 = pneg %p345
      $region58: #{multi_scale_operator_forward.5} parent=11 // pred_check_branch
        %542 = sbr.rel (%p540) target = $region60
      $region59: #{multi_scale_operator_forward.5} parent=11 // pred_region
        _
      $region60: #{multi_scale_operator_forward.5} parent=11 // pred_fallthru
        _
      // Predicated region
      $region61: #{multi_scale_operator_forward.5} parent=11 // pred_check
        %p543 = pneg %p366
      $region62: #{multi_scale_operator_forward.5} parent=11 // pred_check_branch
        %545 = sbr.rel (%p543) target = $region64
      $region63: #{multi_scale_operator_forward.5} parent=11 // pred_region
        _
      $region64: #{multi_scale_operator_forward.5} parent=11 // pred_fallthru
        _
      // Predicated region
      $region65: #{multi_scale_operator_forward.5} parent=11 // pred_check
        %p546 = pneg %p387
      $region66: #{multi_scale_operator_forward.5} parent=11 // pred_check_branch
        %548 = sbr.rel (%p546) target = $region68
      $region67: #{multi_scale_operator_forward.5} parent=11 // pred_region
        _
      $region68: #{multi_scale_operator_forward.5} parent=11 // pred_fallthru
        _
      // Predicated region
      $region69: #{multi_scale_operator_forward.5} parent=11 // pred_check
        %p549 = pneg %p408
      $region70: #{multi_scale_operator_forward.5} parent=11 // pred_check_branch
        %551 = sbr.rel (%p549) target = $region72
      $region71: #{multi_scale_operator_forward.5} parent=11 // pred_region
        _
      $region72: #{multi_scale_operator_forward.5} parent=11 // pred_fallthru
        _
    $region12: #{multi_scale_operator_forward.5} parent=5 // pred_fallthru
      _
    %p552 = scmp.lt.s32.totalorder %s27, 2
    // Predicated region
    $region73: #{multi_scale_operator_forward.5} parent=5 // pred_check
      %p553 = pneg %p552
    $region74: #{multi_scale_operator_forward.5} parent=5 // pred_check_branch
      %555 = sbr.rel (%p553) target = $region76
    $region75: #{multi_scale_operator_forward.5} parent=5 // pred_region
      // Predicated region
      $region77: #{multi_scale_operator_forward.5} parent=75 // pred_check
        %p556 = pneg %p61
      $region78: #{multi_scale_operator_forward.5} parent=75 // pred_check_branch
        %558 = sbr.rel (%p556) target = $region80
      $region79: #{multi_scale_operator_forward.5} parent=75 // pred_region
        %p559 = scmp.lt.s32.totalorder %s34, 1
        %s560 = scalar_select %p559, %s34, 1
        %p561 = scmp.lt.s32.totalorder %s35, 0
        %s562 = scalar_select %p561, %s35, 0
        %s563 = sadd.s32 %s562, %s560
        %s564 = smul.addr %s563, 8
        %s565 = scalar_lea.vmem %s0, %s564
      $region80: #{multi_scale_operator_forward.5} parent=75 // pred_fallthru
        _
      // Predicated region
      $region81: #{multi_scale_operator_forward.5} parent=75 // pred_check
        %p566 = pneg %p213
      $region82: #{multi_scale_operator_forward.5} parent=75 // pred_check_branch
        %568 = sbr.rel (%p566) target = $region84
      $region83: #{multi_scale_operator_forward.5} parent=75 // pred_region
        %p569 = scmp.lt.s32.totalorder %s34, 1
        %s570 = scalar_select %p569, %s34, 1
        %s571 = smul.addr %s570, 8
        %s572 = scalar_lea.vmem %s7, %s571
      $region84: #{multi_scale_operator_forward.5} parent=75 // pred_fallthru
        _
      // Predicated region
      $region85: #{multi_scale_operator_forward.5} parent=75 // pred_check
        %p573 = pneg %p430
      $region86: #{multi_scale_operator_forward.5} parent=75 // pred_check_branch
        %575 = sbr.rel (%p573) target = $region88
      $region87: #{multi_scale_operator_forward.5} parent=75 // pred_region
        %p576 = scmp.lt.s32.totalorder %s34, 1
        %s577 = scalar_select %p576, %s34, 1
        %p578 = scmp.lt.s32.totalorder %s35, 0
        %s579 = scalar_select %p578, %s35, 0
        %s580 = sadd.s32 %s579, %s577
        %s581 = smul.addr %s580, 8
        %s582 = scalar_lea.vmem %s17, %s581
      $region88: #{multi_scale_operator_forward.5} parent=75 // pred_fallthru
        _
    $region76: #{multi_scale_operator_forward.5} parent=5 // pred_fallthru
      _
    %p583 = scmp.le.s32.totalorder 1, %s27
    %p584 = scmp.lt.s32.totalorder %s27, 3
    %p585 = pnand %p583, %p584
    %p586 = pneg %p585
    // Predicated region
    $region89: #{multi_scale_operator_forward.5} parent=5 // pred_check
      _
    $region90: #{multi_scale_operator_forward.5} parent=5 // pred_check_branch
      %588 = sbr.rel (%p585) target = $region92
    $region91: #{multi_scale_operator_forward.5} parent=5 // pred_region
      %s589 = ssub.s32 %s27, 1
      %p590 = scmp.lt.s32.totalorder %s36, 1
      %s591 = scalar_select %p590, %s36, 1
      %p592 = scmp.lt.s32.totalorder %s37, 0
      %s593 = scalar_select %p592, %s37, 0
      %s594 = sadd.s32 %s593, %s591
      %s595 = smul.addr %s594, 8
      %s596 = scalar_lea.vmem %s0, %s595
      %p597 = pneg %p67
      %p598 = pneg %p64
      %p599 = pneg %p88
      %p600 = pneg %p85
      %p601 = pneg %p109
      %p602 = pneg %p106
      %p603 = pneg %p130
      %p604 = pneg %p127
      %p605 = pneg %p151
      %p606 = pneg %p148
      %p607 = pneg %p172
      %p608 = pneg %p169
      %p609 = pneg %p193
      %p610 = pneg %p190
      %p611 = scmp.lt.s32.totalorder %s36, 1
      %s612 = scalar_select %p611, %s36, 1
      %s613 = smul.addr %s612, 8
      %s614 = scalar_lea.vmem %s7, %s613
      %p615 = pneg %p219
      %p616 = pneg %p216
      %p617 = pneg %p240
      %p618 = pneg %p237
      %p619 = pneg %p261
      %p620 = pneg %p258
      %p621 = pneg %p282
      %p622 = pneg %p279
      %p623 = pneg %p303
      %p624 = pneg %p300
      %p625 = pneg %p324
      %p626 = pneg %p321
      %p627 = pneg %p345
      %p628 = pneg %p342
      %p629 = pneg %p366
      %p630 = pneg %p363
      %p631 = pneg %p387
      %p632 = pneg %p384
      %p633 = pneg %p408
      %p634 = pneg %p405
      %p635 = scmp.lt.s32.totalorder %s36, 1
      %s636 = scalar_select %p635, %s36, 1
      %p637 = scmp.lt.s32.totalorder %s37, 0
      %s638 = scalar_select %p637, %s37, 0
      %s639 = sadd.s32 %s638, %s636
      %s640 = smul.addr %s639, 8
      %s641 = scalar_lea.vmem %s17, %s640
      %p642 = pneg %p436
      %p643 = pneg %p433
      %p644 = pneg %p464
      %p645 = pneg %p461
      %p646 = scmp.lt.s32.totalorder %s36, 1
      %s647 = scalar_select %p646, %s36, 1
      %p648 = scmp.lt.s32.totalorder %s37, 0
      %s649 = scalar_select %p648, %s37, 0
      %s650 = sadd.s32 %s649, %s647
      %s651 = smul.addr %s650, 8
      %s652 = scalar_lea.vmem %s18, %s651
      %p653 = pneg %p492
      %p654 = pneg %p489
      %p655 = scmp.lt.s32.totalorder %s36, 1
      %s656 = scalar_select %p655, %s36, 1
      %p657 = scmp.lt.s32.totalorder %s37, 0
      %s658 = scalar_select %p657, %s37, 0
      %s659 = sadd.s32 %s658, %s656
      %s660 = smul.addr %s659, 8
      %s661 = scalar_lea.vmem %s19, %s660
      %p662 = scmp.lt.s32.totalorder %s36, 1
      %s663 = scalar_select %p662, %s36, 1
      %p664 = scmp.lt.s32.totalorder %s37, 0
      %s665 = scalar_select %p664, %s37, 0
      %s666 = sadd.s32 %s665, %s663
      %s667 = smul.addr %s666, 8
      %s668 = scalar_lea.vmem %s0, %s667
      %p669 = scmp.lt.s32.totalorder %s36, 1
      %s670 = scalar_select %p669, %s36, 1
      %s671 = smul.addr %s670, 8
      %s672 = scalar_lea.vmem %s7, %s671
      %p673 = scmp.lt.s32.totalorder %s36, 1
      %s674 = scalar_select %p673, %s36, 1
      %p675 = scmp.lt.s32.totalorder %s37, 0
      %s676 = scalar_select %p675, %s37, 0
      %s677 = sadd.s32 %s676, %s674
      %s678 = smul.addr %s677, 8
      %s679 = scalar_lea.vmem %s17, %s678
      %p680 = scmp.lt.s32.totalorder %s36, 1
      %s681 = scalar_select %p680, %s36, 1
      %p682 = scmp.lt.s32.totalorder %s37, 0
      %s683 = scalar_select %p682, %s37, 0
      %s684 = sadd.s32 %s683, %s681
      %s685 = smul.addr %s684, 8
      %s686 = scalar_lea.vmem %s18, %s685
      %p687 = scmp.lt.s32.totalorder %s36, 1
      %s688 = scalar_select %p687, %s36, 1
      %p689 = scmp.lt.s32.totalorder %s37, 0
      %s690 = scalar_select %p689, %s37, 0
      %s691 = sadd.s32 %s690, %s688
      %s692 = smul.addr %s691, 8
      %s693 = scalar_lea.vmem %s19, %s692
      %v695 = vld [vmem:[%s668] sm:$0xff]
      %v696 = vpack.c.bf16 %v695, %v695
      %v697 = vld [vmem:[%s1] sm:$0xf]
      %v698 = vld [vmem:[%s1 + $0x4] sm:$0xf]
      %v699 = vld [vmem:[%s1 + $0x8] sm:$0xf]
      %v700 = vld [vmem:[%s1 + $0xc] sm:$0xf]
      %v701 = vld [vmem:[%s2] sm:$0x1]
      %v703 = vperm.slane %v701, 0
      %v709 = vunpack.c.l.b16 %v697
      %v710 = vunpack.c.l.b16 %v698
      %v711 = vunpack.c.l.b16 %v699
      %v712 = vunpack.c.l.b16 %v700
      %v713 = vpack.c.b16 %v710, %v709
      %v714 = vpack.c.b16 %v712, %v711
      %vm717 = vcmask 261120
      %v719 = vsel %vm717, %v696, 0
      %721 = vmatpush.bf16.msra.mxu0 0
      %722 = vmatpush.bf16.msra.mxu0 0
      %723 = vmatpush.bf16.msra.mxu0 0
      %724 = vmatpush.bf16.msra.mxu0 0
      %725 = vmatpush.bf16.msra.mxu0 0
      %726 = vmatpush.bf16.msra.mxu0 0
      %727 = vmatpush.bf16.msra.mxu0 %v714
      %728 = vmatpush.bf16.msra.mxu0 %v713
      %729 = vmatmul.bf16.gmra.mxu0 %v719
      %v730 = vpop.f32.mrf.mxu0
      %v731 = vadd.f32 %v703, %v730
      %v732 = vpop.f32.mrf.mxu0
      %733 = vdwg.mxu0
      %vm734 = vcmask 523264
      %v735 = vsel %vm734, %v731, 0.0
      %736 = vadd.xlane.f32.xlu0 %v735
      %v737 = vpop.xlane.xlu0 %736
      %v738 = vrcp.pop 64.0
      %v739 = vmul.f32 64.0, %v738
      %v740 = vsub.f32 1.0, %v739
      %v741 = vmul.f32 %v738, %v740
      %v742 = vadd.f32 %v738, %v741
      %vm743 = vweird.f32 %v738
      %v744 = vsel %vm743, %v738, %v742
      %v745 = vmul.f32 %v737, %v744
      %v746 = vsub.f32 %v731, %v745
      %v747 = vmul.f32 %v746, %v746
      %v748 = vsel %vm734, %v747, 0.0
      %749 = vadd.xlane.f32.xlu0 %v748
      %v750 = vpop.xlane.xlu0 %749
      %v751 = vmul.f32 %v750, %v744
      %v752 = vadd.f32 %v751, 1e-05
      %v753 = vrsqrt.pop %v752
      %v754 = vmul.f32 %v753, %v752
      %v755 = vmul.f32 %v754, %v753
      %v756 = vmul.f32 0.5, %v755
      %v757 = vsub.f32 1.5, %v756
      %v758 = vmul.f32 %v753, %v757
      %vm759 = vweird.f32 %v752
      %vm760 = vweird.f32 %v753
      %vm761 = vmor %vm759, %vm760
      %v762 = vsel %vm761, %v753, %v758
      %v763 = vmul.f32 %v746, %v762
      %v764 = vld [vmem:[%s3] sm:$0x1]
      %v766 = vperm.slane %v764, 0
      %v768 = vmul.f32 %v763, %v766
      %v769 = vld [vmem:[%s4] sm:$0x1]
      %v771 = vperm.slane %v769, 0
      %v773 = vadd.f32 %v768, %v771
      %v774 = vmax.f32 %v773, 0.0
      %v775 = vpack.c.bf16 %v774, %v774
      %v776 = vld [vmem:[%s5] sm:$0xf]
      %v777 = vld [vmem:[%s5 + $0x4] sm:$0xf]
      %v778 = vld [vmem:[%s5 + $0x8] sm:$0xf]
      %v779 = vld [vmem:[%s5 + $0xc] sm:$0xf]
      %v780 = vld [vmem:[%s5 + $0x10] sm:$0xf]
      %v781 = vld [vmem:[%s5 + $0x14] sm:$0xf]
      %v782 = vld [vmem:[%s5 + $0x18] sm:$0xf]
      %v783 = vld [vmem:[%s5 + $0x1c] sm:$0xf]
      %v784 = vld [vmem:[%s6] sm:$0x1]
      %v786 = vperm.slane %v784, 0
      %v796 = vunpack.c.l.b16 %v776
      %v797 = vunpack.c.l.b16 %v777
      %v798 = vunpack.c.l.b16 %v778
      %v799 = vunpack.c.l.b16 %v779
      %v800 = vunpack.c.l.b16 %v780
      %v801 = vunpack.c.l.b16 %v781
      %v802 = vunpack.c.l.b16 %v782
      %v803 = vunpack.c.l.b16 %v783
      %v804 = vpack.c.b16 %v797, %v796
      %v805 = vpack.c.b16 %v799, %v798
      %v806 = vpack.c.b16 %v801, %v800
      %v807 = vpack.c.b16 %v803, %v802
      %v813 = vsel %vm734, %v775, 0
      %815 = vmatpush.bf16.msra.mxu0 0
      %816 = vmatpush.bf16.msra.mxu0 0
      %817 = vmatpush.bf16.msra.mxu0 0
      %818 = vmatpush.bf16.msra.mxu0 0
      %819 = vmatpush.bf16.msra.mxu0 %v807
      %820 = vmatpush.bf16.msra.mxu0 %v806
      %821 = vmatpush.bf16.msra.mxu0 %v805
      %822 = vmatpush.bf16.msra.mxu0 %v804
      %823 = vmatmul.bf16.gmra.mxu0 %v813
      %v824 = vpop.f32.mrf.mxu0
      %v825 = vadd.f32 %v786, %v824
      %v826 = vpop.f32.mrf.mxu0
      %827 = vdwg.mxu0
      %v828 = vld [vmem:[%s672] sm:$0xff]
      %v829 = vpack.c.bf16 %v825, %v825
      %v830 = vpack.c.bf16 %v828, %v828
      %v831 = vld [vmem:[%s8] sm:$0xf]
      %v832 = vld [vmem:[%s8 + $0x4] sm:$0xf]
      %v833 = vld [vmem:[%s8 + $0x8] sm:$0xf]
      %v834 = vld [vmem:[%s8 + $0xc] sm:$0xf]
      %v835 = vld [vmem:[%s9] sm:$0x1]
      %v837 = vperm.slane %v835, 0
      %v843 = vunpack.c.l.b16 %v831
      %v844 = vunpack.c.l.b16 %v832
      %v845 = vunpack.c.l.b16 %v833
      %v846 = vunpack.c.l.b16 %v834
      %v847 = vpack.c.b16 %v844, %v843
      %v848 = vpack.c.b16 %v846, %v845
      %v852 = vsel %vm717, %v829, 0
      %854 = vmatpush.bf16.msra.mxu0 0
      %855 = vmatpush.bf16.msra.mxu0 0
      %856 = vmatpush.bf16.msra.mxu0 0
      %857 = vmatpush.bf16.msra.mxu0 0
      %858 = vmatpush.bf16.msra.mxu0 0
      %859 = vmatpush.bf16.msra.mxu0 0
      %860 = vmatpush.bf16.msra.mxu0 %v848
      %861 = vmatpush.bf16.msra.mxu0 %v847
      %862 = vmatmul.bf16.gmra.mxu0 %v852
      %v863 = vpop.f32.mrf.mxu0
      %v864 = vadd.f32 %v837, %v863
      %v865 = vpop.f32.mrf.mxu0
      %866 = vdwg.mxu0
      %v867 = vld [vmem:[%s10] sm:$0xf]
      %v868 = vld [vmem:[%s10 + $0x4] sm:$0xf]
      %v869 = vld [vmem:[%s10 + $0x8] sm:$0xf]
      %v870 = vld [vmem:[%s10 + $0xc] sm:$0xf]
      %v871 = vld [vmem:[%s11] sm:$0x1]
      %v873 = vperm.slane %v871, 0
      %v879 = vunpack.c.l.b16 %v867
      %v880 = vunpack.c.l.b16 %v868
      %v881 = vunpack.c.l.b16 %v869
      %v882 = vunpack.c.l.b16 %v870
      %v883 = vpack.c.b16 %v880, %v879
      %v884 = vpack.c.b16 %v882, %v881
      %v888 = vsel %vm717, %v830, 0
      %890 = vmatpush.bf16.msra.mxu0 0
      %891 = vmatpush.bf16.msra.mxu0 0
      %892 = vmatpush.bf16.msra.mxu0 0
      %893 = vmatpush.bf16.msra.mxu0 0
      %894 = vmatpush.bf16.msra.mxu0 0
      %895 = vmatpush.bf16.msra.mxu0 0
      %896 = vmatpush.bf16.msra.mxu0 %v884
      %897 = vmatpush.bf16.msra.mxu0 %v883
      %898 = vmatmul.bf16.gmra.mxu0 %v888
      %v899 = vpop.f32.mrf.mxu0
      %v900 = vadd.f32 %v873, %v899
      %v901 = vpop.f32.mrf.mxu0
      %902 = vdwg.mxu0
      %v903 = vld [vmem:[%s12] sm:$0xf]
      %v904 = vld [vmem:[%s12 + $0x4] sm:$0xf]
      %v905 = vld [vmem:[%s12 + $0x8] sm:$0xf]
      %v906 = vld [vmem:[%s12 + $0xc] sm:$0xf]
      %v907 = vld [vmem:[%s13] sm:$0x1]
      %v909 = vperm.slane %v907, 0
      %v915 = vunpack.c.l.b16 %v903
      %v916 = vunpack.c.l.b16 %v904
      %v917 = vunpack.c.l.b16 %v905
      %v918 = vunpack.c.l.b16 %v906
      %v919 = vpack.c.b16 %v916, %v915
      %v920 = vpack.c.b16 %v918, %v917
      %923 = vmatpush.bf16.msra.mxu0 0
      %924 = vmatpush.bf16.msra.mxu0 0
      %925 = vmatpush.bf16.msra.mxu0 0
      %926 = vmatpush.bf16.msra.mxu0 0
      %927 = vmatpush.bf16.msra.mxu0 0
      %928 = vmatpush.bf16.msra.mxu0 0
      %929 = vmatpush.bf16.msra.mxu0 %v920
      %930 = vmatpush.bf16.msra.mxu0 %v919
      %931 = vmatmul.bf16.gmra.mxu0 %v888
      %v932 = vpop.f32.mrf.mxu0
      %v933 = vadd.f32 %v909, %v932
      %v934 = vpop.f32.mrf.mxu0
      %935 = vdwg.mxu0
      %v936 = vpack.c.bf16 %v864, %v864
      %v937 = vpack.c.bf16 %v900, %v900
      %vm938 = vcmask 64512
      %v940 = vsel %vm938, %v936, 0
      %v943 = vsel %vm938, %v937, 0
      %945 = vmatpush.bf16.xpose.msra.mxu0 0
      %946 = vmatpush.bf16.xpose.msra.mxu0 0
      %947 = vmatpush.bf16.xpose.msra.mxu0 0
      %948 = vmatpush.bf16.xpose.msra.mxu0 0
      %949 = vmatpush.bf16.xpose.msra.mxu0 0
      %950 = vmatpush.bf16.xpose.msra.mxu0 0
      %951 = vmatpush.bf16.xpose.msra.mxu0 0
      %952 = vmatpush.bf16.xpose.msra.mxu0 %v943
      %953 = vmatmul.bf16.gmra.mxu0 %v940
      %v954 = vpop.f32.mrf.mxu0
      %v955 = vadd.f32 0.0, %v954
      %v956 = vpop.f32.mrf.mxu0
      %957 = vdwg.mxu0
      %v958 = vsel %vm938, %v955, -inf
      %959 = vmax.xlane.f32.xlu0 %v958
      %v960 = vpop.xlane.xlu0 %959
      %v961 = vsub.f32 %v955, %v960
      %v962 = vmul.f32 %v961, 1.442695
      %v963 = vpow.pop %v962
      %v964 = vsel %vm938, %v963, 0.0
      %965 = vadd.xlane.f32.xlu0 %v964
      %v966 = vpop.xlane.xlu0 %965
      %v967 = vrcp.pop %v966
      %v968 = vmul.f32 %v963, %v967
      %v969 = vpack.c.bf16 %v968, %v968
      %v970 = vpack.c.bf16 %v933, %v933
      %v972 = vsel %vm938, %v969, 0
      %vm974 = vcmask 1043456
      %v976 = vsel %vm974, %v970, 0
      %978 = vmatpush.bf16.msra.mxu0 0
      %979 = vmatpush.bf16.msra.mxu0 0
      %980 = vmatpush.bf16.msra.mxu0 0
      %981 = vmatpush.bf16.msra.mxu0 0
      %982 = vmatpush.bf16.msra.mxu0 0
      %983 = vmatpush.bf16.msra.mxu0 0
      %984 = vmatpush.bf16.msra.mxu0 0
      %985 = vmatpush.bf16.msra.mxu0 %v976
      %986 = vmatmul.bf16.gmra.mxu0 %v972
      %v987 = vpop.f32.mrf.mxu0
      %v988 = vadd.f32 0.0, %v987
      %v989 = vpop.f32.mrf.mxu0
      %990 = vdwg.mxu0
      %v991 = vpack.c.bf16 %v988, %v988
      %v992 = vld [vmem:[%s14] sm:$0xf]
      %s993 = scalar_lea.vmem %s8, 16
      %v994 = vld [vmem:[%s993] sm:$0xf]
      %v995 = vld [vmem:[%s993 + $0x4] sm:$0xf]
      %v996 = vld [vmem:[%s993 + $0x8] sm:$0xf]
      %v997 = vld [vmem:[%s993 + $0xc] sm:$0xf]
      %s998 = scalar_lea.vmem %s9, 1
      %v999 = vld [vmem:[%s998] sm:$0x1]
      %v1001 = vperm.slane %v999, 0
      %v1007 = vunpack.c.l.b16 %v994
      %v1008 = vunpack.c.l.b16 %v995
      %v1009 = vunpack.c.l.b16 %v996
      %v1010 = vunpack.c.l.b16 %v997
      %v1011 = vpack.c.b16 %v1008, %v1007
      %v1012 = vpack.c.b16 %v1010, %v1009
      %1015 = vmatpush.bf16.msra.mxu0 0
      %1016 = vmatpush.bf16.msra.mxu0 0
      %1017 = vmatpush.bf16.msra.mxu0 0
      %1018 = vmatpush.bf16.msra.mxu0 0
      %1019 = vmatpush.bf16.msra.mxu0 0
      %1020 = vmatpush.bf16.msra.mxu0 0
      %1021 = vmatpush.bf16.msra.mxu0 %v1012
      %1022 = vmatpush.bf16.msra.mxu0 %v1011
      %1023 = vmatmul.bf16.gmra.mxu0 %v852
      %v1024 = vpop.f32.mrf.mxu0
      %v1025 = vadd.f32 %v1001, %v1024
      %v1026 = vpop.f32.mrf.mxu0
      %1027 = vdwg.mxu0
      %s1028 = scalar_lea.vmem %s10, 16
      %v1029 = vld [vmem:[%s1028] sm:$0xf]
      %v1030 = vld [vmem:[%s1028 + $0x4] sm:$0xf]
      %v1031 = vld [vmem:[%s1028 + $0x8] sm:$0xf]
      %v1032 = vld [vmem:[%s1028 + $0xc] sm:$0xf]
      %s1033 = scalar_lea.vmem %s11, 1
      %v1034 = vld [vmem:[%s1033] sm:$0x1]
      %v1036 = vperm.slane %v1034, 0
      %v1042 = vunpack.c.l.b16 %v1029
      %v1043 = vunpack.c.l.b16 %v1030
      %v1044 = vunpack.c.l.b16 %v1031
      %v1045 = vunpack.c.l.b16 %v1032
      %v1046 = vpack.c.b16 %v1043, %v1042
      %v1047 = vpack.c.b16 %v1045, %v1044
      %1050 = vmatpush.bf16.msra.mxu0 0
      %1051 = vmatpush.bf16.msra.mxu0 0
      %1052 = vmatpush.bf16.msra.mxu0 0
      %1053 = vmatpush.bf16.msra.mxu0 0
      %1054 = vmatpush.bf16.msra.mxu0 0
      %1055 = vmatpush.bf16.msra.mxu0 0
      %1056 = vmatpush.bf16.msra.mxu0 %v1047
      %1057 = vmatpush.bf16.msra.mxu0 %v1046
      %1058 = vmatmul.bf16.gmra.mxu0 %v888
      %v1059 = vpop.f32.mrf.mxu0
      %v1060 = vadd.f32 %v1036, %v1059
      %v1061 = vpop.f32.mrf.mxu0
      %1062 = vdwg.mxu0
      %s1063 = scalar_lea.vmem %s12, 16
      %v1064 = vld [vmem:[%s1063] sm:$0xf]
      %v1065 = vld [vmem:[%s1063 + $0x4] sm:$0xf]
      %v1066 = vld [vmem:[%s1063 + $0x8] sm:$0xf]
      %v1067 = vld [vmem:[%s1063 + $0xc] sm:$0xf]
      %s1068 = scalar_lea.vmem %s13, 1
      %v1069 = vld [vmem:[%s1068] sm:$0x1]
      %v1071 = vperm.slane %v1069, 0
      %v1077 = vunpack.c.l.b16 %v1064
      %v1078 = vunpack.c.l.b16 %v1065
      %v1079 = vunpack.c.l.b16 %v1066
      %v1080 = vunpack.c.l.b16 %v1067
      %v1081 = vpack.c.b16 %v1078, %v1077
      %v1082 = vpack.c.b16 %v1080, %v1079
      %1085 = vmatpush.bf16.msra.mxu0 0
      %1086 = vmatpush.bf16.msra.mxu0 0
      %1087 = vmatpush.bf16.msra.mxu0 0
      %1088 = vmatpush.bf16.msra.mxu0 0
      %1089 = vmatpush.bf16.msra.mxu0 0
      %1090 = vmatpush.bf16.msra.mxu0 0
      %1091 = vmatpush.bf16.msra.mxu0 %v1082
      %1092 = vmatpush.bf16.msra.mxu0 %v1081
      %1093 = vmatmul.bf16.gmra.mxu0 %v888
      %v1094 = vpop.f32.mrf.mxu0
      %v1095 = vadd.f32 %v1071, %v1094
      %v1096 = vpop.f32.mrf.mxu0
      %1097 = vdwg.mxu0
      %v1098 = vpack.c.bf16 %v1025, %v1025
      %v1099 = vpack.c.bf16 %v1060, %v1060
      %v1101 = vsel %vm938, %v1098, 0
      %v1104 = vsel %vm938, %v1099, 0
      %1106 = vmatpush.bf16.xpose.msra.mxu0 0
      %1107 = vmatpush.bf16.xpose.msra.mxu0 0
      %1108 = vmatpush.bf16.xpose.msra.mxu0 0
      %1109 = vmatpush.bf16.xpose.msra.mxu0 0
      %1110 = vmatpush.bf16.xpose.msra.mxu0 0
      %1111 = vmatpush.bf16.xpose.msra.mxu0 0
      %1112 = vmatpush.bf16.xpose.msra.mxu0 0
      %1113 = vmatpush.bf16.xpose.msra.mxu0 %v1104
      %1114 = vmatmul.bf16.gmra.mxu0 %v1101
      %v1115 = vpop.f32.mrf.mxu0
      %v1116 = vadd.f32 0.0, %v1115
      %v1117 = vpop.f32.mrf.mxu0
      %1118 = vdwg.mxu0
      %v1119 = vsel %vm938, %v1116, -inf
      %1120 = vmax.xlane.f32.xlu0 %v1119
      %v1121 = vpop.xlane.xlu0 %1120
      %v1122 = vsub.f32 %v1116, %v1121
      %v1123 = vmul.f32 %v1122, 1.442695
      %v1124 = vpow.pop %v1123
      %v1125 = vsel %vm938, %v1124, 0.0
      %1126 = vadd.xlane.f32.xlu0 %v1125
      %v1127 = vpop.xlane.xlu0 %1126
      %v1128 = vrcp.pop %v1127
      %v1129 = vmul.f32 %v1124, %v1128
      %v1130 = vpack.c.bf16 %v1129, %v1129
      %v1131 = vpack.c.bf16 %v1095, %v1095
      %v1133 = vsel %vm938, %v1130, 0
      %v1136 = vsel %vm974, %v1131, 0
      %1138 = vmatpush.bf16.msra.mxu0 0
      %1139 = vmatpush.bf16.msra.mxu0 0
      %1140 = vmatpush.bf16.msra.mxu0 0
      %1141 = vmatpush.bf16.msra.mxu0 0
      %1142 = vmatpush.bf16.msra.mxu0 0
      %1143 = vmatpush.bf16.msra.mxu0 0
      %1144 = vmatpush.bf16.msra.mxu0 0
      %1145 = vmatpush.bf16.msra.mxu0 %v1136
      %1146 = vmatmul.bf16.gmra.mxu0 %v1133
      %v1147 = vpop.f32.mrf.mxu0
      %v1148 = vadd.f32 0.0, %v1147
      %v1149 = vpop.f32.mrf.mxu0
      %1150 = vdwg.mxu0
      %v1151 = vpack.c.bf16 %v1148, %v1148
      %s1152 = scalar_lea.vmem %s14, 4
      %v1153 = vld [vmem:[%s1152] sm:$0xf]
      %v1155 = vsel %vm938, %v1151, 0
      %v1158 = vsel %vm974, %v1153, 0
      %1160 = vmatpush.bf16.msra.mxu0 0
      %1161 = vmatpush.bf16.msra.mxu0 0
      %1162 = vmatpush.bf16.msra.mxu0 0
      %1163 = vmatpush.bf16.msra.mxu0 0
      %1164 = vmatpush.bf16.msra.mxu0 0
      %1165 = vmatpush.bf16.msra.mxu0 0
      %1166 = vmatpush.bf16.msra.mxu0 0
      %1167 = vmatpush.bf16.msra.mxu0 %v1158
      %1168 = vmatmul.bf16.gmra.mxu0 %v1155
      %v1169 = vpop.f32.mrf.mxu0
      %v1170 = vadd.f32 0.0, %v1169
      %v1171 = vpop.f32.mrf.mxu0
      %1172 = vdwg.mxu0
      %v1174 = vsel %vm938, %v991, 0
      %v1177 = vsel %vm974, %v992, 0
      %1179 = vmatpush.bf16.msra.mxu0 0
      %1180 = vmatpush.bf16.msra.mxu0 0
      %1181 = vmatpush.bf16.msra.mxu0 0
      %1182 = vmatpush.bf16.msra.mxu0 0
      %1183 = vmatpush.bf16.msra.mxu0 0
      %1184 = vmatpush.bf16.msra.mxu0 0
      %1185 = vmatpush.bf16.msra.mxu0 0
      %1186 = vmatpush.bf16.msra.mxu0 %v1177
      %1187 = vmatmul.bf16.gmra.mxu0 %v1174
      %v1188 = vpop.f32.mrf.mxu0
      %v1189 = vadd.f32 %v1170, %v1188
      %v1190 = vpop.f32.mrf.mxu0
      %1191 = vdwg.mxu0
      %s1192 = scalar_lea.vmem %s8, 32
      %v1193 = vld [vmem:[%s1192] sm:$0xf]
      %v1194 = vld [vmem:[%s1192 + $0x4] sm:$0xf]
      %v1195 = vld [vmem:[%s1192 + $0x8] sm:$0xf]
      %v1196 = vld [vmem:[%s1192 + $0xc] sm:$0xf]
      %s1197 = scalar_lea.vmem %s9, 2
      %v1198 = vld [vmem:[%s1197] sm:$0x1]
      %v1200 = vperm.slane %v1198, 0
      %v1206 = vunpack.c.l.b16 %v1193
      %v1207 = vunpack.c.l.b16 %v1194
      %v1208 = vunpack.c.l.b16 %v1195
      %v1209 = vunpack.c.l.b16 %v1196
      %v1210 = vpack.c.b16 %v1207, %v1206
      %v1211 = vpack.c.b16 %v1209, %v1208
      %1214 = vmatpush.bf16.msra.mxu0 0
      %1215 = vmatpush.bf16.msra.mxu0 0
      %1216 = vmatpush.bf16.msra.mxu0 0
      %1217 = vmatpush.bf16.msra.mxu0 0
      %1218 = vmatpush.bf16.msra.mxu0 0
      %1219 = vmatpush.bf16.msra.mxu0 0
      %1220 = vmatpush.bf16.msra.mxu0 %v1211
      %1221 = vmatpush.bf16.msra.mxu0 %v1210
      %1222 = vmatmul.bf16.gmra.mxu0 %v852
      %v1223 = vpop.f32.mrf.mxu0
      %v1224 = vadd.f32 %v1200, %v1223
      %v1225 = vpop.f32.mrf.mxu0
      %1226 = vdwg.mxu0
      %s1227 = scalar_lea.vmem %s10, 32
      %v1228 = vld [vmem:[%s1227] sm:$0xf]
      %v1229 = vld [vmem:[%s1227 + $0x4] sm:$0xf]
      %v1230 = vld [vmem:[%s1227 + $0x8] sm:$0xf]
      %v1231 = vld [vmem:[%s1227 + $0xc] sm:$0xf]
      %s1232 = scalar_lea.vmem %s11, 2
      %v1233 = vld [vmem:[%s1232] sm:$0x1]
      %v1235 = vperm.slane %v1233, 0
      %v1241 = vunpack.c.l.b16 %v1228
      %v1242 = vunpack.c.l.b16 %v1229
      %v1243 = vunpack.c.l.b16 %v1230
      %v1244 = vunpack.c.l.b16 %v1231
      %v1245 = vpack.c.b16 %v1242, %v1241
      %v1246 = vpack.c.b16 %v1244, %v1243
      %1249 = vmatpush.bf16.msra.mxu0 0
      %1250 = vmatpush.bf16.msra.mxu0 0
      %1251 = vmatpush.bf16.msra.mxu0 0
      %1252 = vmatpush.bf16.msra.mxu0 0
      %1253 = vmatpush.bf16.msra.mxu0 0
      %1254 = vmatpush.bf16.msra.mxu0 0
      %1255 = vmatpush.bf16.msra.mxu0 %v1246
      %1256 = vmatpush.bf16.msra.mxu0 %v1245
      %1257 = vmatmul.bf16.gmra.mxu0 %v888
      %v1258 = vpop.f32.mrf.mxu0
      %v1259 = vadd.f32 %v1235, %v1258
      %v1260 = vpop.f32.mrf.mxu0
      %1261 = vdwg.mxu0
      %s1262 = scalar_lea.vmem %s12, 32
      %v1263 = vld [vmem:[%s1262] sm:$0xf]
      %v1264 = vld [vmem:[%s1262 + $0x4] sm:$0xf]
      %v1265 = vld [vmem:[%s1262 + $0x8] sm:$0xf]
      %v1266 = vld [vmem:[%s1262 + $0xc] sm:$0xf]
      %s1267 = scalar_lea.vmem %s13, 2
      %v1268 = vld [vmem:[%s1267] sm:$0x1]
      %v1270 = vperm.slane %v1268, 0
      %v1276 = vunpack.c.l.b16 %v1263
      %v1277 = vunpack.c.l.b16 %v1264
      %v1278 = vunpack.c.l.b16 %v1265
      %v1279 = vunpack.c.l.b16 %v1266
      %v1280 = vpack.c.b16 %v1277, %v1276
      %v1281 = vpack.c.b16 %v1279, %v1278
      %1284 = vmatpush.bf16.msra.mxu0 0
      %1285 = vmatpush.bf16.msra.mxu0 0
      %1286 = vmatpush.bf16.msra.mxu0 0
      %1287 = vmatpush.bf16.msra.mxu0 0
      %1288 = vmatpush.bf16.msra.mxu0 0
      %1289 = vmatpush.bf16.msra.mxu0 0
      %1290 = vmatpush.bf16.msra.mxu0 %v1281
      %1291 = vmatpush.bf16.msra.mxu0 %v1280
      %1292 = vmatmul.bf16.gmra.mxu0 %v888
      %v1293 = vpop.f32.mrf.mxu0
      %v1294 = vadd.f32 %v1270, %v1293
      %v1295 = vpop.f32.mrf.mxu0
      %1296 = vdwg.mxu0
      %v1297 = vpack.c.bf16 %v1224, %v1224
      %v1298 = vpack.c.bf16 %v1259, %v1259
      %v1300 = vsel %vm938, %v1297, 0
      %v1303 = vsel %vm938, %v1298, 0
      %1305 = vmatpush.bf16.xpose.msra.mxu0 0
      %1306 = vmatpush.bf16.xpose.msra.mxu0 0
      %1307 = vmatpush.bf16.xpose.msra.mxu0 0
      %1308 = vmatpush.bf16.xpose.msra.mxu0 0
      %1309 = vmatpush.bf16.xpose.msra.mxu0 0
      %1310 = vmatpush.bf16.xpose.msra.mxu0 0
      %1311 = vmatpush.bf16.xpose.msra.mxu0 0
      %1312 = vmatpush.bf16.xpose.msra.mxu0 %v1303
      %1313 = vmatmul.bf16.gmra.mxu0 %v1300
      %v1314 = vpop.f32.mrf.mxu0
      %v1315 = vadd.f32 0.0, %v1314
      %v1316 = vpop.f32.mrf.mxu0
      %1317 = vdwg.mxu0
      %v1318 = vsel %vm938, %v1315, -inf
      %1319 = vmax.xlane.f32.xlu0 %v1318
      %v1320 = vpop.xlane.xlu0 %1319
      %v1321 = vsub.f32 %v1315, %v1320
      %v1322 = vmul.f32 %v1321, 1.442695
      %v1323 = vpow.pop %v1322
      %v1324 = vsel %vm938, %v1323, 0.0
      %1325 = vadd.xlane.f32.xlu0 %v1324
      %v1326 = vpop.xlane.xlu0 %1325
      %v1327 = vrcp.pop %v1326
      %v1328 = vmul.f32 %v1323, %v1327
      %v1329 = vpack.c.bf16 %v1328, %v1328
      %v1330 = vpack.c.bf16 %v1294, %v1294
      %v1332 = vsel %vm938, %v1329, 0
      %v1335 = vsel %vm974, %v1330, 0
      %1337 = vmatpush.bf16.msra.mxu0 0
      %1338 = vmatpush.bf16.msra.mxu0 0
      %1339 = vmatpush.bf16.msra.mxu0 0
      %1340 = vmatpush.bf16.msra.mxu0 0
      %1341 = vmatpush.bf16.msra.mxu0 0
      %1342 = vmatpush.bf16.msra.mxu0 0
      %1343 = vmatpush.bf16.msra.mxu0 0
      %1344 = vmatpush.bf16.msra.mxu0 %v1335
      %1345 = vmatmul.bf16.gmra.mxu0 %v1332
      %v1346 = vpop.f32.mrf.mxu0
      %v1347 = vadd.f32 0.0, %v1346
      %v1348 = vpop.f32.mrf.mxu0
      %1349 = vdwg.mxu0
      %v1350 = vpack.c.bf16 %v1347, %v1347
      %s1351 = scalar_lea.vmem %s14, 8
      %v1352 = vld [vmem:[%s1351] sm:$0xf]
      %v1354 = vsel %vm938, %v1350, 0
      %v1357 = vsel %vm974, %v1352, 0
      %1359 = vmatpush.bf16.msra.mxu0 0
      %1360 = vmatpush.bf16.msra.mxu0 0
      %1361 = vmatpush.bf16.msra.mxu0 0
      %1362 = vmatpush.bf16.msra.mxu0 0
      %1363 = vmatpush.bf16.msra.mxu0 0
      %1364 = vmatpush.bf16.msra.mxu0 0
      %1365 = vmatpush.bf16.msra.mxu0 0
      %1366 = vmatpush.bf16.msra.mxu0 %v1357
      %1367 = vmatmul.bf16.gmra.mxu0 %v1354
      %v1368 = vpop.f32.mrf.mxu0
      %v1369 = vadd.f32 0.0, %v1368
      %v1370 = vpop.f32.mrf.mxu0
      %1371 = vdwg.mxu0
      %v1372 = vadd.f32 %v1189, %v1369
      %s1373 = scalar_lea.vmem %s8, 48
      %v1374 = vld [vmem:[%s1373] sm:$0xf]
      %v1375 = vld [vmem:[%s1373 + $0x4] sm:$0xf]
      %v1376 = vld [vmem:[%s1373 + $0x8] sm:$0xf]
      %v1377 = vld [vmem:[%s1373 + $0xc] sm:$0xf]
      %s1378 = scalar_lea.vmem %s9, 3
      %v1379 = vld [vmem:[%s1378] sm:$0x1]
      %v1381 = vperm.slane %v1379, 0
      %v1387 = vunpack.c.l.b16 %v1374
      %v1388 = vunpack.c.l.b16 %v1375
      %v1389 = vunpack.c.l.b16 %v1376
      %v1390 = vunpack.c.l.b16 %v1377
      %v1391 = vpack.c.b16 %v1388, %v1387
      %v1392 = vpack.c.b16 %v1390, %v1389
      %1395 = vmatpush.bf16.msra.mxu0 0
      %1396 = vmatpush.bf16.msra.mxu0 0
      %1397 = vmatpush.bf16.msra.mxu0 0
      %1398 = vmatpush.bf16.msra.mxu0 0
      %1399 = vmatpush.bf16.msra.mxu0 0
      %1400 = vmatpush.bf16.msra.mxu0 0
      %1401 = vmatpush.bf16.msra.mxu0 %v1392
      %1402 = vmatpush.bf16.msra.mxu0 %v1391
      %1403 = vmatmul.bf16.gmra.mxu0 %v852
      %v1404 = vpop.f32.mrf.mxu0
      %v1405 = vadd.f32 %v1381, %v1404
      %v1406 = vpop.f32.mrf.mxu0
      %1407 = vdwg.mxu0
      %s1408 = scalar_lea.vmem %s10, 48
      %v1409 = vld [vmem:[%s1408] sm:$0xf]
      %v1410 = vld [vmem:[%s1408 + $0x4] sm:$0xf]
      %v1411 = vld [vmem:[%s1408 + $0x8] sm:$0xf]
      %v1412 = vld [vmem:[%s1408 + $0xc] sm:$0xf]
      %s1413 = scalar_lea.vmem %s11, 3
      %v1414 = vld [vmem:[%s1413] sm:$0x1]
      %v1416 = vperm.slane %v1414, 0
      %v1422 = vunpack.c.l.b16 %v1409
      %v1423 = vunpack.c.l.b16 %v1410
      %v1424 = vunpack.c.l.b16 %v1411
      %v1425 = vunpack.c.l.b16 %v1412
      %v1426 = vpack.c.b16 %v1423, %v1422
      %v1427 = vpack.c.b16 %v1425, %v1424
      %1430 = vmatpush.bf16.msra.mxu0 0
      %1431 = vmatpush.bf16.msra.mxu0 0
      %1432 = vmatpush.bf16.msra.mxu0 0
      %1433 = vmatpush.bf16.msra.mxu0 0
      %1434 = vmatpush.bf16.msra.mxu0 0
      %1435 = vmatpush.bf16.msra.mxu0 0
      %1436 = vmatpush.bf16.msra.mxu0 %v1427
      %1437 = vmatpush.bf16.msra.mxu0 %v1426
      %1438 = vmatmul.bf16.gmra.mxu0 %v888
      %v1439 = vpop.f32.mrf.mxu0
      %v1440 = vadd.f32 %v1416, %v1439
      %v1441 = vpop.f32.mrf.mxu0
      %1442 = vdwg.mxu0
      %s1443 = scalar_lea.vmem %s12, 48
      %v1444 = vld [vmem:[%s1443] sm:$0xf]
      %v1445 = vld [vmem:[%s1443 + $0x4] sm:$0xf]
      %v1446 = vld [vmem:[%s1443 + $0x8] sm:$0xf]
      %v1447 = vld [vmem:[%s1443 + $0xc] sm:$0xf]
      %s1448 = scalar_lea.vmem %s13, 3
      %v1449 = vld [vmem:[%s1448] sm:$0x1]
      %v1451 = vperm.slane %v1449, 0
      %v1457 = vunpack.c.l.b16 %v1444
      %v1458 = vunpack.c.l.b16 %v1445
      %v1459 = vunpack.c.l.b16 %v1446
      %v1460 = vunpack.c.l.b16 %v1447
      %v1461 = vpack.c.b16 %v1458, %v1457
      %v1462 = vpack.c.b16 %v1460, %v1459
      %1465 = vmatpush.bf16.msra.mxu0 0
      %1466 = vmatpush.bf16.msra.mxu0 0
      %1467 = vmatpush.bf16.msra.mxu0 0
      %1468 = vmatpush.bf16.msra.mxu0 0
      %1469 = vmatpush.bf16.msra.mxu0 0
      %1470 = vmatpush.bf16.msra.mxu0 0
      %1471 = vmatpush.bf16.msra.mxu0 %v1462
      %1472 = vmatpush.bf16.msra.mxu0 %v1461
      %1473 = vmatmul.bf16.gmra.mxu0 %v888
      %v1474 = vpop.f32.mrf.mxu0
      %v1475 = vadd.f32 %v1451, %v1474
      %v1476 = vpop.f32.mrf.mxu0
      %1477 = vdwg.mxu0
      %v1478 = vpack.c.bf16 %v1405, %v1405
      %v1479 = vpack.c.bf16 %v1440, %v1440
      %v1481 = vsel %vm938, %v1478, 0
      %v1484 = vsel %vm938, %v1479, 0
      %1486 = vmatpush.bf16.xpose.msra.mxu0 0
      %1487 = vmatpush.bf16.xpose.msra.mxu0 0
      %1488 = vmatpush.bf16.xpose.msra.mxu0 0
      %1489 = vmatpush.bf16.xpose.msra.mxu0 0
      %1490 = vmatpush.bf16.xpose.msra.mxu0 0
      %1491 = vmatpush.bf16.xpose.msra.mxu0 0
      %1492 = vmatpush.bf16.xpose.msra.mxu0 0
      %1493 = vmatpush.bf16.xpose.msra.mxu0 %v1484
      %1494 = vmatmul.bf16.gmra.mxu0 %v1481
      %v1495 = vpop.f32.mrf.mxu0
      %v1496 = vadd.f32 0.0, %v1495
      %v1497 = vpop.f32.mrf.mxu0
      %1498 = vdwg.mxu0
      %v1499 = vsel %vm938, %v1496, -inf
      %1500 = vmax.xlane.f32.xlu0 %v1499
      %v1501 = vpop.xlane.xlu0 %1500
      %v1502 = vsub.f32 %v1496, %v1501
      %v1503 = vmul.f32 %v1502, 1.442695
      %v1504 = vpow.pop %v1503
      %v1505 = vsel %vm938, %v1504, 0.0
      %1506 = vadd.xlane.f32.xlu0 %v1505
      %v1507 = vpop.xlane.xlu0 %1506
      %v1508 = vrcp.pop %v1507
      %v1509 = vmul.f32 %v1504, %v1508
      %v1510 = vpack.c.bf16 %v1509, %v1509
      %v1511 = vpack.c.bf16 %v1475, %v1475
      %v1513 = vsel %vm938, %v1510, 0
      %v1516 = vsel %vm974, %v1511, 0
      %1518 = vmatpush.bf16.msra.mxu0 0
      %1519 = vmatpush.bf16.msra.mxu0 0
      %1520 = vmatpush.bf16.msra.mxu0 0
      %1521 = vmatpush.bf16.msra.mxu0 0
      %1522 = vmatpush.bf16.msra.mxu0 0
      %1523 = vmatpush.bf16.msra.mxu0 0
      %1524 = vmatpush.bf16.msra.mxu0 0
      %1525 = vmatpush.bf16.msra.mxu0 %v1516
      %1526 = vmatmul.bf16.gmra.mxu0 %v1513
      %v1527 = vpop.f32.mrf.mxu0
      %v1528 = vadd.f32 0.0, %v1527
      %v1529 = vpop.f32.mrf.mxu0
      %1530 = vdwg.mxu0
      %v1531 = vpack.c.bf16 %v1528, %v1528
      %s1532 = scalar_lea.vmem %s14, 12
      %v1533 = vld [vmem:[%s1532] sm:$0xf]
      %v1535 = vsel %vm938, %v1531, 0
      %v1538 = vsel %vm974, %v1533, 0
      %1540 = vmatpush.bf16.msra.mxu0 0
      %1541 = vmatpush.bf16.msra.mxu0 0
      %1542 = vmatpush.bf16.msra.mxu0 0
      %1543 = vmatpush.bf16.msra.mxu0 0
      %1544 = vmatpush.bf16.msra.mxu0 0
      %1545 = vmatpush.bf16.msra.mxu0 0
      %1546 = vmatpush.bf16.msra.mxu0 0
      %1547 = vmatpush.bf16.msra.mxu0 %v1538
      %1548 = vmatmul.bf16.gmra.mxu0 %v1535
      %v1549 = vpop.f32.mrf.mxu0
      %v1550 = vadd.f32 0.0, %v1549
      %v1551 = vpop.f32.mrf.mxu0
      %1552 = vdwg.mxu0
      %v1553 = vadd.f32 %v1372, %v1550
      %v1554 = vld [vmem:[%s15] sm:$0x1]
      %v1556 = vperm.slane %v1554, 0
      %v1558 = vadd.f32 %v1553, %v1556
      %v1559 = vadd.f32 %v825, %v1558
      %1560 = vst.msk [vmem:[%s686] sm:$0xff] %vm717, %v1559
      %v1561 = vld [vmem:[%s679] sm:$0xff]
      %s1562 = sld [smem:[#allocation2]]
      %v1563 = vstv %s1562
      %v1564 = vmul.f32 %v1563, %v1559
      %v1565 = vadd.f32 %v1561, %v1564
      %1566 = vst.msk [vmem:[%s693] sm:$0xff] %vm717, %v1565
      %p1567 = scmp.lt.s32.totalorder %s36, 1
      %s1568 = scalar_select %p1567, %s36, 1
      %p1569 = scmp.lt.s32.totalorder %s37, 0
      %s1570 = scalar_select %p1569, %s37, 0
      %s1571 = sadd.s32 %s1570, %s1568
      %s1572 = smul.addr %s1571, 8
      %s1573 = scalar_lea.vmem %s18, %s1572
      %p1574 = scmp.lt.s32.totalorder %s36, 1
      %s1575 = scalar_select %p1574, %s36, 1
      %p1576 = scmp.lt.s32.totalorder %s37, 0
      %s1577 = scalar_select %p1576, %s37, 0
      %s1578 = sadd.s32 %s1577, %s1575
      %s1579 = smul.addr %s1578, 8
      %s1580 = scalar_lea.vmem %s19, %s1579
      // Predicated region
      $region93: #{multi_scale_operator_forward.5} parent=91 // pred_check
        %p1581 = pneg %p461
      $region94: #{multi_scale_operator_forward.5} parent=91 // pred_check_branch
        %1583 = sbr.rel (%p1581) target = $region96
      $region95: #{multi_scale_operator_forward.5} parent=91 // pred_region
        _
      $region96: #{multi_scale_operator_forward.5} parent=91 // pred_fallthru
        _
      // Predicated region
      $region97: #{multi_scale_operator_forward.5} parent=91 // pred_check
        %p1584 = pneg %p489
      $region98: #{multi_scale_operator_forward.5} parent=91 // pred_check_branch
        %1586 = sbr.rel (%p1584) target = $region100
      $region99: #{multi_scale_operator_forward.5} parent=91 // pred_region
        _
      $region100: #{multi_scale_operator_forward.5} parent=91 // pred_fallthru
        _
    $region92: #{multi_scale_operator_forward.5} parent=5 // pred_fallthru
      _
    %p1587 = scmp.le.s32.totalorder 2, %s27
    // Predicated region
    $region101: #{multi_scale_operator_forward.5} parent=5 // pred_check
      %p1588 = pneg %p1587
    $region102: #{multi_scale_operator_forward.5} parent=5 // pred_check_branch
      %1590 = sbr.rel (%p1588) target = $region104
    $region103: #{multi_scale_operator_forward.5} parent=5 // pred_region
      %s1591 = ssub.s32 %s27, 2
      // Predicated region
      $region105: #{multi_scale_operator_forward.5} parent=103 // pred_check
        %p1592 = pneg %p467
      $region106: #{multi_scale_operator_forward.5} parent=103 // pred_check_branch
        %1594 = sbr.rel (%p1592) target = $region108
      $region107: #{multi_scale_operator_forward.5} parent=103 // pred_region
        %p1595 = scmp.lt.s32.totalorder %s38, 1
        %s1596 = scalar_select %p1595, %s38, 1
        %p1597 = scmp.lt.s32.totalorder %s39, 0
        %s1598 = scalar_select %p1597, %s39, 0
        %s1599 = sadd.s32 %s1598, %s1596
        %s1600 = smul.addr %s1599, 8
        %s1601 = scalar_lea.vmem %s18, %s1600
      $region108: #{multi_scale_operator_forward.5} parent=103 // pred_fallthru
        _
      // Predicated region
      $region109: #{multi_scale_operator_forward.5} parent=103 // pred_check
        %p1602 = pneg %p495
      $region110: #{multi_scale_operator_forward.5} parent=103 // pred_check_branch
        %1604 = sbr.rel (%p1602) target = $region112
      $region111: #{multi_scale_operator_forward.5} parent=103 // pred_region
        %p1605 = scmp.lt.s32.totalorder %s38, 1
        %s1606 = scalar_select %p1605, %s38, 1
        %p1607 = scmp.lt.s32.totalorder %s39, 0
        %s1608 = scalar_select %p1607, %s39, 0
        %s1609 = sadd.s32 %s1608, %s1606
        %s1610 = smul.addr %s1609, 8
        %s1611 = scalar_lea.vmem %s19, %s1610
      $region112: #{multi_scale_operator_forward.5} parent=103 // pred_fallthru
        _
    $region104: #{multi_scale_operator_forward.5} parent=5 // pred_fallthru
      _
  $region6: #{multi_scale_operator_forward.5} parent=0 // loop_footer
    %s31 = sadd.s32 1, %s27
  $region7: #{multi_scale_operator_forward.5} parent=0 // loop_footer_branch
    %26 = sbr.rel target = $region3
  $region8: #{multi_scale_operator_forward.5} parent=0 // loop_exit
    _

</llo_original>
